<compile_context>
chip_gen: v7x
topology: tpu7x:2x2x1
jax: 0.10.0
libtpu: 0.0.40
codegen_flags: <defaults>
</compile_context>

<pallas_src>
import math
from functools import partial

import jax
import jax.numpy as jnp
from jax.experimental import pallas as pl
from jax.experimental.pallas import tpu as pltpu

# ---- small, shape-consistent hyper-parameters ------------------------------
D_MODEL   = 32
N_HEAD    = 4
N_HIDDEN  = 64
N_ENC     = 2
N_DEC     = 2
SRC_VOCAB = 13
TGT_VOCAB = 11
SRC_PAD   = 0
TGT_PAD   = 0
LN_EPS    = 1e-5
VOCAB_PAD = 128          # lane-dense padded width for the final projection


def _vmem_spec():
    return pl.BlockSpec(memory_space=pltpu.MemorySpace.VMEM)


# ---------------------------------------------------------------------------
# In-kernel helper math (pure functions on loaded arrays)
# ---------------------------------------------------------------------------
def _ln(x, g, b):
    mean = jnp.mean(x, axis=-1, keepdims=True)
    var = jnp.mean((x - mean) ** 2, axis=-1, keepdims=True)
    return (x - mean) * jax.lax.rsqrt(var + LN_EPS) * g + b


def _mha_2d(q, k, v, bias, B, Sq, Sk, H, dk):
    """Multi-head attention on flattened activations.

    q: (B*Sq, H*dk), k/v: (B*Sk, H*dk), bias: (B, Sq, Sk) additive {0, -1e9}.
    Returns ctx: (B*Sq, H*dk).  Loops over (batch, head) are static / unrolled
    at trace time, so everything lowers to plain 2-D MXU matmuls.
    """
    scale = 1.0 / math.sqrt(dk)
    batch_rows = []
    for b in range(B):
        qb = q[b * Sq:(b + 1) * Sq, :]
        kb = k[b * Sk:(b + 1) * Sk, :]
        vb = v[b * Sk:(b + 1) * Sk, :]
        bb = bias[b]                                   # (Sq, Sk)
        head_ctx = []
        for h in range(H):
            qh = qb[:, h * dk:(h + 1) * dk]            # (Sq, dk)
            kh = kb[:, h * dk:(h + 1) * dk]            # (Sk, dk)
            vh = vb[:, h * dk:(h + 1) * dk]            # (Sk, dk)
            s = jnp.dot(qh, kh.T, preferred_element_type=jnp.float32) * scale + bb
            s = s - jnp.max(s, axis=-1, keepdims=True)
            p = jnp.exp(s)
            p = p * pl.reciprocal(jnp.sum(p, axis=-1, keepdims=True), approx=True)
            head_ctx.append(jnp.dot(p, vh, preferred_element_type=jnp.float32))
        batch_rows.append(jnp.concatenate(head_ctx, axis=-1))   # (Sq, H*dk)
    return jnp.concatenate(batch_rows, axis=0)                   # (B*Sq, H*dk)


# ---------------------------------------------------------------------------
# Fused per-layer Pallas kernels
# ---------------------------------------------------------------------------
def _encoder_layer_kernel(x_ref, bias_ref,
                          wqkv_ref, bqkv_ref, wo_ref, bo_ref,
                          ln1g_ref, ln1b_ref,
                          w1_ref, b1_ref, w2_ref, b2_ref,
                          ln2g_ref, ln2b_ref,
                          o_ref, *, B, S, H, dk):
    D = H * dk
    x = x_ref[...]                                               # (B*S, D)
    # fused QKV projection (one matmul instead of three)
    qkv = jnp.dot(x, wqkv_ref[...], preferred_element_type=jnp.float32) + bqkv_ref[...]
    ctx = _mha_2d(qkv[:, :D], qkv[:, D:2 * D], qkv[:, 2 * D:],
                  bias_ref[...], B, S, S, H, dk)
    attn = jnp.dot(ctx, wo_ref[...], preferred_element_type=jnp.float32) + bo_ref[...]
    x = _ln(x + attn, ln1g_ref[...], ln1b_ref[...])
    h1 = jnp.maximum(jnp.dot(x, w1_ref[...], preferred_element_type=jnp.float32) + b1_ref[...], 0.0)
    ff = jnp.dot(h1, w2_ref[...], preferred_element_type=jnp.float32) + b2_ref[...]
    o_ref[...] = _ln(x + ff, ln2g_ref[...], ln2b_ref[...])


def _decoder_layer_kernel(y_ref, mem_ref, self_bias_ref, cross_bias_ref,
                          s_wqkv_ref, s_bqkv_ref, s_wo_ref, s_bo_ref,
                          ln1g_ref, ln1b_ref,
                          c_wq_ref, c_bq_ref, c_wkv_ref, c_bkv_ref, c_wo_ref, c_bo_ref,
                          ln2g_ref, ln2b_ref,
                          w1_ref, b1_ref, w2_ref, b2_ref,
                          ln3g_ref, ln3b_ref,
                          o_ref, *, B, St, Ss, H, dk):
    D = H * dk
    y = y_ref[...]                                               # (B*St, D)
    mem = mem_ref[...]                                           # (B*Ss, D)

    # --- masked self-attention ---
    qkv = jnp.dot(y, s_wqkv_ref[...], preferred_element_type=jnp.float32) + s_bqkv_ref[...]
    ctx = _mha_2d(qkv[:, :D], qkv[:, D:2 * D], qkv[:, 2 * D:],
                  self_bias_ref[...], B, St, St, H, dk)
    a = jnp.dot(ctx, s_wo_ref[...], preferred_element_type=jnp.float32) + s_bo_ref[...]
    y = _ln(y + a, ln1g_ref[...], ln1b_ref[...])

    # --- cross-attention (Q from decoder, fused KV from encoder memory) ---
    q = jnp.dot(y, c_wq_ref[...], preferred_element_type=jnp.float32) + c_bq_ref[...]
    kv = jnp.dot(mem, c_wkv_ref[...], preferred_element_type=jnp.float32) + c_bkv_ref[...]
    ctx = _mha_2d(q, kv[:, :D], kv[:, D:],
                  cross_bias_ref[...], B, St, Ss, H, dk)
    c = jnp.dot(ctx, c_wo_ref[...], preferred_element_type=jnp.float32) + c_bo_ref[...]
    y = _ln(y + c, ln2g_ref[...], ln2b_ref[...])

    # --- feed-forward ---
    h1 = jnp.maximum(jnp.dot(y, w1_ref[...], preferred_element_type=jnp.float32) + b1_ref[...], 0.0)
    ff = jnp.dot(h1, w2_ref[...], preferred_element_type=jnp.float32) + b2_ref[...]
    o_ref[...] = _ln(y + ff, ln3g_ref[...], ln3b_ref[...])


def _final_proj_kernel(y_ref, w_ref, b_ref, o_ref):
    o_ref[...] = jnp.dot(y_ref[...], w_ref[...],
                         preferred_element_type=jnp.float32) + b_ref[...]


# ---------------------------------------------------------------------------
# Pallas wrappers (one call per layer, no grid, everything VMEM-resident)
# ---------------------------------------------------------------------------
def encoder_layer(x2d, bias, p, B, S):
    args = (x2d, bias, p["wqkv"], p["bqkv"], p["wo"], p["bo"],
            p["ln1_g"], p["ln1_b"], p["w1"], p["b1"], p["w2"], p["b2"],
            p["ln2_g"], p["ln2_b"])
    return pl.pallas_call(
        partial(_encoder_layer_kernel, B=B, S=S, H=N_HEAD, dk=D_MODEL // N_HEAD),
        out_shape=jax.ShapeDtypeStruct((B * S, D_MODEL), jnp.float32),
        in_specs=[_vmem_spec()] * len(args),
        out_specs=_vmem_spec(),
    )(*args)


def decoder_layer(y2d, mem2d, self_bias, cross_bias, p, B, St, Ss):
    args = (y2d, mem2d, self_bias, cross_bias,
            p["s_wqkv"], p["s_bqkv"], p["s_wo"], p["s_bo"], p["ln1_g"], p["ln1_b"],
            p["c_wq"], p["c_bq"], p["c_wkv"], p["c_bkv"], p["c_wo"], p["c_bo"],
            p["ln2_g"], p["ln2_b"],
            p["w1"], p["b1"], p["w2"], p["b2"], p["ln3_g"], p["ln3_b"])
    return pl.pallas_call(
        partial(_decoder_layer_kernel, B=B, St=St, Ss=Ss, H=N_HEAD, dk=D_MODEL // N_HEAD),
        out_shape=jax.ShapeDtypeStruct((B * St, D_MODEL), jnp.float32),
        in_specs=[_vmem_spec()] * len(args),
        out_specs=_vmem_spec(),
    )(*args)


def final_projection(y2d, w_pad, b_pad):
    M = y2d.shape[0]
    logits_pad = pl.pallas_call(
        _final_proj_kernel,
        out_shape=jax.ShapeDtypeStruct((M, VOCAB_PAD), jnp.float32),
        in_specs=[_vmem_spec()] * 3,
        out_specs=_vmem_spec(),
    )(y2d, w_pad, b_pad)
    return logits_pad[:, :TGT_VOCAB]


# ---------------------------------------------------------------------------
# Model glue (plain JAX: embeddings, positional encoding, masks)
# ---------------------------------------------------------------------------
def positional_encoding(seq_len, d_model):
    pos = jnp.arange(seq_len, dtype=jnp.float32)[:, None]
    i = jnp.arange(0, d_model, 2, dtype=jnp.float32)
    angle = pos / jnp.power(10000.0, i / d_model)
    pe = jnp.zeros((seq_len, d_model), jnp.float32)
    pe = pe.at[:, 0::2].set(jnp.sin(angle))
    pe = pe.at[:, 1::2].set(jnp.cos(angle))
    return pe


def embed(tokens, emb_table):
    x = jnp.take(emb_table, tokens, axis=0) * math.sqrt(D_MODEL)
    return x + positional_encoding(tokens.shape[1], D_MODEL)[None, :, :]


def padding_mask(x, pad):
    return (x != pad)[:, None, :]                                   # (B, 1, S) bool


def subsequent_mask(size):
    return jnp.triu(jnp.ones((1, size, size), jnp.uint8), k=1) == 0  # (1, S, S) bool


def _additive_bias(mask_bool, shape):
    """bool mask -> additive {0, -1e9} f32 bias broadcast to `shape`."""
    return jnp.where(jnp.broadcast_to(mask_bool, shape), 0.0, -1e9).astype(jnp.float32)


@jax.jit
def transformer_forward(params, src, tgt):
    B, Ss = src.shape
    St = tgt.shape[1]

    # masks -> additive biases, computed once and reused by every layer
    src_mask = padding_mask(src, SRC_PAD)                                     # (B,1,Ss)
    tgt_mask = padding_mask(tgt, TGT_PAD) & subsequent_mask(St)               # (B,St,St)
    enc_bias = _additive_bias(src_mask, (B, Ss, Ss))
    dec_self_bias = _additive_bias(tgt_mask, (B, St, St))
    dec_cross_bias = _additive_bias(src_mask, (B, St, Ss))

    # encoder
    x = embed(src, params["src_emb"]).reshape(B * Ss, D_MODEL)
    for lp in params["enc_layers"]:
        x = encoder_layer(x, enc_bias, lp, B, Ss)
    memory = x                                                                # (B*Ss, D)

    # decoder
    y = embed(tgt, params["tgt_emb"]).reshape(B * St, D_MODEL)
    for lp in params["dec_layers"]:
        y = decoder_layer(y, memory, dec_self_bias, dec_cross_bias, lp, B, St, Ss)

    # final lane-dense projection to target vocabulary
    logits = final_projection(y, params["out_w_pad"], params["out_b_pad"])
    return logits.reshape(B, St, TGT_VOCAB)


# ---------------------------------------------------------------------------
# Deterministic parameter initialization (QKV / KV weights pre-fused)
# ---------------------------------------------------------------------------
def init_params(key):
    keys = iter(jax.random.split(key, 512))
    nxt = lambda: next(keys)

    def w(din, dout):
        return jax.random.normal(nxt(), (din, dout), jnp.float32) * 0.02

    def zeros_row(n):
        return jnp.zeros((1, n), jnp.float32)

    def ones_row(n):
        return jnp.ones((1, n), jnp.float32)

    def self_attn_params(prefix=""):
        return {
            f"{prefix}wqkv": jnp.concatenate([w(D_MODEL, D_MODEL) for _ in range(3)], axis=1),
            f"{prefix}bqkv": zeros_row(3 * D_MODEL),
            f"{prefix}wo": w(D_MODEL, D_MODEL),
            f"{prefix}bo": zeros_row(D_MODEL),
        }

    def cross_attn_params():
        return {
            "c_wq": w(D_MODEL, D_MODEL), "c_bq": zeros_row(D_MODEL),
            "c_wkv": jnp.concatenate([w(D_MODEL, D_MODEL) for _ in range(2)], axis=1),
            "c_bkv": zeros_row(2 * D_MODEL),
            "c_wo": w(D_MODEL, D_MODEL), "c_bo": zeros_row(D_MODEL),
        }

    def ffn_params():
        return {"w1": w(D_MODEL, N_HIDDEN), "b1": zeros_row(N_HIDDEN),
                "w2": w(N_HIDDEN, D_MODEL), "b2": zeros_row(D_MODEL)}

    def enc_layer_params():
        p = {}
        p.update(self_attn_params())
        p.update(ffn_params())
        p["ln1_g"], p["ln1_b"] = ones_row(D_MODEL), zeros_row(D_MODEL)
        p["ln2_g"], p["ln2_b"] = ones_row(D_MODEL), zeros_row(D_MODEL)
        return p

    def dec_layer_params():
        p = {}
        p.update(self_attn_params(prefix="s_"))
        p.update(cross_attn_params())
        p.update(ffn_params())
        for i in (1, 2, 3):
            p[f"ln{i}_g"] = ones_row(D_MODEL)
            p[f"ln{i}_b"] = zeros_row(D_MODEL)
        return p

    out_w = w(D_MODEL, TGT_VOCAB)
    out_b = jnp.zeros((TGT_VOCAB,), jnp.float32)
    # lane-dense padding of the final projection (zeros beyond TGT_VOCAB)
    out_w_pad = jnp.zeros((D_MODEL, VOCAB_PAD), jnp.float32).at[:, :TGT_VOCAB].set(out_w)
    out_b_pad = jnp.zeros((1, VOCAB_PAD), jnp.float32).at[0, :TGT_VOCAB].set(out_b)

    return {
        "src_emb": jax.random.normal(nxt(), (SRC_VOCAB, D_MODEL), jnp.float32) * 0.02,
        "tgt_emb": jax.random.normal(nxt(), (TGT_VOCAB, D_MODEL), jnp.float32) * 0.02,
        "enc_layers": [enc_layer_params() for _ in range(N_ENC)],
        "dec_layers": [dec_layer_params() for _ in range(N_DEC)],
        "out_w_pad": out_w_pad, "out_b_pad": out_b_pad,
    }


# ---------------------------------------------------------------------------
if __name__ == "__main__":
    key = jax.random.PRNGKey(0)
    kp, ks, kt = jax.random.split(key, 3)
    params = init_params(kp)

    B, S_SRC, S_TGT = 2, 8, 8
    src = jax.random.randint(ks, (B, S_SRC), 0, SRC_VOCAB, dtype=jnp.int32)
    tgt = jax.random.randint(kt, (B, S_TGT), 0, TGT_VOCAB, dtype=jnp.int32)
    # force a couple of pad tokens so the padding mask is exercised
    src = src.at[0, -2:].set(SRC_PAD)
    tgt = tgt.at[1, -1].set(TGT_PAD)

    out = transformer_forward(params, src, tgt)
    out = jax.block_until_ready(out)
    assert out.shape == (B, S_TGT, TGT_VOCAB)
    assert bool(jnp.all(jnp.isfinite(out)))
    print("KERNEL_OK")
</pallas_src>

<mosaic_0001>
module attributes {stable_mosaic.version = 11 : i64} {
  func.func @_encoder_layer_kernel(%arg0: memref<16x32xf32, #tpu.memory_space<vmem>>, %arg1: memref<2x8x8xf32, #tpu.memory_space<vmem>>, %arg2: memref<32x96xf32, #tpu.memory_space<vmem>>, %arg3: memref<1x96xf32, #tpu.memory_space<vmem>>, %arg4: memref<32x32xf32, #tpu.memory_space<vmem>>, %arg5: memref<1x32xf32, #tpu.memory_space<vmem>>, %arg6: memref<1x32xf32, #tpu.memory_space<vmem>>, %arg7: memref<1x32xf32, #tpu.memory_space<vmem>>, %arg8: memref<32x64xf32, #tpu.memory_space<vmem>>, %arg9: memref<1x64xf32, #tpu.memory_space<vmem>>, %arg10: memref<64x32xf32, #tpu.memory_space<vmem>>, %arg11: memref<1x32xf32, #tpu.memory_space<vmem>>, %arg12: memref<1x32xf32, #tpu.memory_space<vmem>>, %arg13: memref<1x32xf32, #tpu.memory_space<vmem>>, %arg14: memref<16x32xf32, #tpu.memory_space<vmem>>) attributes {dimension_semantics = [], scalar_prefetch = 0 : i64, scratch_operands = 0 : i64, tpu.core_type = #tpu.core_type<tc>} {
    %c0 = arith.constant 0 : index
    %c0_0 = arith.constant 0 : index
    %0 = vector.load %arg0[%c0, %c0_0] : memref<16x32xf32, #tpu.memory_space<vmem>>, vector<16x32xf32>
    %c0_1 = arith.constant 0 : index
    %c0_2 = arith.constant 0 : index
    %1 = vector.load %arg2[%c0_1, %c0_2] : memref<32x96xf32, #tpu.memory_space<vmem>>, vector<32x96xf32>
    %cst = arith.constant dense<0.000000e+00> : vector<16x96xf32>
    %2 = tpu.matmul %0, %1, %cst {dimension_numbers = #tpu.dot_dimension_numbers<[1], [0], [0], [1], [0, 0, 1, 1], [], []>} : vector<16x32xf32>, vector<32x96xf32>, vector<16x96xf32> -> vector<16x96xf32>
    %c0_3 = arith.constant 0 : index
    %c0_4 = arith.constant 0 : index
    %3 = vector.load %arg3[%c0_3, %c0_4] : memref<1x96xf32, #tpu.memory_space<vmem>>, vector<1x96xf32>
    %4 = vector.broadcast %3 : vector<1x96xf32> to vector<16x96xf32>
    %5 = arith.addf %2, %4 : vector<16x96xf32>
    %6 = vector.extract_strided_slice %5 {offsets = [0, 0], sizes = [16, 32], strides = [1, 1]} : vector<16x96xf32> to vector<16x32xf32>
    %7 = vector.extract_strided_slice %5 {offsets = [0, 32], sizes = [16, 32], strides = [1, 1]} : vector<16x96xf32> to vector<16x32xf32>
    %8 = vector.extract_strided_slice %5 {offsets = [0, 64], sizes = [16, 32], strides = [1, 1]} : vector<16x96xf32> to vector<16x32xf32>
    %c0_5 = arith.constant 0 : index
    %c0_6 = arith.constant 0 : index
    %c0_7 = arith.constant 0 : index
    %9 = vector.load %arg1[%c0_5, %c0_6, %c0_7] : memref<2x8x8xf32, #tpu.memory_space<vmem>>, vector<2x8x8xf32>
    %10 = vector.extract_strided_slice %6 {offsets = [0, 0], sizes = [8, 32], strides = [1, 1]} : vector<16x32xf32> to vector<8x32xf32>
    %11 = vector.extract_strided_slice %7 {offsets = [0, 0], sizes = [8, 32], strides = [1, 1]} : vector<16x32xf32> to vector<8x32xf32>
    %12 = vector.extract_strided_slice %8 {offsets = [0, 0], sizes = [8, 32], strides = [1, 1]} : vector<16x32xf32> to vector<8x32xf32>
    %13 = vector.extract_strided_slice %9 {offsets = [0, 0, 0], sizes = [1, 8, 8], strides = [1, 1, 1]} : vector<2x8x8xf32> to vector<1x8x8xf32>
    %14 = vector.shape_cast %13 : vector<1x8x8xf32> to vector<8x8xf32>
    %15 = vector.extract_strided_slice %10 {offsets = [0, 0], sizes = [8, 8], strides = [1, 1]} : vector<8x32xf32> to vector<8x8xf32>
    %16 = vector.extract_strided_slice %11 {offsets = [0, 0], sizes = [8, 8], strides = [1, 1]} : vector<8x32xf32> to vector<8x8xf32>
    %17 = vector.extract_strided_slice %12 {offsets = [0, 0], sizes = [8, 8], strides = [1, 1]} : vector<8x32xf32> to vector<8x8xf32>
    %18 = tpu.transpose %16, [1, 0] : vector<8x8xf32> -> vector<8x8xf32>
    %cst_8 = arith.constant dense<0.000000e+00> : vector<8x8xf32>
    %19 = tpu.matmul %15, %18, %cst_8 {dimension_numbers = #tpu.dot_dimension_numbers<[1], [0], [0], [1], [0, 0, 1, 1], [], []>} : vector<8x8xf32>, vector<8x8xf32>, vector<8x8xf32> -> vector<8x8xf32>
    %cst_9 = arith.constant 0.353553385 : f32
    %20 = vector.broadcast %cst_9 : f32 to vector<8x8xf32>
    %21 = arith.mulf %19, %20 : vector<8x8xf32>
    %22 = arith.addf %21, %14 : vector<8x8xf32>
    %cst_10 = arith.constant dense<0xFF800000> : vector<8xf32>
    %23 = vector.multi_reduction <maximumf>, %22, %cst_10 [1] : vector<8x8xf32> to vector<8xf32>
    %24 = vector.shape_cast %23 : vector<8xf32> to vector<8x1xf32>
    %25 = vector.broadcast %24 : vector<8x1xf32> to vector<8x8xf32>
    %26 = arith.subf %22, %25 : vector<8x8xf32>
    %27 = math.exp %26 : vector<8x8xf32>
    %cst_11 = arith.constant dense<0.000000e+00> : vector<8xf32>
    %28 = vector.multi_reduction <add>, %27, %cst_11 [1] : vector<8x8xf32> to vector<8xf32>
    %29 = vector.shape_cast %28 : vector<8xf32> to vector<8x1xf32>
    %30 = tpu.reciprocal %29 {approx = true} : vector<8x1xf32> -> vector<8x1xf32>
    %31 = vector.broadcast %30 : vector<8x1xf32> to vector<8x8xf32>
    %32 = arith.mulf %27, %31 : vector<8x8xf32>
    %cst_12 = arith.constant dense<0.000000e+00> : vector<8x8xf32>
    %33 = tpu.matmul %32, %17, %cst_12 {dimension_numbers = #tpu.dot_dimension_numbers<[1], [0], [0], [1], [0, 0, 1, 1], [], []>} : vector<8x8xf32>, vector<8x8xf32>, vector<8x8xf32> -> vector<8x8xf32>
    %34 = vector.extract_strided_slice %10 {offsets = [0, 8], sizes = [8, 8], strides = [1, 1]} : vector<8x32xf32> to vector<8x8xf32>
    %35 = vector.extract_strided_slice %11 {offsets = [0, 8], sizes = [8, 8], strides = [1, 1]} : vector<8x32xf32> to vector<8x8xf32>
    %36 = vector.extract_strided_slice %12 {offsets = [0, 8], sizes = [8, 8], strides = [1, 1]} : vector<8x32xf32> to vector<8x8xf32>
    %37 = tpu.transpose %35, [1, 0] : vector<8x8xf32> -> vector<8x8xf32>
    %cst_13 = arith.constant dense<0.000000e+00> : vector<8x8xf32>
    %38 = tpu.matmul %34, %37, %cst_13 {dimension_numbers = #tpu.dot_dimension_numbers<[1], [0], [0], [1], [0, 0, 1, 1], [], []>} : vector<8x8xf32>, vector<8x8xf32>, vector<8x8xf32> -> vector<8x8xf32>
    %cst_14 = arith.constant 0.353553385 : f32
    %39 = vector.broadcast %cst_14 : f32 to vector<8x8xf32>
    %40 = arith.mulf %38, %39 : vector<8x8xf32>
    %41 = arith.addf %40, %14 : vector<8x8xf32>
    %cst_15 = arith.constant dense<0xFF800000> : vector<8xf32>
    %42 = vector.multi_reduction <maximumf>, %41, %cst_15 [1] : vector<8x8xf32> to vector<8xf32>
    %43 = vector.shape_cast %42 : vector<8xf32> to vector<8x1xf32>
    %44 = vector.broadcast %43 : vector<8x1xf32> to vector<8x8xf32>
    %45 = arith.subf %41, %44 : vector<8x8xf32>
    %46 = math.exp %45 : vector<8x8xf32>
    %cst_16 = arith.constant dense<0.000000e+00> : vector<8xf32>
    %47 = vector.multi_reduction <add>, %46, %cst_16 [1] : vector<8x8xf32> to vector<8xf32>
    %48 = vector.shape_cast %47 : vector<8xf32> to vector<8x1xf32>
    %49 = tpu.reciprocal %48 {approx = true} : vector<8x1xf32> -> vector<8x1xf32>
    %50 = vector.broadcast %49 : vector<8x1xf32> to vector<8x8xf32>
    %51 = arith.mulf %46, %50 : vector<8x8xf32>
    %cst_17 = arith.constant dense<0.000000e+00> : vector<8x8xf32>
    %52 = tpu.matmul %51, %36, %cst_17 {dimension_numbers = #tpu.dot_dimension_numbers<[1], [0], [0], [1], [0, 0, 1, 1], [], []>} : vector<8x8xf32>, vector<8x8xf32>, vector<8x8xf32> -> vector<8x8xf32>
    %53 = vector.extract_strided_slice %10 {offsets = [0, 16], sizes = [8, 8], strides = [1, 1]} : vector<8x32xf32> to vector<8x8xf32>
    %54 = vector.extract_strided_slice %11 {offsets = [0, 16], sizes = [8, 8], strides = [1, 1]} : vector<8x32xf32> to vector<8x8xf32>
    %55 = vector.extract_strided_slice %12 {offsets = [0, 16], sizes = [8, 8], strides = [1, 1]} : vector<8x32xf32> to vector<8x8xf32>
    %56 = tpu.transpose %54, [1, 0] : vector<8x8xf32> -> vector<8x8xf32>
    %cst_18 = arith.constant dense<0.000000e+00> : vector<8x8xf32>
    %57 = tpu.matmul %53, %56, %cst_18 {dimension_numbers = #tpu.dot_dimension_numbers<[1], [0], [0], [1], [0, 0, 1, 1], [], []>} : vector<8x8xf32>, vector<8x8xf32>, vector<8x8xf32> -> vector<8x8xf32>
    %cst_19 = arith.constant 0.353553385 : f32
    %58 = vector.broadcast %cst_19 : f32 to vector<8x8xf32>
    %59 = arith.mulf %57, %58 : vector<8x8xf32>
    %60 = arith.addf %59, %14 : vector<8x8xf32>
    %cst_20 = arith.constant dense<0xFF800000> : vector<8xf32>
    %61 = vector.multi_reduction <maximumf>, %60, %cst_20 [1] : vector<8x8xf32> to vector<8xf32>
    %62 = vector.shape_cast %61 : vector<8xf32> to vector<8x1xf32>
    %63 = vector.broadcast %62 : vector<8x1xf32> to vector<8x8xf32>
    %64 = arith.subf %60, %63 : vector<8x8xf32>
    %65 = math.exp %64 : vector<8x8xf32>
    %cst_21 = arith.constant dense<0.000000e+00> : vector<8xf32>
    %66 = vector.multi_reduction <add>, %65, %cst_21 [1] : vector<8x8xf32> to vector<8xf32>
    %67 = vector.shape_cast %66 : vector<8xf32> to vector<8x1xf32>
    %68 = tpu.reciprocal %67 {approx = true} : vector<8x1xf32> -> vector<8x1xf32>
    %69 = vector.broadcast %68 : vector<8x1xf32> to vector<8x8xf32>
    %70 = arith.mulf %65, %69 : vector<8x8xf32>
    %cst_22 = arith.constant dense<0.000000e+00> : vector<8x8xf32>
    %71 = tpu.matmul %70, %55, %cst_22 {dimension_numbers = #tpu.dot_dimension_numbers<[1], [0], [0], [1], [0, 0, 1, 1], [], []>} : vector<8x8xf32>, vector<8x8xf32>, vector<8x8xf32> -> vector<8x8xf32>
    %72 = vector.extract_strided_slice %10 {offsets = [0, 24], sizes = [8, 8], strides = [1, 1]} : vector<8x32xf32> to vector<8x8xf32>
    %73 = vector.extract_strided_slice %11 {offsets = [0, 24], sizes = [8, 8], strides = [1, 1]} : vector<8x32xf32> to vector<8x8xf32>
    %74 = vector.extract_strided_slice %12 {offsets = [0, 24], sizes = [8, 8], strides = [1, 1]} : vector<8x32xf32> to vector<8x8xf32>
    %75 = tpu.transpose %73, [1, 0] : vector<8x8xf32> -> vector<8x8xf32>
    %cst_23 = arith.constant dense<0.000000e+00> : vector<8x8xf32>
    %76 = tpu.matmul %72, %75, %cst_23 {dimension_numbers = #tpu.dot_dimension_numbers<[1], [0], [0], [1], [0, 0, 1, 1], [], []>} : vector<8x8xf32>, vector<8x8xf32>, vector<8x8xf32> -> vector<8x8xf32>
    %cst_24 = arith.constant 0.353553385 : f32
    %77 = vector.broadcast %cst_24 : f32 to vector<8x8xf32>
    %78 = arith.mulf %76, %77 : vector<8x8xf32>
    %79 = arith.addf %78, %14 : vector<8x8xf32>
    %cst_25 = arith.constant dense<0xFF800000> : vector<8xf32>
    %80 = vector.multi_reduction <maximumf>, %79, %cst_25 [1] : vector<8x8xf32> to vector<8xf32>
    %81 = vector.shape_cast %80 : vector<8xf32> to vector<8x1xf32>
    %82 = vector.broadcast %81 : vector<8x1xf32> to vector<8x8xf32>
    %83 = arith.subf %79, %82 : vector<8x8xf32>
    %84 = math.exp %83 : vector<8x8xf32>
    %cst_26 = arith.constant dense<0.000000e+00> : vector<8xf32>
    %85 = vector.multi_reduction <add>, %84, %cst_26 [1] : vector<8x8xf32> to vector<8xf32>
    %86 = vector.shape_cast %85 : vector<8xf32> to vector<8x1xf32>
    %87 = tpu.reciprocal %86 {approx = true} : vector<8x1xf32> -> vector<8x1xf32>
    %88 = vector.broadcast %87 : vector<8x1xf32> to vector<8x8xf32>
    %89 = arith.mulf %84, %88 : vector<8x8xf32>
    %cst_27 = arith.constant dense<0.000000e+00> : vector<8x8xf32>
    %90 = tpu.matmul %89, %74, %cst_27 {dimension_numbers = #tpu.dot_dimension_numbers<[1], [0], [0], [1], [0, 0, 1, 1], [], []>} : vector<8x8xf32>, vector<8x8xf32>, vector<8x8xf32> -> vector<8x8xf32>
    %91 = tpu.concatenate %33, %52, %71, %90 in 1 : vector<8x8xf32>, vector<8x8xf32>, vector<8x8xf32>, vector<8x8xf32> -> vector<8x32xf32>
    %92 = vector.extract_strided_slice %6 {offsets = [8, 0], sizes = [8, 32], strides = [1, 1]} : vector<16x32xf32> to vector<8x32xf32>
    %93 = vector.extract_strided_slice %7 {offsets = [8, 0], sizes = [8, 32], strides = [1, 1]} : vector<16x32xf32> to vector<8x32xf32>
    %94 = vector.extract_strided_slice %8 {offsets = [8, 0], sizes = [8, 32], strides = [1, 1]} : vector<16x32xf32> to vector<8x32xf32>
    %95 = vector.extract_strided_slice %9 {offsets = [1, 0, 0], sizes = [1, 8, 8], strides = [1, 1, 1]} : vector<2x8x8xf32> to vector<1x8x8xf32>
    %96 = vector.shape_cast %95 : vector<1x8x8xf32> to vector<8x8xf32>
    %97 = vector.extract_strided_slice %92 {offsets = [0, 0], sizes = [8, 8], strides = [1, 1]} : vector<8x32xf32> to vector<8x8xf32>
    %98 = vector.extract_strided_slice %93 {offsets = [0, 0], sizes = [8, 8], strides = [1, 1]} : vector<8x32xf32> to vector<8x8xf32>
    %99 = vector.extract_strided_slice %94 {offsets = [0, 0], sizes = [8, 8], strides = [1, 1]} : vector<8x32xf32> to vector<8x8xf32>
    %100 = tpu.transpose %98, [1, 0] : vector<8x8xf32> -> vector<8x8xf32>
    %cst_28 = arith.constant dense<0.000000e+00> : vector<8x8xf32>
    %101 = tpu.matmul %97, %100, %cst_28 {dimension_numbers = #tpu.dot_dimension_numbers<[1], [0], [0], [1], [0, 0, 1, 1], [], []>} : vector<8x8xf32>, vector<8x8xf32>, vector<8x8xf32> -> vector<8x8xf32>
    %cst_29 = arith.constant 0.353553385 : f32
    %102 = vector.broadcast %cst_29 : f32 to vector<8x8xf32>
    %103 = arith.mulf %101, %102 : vector<8x8xf32>
    %104 = arith.addf %103, %96 : vector<8x8xf32>
    %cst_30 = arith.constant dense<0xFF800000> : vector<8xf32>
    %105 = vector.multi_reduction <maximumf>, %104, %cst_30 [1] : vector<8x8xf32> to vector<8xf32>
    %106 = vector.shape_cast %105 : vector<8xf32> to vector<8x1xf32>
    %107 = vector.broadcast %106 : vector<8x1xf32> to vector<8x8xf32>
    %108 = arith.subf %104, %107 : vector<8x8xf32>
    %109 = math.exp %108 : vector<8x8xf32>
    %cst_31 = arith.constant dense<0.000000e+00> : vector<8xf32>
    %110 = vector.multi_reduction <add>, %109, %cst_31 [1] : vector<8x8xf32> to vector<8xf32>
    %111 = vector.shape_cast %110 : vector<8xf32> to vector<8x1xf32>
    %112 = tpu.reciprocal %111 {approx = true} : vector<8x1xf32> -> vector<8x1xf32>
    %113 = vector.broadcast %112 : vector<8x1xf32> to vector<8x8xf32>
    %114 = arith.mulf %109, %113 : vector<8x8xf32>
    %cst_32 = arith.constant dense<0.000000e+00> : vector<8x8xf32>
    %115 = tpu.matmul %114, %99, %cst_32 {dimension_numbers = #tpu.dot_dimension_numbers<[1], [0], [0], [1], [0, 0, 1, 1], [], []>} : vector<8x8xf32>, vector<8x8xf32>, vector<8x8xf32> -> vector<8x8xf32>
    %116 = vector.extract_strided_slice %92 {offsets = [0, 8], sizes = [8, 8], strides = [1, 1]} : vector<8x32xf32> to vector<8x8xf32>
    %117 = vector.extract_strided_slice %93 {offsets = [0, 8], sizes = [8, 8], strides = [1, 1]} : vector<8x32xf32> to vector<8x8xf32>
    %118 = vector.extract_strided_slice %94 {offsets = [0, 8], sizes = [8, 8], strides = [1, 1]} : vector<8x32xf32> to vector<8x8xf32>
    %119 = tpu.transpose %117, [1, 0] : vector<8x8xf32> -> vector<8x8xf32>
    %cst_33 = arith.constant dense<0.000000e+00> : vector<8x8xf32>
    %120 = tpu.matmul %116, %119, %cst_33 {dimension_numbers = #tpu.dot_dimension_numbers<[1], [0], [0], [1], [0, 0, 1, 1], [], []>} : vector<8x8xf32>, vector<8x8xf32>, vector<8x8xf32> -> vector<8x8xf32>
    %cst_34 = arith.constant 0.353553385 : f32
    %121 = vector.broadcast %cst_34 : f32 to vector<8x8xf32>
    %122 = arith.mulf %120, %121 : vector<8x8xf32>
    %123 = arith.addf %122, %96 : vector<8x8xf32>
    %cst_35 = arith.constant dense<0xFF800000> : vector<8xf32>
    %124 = vector.multi_reduction <maximumf>, %123, %cst_35 [1] : vector<8x8xf32> to vector<8xf32>
    %125 = vector.shape_cast %124 : vector<8xf32> to vector<8x1xf32>
    %126 = vector.broadcast %125 : vector<8x1xf32> to vector<8x8xf32>
    %127 = arith.subf %123, %126 : vector<8x8xf32>
    %128 = math.exp %127 : vector<8x8xf32>
    %cst_36 = arith.constant dense<0.000000e+00> : vector<8xf32>
    %129 = vector.multi_reduction <add>, %128, %cst_36 [1] : vector<8x8xf32> to vector<8xf32>
    %130 = vector.shape_cast %129 : vector<8xf32> to vector<8x1xf32>
    %131 = tpu.reciprocal %130 {approx = true} : vector<8x1xf32> -> vector<8x1xf32>
    %132 = vector.broadcast %131 : vector<8x1xf32> to vector<8x8xf32>
    %133 = arith.mulf %128, %132 : vector<8x8xf32>
    %cst_37 = arith.constant dense<0.000000e+00> : vector<8x8xf32>
    %134 = tpu.matmul %133, %118, %cst_37 {dimension_numbers = #tpu.dot_dimension_numbers<[1], [0], [0], [1], [0, 0, 1, 1], [], []>} : vector<8x8xf32>, vector<8x8xf32>, vector<8x8xf32> -> vector<8x8xf32>
    %135 = vector.extract_strided_slice %92 {offsets = [0, 16], sizes = [8, 8], strides = [1, 1]} : vector<8x32xf32> to vector<8x8xf32>
    %136 = vector.extract_strided_slice %93 {offsets = [0, 16], sizes = [8, 8], strides = [1, 1]} : vector<8x32xf32> to vector<8x8xf32>
    %137 = vector.extract_strided_slice %94 {offsets = [0, 16], sizes = [8, 8], strides = [1, 1]} : vector<8x32xf32> to vector<8x8xf32>
    %138 = tpu.transpose %136, [1, 0] : vector<8x8xf32> -> vector<8x8xf32>
    %cst_38 = arith.constant dense<0.000000e+00> : vector<8x8xf32>
    %139 = tpu.matmul %135, %138, %cst_38 {dimension_numbers = #tpu.dot_dimension_numbers<[1], [0], [0], [1], [0, 0, 1, 1], [], []>} : vector<8x8xf32>, vector<8x8xf32>, vector<8x8xf32> -> vector<8x8xf32>
    %cst_39 = arith.constant 0.353553385 : f32
    %140 = vector.broadcast %cst_39 : f32 to vector<8x8xf32>
    %141 = arith.mulf %139, %140 : vector<8x8xf32>
    %142 = arith.addf %141, %96 : vector<8x8xf32>
    %cst_40 = arith.constant dense<0xFF800000> : vector<8xf32>
    %143 = vector.multi_reduction <maximumf>, %142, %cst_40 [1] : vector<8x8xf32> to vector<8xf32>
    %144 = vector.shape_cast %143 : vector<8xf32> to vector<8x1xf32>
    %145 = vector.broadcast %144 : vector<8x1xf32> to vector<8x8xf32>
    %146 = arith.subf %142, %145 : vector<8x8xf32>
    %147 = math.exp %146 : vector<8x8xf32>
    %cst_41 = arith.constant dense<0.000000e+00> : vector<8xf32>
    %148 = vector.multi_reduction <add>, %147, %cst_41 [1] : vector<8x8xf32> to vector<8xf32>
    %149 = vector.shape_cast %148 : vector<8xf32> to vector<8x1xf32>
    %150 = tpu.reciprocal %149 {approx = true} : vector<8x1xf32> -> vector<8x1xf32>
    %151 = vector.broadcast %150 : vector<8x1xf32> to vector<8x8xf32>
    %152 = arith.mulf %147, %151 : vector<8x8xf32>
    %cst_42 = arith.constant dense<0.000000e+00> : vector<8x8xf32>
    %153 = tpu.matmul %152, %137, %cst_42 {dimension_numbers = #tpu.dot_dimension_numbers<[1], [0], [0], [1], [0, 0, 1, 1], [], []>} : vector<8x8xf32>, vector<8x8xf32>, vector<8x8xf32> -> vector<8x8xf32>
    %154 = vector.extract_strided_slice %92 {offsets = [0, 24], sizes = [8, 8], strides = [1, 1]} : vector<8x32xf32> to vector<8x8xf32>
    %155 = vector.extract_strided_slice %93 {offsets = [0, 24], sizes = [8, 8], strides = [1, 1]} : vector<8x32xf32> to vector<8x8xf32>
    %156 = vector.extract_strided_slice %94 {offsets = [0, 24], sizes = [8, 8], strides = [1, 1]} : vector<8x32xf32> to vector<8x8xf32>
    %157 = tpu.transpose %155, [1, 0] : vector<8x8xf32> -> vector<8x8xf32>
    %cst_43 = arith.constant dense<0.000000e+00> : vector<8x8xf32>
    %158 = tpu.matmul %154, %157, %cst_43 {dimension_numbers = #tpu.dot_dimension_numbers<[1], [0], [0], [1], [0, 0, 1, 1], [], []>} : vector<8x8xf32>, vector<8x8xf32>, vector<8x8xf32> -> vector<8x8xf32>
    %cst_44 = arith.constant 0.353553385 : f32
    %159 = vector.broadcast %cst_44 : f32 to vector<8x8xf32>
    %160 = arith.mulf %158, %159 : vector<8x8xf32>
    %161 = arith.addf %160, %96 : vector<8x8xf32>
    %cst_45 = arith.constant dense<0xFF800000> : vector<8xf32>
    %162 = vector.multi_reduction <maximumf>, %161, %cst_45 [1] : vector<8x8xf32> to vector<8xf32>
    %163 = vector.shape_cast %162 : vector<8xf32> to vector<8x1xf32>
    %164 = vector.broadcast %163 : vector<8x1xf32> to vector<8x8xf32>
    %165 = arith.subf %161, %164 : vector<8x8xf32>
    %166 = math.exp %165 : vector<8x8xf32>
    %cst_46 = arith.constant dense<0.000000e+00> : vector<8xf32>
    %167 = vector.multi_reduction <add>, %166, %cst_46 [1] : vector<8x8xf32> to vector<8xf32>
    %168 = vector.shape_cast %167 : vector<8xf32> to vector<8x1xf32>
    %169 = tpu.reciprocal %168 {approx = true} : vector<8x1xf32> -> vector<8x1xf32>
    %170 = vector.broadcast %169 : vector<8x1xf32> to vector<8x8xf32>
    %171 = arith.mulf %166, %170 : vector<8x8xf32>
    %cst_47 = arith.constant dense<0.000000e+00> : vector<8x8xf32>
    %172 = tpu.matmul %171, %156, %cst_47 {dimension_numbers = #tpu.dot_dimension_numbers<[1], [0], [0], [1], [0, 0, 1, 1], [], []>} : vector<8x8xf32>, vector<8x8xf32>, vector<8x8xf32> -> vector<8x8xf32>
    %173 = tpu.concatenate %115, %134, %153, %172 in 1 : vector<8x8xf32>, vector<8x8xf32>, vector<8x8xf32>, vector<8x8xf32> -> vector<8x32xf32>
    %174 = tpu.concatenate %91, %173 in 0 : vector<8x32xf32>, vector<8x32xf32> -> vector<16x32xf32>
    %c0_48 = arith.constant 0 : index
    %c0_49 = arith.constant 0 : index
    %175 = vector.load %arg4[%c0_48, %c0_49] : memref<32x32xf32, #tpu.memory_space<vmem>>, vector<32x32xf32>
    %cst_50 = arith.constant dense<0.000000e+00> : vector<16x32xf32>
    %176 = tpu.matmul %174, %175, %cst_50 {dimension_numbers = #tpu.dot_dimension_numbers<[1], [0], [0], [1], [0, 0, 1, 1], [], []>} : vector<16x32xf32>, vector<32x32xf32>, vector<16x32xf32> -> vector<16x32xf32>
    %c0_51 = arith.constant 0 : index
    %c0_52 = arith.constant 0 : index
    %177 = vector.load %arg5[%c0_51, %c0_52] : memref<1x32xf32, #tpu.memory_space<vmem>>, vector<1x32xf32>
    %178 = vector.broadcast %177 : vector<1x32xf32> to vector<16x32xf32>
    %179 = arith.addf %176, %178 : vector<16x32xf32>
    %180 = arith.addf %0, %179 : vector<16x32xf32>
    %c0_53 = arith.constant 0 : index
    %c0_54 = arith.constant 0 : index
    %181 = vector.load %arg6[%c0_53, %c0_54] : memref<1x32xf32, #tpu.memory_space<vmem>>, vector<1x32xf32>
    %c0_55 = arith.constant 0 : index
    %c0_56 = arith.constant 0 : index
    %182 = vector.load %arg7[%c0_55, %c0_56] : memref<1x32xf32, #tpu.memory_space<vmem>>, vector<1x32xf32>
    %cst_57 = arith.constant dense<0.000000e+00> : vector<16xf32>
    %183 = vector.multi_reduction <add>, %180, %cst_57 [1] : vector<16x32xf32> to vector<16xf32>
    %184 = vector.shape_cast %183 : vector<16xf32> to vector<16x1xf32>
    %cst_58 = arith.constant 3.200000e+01 : f32
    %185 = vector.broadcast %cst_58 : f32 to vector<16x1xf32>
    %186 = arith.divf %184, %185 : vector<16x1xf32>
    %187 = vector.broadcast %186 : vector<16x1xf32> to vector<16x32xf32>
    %188 = arith.subf %180, %187 : vector<16x32xf32>
    %189 = arith.mulf %188, %188 : vector<16x32xf32>
    %cst_59 = arith.constant dense<0.000000e+00> : vector<16xf32>
    %190 = vector.multi_reduction <add>, %189, %cst_59 [1] : vector<16x32xf32> to vector<16xf32>
    %191 = vector.shape_cast %190 : vector<16xf32> to vector<16x1xf32>
    %cst_60 = arith.constant 3.200000e+01 : f32
    %192 = vector.broadcast %cst_60 : f32 to vector<16x1xf32>
    %193 = arith.divf %191, %192 : vector<16x1xf32>
    %194 = vector.broadcast %186 : vector<16x1xf32> to vector<16x32xf32>
    %195 = arith.subf %180, %194 : vector<16x32xf32>
    %cst_61 = arith.constant 9.99999974E-6 : f32
    %196 = vector.broadcast %cst_61 : f32 to vector<16x1xf32>
    %197 = arith.addf %193, %196 : vector<16x1xf32>
    %198 = math.rsqrt %197 : vector<16x1xf32>
    %199 = vector.broadcast %198 : vector<16x1xf32> to vector<16x32xf32>
    %200 = arith.mulf %195, %199 : vector<16x32xf32>
    %201 = vector.broadcast %181 : vector<1x32xf32> to vector<16x32xf32>
    %202 = arith.mulf %200, %201 : vector<16x32xf32>
    %203 = vector.broadcast %182 : vector<1x32xf32> to vector<16x32xf32>
    %204 = arith.addf %202, %203 : vector<16x32xf32>
    %c0_62 = arith.constant 0 : index
    %c0_63 = arith.constant 0 : index
    %205 = vector.load %arg8[%c0_62, %c0_63] : memref<32x64xf32, #tpu.memory_space<vmem>>, vector<32x64xf32>
    %cst_64 = arith.constant dense<0.000000e+00> : vector<16x64xf32>
    %206 = tpu.matmul %204, %205, %cst_64 {dimension_numbers = #tpu.dot_dimension_numbers<[1], [0], [0], [1], [0, 0, 1, 1], [], []>} : vector<16x32xf32>, vector<32x64xf32>, vector<16x64xf32> -> vector<16x64xf32>
    %c0_65 = arith.constant 0 : index
    %c0_66 = arith.constant 0 : index
    %207 = vector.load %arg9[%c0_65, %c0_66] : memref<1x64xf32, #tpu.memory_space<vmem>>, vector<1x64xf32>
    %208 = vector.broadcast %207 : vector<1x64xf32> to vector<16x64xf32>
    %209 = arith.addf %206, %208 : vector<16x64xf32>
    %cst_67 = arith.constant 0.000000e+00 : f32
    %210 = vector.broadcast %cst_67 : f32 to vector<16x64xf32>
    %211 = arith.maximumf %209, %210 : vector<16x64xf32>
    %c0_68 = arith.constant 0 : index
    %c0_69 = arith.constant 0 : index
    %212 = vector.load %arg10[%c0_68, %c0_69] : memref<64x32xf32, #tpu.memory_space<vmem>>, vector<64x32xf32>
    %cst_70 = arith.constant dense<0.000000e+00> : vector<16x32xf32>
    %213 = tpu.matmul %211, %212, %cst_70 {dimension_numbers = #tpu.dot_dimension_numbers<[1], [0], [0], [1], [0, 0, 1, 1], [], []>} : vector<16x64xf32>, vector<64x32xf32>, vector<16x32xf32> -> vector<16x32xf32>
    %c0_71 = arith.constant 0 : index
    %c0_72 = arith.constant 0 : index
    %214 = vector.load %arg11[%c0_71, %c0_72] : memref<1x32xf32, #tpu.memory_space<vmem>>, vector<1x32xf32>
    %215 = vector.broadcast %214 : vector<1x32xf32> to vector<16x32xf32>
    %216 = arith.addf %213, %215 : vector<16x32xf32>
    %217 = arith.addf %204, %216 : vector<16x32xf32>
    %c0_73 = arith.constant 0 : index
    %c0_74 = arith.constant 0 : index
    %218 = vector.load %arg12[%c0_73, %c0_74] : memref<1x32xf32, #tpu.memory_space<vmem>>, vector<1x32xf32>
    %c0_75 = arith.constant 0 : index
    %c0_76 = arith.constant 0 : index
    %219 = vector.load %arg13[%c0_75, %c0_76] : memref<1x32xf32, #tpu.memory_space<vmem>>, vector<1x32xf32>
    %cst_77 = arith.constant dense<0.000000e+00> : vector<16xf32>
    %220 = vector.multi_reduction <add>, %217, %cst_77 [1] : vector<16x32xf32> to vector<16xf32>
    %221 = vector.shape_cast %220 : vector<16xf32> to vector<16x1xf32>
    %cst_78 = arith.constant 3.200000e+01 : f32
    %222 = vector.broadcast %cst_78 : f32 to vector<16x1xf32>
    %223 = arith.divf %221, %222 : vector<16x1xf32>
    %224 = vector.broadcast %223 : vector<16x1xf32> to vector<16x32xf32>
    %225 = arith.subf %217, %224 : vector<16x32xf32>
    %226 = arith.mulf %225, %225 : vector<16x32xf32>
    %cst_79 = arith.constant dense<0.000000e+00> : vector<16xf32>
    %227 = vector.multi_reduction <add>, %226, %cst_79 [1] : vector<16x32xf32> to vector<16xf32>
    %228 = vector.shape_cast %227 : vector<16xf32> to vector<16x1xf32>
    %cst_80 = arith.constant 3.200000e+01 : f32
    %229 = vector.broadcast %cst_80 : f32 to vector<16x1xf32>
    %230 = arith.divf %228, %229 : vector<16x1xf32>
    %231 = vector.broadcast %223 : vector<16x1xf32> to vector<16x32xf32>
    %232 = arith.subf %217, %231 : vector<16x32xf32>
    %cst_81 = arith.constant 9.99999974E-6 : f32
    %233 = vector.broadcast %cst_81 : f32 to vector<16x1xf32>
    %234 = arith.addf %230, %233 : vector<16x1xf32>
    %235 = math.rsqrt %234 : vector<16x1xf32>
    %236 = vector.broadcast %235 : vector<16x1xf32> to vector<16x32xf32>
    %237 = arith.mulf %232, %236 : vector<16x32xf32>
    %238 = vector.broadcast %218 : vector<1x32xf32> to vector<16x32xf32>
    %239 = arith.mulf %237, %238 : vector<16x32xf32>
    %240 = vector.broadcast %219 : vector<1x32xf32> to vector<16x32xf32>
    %241 = arith.addf %239, %240 : vector<16x32xf32>
    %c0_82 = arith.constant 0 : index
    %c0_83 = arith.constant 0 : index
    %242 = vector.load %arg14[%c0_82, %c0_83] : memref<16x32xf32, #tpu.memory_space<vmem>>, vector<16x32xf32>
    tpu.vector_store %arg14[%c0_82, %c0_83], %241 {strides = array<i32>} : memref<16x32xf32, #tpu.memory_space<vmem>>, vector<16x32xf32>,
    return
  }
}

module attributes {stable_mosaic.version = 11 : i64} {
  func.func @_final_proj_kernel(%arg0: memref<16x32xf32, #tpu.memory_space<vmem>>, %arg1: memref<32x128xf32, #tpu.memory_space<vmem>>, %arg2: memref<1x128xf32, #tpu.memory_space<vmem>>, %arg3: memref<16x128xf32, #tpu.memory_space<vmem>>) attributes {dimension_semantics = [], scalar_prefetch = 0 : i64, scratch_operands = 0 : i64, tpu.core_type = #tpu.core_type<tc>} {
    %c0 = arith.constant 0 : index
    %c0_0 = arith.constant 0 : index
    %0 = vector.load %arg0[%c0, %c0_0] : memref<16x32xf32, #tpu.memory_space<vmem>>, vector<16x32xf32>
    %c0_1 = arith.constant 0 : index
    %c0_2 = arith.constant 0 : index
    %1 = vector.load %arg1[%c0_1, %c0_2] : memref<32x128xf32, #tpu.memory_space<vmem>>, vector<32x128xf32>
    %cst = arith.constant dense<0.000000e+00> : vector<16x128xf32>
    %2 = tpu.matmul %0, %1, %cst {dimension_numbers = #tpu.dot_dimension_numbers<[1], [0], [0], [1], [0, 0, 1, 1], [], []>} : vector<16x32xf32>, vector<32x128xf32>, vector<16x128xf32> -> vector<16x128xf32>
    %c0_3 = arith.constant 0 : index
    %c0_4 = arith.constant 0 : index
    %3 = vector.load %arg2[%c0_3, %c0_4] : memref<1x128xf32, #tpu.memory_space<vmem>>, vector<1x128xf32>
    %4 = vector.broadcast %3 : vector<1x128xf32> to vector<16x128xf32>
    %5 = arith.addf %2, %4 : vector<16x128xf32>
    %c0_5 = arith.constant 0 : index
    %c0_6 = arith.constant 0 : index
    %6 = vector.load %arg3[%c0_5, %c0_6] : memref<16x128xf32, #tpu.memory_space<vmem>>, vector<16x128xf32>
    tpu.vector_store %arg3[%c0_5, %c0_6], %5 {strides = array<i32>} : memref<16x128xf32, #tpu.memory_space<vmem>>, vector<16x128xf32>,
    return
  }
}

module attributes {stable_mosaic.version = 11 : i64} {
  func.func @_decoder_layer_kernel(%arg0: memref<16x32xf32, #tpu.memory_space<vmem>>, %arg1: memref<16x32xf32, #tpu.memory_space<vmem>>, %arg2: memref<2x8x8xf32, #tpu.memory_space<vmem>>, %arg3: memref<2x8x8xf32, #tpu.memory_space<vmem>>, %arg4: memref<32x96xf32, #tpu.memory_space<vmem>>, %arg5: memref<1x96xf32, #tpu.memory_space<vmem>>, %arg6: memref<32x32xf32, #tpu.memory_space<vmem>>, %arg7: memref<1x32xf32, #tpu.memory_space<vmem>>, %arg8: memref<1x32xf32, #tpu.memory_space<vmem>>, %arg9: memref<1x32xf32, #tpu.memory_space<vmem>>, %arg10: memref<32x32xf32, #tpu.memory_space<vmem>>, %arg11: memref<1x32xf32, #tpu.memory_space<vmem>>, %arg12: memref<32x64xf32, #tpu.memory_space<vmem>>, %arg13: memref<1x64xf32, #tpu.memory_space<vmem>>, %arg14: memref<32x32xf32, #tpu.memory_space<vmem>>, %arg15: memref<1x32xf32, #tpu.memory_space<vmem>>, %arg16: memref<1x32xf32, #tpu.memory_space<vmem>>, %arg17: memref<1x32xf32, #tpu.memory_space<vmem>>, %arg18: memref<32x64xf32, #tpu.memory_space<vmem>>, %arg19: memref<1x64xf32, #tpu.memory_space<vmem>>, %arg20: memref<64x32xf32, #tpu.memory_space<vmem>>, %arg21: memref<1x32xf32, #tpu.memory_space<vmem>>, %arg22: memref<1x32xf32, #tpu.memory_space<vmem>>, %arg23: memref<1x32xf32, #tpu.memory_space<vmem>>, %arg24: memref<16x32xf32, #tpu.memory_space<vmem>>) attributes {dimension_semantics = [], scalar_prefetch = 0 : i64, scratch_operands = 0 : i64, tpu.core_type = #tpu.core_type<tc>} {
    %c0 = arith.constant 0 : index
    %c0_0 = arith.constant 0 : index
    %0 = vector.load %arg0[%c0, %c0_0] : memref<16x32xf32, #tpu.memory_space<vmem>>, vector<16x32xf32>
    %c0_1 = arith.constant 0 : index
    %c0_2 = arith.constant 0 : index
    %1 = vector.load %arg1[%c0_1, %c0_2] : memref<16x32xf32, #tpu.memory_space<vmem>>, vector<16x32xf32>
    %c0_3 = arith.constant 0 : index
    %c0_4 = arith.constant 0 : index
    %2 = vector.load %arg4[%c0_3, %c0_4] : memref<32x96xf32, #tpu.memory_space<vmem>>, vector<32x96xf32>
    %cst = arith.constant dense<0.000000e+00> : vector<16x96xf32>
    %3 = tpu.matmul %0, %2, %cst {dimension_numbers = #tpu.dot_dimension_numbers<[1], [0], [0], [1], [0, 0, 1, 1], [], []>} : vector<16x32xf32>, vector<32x96xf32>, vector<16x96xf32> -> vector<16x96xf32>
    %c0_5 = arith.constant 0 : index
    %c0_6 = arith.constant 0 : index
    %4 = vector.load %arg5[%c0_5, %c0_6] : memref<1x96xf32, #tpu.memory_space<vmem>>, vector<1x96xf32>
    %5 = vector.broadcast %4 : vector<1x96xf32> to vector<16x96xf32>
    %6 = arith.addf %3, %5 : vector<16x96xf32>
    %7 = vector.extract_strided_slice %6 {offsets = [0, 0], sizes = [16, 32], strides = [1, 1]} : vector<16x96xf32> to vector<16x32xf32>
    %8 = vector.extract_strided_slice %6 {offsets = [0, 32], sizes = [16, 32], strides = [1, 1]} : vector<16x96xf32> to vector<16x32xf32>
    %9 = vector.extract_strided_slice %6 {offsets = [0, 64], sizes = [16, 32], strides = [1, 1]} : vector<16x96xf32> to vector<16x32xf32>
    %c0_7 = arith.constant 0 : index
    %c0_8 = arith.constant 0 : index
    %c0_9 = arith.constant 0 : index
    %10 = vector.load %arg2[%c0_7, %c0_8, %c0_9] : memref<2x8x8xf32, #tpu.memory_space<vmem>>, vector<2x8x8xf32>
    %11 = vector.extract_strided_slice %7 {offsets = [0, 0], sizes = [8, 32], strides = [1, 1]} : vector<16x32xf32> to vector<8x32xf32>
    %12 = vector.extract_strided_slice %8 {offsets = [0, 0], sizes = [8, 32], strides = [1, 1]} : vector<16x32xf32> to vector<8x32xf32>
    %13 = vector.extract_strided_slice %9 {offsets = [0, 0], sizes = [8, 32], strides = [1, 1]} : vector<16x32xf32> to vector<8x32xf32>
    %14 = vector.extract_strided_slice %10 {offsets = [0, 0, 0], sizes = [1, 8, 8], strides = [1, 1, 1]} : vector<2x8x8xf32> to vector<1x8x8xf32>
    %15 = vector.shape_cast %14 : vector<1x8x8xf32> to vector<8x8xf32>
    %16 = vector.extract_strided_slice %11 {offsets = [0, 0], sizes = [8, 8], strides = [1, 1]} : vector<8x32xf32> to vector<8x8xf32>
    %17 = vector.extract_strided_slice %12 {offsets = [0, 0], sizes = [8, 8], strides = [1, 1]} : vector<8x32xf32> to vector<8x8xf32>
    %18 = vector.extract_strided_slice %13 {offsets = [0, 0], sizes = [8, 8], strides = [1, 1]} : vector<8x32xf32> to vector<8x8xf32>
    %19 = tpu.transpose %17, [1, 0] : vector<8x8xf32> -> vector<8x8xf32>
    %cst_10 = arith.constant dense<0.000000e+00> : vector<8x8xf32>
    %20 = tpu.matmul %16, %19, %cst_10 {dimension_numbers = #tpu.dot_dimension_numbers<[1], [0], [0], [1], [0, 0, 1, 1], [], []>} : vector<8x8xf32>, vector<8x8xf32>, vector<8x8xf32> -> vector<8x8xf32>
    %cst_11 = arith.constant 0.353553385 : f32
    %21 = vector.broadcast %cst_11 : f32 to vector<8x8xf32>
    %22 = arith.mulf %20, %21 : vector<8x8xf32>
    %23 = arith.addf %22, %15 : vector<8x8xf32>
    %cst_12 = arith.constant dense<0xFF800000> : vector<8xf32>
    %24 = vector.multi_reduction <maximumf>, %23, %cst_12 [1] : vector<8x8xf32> to vector<8xf32>
    %25 = vector.shape_cast %24 : vector<8xf32> to vector<8x1xf32>
    %26 = vector.broadcast %25 : vector<8x1xf32> to vector<8x8xf32>
    %27 = arith.subf %23, %26 : vector<8x8xf32>
    %28 = math.exp %27 : vector<8x8xf32>
    %cst_13 = arith.constant dense<0.000000e+00> : vector<8xf32>
    %29 = vector.multi_reduction <add>, %28, %cst_13 [1] : vector<8x8xf32> to vector<8xf32>
    %30 = vector.shape_cast %29 : vector<8xf32> to vector<8x1xf32>
    %31 = tpu.reciprocal %30 {approx = true} : vector<8x1xf32> -> vector<8x1xf32>
    %32 = vector.broadcast %31 : vector<8x1xf32> to vector<8x8xf32>
    %33 = arith.mulf %28, %32 : vector<8x8xf32>
    %cst_14 = arith.constant dense<0.000000e+00> : vector<8x8xf32>
    %34 = tpu.matmul %33, %18, %cst_14 {dimension_numbers = #tpu.dot_dimension_numbers<[1], [0], [0], [1], [0, 0, 1, 1], [], []>} : vector<8x8xf32>, vector<8x8xf32>, vector<8x8xf32> -> vector<8x8xf32>
    %35 = vector.extract_strided_slice %11 {offsets = [0, 8], sizes = [8, 8], strides = [1, 1]} : vector<8x32xf32> to vector<8x8xf32>
    %36 = vector.extract_strided_slice %12 {offsets = [0, 8], sizes = [8, 8], strides = [1, 1]} : vector<8x32xf32> to vector<8x8xf32>
    %37 = vector.extract_strided_slice %13 {offsets = [0, 8], sizes = [8, 8], strides = [1, 1]} : vector<8x32xf32> to vector<8x8xf32>
    %38 = tpu.transpose %36, [1, 0] : vector<8x8xf32> -> vector<8x8xf32>
    %cst_15 = arith.constant dense<0.000000e+00> : vector<8x8xf32>
    %39 = tpu.matmul %35, %38, %cst_15 {dimension_numbers = #tpu.dot_dimension_numbers<[1], [0], [0], [1], [0, 0, 1, 1], [], []>} : vector<8x8xf32>, vector<8x8xf32>, vector<8x8xf32> -> vector<8x8xf32>
    %cst_16 = arith.constant 0.353553385 : f32
    %40 = vector.broadcast %cst_16 : f32 to vector<8x8xf32>
    %41 = arith.mulf %39, %40 : vector<8x8xf32>
    %42 = arith.addf %41, %15 : vector<8x8xf32>
    %cst_17 = arith.constant dense<0xFF800000> : vector<8xf32>
    %43 = vector.multi_reduction <maximumf>, %42, %cst_17 [1] : vector<8x8xf32> to vector<8xf32>
    %44 = vector.shape_cast %43 : vector<8xf32> to vector<8x1xf32>
    %45 = vector.broadcast %44 : vector<8x1xf32> to vector<8x8xf32>
    %46 = arith.subf %42, %45 : vector<8x8xf32>
    %47 = math.exp %46 : vector<8x8xf32>
    %cst_18 = arith.constant dense<0.000000e+00> : vector<8xf32>
    %48 = vector.multi_reduction <add>, %47, %cst_18 [1] : vector<8x8xf32> to vector<8xf32>
    %49 = vector.shape_cast %48 : vector<8xf32> to vector<8x1xf32>
    %50 = tpu.reciprocal %49 {approx = true} : vector<8x1xf32> -> vector<8x1xf32>
    %51 = vector.broadcast %50 : vector<8x1xf32> to vector<8x8xf32>
    %52 = arith.mulf %47, %51 : vector<8x8xf32>
    %cst_19 = arith.constant dense<0.000000e+00> : vector<8x8xf32>
    %53 = tpu.matmul %52, %37, %cst_19 {dimension_numbers = #tpu.dot_dimension_numbers<[1], [0], [0], [1], [0, 0, 1, 1], [], []>} : vector<8x8xf32>, vector<8x8xf32>, vector<8x8xf32> -> vector<8x8xf32>
    %54 = vector.extract_strided_slice %11 {offsets = [0, 16], sizes = [8, 8], strides = [1, 1]} : vector<8x32xf32> to vector<8x8xf32>
    %55 = vector.extract_strided_slice %12 {offsets = [0, 16], sizes = [8, 8], strides = [1, 1]} : vector<8x32xf32> to vector<8x8xf32>
    %56 = vector.extract_strided_slice %13 {offsets = [0, 16], sizes = [8, 8], strides = [1, 1]} : vector<8x32xf32> to vector<8x8xf32>
    %57 = tpu.transpose %55, [1, 0] : vector<8x8xf32> -> vector<8x8xf32>
    %cst_20 = arith.constant dense<0.000000e+00> : vector<8x8xf32>
    %58 = tpu.matmul %54, %57, %cst_20 {dimension_numbers = #tpu.dot_dimension_numbers<[1], [0], [0], [1], [0, 0, 1, 1], [], []>} : vector<8x8xf32>, vector<8x8xf32>, vector<8x8xf32> -> vector<8x8xf32>
    %cst_21 = arith.constant 0.353553385 : f32
    %59 = vector.broadcast %cst_21 : f32 to vector<8x8xf32>
    %60 = arith.mulf %58, %59 : vector<8x8xf32>
    %61 = arith.addf %60, %15 : vector<8x8xf32>
    %cst_22 = arith.constant dense<0xFF800000> : vector<8xf32>
    %62 = vector.multi_reduction <maximumf>, %61, %cst_22 [1] : vector<8x8xf32> to vector<8xf32>
    %63 = vector.shape_cast %62 : vector<8xf32> to vector<8x1xf32>
    %64 = vector.broadcast %63 : vector<8x1xf32> to vector<8x8xf32>
    %65 = arith.subf %61, %64 : vector<8x8xf32>
    %66 = math.exp %65 : vector<8x8xf32>
    %cst_23 = arith.constant dense<0.000000e+00> : vector<8xf32>
    %67 = vector.multi_reduction <add>, %66, %cst_23 [1] : vector<8x8xf32> to vector<8xf32>
    %68 = vector.shape_cast %67 : vector<8xf32> to vector<8x1xf32>
    %69 = tpu.reciprocal %68 {approx = true} : vector<8x1xf32> -> vector<8x1xf32>
    %70 = vector.broadcast %69 : vector<8x1xf32> to vector<8x8xf32>
    %71 = arith.mulf %66, %70 : vector<8x8xf32>
    %cst_24 = arith.constant dense<0.000000e+00> : vector<8x8xf32>
    %72 = tpu.matmul %71, %56, %cst_24 {dimension_numbers = #tpu.dot_dimension_numbers<[1], [0], [0], [1], [0, 0, 1, 1], [], []>} : vector<8x8xf32>, vector<8x8xf32>, vector<8x8xf32> -> vector<8x8xf32>
    %73 = vector.extract_strided_slice %11 {offsets = [0, 24], sizes = [8, 8], strides = [1, 1]} : vector<8x32xf32> to vector<8x8xf32>
    %74 = vector.extract_strided_slice %12 {offsets = [0, 24], sizes = [8, 8], strides = [1, 1]} : vector<8x32xf32> to vector<8x8xf32>
    %75 = vector.extract_strided_slice %13 {offsets = [0, 24], sizes = [8, 8], strides = [1, 1]} : vector<8x32xf32> to vector<8x8xf32>
    %76 = tpu.transpose %74, [1, 0] : vector<8x8xf32> -> vector<8x8xf32>
    %cst_25 = arith.constant dense<0.000000e+00> : vector<8x8xf32>
    %77 = tpu.matmul %73, %76, %cst_25 {dimension_numbers = #tpu.dot_dimension_numbers<[1], [0], [0], [1], [0, 0, 1, 1], [], []>} : vector<8x8xf32>, vector<8x8xf32>, vector<8x8xf32> -> vector<8x8xf32>
    %cst_26 = arith.constant 0.353553385 : f32
    %78 = vector.broadcast %cst_26 : f32 to vector<8x8xf32>
    %79 = arith.mulf %77, %78 : vector<8x8xf32>
    %80 = arith.addf %79, %15 : vector<8x8xf32>
    %cst_27 = arith.constant dense<0xFF800000> : vector<8xf32>
    %81 = vector.multi_reduction <maximumf>, %80, %cst_27 [1] : vector<8x8xf32> to vector<8xf32>
    %82 = vector.shape_cast %81 : vector<8xf32> to vector<8x1xf32>
    %83 = vector.broadcast %82 : vector<8x1xf32> to vector<8x8xf32>
    %84 = arith.subf %80, %83 : vector<8x8xf32>
    %85 = math.exp %84 : vector<8x8xf32>
    %cst_28 = arith.constant dense<0.000000e+00> : vector<8xf32>
    %86 = vector.multi_reduction <add>, %85, %cst_28 [1] : vector<8x8xf32> to vector<8xf32>
    %87 = vector.shape_cast %86 : vector<8xf32> to vector<8x1xf32>
    %88 = tpu.reciprocal %87 {approx = true} : vector<8x1xf32> -> vector<8x1xf32>
    %89 = vector.broadcast %88 : vector<8x1xf32> to vector<8x8xf32>
    %90 = arith.mulf %85, %89 : vector<8x8xf32>
    %cst_29 = arith.constant dense<0.000000e+00> : vector<8x8xf32>
    %91 = tpu.matmul %90, %75, %cst_29 {dimension_numbers = #tpu.dot_dimension_numbers<[1], [0], [0], [1], [0, 0, 1, 1], [], []>} : vector<8x8xf32>, vector<8x8xf32>, vector<8x8xf32> -> vector<8x8xf32>
    %92 = tpu.concatenate %34, %53, %72, %91 in 1 : vector<8x8xf32>, vector<8x8xf32>, vector<8x8xf32>, vector<8x8xf32> -> vector<8x32xf32>
    %93 = vector.extract_strided_slice %7 {offsets = [8, 0], sizes = [8, 32], strides = [1, 1]} : vector<16x32xf32> to vector<8x32xf32>
    %94 = vector.extract_strided_slice %8 {offsets = [8, 0], sizes = [8, 32], strides = [1, 1]} : vector<16x32xf32> to vector<8x32xf32>
    %95 = vector.extract_strided_slice %9 {offsets = [8, 0], sizes = [8, 32], strides = [1, 1]} : vector<16x32xf32> to vector<8x32xf32>
    %96 = vector.extract_strided_slice %10 {offsets = [1, 0, 0], sizes = [1, 8, 8], strides = [1, 1, 1]} : vector<2x8x8xf32> to vector<1x8x8xf32>
    %97 = vector.shape_cast %96 : vector<1x8x8xf32> to vector<8x8xf32>
    %98 = vector.extract_strided_slice %93 {offsets = [0, 0], sizes = [8, 8], strides = [1, 1]} : vector<8x32xf32> to vector<8x8xf32>
    %99 = vector.extract_strided_slice %94 {offsets = [0, 0], sizes = [8, 8], strides = [1, 1]} : vector<8x32xf32> to vector<8x8xf32>
    %100 = vector.extract_strided_slice %95 {offsets = [0, 0], sizes = [8, 8], strides = [1, 1]} : vector<8x32xf32> to vector<8x8xf32>
    %101 = tpu.transpose %99, [1, 0] : vector<8x8xf32> -> vector<8x8xf32>
    %cst_30 = arith.constant dense<0.000000e+00> : vector<8x8xf32>
    %102 = tpu.matmul %98, %101, %cst_30 {dimension_numbers = #tpu.dot_dimension_numbers<[1], [0], [0], [1], [0, 0, 1, 1], [], []>} : vector<8x8xf32>, vector<8x8xf32>, vector<8x8xf32> -> vector<8x8xf32>
    %cst_31 = arith.constant 0.353553385 : f32
    %103 = vector.broadcast %cst_31 : f32 to vector<8x8xf32>
    %104 = arith.mulf %102, %103 : vector<8x8xf32>
    %105 = arith.addf %104, %97 : vector<8x8xf32>
    %cst_32 = arith.constant dense<0xFF800000> : vector<8xf32>
    %106 = vector.multi_reduction <maximumf>, %105, %cst_32 [1] : vector<8x8xf32> to vector<8xf32>
    %107 = vector.shape_cast %106 : vector<8xf32> to vector<8x1xf32>
    %108 = vector.broadcast %107 : vector<8x1xf32> to vector<8x8xf32>
    %109 = arith.subf %105, %108 : vector<8x8xf32>
    %110 = math.exp %109 : vector<8x8xf32>
    %cst_33 = arith.constant dense<0.000000e+00> : vector<8xf32>
    %111 = vector.multi_reduction <add>, %110, %cst_33 [1] : vector<8x8xf32> to vector<8xf32>
    %112 = vector.shape_cast %111 : vector<8xf32> to vector<8x1xf32>
    %113 = tpu.reciprocal %112 {approx = true} : vector<8x1xf32> -> vector<8x1xf32>
    %114 = vector.broadcast %113 : vector<8x1xf32> to vector<8x8xf32>
    %115 = arith.mulf %110, %114 : vector<8x8xf32>
    %cst_34 = arith.constant dense<0.000000e+00> : vector<8x8xf32>
    %116 = tpu.matmul %115, %100, %cst_34 {dimension_numbers = #tpu.dot_dimension_numbers<[1], [0], [0], [1], [0, 0, 1, 1], [], []>} : vector<8x8xf32>, vector<8x8xf32>, vector<8x8xf32> -> vector<8x8xf32>
    %117 = vector.extract_strided_slice %93 {offsets = [0, 8], sizes = [8, 8], strides = [1, 1]} : vector<8x32xf32> to vector<8x8xf32>
    %118 = vector.extract_strided_slice %94 {offsets = [0, 8], sizes = [8, 8], strides = [1, 1]} : vector<8x32xf32> to vector<8x8xf32>
    %119 = vector.extract_strided_slice %95 {offsets = [0, 8], sizes = [8, 8], strides = [1, 1]} : vector<8x32xf32> to vector<8x8xf32>
    %120 = tpu.transpose %118, [1, 0] : vector<8x8xf32> -> vector<8x8xf32>
    %cst_35 = arith.constant dense<0.000000e+00> : vector<8x8xf32>
    %121 = tpu.matmul %117, %120, %cst_35 {dimension_numbers = #tpu.dot_dimension_numbers<[1], [0], [0], [1], [0, 0, 1, 1], [], []>} : vector<8x8xf32>, vector<8x8xf32>, vector<8x8xf32> -> vector<8x8xf32>
    %cst_36 = arith.constant 0.353553385 : f32
    %122 = vector.broadcast %cst_36 : f32 to vector<8x8xf32>
    %123 = arith.mulf %121, %122 : vector<8x8xf32>
    %124 = arith.addf %123, %97 : vector<8x8xf32>
    %cst_37 = arith.constant dense<0xFF800000> : vector<8xf32>
    %125 = vector.multi_reduction <maximumf>, %124, %cst_37 [1] : vector<8x8xf32> to vector<8xf32>
    %126 = vector.shape_cast %125 : vector<8xf32> to vector<8x1xf32>
    %127 = vector.broadcast %126 : vector<8x1xf32> to vector<8x8xf32>
    %128 = arith.subf %124, %127 : vector<8x8xf32>
    %129 = math.exp %128 : vector<8x8xf32>
    %cst_38 = arith.constant dense<0.000000e+00> : vector<8xf32>
    %130 = vector.multi_reduction <add>, %129, %cst_38 [1] : vector<8x8xf32> to vector<8xf32>
    %131 = vector.shape_cast %130 : vector<8xf32> to vector<8x1xf32>
    %132 = tpu.reciprocal %131 {approx = true} : vector<8x1xf32> -> vector<8x1xf32>
    %133 = vector.broadcast %132 : vector<8x1xf32> to vector<8x8xf32>
    %134 = arith.mulf %129, %133 : vector<8x8xf32>
    %cst_39 = arith.constant dense<0.000000e+00> : vector<8x8xf32>
    %135 = tpu.matmul %134, %119, %cst_39 {dimension_numbers = #tpu.dot_dimension_numbers<[1], [0], [0], [1], [0, 0, 1, 1], [], []>} : vector<8x8xf32>, vector<8x8xf32>, vector<8x8xf32> -> vector<8x8xf32>
    %136 = vector.extract_strided_slice %93 {offsets = [0, 16], sizes = [8, 8], strides = [1, 1]} : vector<8x32xf32> to vector<8x8xf32>
    %137 = vector.extract_strided_slice %94 {offsets = [0, 16], sizes = [8, 8], strides = [1, 1]} : vector<8x32xf32> to vector<8x8xf32>
    %138 = vector.extract_strided_slice %95 {offsets = [0, 16], sizes = [8, 8], strides = [1, 1]} : vector<8x32xf32> to vector<8x8xf32>
    %139 = tpu.transpose %137, [1, 0] : vector<8x8xf32> -> vector<8x8xf32>
    %cst_40 = arith.constant dense<0.000000e+00> : vector<8x8xf32>
    %140 = tpu.matmul %136, %139, %cst_40 {dimension_numbers = #tpu.dot_dimension_numbers<[1], [0], [0], [1], [0, 0, 1, 1], [], []>} : vector<8x8xf32>, vector<8x8xf32>, vector<8x8xf32> -> vector<8x8xf32>
    %cst_41 = arith.constant 0.353553385 : f32
    %141 = vector.broadcast %cst_41 : f32 to vector<8x8xf32>
    %142 = arith.mulf %140, %141 : vector<8x8xf32>
    %143 = arith.addf %142, %97 : vector<8x8xf32>
    %cst_42 = arith.constant dense<0xFF800000> : vector<8xf32>
    %144 = vector.multi_reduction <maximumf>, %143, %cst_42 [1] : vector<8x8xf32> to vector<8xf32>
    %145 = vector.shape_cast %144 : vector<8xf32> to vector<8x1xf32>
    %146 = vector.broadcast %145 : vector<8x1xf32> to vector<8x8xf32>
    %147 = arith.subf %143, %146 : vector<8x8xf32>
    %148 = math.exp %147 : vector<8x8xf32>
    %cst_43 = arith.constant dense<0.000000e+00> : vector<8xf32>
    %149 = vector.multi_reduction <add>, %148, %cst_43 [1] : vector<8x8xf32> to vector<8xf32>
    %150 = vector.shape_cast %149 : vector<8xf32> to vector<8x1xf32>
    %151 = tpu.reciprocal %150 {approx = true} : vector<8x1xf32> -> vector<8x1xf32>
    %152 = vector.broadcast %151 : vector<8x1xf32> to vector<8x8xf32>
    %153 = arith.mulf %148, %152 : vector<8x8xf32>
    %cst_44 = arith.constant dense<0.000000e+00> : vector<8x8xf32>
    %154 = tpu.matmul %153, %138, %cst_44 {dimension_numbers = #tpu.dot_dimension_numbers<[1], [0], [0], [1], [0, 0, 1, 1], [], []>} : vector<8x8xf32>, vector<8x8xf32>, vector<8x8xf32> -> vector<8x8xf32>
    %155 = vector.extract_strided_slice %93 {offsets = [0, 24], sizes = [8, 8], strides = [1, 1]} : vector<8x32xf32> to vector<8x8xf32>
    %156 = vector.extract_strided_slice %94 {offsets = [0, 24], sizes = [8, 8], strides = [1, 1]} : vector<8x32xf32> to vector<8x8xf32>
    %157 = vector.extract_strided_slice %95 {offsets = [0, 24], sizes = [8, 8], strides = [1, 1]} : vector<8x32xf32> to vector<8x8xf32>
    %158 = tpu.transpose %156, [1, 0] : vector<8x8xf32> -> vector<8x8xf32>
    %cst_45 = arith.constant dense<0.000000e+00> : vector<8x8xf32>
    %159 = tpu.matmul %155, %158, %cst_45 {dimension_numbers = #tpu.dot_dimension_numbers<[1], [0], [0], [1], [0, 0, 1, 1], [], []>} : vector<8x8xf32>, vector<8x8xf32>, vector<8x8xf32> -> vector<8x8xf32>
    %cst_46 = arith.constant 0.353553385 : f32
    %160 = vector.broadcast %cst_46 : f32 to vector<8x8xf32>
    %161 = arith.mulf %159, %160 : vector<8x8xf32>
    %162 = arith.addf %161, %97 : vector<8x8xf32>
    %cst_47 = arith.constant dense<0xFF800000> : vector<8xf32>
    %163 = vector.multi_reduction <maximumf>, %162, %cst_47 [1] : vector<8x8xf32> to vector<8xf32>
    %164 = vector.shape_cast %163 : vector<8xf32> to vector<8x1xf32>
    %165 = vector.broadcast %164 : vector<8x1xf32> to vector<8x8xf32>
    %166 = arith.subf %162, %165 : vector<8x8xf32>
    %167 = math.exp %166 : vector<8x8xf32>
    %cst_48 = arith.constant dense<0.000000e+00> : vector<8xf32>
    %168 = vector.multi_reduction <add>, %167, %cst_48 [1] : vector<8x8xf32> to vector<8xf32>
    %169 = vector.shape_cast %168 : vector<8xf32> to vector<8x1xf32>
    %170 = tpu.reciprocal %169 {approx = true} : vector<8x1xf32> -> vector<8x1xf32>
    %171 = vector.broadcast %170 : vector<8x1xf32> to vector<8x8xf32>
    %172 = arith.mulf %167, %171 : vector<8x8xf32>
    %cst_49 = arith.constant dense<0.000000e+00> : vector<8x8xf32>
    %173 = tpu.matmul %172, %157, %cst_49 {dimension_numbers = #tpu.dot_dimension_numbers<[1], [0], [0], [1], [0, 0, 1, 1], [], []>} : vector<8x8xf32>, vector<8x8xf32>, vector<8x8xf32> -> vector<8x8xf32>
    %174 = tpu.concatenate %116, %135, %154, %173 in 1 : vector<8x8xf32>, vector<8x8xf32>, vector<8x8xf32>, vector<8x8xf32> -> vector<8x32xf32>
    %175 = tpu.concatenate %92, %174 in 0 : vector<8x32xf32>, vector<8x32xf32> -> vector<16x32xf32>
    %c0_50 = arith.constant 0 : index
    %c0_51 = arith.constant 0 : index
    %176 = vector.load %arg6[%c0_50, %c0_51] : memref<32x32xf32, #tpu.memory_space<vmem>>, vector<32x32xf32>
    %cst_52 = arith.constant dense<0.000000e+00> : vector<16x32xf32>
    %177 = tpu.matmul %175, %176, %cst_52 {dimension_numbers = #tpu.dot_dimension_numbers<[1], [0], [0], [1], [0, 0, 1, 1], [], []>} : vector<16x32xf32>, vector<32x32xf32>, vector<16x32xf32> -> vector<16x32xf32>
    %c0_53 = arith.constant 0 : index
    %c0_54 = arith.constant 0 : index
    %178 = vector.load %arg7[%c0_53, %c0_54] : memref<1x32xf32, #tpu.memory_space<vmem>>, vector<1x32xf32>
    %179 = vector.broadcast %178 : vector<1x32xf32> to vector<16x32xf32>
    %180 = arith.addf %177, %179 : vector<16x32xf32>
    %181 = arith.addf %0, %180 : vector<16x32xf32>
    %c0_55 = arith.constant 0 : index
    %c0_56 = arith.constant 0 : index
    %182 = vector.load %arg8[%c0_55, %c0_56] : memref<1x32xf32, #tpu.memory_space<vmem>>, vector<1x32xf32>
    %c0_57 = arith.constant 0 : index
    %c0_58 = arith.constant 0 : index
    %183 = vector.load %arg9[%c0_57, %c0_58] : memref<1x32xf32, #tpu.memory_space<vmem>>, vector<1x32xf32>
    %cst_59 = arith.constant dense<0.000000e+00> : vector<16xf32>
    %184 = vector.multi_reduction <add>, %181, %cst_59 [1] : vector<16x32xf32> to vector<16xf32>
    %185 = vector.shape_cast %184 : vector<16xf32> to vector<16x1xf32>
    %cst_60 = arith.constant 3.200000e+01 : f32
    %186 = vector.broadcast %cst_60 : f32 to vector<16x1xf32>
    %187 = arith.divf %185, %186 : vector<16x1xf32>
    %188 = vector.broadcast %187 : vector<16x1xf32> to vector<16x32xf32>
    %189 = arith.subf %181, %188 : vector<16x32xf32>
    %190 = arith.mulf %189, %189 : vector<16x32xf32>
    %cst_61 = arith.constant dense<0.000000e+00> : vector<16xf32>
    %191 = vector.multi_reduction <add>, %190, %cst_61 [1] : vector<16x32xf32> to vector<16xf32>
    %192 = vector.shape_cast %191 : vector<16xf32> to vector<16x1xf32>
    %cst_62 = arith.constant 3.200000e+01 : f32
    %193 = vector.broadcast %cst_62 : f32 to vector<16x1xf32>
    %194 = arith.divf %192, %193 : vector<16x1xf32>
    %195 = vector.broadcast %187 : vector<16x1xf32> to vector<16x32xf32>
    %196 = arith.subf %181, %195 : vector<16x32xf32>
    %cst_63 = arith.constant 9.99999974E-6 : f32
    %197 = vector.broadcast %cst_63 : f32 to vector<16x1xf32>
    %198 = arith.addf %194, %197 : vector<16x1xf32>
    %199 = math.rsqrt %198 : vector<16x1xf32>
    %200 = vector.broadcast %199 : vector<16x1xf32> to vector<16x32xf32>
    %201 = arith.mulf %196, %200 : vector<16x32xf32>
    %202 = vector.broadcast %182 : vector<1x32xf32> to vector<16x32xf32>
    %203 = arith.mulf %201, %202 : vector<16x32xf32>
    %204 = vector.broadcast %183 : vector<1x32xf32> to vector<16x32xf32>
    %205 = arith.addf %203, %204 : vector<16x32xf32>
    %c0_64 = arith.constant 0 : index
    %c0_65 = arith.constant 0 : index
    %206 = vector.load %arg10[%c0_64, %c0_65] : memref<32x32xf32, #tpu.memory_space<vmem>>, vector<32x32xf32>
    %cst_66 = arith.constant dense<0.000000e+00> : vector<16x32xf32>
    %207 = tpu.matmul %205, %206, %cst_66 {dimension_numbers = #tpu.dot_dimension_numbers<[1], [0], [0], [1], [0, 0, 1, 1], [], []>} : vector<16x32xf32>, vector<32x32xf32>, vector<16x32xf32> -> vector<16x32xf32>
    %c0_67 = arith.constant 0 : index
    %c0_68 = arith.constant 0 : index
    %208 = vector.load %arg11[%c0_67, %c0_68] : memref<1x32xf32, #tpu.memory_space<vmem>>, vector<1x32xf32>
    %209 = vector.broadcast %208 : vector<1x32xf32> to vector<16x32xf32>
    %210 = arith.addf %207, %209 : vector<16x32xf32>
    %c0_69 = arith.constant 0 : index
    %c0_70 = arith.constant 0 : index
    %211 = vector.load %arg12[%c0_69, %c0_70] : memref<32x64xf32, #tpu.memory_space<vmem>>, vector<32x64xf32>
    %cst_71 = arith.constant dense<0.000000e+00> : vector<16x64xf32>
    %212 = tpu.matmul %1, %211, %cst_71 {dimension_numbers = #tpu.dot_dimension_numbers<[1], [0], [0], [1], [0, 0, 1, 1], [], []>} : vector<16x32xf32>, vector<32x64xf32>, vector<16x64xf32> -> vector<16x64xf32>
    %c0_72 = arith.constant 0 : index
    %c0_73 = arith.constant 0 : index
    %213 = vector.load %arg13[%c0_72, %c0_73] : memref<1x64xf32, #tpu.memory_space<vmem>>, vector<1x64xf32>
    %214 = vector.broadcast %213 : vector<1x64xf32> to vector<16x64xf32>
    %215 = arith.addf %212, %214 : vector<16x64xf32>
    %216 = vector.extract_strided_slice %215 {offsets = [0, 0], sizes = [16, 32], strides = [1, 1]} : vector<16x64xf32> to vector<16x32xf32>
    %217 = vector.extract_strided_slice %215 {offsets = [0, 32], sizes = [16, 32], strides = [1, 1]} : vector<16x64xf32> to vector<16x32xf32>
    %c0_74 = arith.constant 0 : index
    %c0_75 = arith.constant 0 : index
    %c0_76 = arith.constant 0 : index
    %218 = vector.load %arg3[%c0_74, %c0_75, %c0_76] : memref<2x8x8xf32, #tpu.memory_space<vmem>>, vector<2x8x8xf32>
    %219 = vector.extract_strided_slice %210 {offsets = [0, 0], sizes = [8, 32], strides = [1, 1]} : vector<16x32xf32> to vector<8x32xf32>
    %220 = vector.extract_strided_slice %216 {offsets = [0, 0], sizes = [8, 32], strides = [1, 1]} : vector<16x32xf32> to vector<8x32xf32>
    %221 = vector.extract_strided_slice %217 {offsets = [0, 0], sizes = [8, 32], strides = [1, 1]} : vector<16x32xf32> to vector<8x32xf32>
    %222 = vector.extract_strided_slice %218 {offsets = [0, 0, 0], sizes = [1, 8, 8], strides = [1, 1, 1]} : vector<2x8x8xf32> to vector<1x8x8xf32>
    %223 = vector.shape_cast %222 : vector<1x8x8xf32> to vector<8x8xf32>
    %224 = vector.extract_strided_slice %219 {offsets = [0, 0], sizes = [8, 8], strides = [1, 1]} : vector<8x32xf32> to vector<8x8xf32>
    %225 = vector.extract_strided_slice %220 {offsets = [0, 0], sizes = [8, 8], strides = [1, 1]} : vector<8x32xf32> to vector<8x8xf32>
    %226 = vector.extract_strided_slice %221 {offsets = [0, 0], sizes = [8, 8], strides = [1, 1]} : vector<8x32xf32> to vector<8x8xf32>
    %227 = tpu.transpose %225, [1, 0] : vector<8x8xf32> -> vector<8x8xf32>
    %cst_77 = arith.constant dense<0.000000e+00> : vector<8x8xf32>
    %228 = tpu.matmul %224, %227, %cst_77 {dimension_numbers = #tpu.dot_dimension_numbers<[1], [0], [0], [1], [0, 0, 1, 1], [], []>} : vector<8x8xf32>, vector<8x8xf32>, vector<8x8xf32> -> vector<8x8xf32>
    %cst_78 = arith.constant 0.353553385 : f32
    %229 = vector.broadcast %cst_78 : f32 to vector<8x8xf32>
    %230 = arith.mulf %228, %229 : vector<8x8xf32>
    %231 = arith.addf %230, %223 : vector<8x8xf32>
    %cst_79 = arith.constant dense<0xFF800000> : vector<8xf32>
    %232 = vector.multi_reduction <maximumf>, %231, %cst_79 [1] : vector<8x8xf32> to vector<8xf32>
    %233 = vector.shape_cast %232 : vector<8xf32> to vector<8x1xf32>
    %234 = vector.broadcast %233 : vector<8x1xf32> to vector<8x8xf32>
    %235 = arith.subf %231, %234 : vector<8x8xf32>
    %236 = math.exp %235 : vector<8x8xf32>
    %cst_80 = arith.constant dense<0.000000e+00> : vector<8xf32>
    %237 = vector.multi_reduction <add>, %236, %cst_80 [1] : vector<8x8xf32> to vector<8xf32>
    %238 = vector.shape_cast %237 : vector<8xf32> to vector<8x1xf32>
    %239 = tpu.reciprocal %238 {approx = true} : vector<8x1xf32> -> vector<8x1xf32>
    %240 = vector.broadcast %239 : vector<8x1xf32> to vector<8x8xf32>
    %241 = arith.mulf %236, %240 : vector<8x8xf32>
    %cst_81 = arith.constant dense<0.000000e+00> : vector<8x8xf32>
    %242 = tpu.matmul %241, %226, %cst_81 {dimension_numbers = #tpu.dot_dimension_numbers<[1], [0], [0], [1], [0, 0, 1, 1], [], []>} : vector<8x8xf32>, vector<8x8xf32>, vector<8x8xf32> -> vector<8x8xf32>
    %243 = vector.extract_strided_slice %219 {offsets = [0, 8], sizes = [8, 8], strides = [1, 1]} : vector<8x32xf32> to vector<8x8xf32>
    %244 = vector.extract_strided_slice %220 {offsets = [0, 8], sizes = [8, 8], strides = [1, 1]} : vector<8x32xf32> to vector<8x8xf32>
    %245 = vector.extract_strided_slice %221 {offsets = [0, 8], sizes = [8, 8], strides = [1, 1]} : vector<8x32xf32> to vector<8x8xf32>
    %246 = tpu.transpose %244, [1, 0] : vector<8x8xf32> -> vector<8x8xf32>
    %cst_82 = arith.constant dense<0.000000e+00> : vector<8x8xf32>
    %247 = tpu.matmul %243, %246, %cst_82 {dimension_numbers = #tpu.dot_dimension_numbers<[1], [0], [0], [1], [0, 0, 1, 1], [], []>} : vector<8x8xf32>, vector<8x8xf32>, vector<8x8xf32> -> vector<8x8xf32>
    %cst_83 = arith.constant 0.353553385 : f32
    %248 = vector.broadcast %cst_83 : f32 to vector<8x8xf32>
    %249 = arith.mulf %247, %248 : vector<8x8xf32>
    %250 = arith.addf %249, %223 : vector<8x8xf32>
    %cst_84 = arith.constant dense<0xFF800000> : vector<8xf32>
    %251 = vector.multi_reduction <maximumf>, %250, %cst_84 [1] : vector<8x8xf32> to vector<8xf32>
    %252 = vector.shape_cast %251 : vector<8xf32> to vector<8x1xf32>
    %253 = vector.broadcast %252 : vector<8x1xf32> to vector<8x8xf32>
    %254 = arith.subf %250, %253 : vector<8x8xf32>
    %255 = math.exp %254 : vector<8x8xf32>
    %cst_85 = arith.constant dense<0.000000e+00> : vector<8xf32>
    %256 = vector.multi_reduction <add>, %255, %cst_85 [1] : vector<8x8xf32> to vector<8xf32>
    %257 = vector.shape_cast %256 : vector<8xf32> to vector<8x1xf32>
    %258 = tpu.reciprocal %257 {approx = true} : vector<8x1xf32> -> vector<8x1xf32>
    %259 = vector.broadcast %258 : vector<8x1xf32> to vector<8x8xf32>
    %260 = arith.mulf %255, %259 : vector<8x8xf32>
    %cst_86 = arith.constant dense<0.000000e+00> : vector<8x8xf32>
    %261 = tpu.matmul %260, %245, %cst_86 {dimension_numbers = #tpu.dot_dimension_numbers<[1], [0], [0], [1], [0, 0, 1, 1], [], []>} : vector<8x8xf32>, vector<8x8xf32>, vector<8x8xf32> -> vector<8x8xf32>
    %262 = vector.extract_strided_slice %219 {offsets = [0, 16], sizes = [8, 8], strides = [1, 1]} : vector<8x32xf32> to vector<8x8xf32>
    %263 = vector.extract_strided_slice %220 {offsets = [0, 16], sizes = [8, 8], strides = [1, 1]} : vector<8x32xf32> to vector<8x8xf32>
    %264 = vector.extract_strided_slice %221 {offsets = [0, 16], sizes = [8, 8], strides = [1, 1]} : vector<8x32xf32> to vector<8x8xf32>
    %265 = tpu.transpose %263, [1, 0] : vector<8x8xf32> -> vector<8x8xf32>
    %cst_87 = arith.constant dense<0.000000e+00> : vector<8x8xf32>
    %266 = tpu.matmul %262, %265, %cst_87 {dimension_numbers = #tpu.dot_dimension_numbers<[1], [0], [0], [1], [0, 0, 1, 1], [], []>} : vector<8x8xf32>, vector<8x8xf32>, vector<8x8xf32> -> vector<8x8xf32>
    %cst_88 = arith.constant 0.353553385 : f32
    %267 = vector.broadcast %cst_88 : f32 to vector<8x8xf32>
    %268 = arith.mulf %266, %267 : vector<8x8xf32>
    %269 = arith.addf %268, %223 : vector<8x8xf32>
    %cst_89 = arith.constant dense<0xFF800000> : vector<8xf32>
    %270 = vector.multi_reduction <maximumf>, %269, %cst_89 [1] : vector<8x8xf32> to vector<8xf32>
    %271 = vector.shape_cast %270 : vector<8xf32> to vector<8x1xf32>
    %272 = vector.broadcast %271 : vector<8x1xf32> to vector<8x8xf32>
    %273 = arith.subf %269, %272 : vector<8x8xf32>
    %274 = math.exp %273 : vector<8x8xf32>
    %cst_90 = arith.constant dense<0.000000e+00> : vector<8xf32>
    %275 = vector.multi_reduction <add>, %274, %cst_90 [1] : vector<8x8xf32> to vector<8xf32>
    %276 = vector.shape_cast %275 : vector<8xf32> to vector<8x1xf32>
    %277 = tpu.reciprocal %276 {approx = true} : vector<8x1xf32> -> vector<8x1xf32>
    %278 = vector.broadcast %277 : vector<8x1xf32> to vector<8x8xf32>
    %279 = arith.mulf %274, %278 : vector<8x8xf32>
    %cst_91 = arith.constant dense<0.000000e+00> : vector<8x8xf32>
    %280 = tpu.matmul %279, %264, %cst_91 {dimension_numbers = #tpu.dot_dimension_numbers<[1], [0], [0], [1], [0, 0, 1, 1], [], []>} : vector<8x8xf32>, vector<8x8xf32>, vector<8x8xf32> -> vector<8x8xf32>
    %281 = vector.extract_strided_slice %219 {offsets = [0, 24], sizes = [8, 8], strides = [1, 1]} : vector<8x32xf32> to vector<8x8xf32>
    %282 = vector.extract_strided_slice %220 {offsets = [0, 24], sizes = [8, 8], strides = [1, 1]} : vector<8x32xf32> to vector<8x8xf32>
    %283 = vector.extract_strided_slice %221 {offsets = [0, 24], sizes = [8, 8], strides = [1, 1]} : vector<8x32xf32> to vector<8x8xf32>
    %284 = tpu.transpose %282, [1, 0] : vector<8x8xf32> -> vector<8x8xf32>
    %cst_92 = arith.constant dense<0.000000e+00> : vector<8x8xf32>
    %285 = tpu.matmul %281, %284, %cst_92 {dimension_numbers = #tpu.dot_dimension_numbers<[1], [0], [0], [1], [0, 0, 1, 1], [], []>} : vector<8x8xf32>, vector<8x8xf32>, vector<8x8xf32> -> vector<8x8xf32>
    %cst_93 = arith.constant 0.353553385 : f32
    %286 = vector.broadcast %cst_93 : f32 to vector<8x8xf32>
    %287 = arith.mulf %285, %286 : vector<8x8xf32>
    %288 = arith.addf %287, %223 : vector<8x8xf32>
    %cst_94 = arith.constant dense<0xFF800000> : vector<8xf32>
    %289 = vector.multi_reduction <maximumf>, %288, %cst_94 [1] : vector<8x8xf32> to vector<8xf32>
    %290 = vector.shape_cast %289 : vector<8xf32> to vector<8x1xf32>
    %291 = vector.broadcast %290 : vector<8x1xf32> to vector<8x8xf32>
    %292 = arith.subf %288, %291 : vector<8x8xf32>
    %293 = math.exp %292 : vector<8x8xf32>
    %cst_95 = arith.constant dense<0.000000e+00> : vector<8xf32>
    %294 = vector.multi_reduction <add>, %293, %cst_95 [1] : vector<8x8xf32> to vector<8xf32>
    %295 = vector.shape_cast %294 : vector<8xf32> to vector<8x1xf32>
    %296 = tpu.reciprocal %295 {approx = true} : vector<8x1xf32> -> vector<8x1xf32>
    %297 = vector.broadcast %296 : vector<8x1xf32> to vector<8x8xf32>
    %298 = arith.mulf %293, %297 : vector<8x8xf32>
    %cst_96 = arith.constant dense<0.000000e+00> : vector<8x8xf32>
    %299 = tpu.matmul %298, %283, %cst_96 {dimension_numbers = #tpu.dot_dimension_numbers<[1], [0], [0], [1], [0, 0, 1, 1], [], []>} : vector<8x8xf32>, vector<8x8xf32>, vector<8x8xf32> -> vector<8x8xf32>
    %300 = tpu.concatenate %242, %261, %280, %299 in 1 : vector<8x8xf32>, vector<8x8xf32>, vector<8x8xf32>, vector<8x8xf32> -> vector<8x32xf32>
    %301 = vector.extract_strided_slice %210 {offsets = [8, 0], sizes = [8, 32], strides = [1, 1]} : vector<16x32xf32> to vector<8x32xf32>
    %302 = vector.extract_strided_slice %216 {offsets = [8, 0], sizes = [8, 32], strides = [1, 1]} : vector<16x32xf32> to vector<8x32xf32>
    %303 = vector.extract_strided_slice %217 {offsets = [8, 0], sizes = [8, 32], strides = [1, 1]} : vector<16x32xf32> to vector<8x32xf32>
    %304 = vector.extract_strided_slice %218 {offsets = [1, 0, 0], sizes = [1, 8, 8], strides = [1, 1, 1]} : vector<2x8x8xf32> to vector<1x8x8xf32>
    %305 = vector.shape_cast %304 : vector<1x8x8xf32> to vector<8x8xf32>
    %306 = vector.extract_strided_slice %301 {offsets = [0, 0], sizes = [8, 8], strides = [1, 1]} : vector<8x32xf32> to vector<8x8xf32>
    %307 = vector.extract_strided_slice %302 {offsets = [0, 0], sizes = [8, 8], strides = [1, 1]} : vector<8x32xf32> to vector<8x8xf32>
    %308 = vector.extract_strided_slice %303 {offsets = [0, 0], sizes = [8, 8], strides = [1, 1]} : vector<8x32xf32> to vector<8x8xf32>
    %309 = tpu.transpose %307, [1, 0] : vector<8x8xf32> -> vector<8x8xf32>
    %cst_97 = arith.constant dense<0.000000e+00> : vector<8x8xf32>
    %310 = tpu.matmul %306, %309, %cst_97 {dimension_numbers = #tpu.dot_dimension_numbers<[1], [0], [0], [1], [0, 0, 1, 1], [], []>} : vector<8x8xf32>, vector<8x8xf32>, vector<8x8xf32> -> vector<8x8xf32>
    %cst_98 = arith.constant 0.353553385 : f32
    %311 = vector.broadcast %cst_98 : f32 to vector<8x8xf32>
    %312 = arith.mulf %310, %311 : vector<8x8xf32>
    %313 = arith.addf %312, %305 : vector<8x8xf32>
    %cst_99 = arith.constant dense<0xFF800000> : vector<8xf32>
    %314 = vector.multi_reduction <maximumf>, %313, %cst_99 [1] : vector<8x8xf32> to vector<8xf32>
    %315 = vector.shape_cast %314 : vector<8xf32> to vector<8x1xf32>
    %316 = vector.broadcast %315 : vector<8x1xf32> to vector<8x8xf32>
    %317 = arith.subf %313, %316 : vector<8x8xf32>
    %318 = math.exp %317 : vector<8x8xf32>
    %cst_100 = arith.constant dense<0.000000e+00> : vector<8xf32>
    %319 = vector.multi_reduction <add>, %318, %cst_100 [1] : vector<8x8xf32> to vector<8xf32>
    %320 = vector.shape_cast %319 : vector<8xf32> to vector<8x1xf32>
    %321 = tpu.reciprocal %320 {approx = true} : vector<8x1xf32> -> vector<8x1xf32>
    %322 = vector.broadcast %321 : vector<8x1xf32> to vector<8x8xf32>
    %323 = arith.mulf %318, %322 : vector<8x8xf32>
    %cst_101 = arith.constant dense<0.000000e+00> : vector<8x8xf32>
    %324 = tpu.matmul %323, %308, %cst_101 {dimension_numbers = #tpu.dot_dimension_numbers<[1], [0], [0], [1], [0, 0, 1, 1], [], []>} : vector<8x8xf32>, vector<8x8xf32>, vector<8x8xf32> -> vector<8x8xf32>
    %325 = vector.extract_strided_slice %301 {offsets = [0, 8], sizes = [8, 8], strides = [1, 1]} : vector<8x32xf32> to vector<8x8xf32>
    %326 = vector.extract_strided_slice %302 {offsets = [0, 8], sizes = [8, 8], strides = [1, 1]} : vector<8x32xf32> to vector<8x8xf32>
    %327 = vector.extract_strided_slice %303 {offsets = [0, 8], sizes = [8, 8], strides = [1, 1]} : vector<8x32xf32> to vector<8x8xf32>
    %328 = tpu.transpose %326, [1, 0] : vector<8x8xf32> -> vector<8x8xf32>
    %cst_102 = arith.constant dense<0.000000e+00> : vector<8x8xf32>
    %329 = tpu.matmul %325, %328, %cst_102 {dimension_numbers = #tpu.dot_dimension_numbers<[1], [0], [0], [1], [0, 0, 1, 1], [], []>} : vector<8x8xf32>, vector<8x8xf32>, vector<8x8xf32> -> vector<8x8xf32>
    %cst_103 = arith.constant 0.353553385 : f32
    %330 = vector.broadcast %cst_103 : f32 to vector<8x8xf32>
    %331 = arith.mulf %329, %330 : vector<8x8xf32>
    %332 = arith.addf %331, %305 : vector<8x8xf32>
    %cst_104 = arith.constant dense<0xFF800000> : vector<8xf32>
    %333 = vector.multi_reduction <maximumf>, %332, %cst_104 [1] : vector<8x8xf32> to vector<8xf32>
    %334 = vector.shape_cast %333 : vector<8xf32> to vector<8x1xf32>
    %335 = vector.broadcast %334 : vector<8x1xf32> to vector<8x8xf32>
    %336 = arith.subf %332, %335 : vector<8x8xf32>
    %337 = math.exp %336 : vector<8x8xf32>
    %cst_105 = arith.constant dense<0.000000e+00> : vector<8xf32>
    %338 = vector.multi_reduction <add>, %337, %cst_105 [1] : vector<8x8xf32> to vector<8xf32>
    %339 = vector.shape_cast %338 : vector<8xf32> to vector<8x1xf32>
    %340 = tpu.reciprocal %339 {approx = true} : vector<8x1xf32> -> vector<8x1xf32>
    %341 = vector.broadcast %340 : vector<8x1xf32> to vector<8x8xf32>
    %342 = arith.mulf %337, %341 : vector<8x8xf32>
    %cst_106 = arith.constant dense<0.000000e+00> : vector<8x8xf32>
    %343 = tpu.matmul %342, %327, %cst_106 {dimension_numbers = #tpu.dot_dimension_numbers<[1], [0], [0], [1], [0, 0, 1, 1], [], []>} : vector<8x8xf32>, vector<8x8xf32>, vector<8x8xf32> -> vector<8x8xf32>
    %344 = vector.extract_strided_slice %301 {offsets = [0, 16], sizes = [8, 8], strides = [1, 1]} : vector<8x32xf32> to vector<8x8xf32>
    %345 = vector.extract_strided_slice %302 {offsets = [0, 16], sizes = [8, 8], strides = [1, 1]} : vector<8x32xf32> to vector<8x8xf32>
    %346 = vector.extract_strided_slice %303 {offsets = [0, 16], sizes = [8, 8], strides = [1, 1]} : vector<8x32xf32> to vector<8x8xf32>
    %347 = tpu.transpose %345, [1, 0] : vector<8x8xf32> -> vector<8x8xf32>
    %cst_107 = arith.constant dense<0.000000e+00> : vector<8x8xf32>
    %348 = tpu.matmul %344, %347, %cst_107 {dimension_numbers = #tpu.dot_dimension_numbers<[1], [0], [0], [1], [0, 0, 1, 1], [], []>} : vector<8x8xf32>, vector<8x8xf32>, vector<8x8xf32> -> vector<8x8xf32>
    %cst_108 = arith.constant 0.353553385 : f32
    %349 = vector.broadcast %cst_108 : f32 to vector<8x8xf32>
    %350 = arith.mulf %348, %349 : vector<8x8xf32>
    %351 = arith.addf %350, %305 : vector<8x8xf32>
    %cst_109 = arith.constant dense<0xFF800000> : vector<8xf32>
    %352 = vector.multi_reduction <maximumf>, %351, %cst_109 [1] : vector<8x8xf32> to vector<8xf32>
    %353 = vector.shape_cast %352 : vector<8xf32> to vector<8x1xf32>
    %354 = vector.broadcast %353 : vector<8x1xf32> to vector<8x8xf32>
    %355 = arith.subf %351, %354 : vector<8x8xf32>
    %356 = math.exp %355 : vector<8x8xf32>
    %cst_110 = arith.constant dense<0.000000e+00> : vector<8xf32>
    %357 = vector.multi_reduction <add>, %356, %cst_110 [1] : vector<8x8xf32> to vector<8xf32>
    %358 = vector.shape_cast %357 : vector<8xf32> to vector<8x1xf32>
    %359 = tpu.reciprocal %358 {approx = true} : vector<8x1xf32> -> vector<8x1xf32>
    %360 = vector.broadcast %359 : vector<8x1xf32> to vector<8x8xf32>
    %361 = arith.mulf %356, %360 : vector<8x8xf32>
    %cst_111 = arith.constant dense<0.000000e+00> : vector<8x8xf32>
    %362 = tpu.matmul %361, %346, %cst_111 {dimension_numbers = #tpu.dot_dimension_numbers<[1], [0], [0], [1], [0, 0, 1, 1], [], []>} : vector<8x8xf32>, vector<8x8xf32>, vector<8x8xf32> -> vector<8x8xf32>
    %363 = vector.extract_strided_slice %301 {offsets = [0, 24], sizes = [8, 8], strides = [1, 1]} : vector<8x32xf32> to vector<8x8xf32>
    %364 = vector.extract_strided_slice %302 {offsets = [0, 24], sizes = [8, 8], strides = [1, 1]} : vector<8x32xf32> to vector<8x8xf32>
    %365 = vector.extract_strided_slice %303 {offsets = [0, 24], sizes = [8, 8], strides = [1, 1]} : vector<8x32xf32> to vector<8x8xf32>
    %366 = tpu.transpose %364, [1, 0] : vector<8x8xf32> -> vector<8x8xf32>
    %cst_112 = arith.constant dense<0.000000e+00> : vector<8x8xf32>
    %367 = tpu.matmul %363, %366, %cst_112 {dimension_numbers = #tpu.dot_dimension_numbers<[1], [0], [0], [1], [0, 0, 1, 1], [], []>} : vector<8x8xf32>, vector<8x8xf32>, vector<8x8xf32> -> vector<8x8xf32>
    %cst_113 = arith.constant 0.353553385 : f32
    %368 = vector.broadcast %cst_113 : f32 to vector<8x8xf32>
    %369 = arith.mulf %367, %368 : vector<8x8xf32>
    %370 = arith.addf %369, %305 : vector<8x8xf32>
    %cst_114 = arith.constant dense<0xFF800000> : vector<8xf32>
    %371 = vector.multi_reduction <maximumf>, %370, %cst_114 [1] : vector<8x8xf32> to vector<8xf32>
    %372 = vector.shape_cast %371 : vector<8xf32> to vector<8x1xf32>
    %373 = vector.broadcast %372 : vector<8x1xf32> to vector<8x8xf32>
    %374 = arith.subf %370, %373 : vector<8x8xf32>
    %375 = math.exp %374 : vector<8x8xf32>
    %cst_115 = arith.constant dense<0.000000e+00> : vector<8xf32>
    %376 = vector.multi_reduction <add>, %375, %cst_115 [1] : vector<8x8xf32> to vector<8xf32>
    %377 = vector.shape_cast %376 : vector<8xf32> to vector<8x1xf32>
    %378 = tpu.reciprocal %377 {approx = true} : vector<8x1xf32> -> vector<8x1xf32>
    %379 = vector.broadcast %378 : vector<8x1xf32> to vector<8x8xf32>
    %380 = arith.mulf %375, %379 : vector<8x8xf32>
    %cst_116 = arith.constant dense<0.000000e+00> : vector<8x8xf32>
    %381 = tpu.matmul %380, %365, %cst_116 {dimension_numbers = #tpu.dot_dimension_numbers<[1], [0], [0], [1], [0, 0, 1, 1], [], []>} : vector<8x8xf32>, vector<8x8xf32>, vector<8x8xf32> -> vector<8x8xf32>
    %382 = tpu.concatenate %324, %343, %362, %381 in 1 : vector<8x8xf32>, vector<8x8xf32>, vector<8x8xf32>, vector<8x8xf32> -> vector<8x32xf32>
    %383 = tpu.concatenate %300, %382 in 0 : vector<8x32xf32>, vector<8x32xf32> -> vector<16x32xf32>
    %c0_117 = arith.constant 0 : index
    %c0_118 = arith.constant 0 : index
    %384 = vector.load %arg14[%c0_117, %c0_118] : memref<32x32xf32, #tpu.memory_space<vmem>>, vector<32x32xf32>
    %cst_119 = arith.constant dense<0.000000e+00> : vector<16x32xf32>
    %385 = tpu.matmul %383, %384, %cst_119 {dimension_numbers = #tpu.dot_dimension_numbers<[1], [0], [0], [1], [0, 0, 1, 1], [], []>} : vector<16x32xf32>, vector<32x32xf32>, vector<16x32xf32> -> vector<16x32xf32>
    %c0_120 = arith.constant 0 : index
    %c0_121 = arith.constant 0 : index
    %386 = vector.load %arg15[%c0_120, %c0_121] : memref<1x32xf32, #tpu.memory_space<vmem>>, vector<1x32xf32>
    %387 = vector.broadcast %386 : vector<1x32xf32> to vector<16x32xf32>
    %388 = arith.addf %385, %387 : vector<16x32xf32>
    %389 = arith.addf %205, %388 : vector<16x32xf32>
    %c0_122 = arith.constant 0 : index
    %c0_123 = arith.constant 0 : index
    %390 = vector.load %arg16[%c0_122, %c0_123] : memref<1x32xf32, #tpu.memory_space<vmem>>, vector<1x32xf32>
    %c0_124 = arith.constant 0 : index
    %c0_125 = arith.constant 0 : index
    %391 = vector.load %arg17[%c0_124, %c0_125] : memref<1x32xf32, #tpu.memory_space<vmem>>, vector<1x32xf32>
    %cst_126 = arith.constant dense<0.000000e+00> : vector<16xf32>
    %392 = vector.multi_reduction <add>, %389, %cst_126 [1] : vector<16x32xf32> to vector<16xf32>
    %393 = vector.shape_cast %392 : vector<16xf32> to vector<16x1xf32>
    %cst_127 = arith.constant 3.200000e+01 : f32
    %394 = vector.broadcast %cst_127 : f32 to vector<16x1xf32>
    %395 = arith.divf %393, %394 : vector<16x1xf32>
    %396 = vector.broadcast %395 : vector<16x1xf32> to vector<16x32xf32>
    %397 = arith.subf %389, %396 : vector<16x32xf32>
    %398 = arith.mulf %397, %397 : vector<16x32xf32>
    %cst_128 = arith.constant dense<0.000000e+00> : vector<16xf32>
    %399 = vector.multi_reduction <add>, %398, %cst_128 [1] : vector<16x32xf32> to vector<16xf32>
    %400 = vector.shape_cast %399 : vector<16xf32> to vector<16x1xf32>
    %cst_129 = arith.constant 3.200000e+01 : f32
    %401 = vector.broadcast %cst_129 : f32 to vector<16x1xf32>
    %402 = arith.divf %400, %401 : vector<16x1xf32>
    %403 = vector.broadcast %395 : vector<16x1xf32> to vector<16x32xf32>
    %404 = arith.subf %389, %403 : vector<16x32xf32>
    %cst_130 = arith.constant 9.99999974E-6 : f32
    %405 = vector.broadcast %cst_130 : f32 to vector<16x1xf32>
    %406 = arith.addf %402, %405 : vector<16x1xf32>
    %407 = math.rsqrt %406 : vector<16x1xf32>
    %408 = vector.broadcast %407 : vector<16x1xf32> to vector<16x32xf32>
    %409 = arith.mulf %404, %408 : vector<16x32xf32>
    %410 = vector.broadcast %390 : vector<1x32xf32> to vector<16x32xf32>
    %411 = arith.mulf %409, %410 : vector<16x32xf32>
    %412 = vector.broadcast %391 : vector<1x32xf32> to vector<16x32xf32>
    %413 = arith.addf %411, %412 : vector<16x32xf32>
    %c0_131 = arith.constant 0 : index
    %c0_132 = arith.constant 0 : index
    %414 = vector.load %arg18[%c0_131, %c0_132] : memref<32x64xf32, #tpu.memory_space<vmem>>, vector<32x64xf32>
    %cst_133 = arith.constant dense<0.000000e+00> : vector<16x64xf32>
    %415 = tpu.matmul %413, %414, %cst_133 {dimension_numbers = #tpu.dot_dimension_numbers<[1], [0], [0], [1], [0, 0, 1, 1], [], []>} : vector<16x32xf32>, vector<32x64xf32>, vector<16x64xf32> -> vector<16x64xf32>
    %c0_134 = arith.constant 0 : index
    %c0_135 = arith.constant 0 : index
    %416 = vector.load %arg19[%c0_134, %c0_135] : memref<1x64xf32, #tpu.memory_space<vmem>>, vector<1x64xf32>
    %417 = vector.broadcast %416 : vector<1x64xf32> to vector<16x64xf32>
    %418 = arith.addf %415, %417 : vector<16x64xf32>
    %cst_136 = arith.constant 0.000000e+00 : f32
    %419 = vector.broadcast %cst_136 : f32 to vector<16x64xf32>
    %420 = arith.maximumf %418, %419 : vector<16x64xf32>
    %c0_137 = arith.constant 0 : index
    %c0_138 = arith.constant 0 : index
    %421 = vector.load %arg20[%c0_137, %c0_138] : memref<64x32xf32, #tpu.memory_space<vmem>>, vector<64x32xf32>
    %cst_139 = arith.constant dense<0.000000e+00> : vector<16x32xf32>
    %422 = tpu.matmul %420, %421, %cst_139 {dimension_numbers = #tpu.dot_dimension_numbers<[1], [0], [0], [1], [0, 0, 1, 1], [], []>} : vector<16x64xf32>, vector<64x32xf32>, vector<16x32xf32> -> vector<16x32xf32>
    %c0_140 = arith.constant 0 : index
    %c0_141 = arith.constant 0 : index
    %423 = vector.load %arg21[%c0_140, %c0_141] : memref<1x32xf32, #tpu.memory_space<vmem>>, vector<1x32xf32>
    %424 = vector.broadcast %423 : vector<1x32xf32> to vector<16x32xf32>
    %425 = arith.addf %422, %424 : vector<16x32xf32>
    %426 = arith.addf %413, %425 : vector<16x32xf32>
    %c0_142 = arith.constant 0 : index
    %c0_143 = arith.constant 0 : index
    %427 = vector.load %arg22[%c0_142, %c0_143] : memref<1x32xf32, #tpu.memory_space<vmem>>, vector<1x32xf32>
    %c0_144 = arith.constant 0 : index
    %c0_145 = arith.constant 0 : index
    %428 = vector.load %arg23[%c0_144, %c0_145] : memref<1x32xf32, #tpu.memory_space<vmem>>, vector<1x32xf32>
    %cst_146 = arith.constant dense<0.000000e+00> : vector<16xf32>
    %429 = vector.multi_reduction <add>, %426, %cst_146 [1] : vector<16x32xf32> to vector<16xf32>
    %430 = vector.shape_cast %429 : vector<16xf32> to vector<16x1xf32>
    %cst_147 = arith.constant 3.200000e+01 : f32
    %431 = vector.broadcast %cst_147 : f32 to vector<16x1xf32>
    %432 = arith.divf %430, %431 : vector<16x1xf32>
    %433 = vector.broadcast %432 : vector<16x1xf32> to vector<16x32xf32>
    %434 = arith.subf %426, %433 : vector<16x32xf32>
    %435 = arith.mulf %434, %434 : vector<16x32xf32>
    %cst_148 = arith.constant dense<0.000000e+00> : vector<16xf32>
    %436 = vector.multi_reduction <add>, %435, %cst_148 [1] : vector<16x32xf32> to vector<16xf32>
    %437 = vector.shape_cast %436 : vector<16xf32> to vector<16x1xf32>
    %cst_149 = arith.constant 3.200000e+01 : f32
    %438 = vector.broadcast %cst_149 : f32 to vector<16x1xf32>
    %439 = arith.divf %437, %438 : vector<16x1xf32>
    %440 = vector.broadcast %432 : vector<16x1xf32> to vector<16x32xf32>
    %441 = arith.subf %426, %440 : vector<16x32xf32>
    %cst_150 = arith.constant 9.99999974E-6 : f32
    %442 = vector.broadcast %cst_150 : f32 to vector<16x1xf32>
    %443 = arith.addf %439, %442 : vector<16x1xf32>
    %444 = math.rsqrt %443 : vector<16x1xf32>
    %445 = vector.broadcast %444 : vector<16x1xf32> to vector<16x32xf32>
    %446 = arith.mulf %441, %445 : vector<16x32xf32>
    %447 = vector.broadcast %427 : vector<1x32xf32> to vector<16x32xf32>
    %448 = arith.mulf %446, %447 : vector<16x32xf32>
    %449 = vector.broadcast %428 : vector<1x32xf32> to vector<16x32xf32>
    %450 = arith.addf %448, %449 : vector<16x32xf32>
    %c0_151 = arith.constant 0 : index
    %c0_152 = arith.constant 0 : index
    %451 = vector.load %arg24[%c0_151, %c0_152] : memref<16x32xf32, #tpu.memory_space<vmem>>, vector<16x32xf32>
    tpu.vector_store %arg24[%c0_151, %c0_152], %450 {strides = array<i32>} : memref<16x32xf32, #tpu.memory_space<vmem>>, vector<16x32xf32>,
    return
  }
}

module attributes {stable_mosaic.version = 11 : i64} {
  func.func @_decoder_layer_kernel(%arg0: memref<16x32xf32, #tpu.memory_space<vmem>>, %arg1: memref<16x32xf32, #tpu.memory_space<vmem>>, %arg2: memref<2x8x8xf32, #tpu.memory_space<vmem>>, %arg3: memref<2x8x8xf32, #tpu.memory_space<vmem>>, %arg4: memref<32x96xf32, #tpu.memory_space<vmem>>, %arg5: memref<1x96xf32, #tpu.memory_space<vmem>>, %arg6: memref<32x32xf32, #tpu.memory_space<vmem>>, %arg7: memref<1x32xf32, #tpu.memory_space<vmem>>, %arg8: memref<1x32xf32, #tpu.memory_space<vmem>>, %arg9: memref<1x32xf32, #tpu.memory_space<vmem>>, %arg10: memref<32x32xf32, #tpu.memory_space<vmem>>, %arg11: memref<1x32xf32, #tpu.memory_space<vmem>>, %arg12: memref<32x64xf32, #tpu.memory_space<vmem>>, %arg13: memref<1x64xf32, #tpu.memory_space<vmem>>, %arg14: memref<32x32xf32, #tpu.memory_space<vmem>>, %arg15: memref<1x32xf32, #tpu.memory_space<vmem>>, %arg16: memref<1x32xf32, #tpu.memory_space<vmem>>, %arg17: memref<1x32xf32, #tpu.memory_space<vmem>>, %arg18: memref<32x64xf32, #tpu.memory_space<vmem>>, %arg19: memref<1x64xf32, #tpu.memory_space<vmem>>, %arg20: memref<64x32xf32, #tpu.memory_space<vmem>>, %arg21: memref<1x32xf32, #tpu.memory_space<vmem>>, %arg22: memref<1x32xf32, #tpu.memory_space<vmem>>, %arg23: memref<1x32xf32, #tpu.memory_space<vmem>>, %arg24: memref<16x32xf32, #tpu.memory_space<vmem>>) attributes {dimension_semantics = [], scalar_prefetch = 0 : i64, scratch_operands = 0 : i64, tpu.core_type = #tpu.core_type<tc>} {
    %c0 = arith.constant 0 : index
    %c0_0 = arith.constant 0 : index
    %0 = vector.load %arg0[%c0, %c0_0] : memref<16x32xf32, #tpu.memory_space<vmem>>, vector<16x32xf32>
    %c0_1 = arith.constant 0 : index
    %c0_2 = arith.constant 0 : index
    %1 = vector.load %arg1[%c0_1, %c0_2] : memref<16x32xf32, #tpu.memory_space<vmem>>, vector<16x32xf32>
    %c0_3 = arith.constant 0 : index
    %c0_4 = arith.constant 0 : index
    %2 = vector.load %arg4[%c0_3, %c0_4] : memref<32x96xf32, #tpu.memory_space<vmem>>, vector<32x96xf32>
    %cst = arith.constant dense<0.000000e+00> : vector<16x96xf32>
    %3 = tpu.matmul %0, %2, %cst {dimension_numbers = #tpu.dot_dimension_numbers<[1], [0], [0], [1], [0, 0, 1, 1], [], []>} : vector<16x32xf32>, vector<32x96xf32>, vector<16x96xf32> -> vector<16x96xf32>
    %c0_5 = arith.constant 0 : index
    %c0_6 = arith.constant 0 : index
    %4 = vector.load %arg5[%c0_5, %c0_6] : memref<1x96xf32, #tpu.memory_space<vmem>>, vector<1x96xf32>
    %5 = vector.broadcast %4 : vector<1x96xf32> to vector<16x96xf32>
    %6 = arith.addf %3, %5 : vector<16x96xf32>
    %7 = vector.extract_strided_slice %6 {offsets = [0, 0], sizes = [16, 32], strides = [1, 1]} : vector<16x96xf32> to vector<16x32xf32>
    %8 = vector.extract_strided_slice %6 {offsets = [0, 32], sizes = [16, 32], strides = [1, 1]} : vector<16x96xf32> to vector<16x32xf32>
    %9 = vector.extract_strided_slice %6 {offsets = [0, 64], sizes = [16, 32], strides = [1, 1]} : vector<16x96xf32> to vector<16x32xf32>
    %c0_7 = arith.constant 0 : index
    %c0_8 = arith.constant 0 : index
    %c0_9 = arith.constant 0 : index
    %10 = vector.load %arg2[%c0_7, %c0_8, %c0_9] : memref<2x8x8xf32, #tpu.memory_space<vmem>>, vector<2x8x8xf32>
    %11 = vector.extract_strided_slice %7 {offsets = [0, 0], sizes = [8, 32], strides = [1, 1]} : vector<16x32xf32> to vector<8x32xf32>
    %12 = vector.extract_strided_slice %8 {offsets = [0, 0], sizes = [8, 32], strides = [1, 1]} : vector<16x32xf32> to vector<8x32xf32>
    %13 = vector.extract_strided_slice %9 {offsets = [0, 0], sizes = [8, 32], strides = [1, 1]} : vector<16x32xf32> to vector<8x32xf32>
    %14 = vector.extract_strided_slice %10 {offsets = [0, 0, 0], sizes = [1, 8, 8], strides = [1, 1, 1]} : vector<2x8x8xf32> to vector<1x8x8xf32>
    %15 = vector.shape_cast %14 : vector<1x8x8xf32> to vector<8x8xf32>
    %16 = vector.extract_strided_slice %11 {offsets = [0, 0], sizes = [8, 8], strides = [1, 1]} : vector<8x32xf32> to vector<8x8xf32>
    %17 = vector.extract_strided_slice %12 {offsets = [0, 0], sizes = [8, 8], strides = [1, 1]} : vector<8x32xf32> to vector<8x8xf32>
    %18 = vector.extract_strided_slice %13 {offsets = [0, 0], sizes = [8, 8], strides = [1, 1]} : vector<8x32xf32> to vector<8x8xf32>
    %19 = tpu.transpose %17, [1, 0] : vector<8x8xf32> -> vector<8x8xf32>
    %cst_10 = arith.constant dense<0.000000e+00> : vector<8x8xf32>
    %20 = tpu.matmul %16, %19, %cst_10 {dimension_numbers = #tpu.dot_dimension_numbers<[1], [0], [0], [1], [0, 0, 1, 1], [], []>} : vector<8x8xf32>, vector<8x8xf32>, vector<8x8xf32> -> vector<8x8xf32>
    %cst_11 = arith.constant 0.353553385 : f32
    %21 = vector.broadcast %cst_11 : f32 to vector<8x8xf32>
    %22 = arith.mulf %20, %21 : vector<8x8xf32>
    %23 = arith.addf %22, %15 : vector<8x8xf32>
    %cst_12 = arith.constant dense<0xFF800000> : vector<8xf32>
    %24 = vector.multi_reduction <maximumf>, %23, %cst_12 [1] : vector<8x8xf32> to vector<8xf32>
    %25 = vector.shape_cast %24 : vector<8xf32> to vector<8x1xf32>
    %26 = vector.broadcast %25 : vector<8x1xf32> to vector<8x8xf32>
    %27 = arith.subf %23, %26 : vector<8x8xf32>
    %28 = math.exp %27 : vector<8x8xf32>
    %cst_13 = arith.constant dense<0.000000e+00> : vector<8xf32>
    %29 = vector.multi_reduction <add>, %28, %cst_13 [1] : vector<8x8xf32> to vector<8xf32>
    %30 = vector.shape_cast %29 : vector<8xf32> to vector<8x1xf32>
    %31 = tpu.reciprocal %30 {approx = true} : vector<8x1xf32> -> vector<8x1xf32>
    %32 = vector.broadcast %31 : vector<8x1xf32> to vector<8x8xf32>
    %33 = arith.mulf %28, %32 : vector<8x8xf32>
    %cst_14 = arith.constant dense<0.000000e+00> : vector<8x8xf32>
    %34 = tpu.matmul %33, %18, %cst_14 {dimension_numbers = #tpu.dot_dimension_numbers<[1], [0], [0], [1], [0, 0, 1, 1], [], []>} : vector<8x8xf32>, vector<8x8xf32>, vector<8x8xf32> -> vector<8x8xf32>
    %35 = vector.extract_strided_slice %11 {offsets = [0, 8], sizes = [8, 8], strides = [1, 1]} : vector<8x32xf32> to vector<8x8xf32>
    %36 = vector.extract_strided_slice %12 {offsets = [0, 8], sizes = [8, 8], strides = [1, 1]} : vector<8x32xf32> to vector<8x8xf32>
    %37 = vector.extract_strided_slice %13 {offsets = [0, 8], sizes = [8, 8], strides = [1, 1]} : vector<8x32xf32> to vector<8x8xf32>
    %38 = tpu.transpose %36, [1, 0] : vector<8x8xf32> -> vector<8x8xf32>
    %cst_15 = arith.constant dense<0.000000e+00> : vector<8x8xf32>
    %39 = tpu.matmul %35, %38, %cst_15 {dimension_numbers = #tpu.dot_dimension_numbers<[1], [0], [0], [1], [0, 0, 1, 1], [], []>} : vector<8x8xf32>, vector<8x8xf32>, vector<8x8xf32> -> vector<8x8xf32>
    %cst_16 = arith.constant 0.353553385 : f32
    %40 = vector.broadcast %cst_16 : f32 to vector<8x8xf32>
    %41 = arith.mulf %39, %40 : vector<8x8xf32>
    %42 = arith.addf %41, %15 : vector<8x8xf32>
    %cst_17 = arith.constant dense<0xFF800000> : vector<8xf32>
    %43 = vector.multi_reduction <maximumf>, %42, %cst_17 [1] : vector<8x8xf32> to vector<8xf32>
    %44 = vector.shape_cast %43 : vector<8xf32> to vector<8x1xf32>
    %45 = vector.broadcast %44 : vector<8x1xf32> to vector<8x8xf32>
    %46 = arith.subf %42, %45 : vector<8x8xf32>
    %47 = math.exp %46 : vector<8x8xf32>
    %cst_18 = arith.constant dense<0.000000e+00> : vector<8xf32>
    %48 = vector.multi_reduction <add>, %47, %cst_18 [1] : vector<8x8xf32> to vector<8xf32>
    %49 = vector.shape_cast %48 : vector<8xf32> to vector<8x1xf32>
    %50 = tpu.reciprocal %49 {approx = true} : vector<8x1xf32> -> vector<8x1xf32>
    %51 = vector.broadcast %50 : vector<8x1xf32> to vector<8x8xf32>
    %52 = arith.mulf %47, %51 : vector<8x8xf32>
    %cst_19 = arith.constant dense<0.000000e+00> : vector<8x8xf32>
    %53 = tpu.matmul %52, %37, %cst_19 {dimension_numbers = #tpu.dot_dimension_numbers<[1], [0], [0], [1], [0, 0, 1, 1], [], []>} : vector<8x8xf32>, vector<8x8xf32>, vector<8x8xf32> -> vector<8x8xf32>
    %54 = vector.extract_strided_slice %11 {offsets = [0, 16], sizes = [8, 8], strides = [1, 1]} : vector<8x32xf32> to vector<8x8xf32>
    %55 = vector.extract_strided_slice %12 {offsets = [0, 16], sizes = [8, 8], strides = [1, 1]} : vector<8x32xf32> to vector<8x8xf32>
    %56 = vector.extract_strided_slice %13 {offsets = [0, 16], sizes = [8, 8], strides = [1, 1]} : vector<8x32xf32> to vector<8x8xf32>
    %57 = tpu.transpose %55, [1, 0] : vector<8x8xf32> -> vector<8x8xf32>
    %cst_20 = arith.constant dense<0.000000e+00> : vector<8x8xf32>
    %58 = tpu.matmul %54, %57, %cst_20 {dimension_numbers = #tpu.dot_dimension_numbers<[1], [0], [0], [1], [0, 0, 1, 1], [], []>} : vector<8x8xf32>, vector<8x8xf32>, vector<8x8xf32> -> vector<8x8xf32>
    %cst_21 = arith.constant 0.353553385 : f32
    %59 = vector.broadcast %cst_21 : f32 to vector<8x8xf32>
    %60 = arith.mulf %58, %59 : vector<8x8xf32>
    %61 = arith.addf %60, %15 : vector<8x8xf32>
    %cst_22 = arith.constant dense<0xFF800000> : vector<8xf32>
    %62 = vector.multi_reduction <maximumf>, %61, %cst_22 [1] : vector<8x8xf32> to vector<8xf32>
    %63 = vector.shape_cast %62 : vector<8xf32> to vector<8x1xf32>
    %64 = vector.broadcast %63 : vector<8x1xf32> to vector<8x8xf32>
    %65 = arith.subf %61, %64 : vector<8x8xf32>
    %66 = math.exp %65 : vector<8x8xf32>
    %cst_23 = arith.constant dense<0.000000e+00> : vector<8xf32>
    %67 = vector.multi_reduction <add>, %66, %cst_23 [1] : vector<8x8xf32> to vector<8xf32>
    %68 = vector.shape_cast %67 : vector<8xf32> to vector<8x1xf32>
    %69 = tpu.reciprocal %68 {approx = true} : vector<8x1xf32> -> vector<8x1xf32>
    %70 = vector.broadcast %69 : vector<8x1xf32> to vector<8x8xf32>
    %71 = arith.mulf %66, %70 : vector<8x8xf32>
    %cst_24 = arith.constant dense<0.000000e+00> : vector<8x8xf32>
    %72 = tpu.matmul %71, %56, %cst_24 {dimension_numbers = #tpu.dot_dimension_numbers<[1], [0], [0], [1], [0, 0, 1, 1], [], []>} : vector<8x8xf32>, vector<8x8xf32>, vector<8x8xf32> -> vector<8x8xf32>
    %73 = vector.extract_strided_slice %11 {offsets = [0, 24], sizes = [8, 8], strides = [1, 1]} : vector<8x32xf32> to vector<8x8xf32>
    %74 = vector.extract_strided_slice %12 {offsets = [0, 24], sizes = [8, 8], strides = [1, 1]} : vector<8x32xf32> to vector<8x8xf32>
    %75 = vector.extract_strided_slice %13 {offsets = [0, 24], sizes = [8, 8], strides = [1, 1]} : vector<8x32xf32> to vector<8x8xf32>
    %76 = tpu.transpose %74, [1, 0] : vector<8x8xf32> -> vector<8x8xf32>
    %cst_25 = arith.constant dense<0.000000e+00> : vector<8x8xf32>
    %77 = tpu.matmul %73, %76, %cst_25 {dimension_numbers = #tpu.dot_dimension_numbers<[1], [0], [0], [1], [0, 0, 1, 1], [], []>} : vector<8x8xf32>, vector<8x8xf32>, vector<8x8xf32> -> vector<8x8xf32>
    %cst_26 = arith.constant 0.353553385 : f32
    %78 = vector.broadcast %cst_26 : f32 to vector<8x8xf32>
    %79 = arith.mulf %77, %78 : vector<8x8xf32>
    %80 = arith.addf %79, %15 : vector<8x8xf32>
    %cst_27 = arith.constant dense<0xFF800000> : vector<8xf32>
    %81 = vector.multi_reduction <maximumf>, %80, %cst_27 [1] : vector<8x8xf32> to vector<8xf32>
    %82 = vector.shape_cast %81 : vector<8xf32> to vector<8x1xf32>
    %83 = vector.broadcast %82 : vector<8x1xf32> to vector<8x8xf32>
    %84 = arith.subf %80, %83 : vector<8x8xf32>
    %85 = math.exp %84 : vector<8x8xf32>
    %cst_28 = arith.constant dense<0.000000e+00> : vector<8xf32>
    %86 = vector.multi_reduction <add>, %85, %cst_28 [1] : vector<8x8xf32> to vector<8xf32>
    %87 = vector.shape_cast %86 : vector<8xf32> to vector<8x1xf32>
    %88 = tpu.reciprocal %87 {approx = true} : vector<8x1xf32> -> vector<8x1xf32>
    %89 = vector.broadcast %88 : vector<8x1xf32> to vector<8x8xf32>
    %90 = arith.mulf %85, %89 : vector<8x8xf32>
    %cst_29 = arith.constant dense<0.000000e+00> : vector<8x8xf32>
    %91 = tpu.matmul %90, %75, %cst_29 {dimension_numbers = #tpu.dot_dimension_numbers<[1], [0], [0], [1], [0, 0, 1, 1], [], []>} : vector<8x8xf32>, vector<8x8xf32>, vector<8x8xf32> -> vector<8x8xf32>
    %92 = tpu.concatenate %34, %53, %72, %91 in 1 : vector<8x8xf32>, vector<8x8xf32>, vector<8x8xf32>, vector<8x8xf32> -> vector<8x32xf32>
    %93 = vector.extract_strided_slice %7 {offsets = [8, 0], sizes = [8, 32], strides = [1, 1]} : vector<16x32xf32> to vector<8x32xf32>
    %94 = vector.extract_strided_slice %8 {offsets = [8, 0], sizes = [8, 32], strides = [1, 1]} : vector<16x32xf32> to vector<8x32xf32>
    %95 = vector.extract_strided_slice %9 {offsets = [8, 0], sizes = [8, 32], strides = [1, 1]} : vector<16x32xf32> to vector<8x32xf32>
    %96 = vector.extract_strided_slice %10 {offsets = [1, 0, 0], sizes = [1, 8, 8], strides = [1, 1, 1]} : vector<2x8x8xf32> to vector<1x8x8xf32>
    %97 = vector.shape_cast %96 : vector<1x8x8xf32> to vector<8x8xf32>
    %98 = vector.extract_strided_slice %93 {offsets = [0, 0], sizes = [8, 8], strides = [1, 1]} : vector<8x32xf32> to vector<8x8xf32>
    %99 = vector.extract_strided_slice %94 {offsets = [0, 0], sizes = [8, 8], strides = [1, 1]} : vector<8x32xf32> to vector<8x8xf32>
    %100 = vector.extract_strided_slice %95 {offsets = [0, 0], sizes = [8, 8], strides = [1, 1]} : vector<8x32xf32> to vector<8x8xf32>
    %101 = tpu.transpose %99, [1, 0] : vector<8x8xf32> -> vector<8x8xf32>
    %cst_30 = arith.constant dense<0.000000e+00> : vector<8x8xf32>
    %102 = tpu.matmul %98, %101, %cst_30 {dimension_numbers = #tpu.dot_dimension_numbers<[1], [0], [0], [1], [0, 0, 1, 1], [], []>} : vector<8x8xf32>, vector<8x8xf32>, vector<8x8xf32> -> vector<8x8xf32>
    %cst_31 = arith.constant 0.353553385 : f32
    %103 = vector.broadcast %cst_31 : f32 to vector<8x8xf32>
    %104 = arith.mulf %102, %103 : vector<8x8xf32>
    %105 = arith.addf %104, %97 : vector<8x8xf32>
    %cst_32 = arith.constant dense<0xFF800000> : vector<8xf32>
    %106 = vector.multi_reduction <maximumf>, %105, %cst_32 [1] : vector<8x8xf32> to vector<8xf32>
    %107 = vector.shape_cast %106 : vector<8xf32> to vector<8x1xf32>
    %108 = vector.broadcast %107 : vector<8x1xf32> to vector<8x8xf32>
    %109 = arith.subf %105, %108 : vector<8x8xf32>
    %110 = math.exp %109 : vector<8x8xf32>
    %cst_33 = arith.constant dense<0.000000e+00> : vector<8xf32>
    %111 = vector.multi_reduction <add>, %110, %cst_33 [1] : vector<8x8xf32> to vector<8xf32>
    %112 = vector.shape_cast %111 : vector<8xf32> to vector<8x1xf32>
    %113 = tpu.reciprocal %112 {approx = true} : vector<8x1xf32> -> vector<8x1xf32>
    %114 = vector.broadcast %113 : vector<8x1xf32> to vector<8x8xf32>
    %115 = arith.mulf %110, %114 : vector<8x8xf32>
    %cst_34 = arith.constant dense<0.000000e+00> : vector<8x8xf32>
    %116 = tpu.matmul %115, %100, %cst_34 {dimension_numbers = #tpu.dot_dimension_numbers<[1], [0], [0], [1], [0, 0, 1, 1], [], []>} : vector<8x8xf32>, vector<8x8xf32>, vector<8x8xf32> -> vector<8x8xf32>
    %117 = vector.extract_strided_slice %93 {offsets = [0, 8], sizes = [8, 8], strides = [1, 1]} : vector<8x32xf32> to vector<8x8xf32>
    %118 = vector.extract_strided_slice %94 {offsets = [0, 8], sizes = [8, 8], strides = [1, 1]} : vector<8x32xf32> to vector<8x8xf32>
    %119 = vector.extract_strided_slice %95 {offsets = [0, 8], sizes = [8, 8], strides = [1, 1]} : vector<8x32xf32> to vector<8x8xf32>
    %120 = tpu.transpose %118, [1, 0] : vector<8x8xf32> -> vector<8x8xf32>
    %cst_35 = arith.constant dense<0.000000e+00> : vector<8x8xf32>
    %121 = tpu.matmul %117, %120, %cst_35 {dimension_numbers = #tpu.dot_dimension_numbers<[1], [0], [0], [1], [0, 0, 1, 1], [], []>} : vector<8x8xf32>, vector<8x8xf32>, vector<8x8xf32> -> vector<8x8xf32>
    %cst_36 = arith.constant 0.353553385 : f32
    %122 = vector.broadcast %cst_36 : f32 to vector<8x8xf32>
    %123 = arith.mulf %121, %122 : vector<8x8xf32>
    %124 = arith.addf %123, %97 : vector<8x8xf32>
    %cst_37 = arith.constant dense<0xFF800000> : vector<8xf32>
    %125 = vector.multi_reduction <maximumf>, %124, %cst_37 [1] : vector<8x8xf32> to vector<8xf32>
    %126 = vector.shape_cast %125 : vector<8xf32> to vector<8x1xf32>
    %127 = vector.broadcast %126 : vector<8x1xf32> to vector<8x8xf32>
    %128 = arith.subf %124, %127 : vector<8x8xf32>
    %129 = math.exp %128 : vector<8x8xf32>
    %cst_38 = arith.constant dense<0.000000e+00> : vector<8xf32>
    %130 = vector.multi_reduction <add>, %129, %cst_38 [1] : vector<8x8xf32> to vector<8xf32>
    %131 = vector.shape_cast %130 : vector<8xf32> to vector<8x1xf32>
    %132 = tpu.reciprocal %131 {approx = true} : vector<8x1xf32> -> vector<8x1xf32>
    %133 = vector.broadcast %132 : vector<8x1xf32> to vector<8x8xf32>
    %134 = arith.mulf %129, %133 : vector<8x8xf32>
    %cst_39 = arith.constant dense<0.000000e+00> : vector<8x8xf32>
    %135 = tpu.matmul %134, %119, %cst_39 {dimension_numbers = #tpu.dot_dimension_numbers<[1], [0], [0], [1], [0, 0, 1, 1], [], []>} : vector<8x8xf32>, vector<8x8xf32>, vector<8x8xf32> -> vector<8x8xf32>
    %136 = vector.extract_strided_slice %93 {offsets = [0, 16], sizes = [8, 8], strides = [1, 1]} : vector<8x32xf32> to vector<8x8xf32>
    %137 = vector.extract_strided_slice %94 {offsets = [0, 16], sizes = [8, 8], strides = [1, 1]} : vector<8x32xf32> to vector<8x8xf32>
    %138 = vector.extract_strided_slice %95 {offsets = [0, 16], sizes = [8, 8], strides = [1, 1]} : vector<8x32xf32> to vector<8x8xf32>
    %139 = tpu.transpose %137, [1, 0] : vector<8x8xf32> -> vector<8x8xf32>
    %cst_40 = arith.constant dense<0.000000e+00> : vector<8x8xf32>
    %140 = tpu.matmul %136, %139, %cst_40 {dimension_numbers = #tpu.dot_dimension_numbers<[1], [0], [0], [1], [0, 0, 1, 1], [], []>} : vector<8x8xf32>, vector<8x8xf32>, vector<8x8xf32> -> vector<8x8xf32>
    %cst_41 = arith.constant 0.353553385 : f32
    %141 = vector.broadcast %cst_41 : f32 to vector<8x8xf32>
    %142 = arith.mulf %140, %141 : vector<8x8xf32>
    %143 = arith.addf %142, %97 : vector<8x8xf32>
    %cst_42 = arith.constant dense<0xFF800000> : vector<8xf32>
    %144 = vector.multi_reduction <maximumf>, %143, %cst_42 [1] : vector<8x8xf32> to vector<8xf32>
    %145 = vector.shape_cast %144 : vector<8xf32> to vector<8x1xf32>
    %146 = vector.broadcast %145 : vector<8x1xf32> to vector<8x8xf32>
    %147 = arith.subf %143, %146 : vector<8x8xf32>
    %148 = math.exp %147 : vector<8x8xf32>
    %cst_43 = arith.constant dense<0.000000e+00> : vector<8xf32>
    %149 = vector.multi_reduction <add>, %148, %cst_43 [1] : vector<8x8xf32> to vector<8xf32>
    %150 = vector.shape_cast %149 : vector<8xf32> to vector<8x1xf32>
    %151 = tpu.reciprocal %150 {approx = true} : vector<8x1xf32> -> vector<8x1xf32>
    %152 = vector.broadcast %151 : vector<8x1xf32> to vector<8x8xf32>
    %153 = arith.mulf %148, %152 : vector<8x8xf32>
    %cst_44 = arith.constant dense<0.000000e+00> : vector<8x8xf32>
    %154 = tpu.matmul %153, %138, %cst_44 {dimension_numbers = #tpu.dot_dimension_numbers<[1], [0], [0], [1], [0, 0, 1, 1], [], []>} : vector<8x8xf32>, vector<8x8xf32>, vector<8x8xf32> -> vector<8x8xf32>
    %155 = vector.extract_strided_slice %93 {offsets = [0, 24], sizes = [8, 8], strides = [1, 1]} : vector<8x32xf32> to vector<8x8xf32>
    %156 = vector.extract_strided_slice %94 {offsets = [0, 24], sizes = [8, 8], strides = [1, 1]} : vector<8x32xf32> to vector<8x8xf32>
    %157 = vector.extract_strided_slice %95 {offsets = [0, 24], sizes = [8, 8], strides = [1, 1]} : vector<8x32xf32> to vector<8x8xf32>
    %158 = tpu.transpose %156, [1, 0] : vector<8x8xf32> -> vector<8x8xf32>
    %cst_45 = arith.constant dense<0.000000e+00> : vector<8x8xf32>
    %159 = tpu.matmul %155, %158, %cst_45 {dimension_numbers = #tpu.dot_dimension_numbers<[1], [0], [0], [1], [0, 0, 1, 1], [], []>} : vector<8x8xf32>, vector<8x8xf32>, vector<8x8xf32> -> vector<8x8xf32>
    %cst_46 = arith.constant 0.353553385 : f32
    %160 = vector.broadcast %cst_46 : f32 to vector<8x8xf32>
    %161 = arith.mulf %159, %160 : vector<8x8xf32>
    %162 = arith.addf %161, %97 : vector<8x8xf32>
    %cst_47 = arith.constant dense<0xFF800000> : vector<8xf32>
    %163 = vector.multi_reduction <maximumf>, %162, %cst_47 [1] : vector<8x8xf32> to vector<8xf32>
    %164 = vector.shape_cast %163 : vector<8xf32> to vector<8x1xf32>
    %165 = vector.broadcast %164 : vector<8x1xf32> to vector<8x8xf32>
    %166 = arith.subf %162, %165 : vector<8x8xf32>
    %167 = math.exp %166 : vector<8x8xf32>
    %cst_48 = arith.constant dense<0.000000e+00> : vector<8xf32>
    %168 = vector.multi_reduction <add>, %167, %cst_48 [1] : vector<8x8xf32> to vector<8xf32>
    %169 = vector.shape_cast %168 : vector<8xf32> to vector<8x1xf32>
    %170 = tpu.reciprocal %169 {approx = true} : vector<8x1xf32> -> vector<8x1xf32>
    %171 = vector.broadcast %170 : vector<8x1xf32> to vector<8x8xf32>
    %172 = arith.mulf %167, %171 : vector<8x8xf32>
    %cst_49 = arith.constant dense<0.000000e+00> : vector<8x8xf32>
    %173 = tpu.matmul %172, %157, %cst_49 {dimension_numbers = #tpu.dot_dimension_numbers<[1], [0], [0], [1], [0, 0, 1, 1], [], []>} : vector<8x8xf32>, vector<8x8xf32>, vector<8x8xf32> -> vector<8x8xf32>
    %174 = tpu.concatenate %116, %135, %154, %173 in 1 : vector<8x8xf32>, vector<8x8xf32>, vector<8x8xf32>, vector<8x8xf32> -> vector<8x32xf32>
    %175 = tpu.concatenate %92, %174 in 0 : vector<8x32xf32>, vector<8x32xf32> -> vector<16x32xf32>
    %c0_50 = arith.constant 0 : index
    %c0_51 = arith.constant 0 : index
    %176 = vector.load %arg6[%c0_50, %c0_51] : memref<32x32xf32, #tpu.memory_space<vmem>>, vector<32x32xf32>
    %cst_52 = arith.constant dense<0.000000e+00> : vector<16x32xf32>
    %177 = tpu.matmul %175, %176, %cst_52 {dimension_numbers = #tpu.dot_dimension_numbers<[1], [0], [0], [1], [0, 0, 1, 1], [], []>} : vector<16x32xf32>, vector<32x32xf32>, vector<16x32xf32> -> vector<16x32xf32>
    %c0_53 = arith.constant 0 : index
    %c0_54 = arith.constant 0 : index
    %178 = vector.load %arg7[%c0_53, %c0_54] : memref<1x32xf32, #tpu.memory_space<vmem>>, vector<1x32xf32>
    %179 = vector.broadcast %178 : vector<1x32xf32> to vector<16x32xf32>
    %180 = arith.addf %177, %179 : vector<16x32xf32>
    %181 = arith.addf %0, %180 : vector<16x32xf32>
    %c0_55 = arith.constant 0 : index
    %c0_56 = arith.constant 0 : index
    %182 = vector.load %arg8[%c0_55, %c0_56] : memref<1x32xf32, #tpu.memory_space<vmem>>, vector<1x32xf32>
    %c0_57 = arith.constant 0 : index
    %c0_58 = arith.constant 0 : index
    %183 = vector.load %arg9[%c0_57, %c0_58] : memref<1x32xf32, #tpu.memory_space<vmem>>, vector<1x32xf32>
    %cst_59 = arith.constant dense<0.000000e+00> : vector<16xf32>
    %184 = vector.multi_reduction <add>, %181, %cst_59 [1] : vector<16x32xf32> to vector<16xf32>
    %185 = vector.shape_cast %184 : vector<16xf32> to vector<16x1xf32>
    %cst_60 = arith.constant 3.200000e+01 : f32
    %186 = vector.broadcast %cst_60 : f32 to vector<16x1xf32>
    %187 = arith.divf %185, %186 : vector<16x1xf32>
    %188 = vector.broadcast %187 : vector<16x1xf32> to vector<16x32xf32>
    %189 = arith.subf %181, %188 : vector<16x32xf32>
    %190 = arith.mulf %189, %189 : vector<16x32xf32>
    %cst_61 = arith.constant dense<0.000000e+00> : vector<16xf32>
    %191 = vector.multi_reduction <add>, %190, %cst_61 [1] : vector<16x32xf32> to vector<16xf32>
    %192 = vector.shape_cast %191 : vector<16xf32> to vector<16x1xf32>
    %cst_62 = arith.constant 3.200000e+01 : f32
    %193 = vector.broadcast %cst_62 : f32 to vector<16x1xf32>
    %194 = arith.divf %192, %193 : vector<16x1xf32>
    %195 = vector.broadcast %187 : vector<16x1xf32> to vector<16x32xf32>
    %196 = arith.subf %181, %195 : vector<16x32xf32>
    %cst_63 = arith.constant 9.99999974E-6 : f32
    %197 = vector.broadcast %cst_63 : f32 to vector<16x1xf32>
    %198 = arith.addf %194, %197 : vector<16x1xf32>
    %199 = math.rsqrt %198 : vector<16x1xf32>
    %200 = vector.broadcast %199 : vector<16x1xf32> to vector<16x32xf32>
    %201 = arith.mulf %196, %200 : vector<16x32xf32>
    %202 = vector.broadcast %182 : vector<1x32xf32> to vector<16x32xf32>
    %203 = arith.mulf %201, %202 : vector<16x32xf32>
    %204 = vector.broadcast %183 : vector<1x32xf32> to vector<16x32xf32>
    %205 = arith.addf %203, %204 : vector<16x32xf32>
    %c0_64 = arith.constant 0 : index
    %c0_65 = arith.constant 0 : index
    %206 = vector.load %arg10[%c0_64, %c0_65] : memref<32x32xf32, #tpu.memory_space<vmem>>, vector<32x32xf32>
    %cst_66 = arith.constant dense<0.000000e+00> : vector<16x32xf32>
    %207 = tpu.matmul %205, %206, %cst_66 {dimension_numbers = #tpu.dot_dimension_numbers<[1], [0], [0], [1], [0, 0, 1, 1], [], []>} : vector<16x32xf32>, vector<32x32xf32>, vector<16x32xf32> -> vector<16x32xf32>
    %c0_67 = arith.constant 0 : index
    %c0_68 = arith.constant 0 : index
    %208 = vector.load %arg11[%c0_67, %c0_68] : memref<1x32xf32, #tpu.memory_space<vmem>>, vector<1x32xf32>
    %209 = vector.broadcast %208 : vector<1x32xf32> to vector<16x32xf32>
    %210 = arith.addf %207, %209 : vector<16x32xf32>
    %c0_69 = arith.constant 0 : index
    %c0_70 = arith.constant 0 : index
    %211 = vector.load %arg12[%c0_69, %c0_70] : memref<32x64xf32, #tpu.memory_space<vmem>>, vector<32x64xf32>
    %cst_71 = arith.constant dense<0.000000e+00> : vector<16x64xf32>
    %212 = tpu.matmul %1, %211, %cst_71 {dimension_numbers = #tpu.dot_dimension_numbers<[1], [0], [0], [1], [0, 0, 1, 1], [], []>} : vector<16x32xf32>, vector<32x64xf32>, vector<16x64xf32> -> vector<16x64xf32>
    %c0_72 = arith.constant 0 : index
    %c0_73 = arith.constant 0 : index
    %213 = vector.load %arg13[%c0_72, %c0_73] : memref<1x64xf32, #tpu.memory_space<vmem>>, vector<1x64xf32>
    %214 = vector.broadcast %213 : vector<1x64xf32> to vector<16x64xf32>
    %215 = arith.addf %212, %214 : vector<16x64xf32>
    %216 = vector.extract_strided_slice %215 {offsets = [0, 0], sizes = [16, 32], strides = [1, 1]} : vector<16x64xf32> to vector<16x32xf32>
    %217 = vector.extract_strided_slice %215 {offsets = [0, 32], sizes = [16, 32], strides = [1, 1]} : vector<16x64xf32> to vector<16x32xf32>
    %c0_74 = arith.constant 0 : index
    %c0_75 = arith.constant 0 : index
    %c0_76 = arith.constant 0 : index
    %218 = vector.load %arg3[%c0_74, %c0_75, %c0_76] : memref<2x8x8xf32, #tpu.memory_space<vmem>>, vector<2x8x8xf32>
    %219 = vector.extract_strided_slice %210 {offsets = [0, 0], sizes = [8, 32], strides = [1, 1]} : vector<16x32xf32> to vector<8x32xf32>
    %220 = vector.extract_strided_slice %216 {offsets = [0, 0], sizes = [8, 32], strides = [1, 1]} : vector<16x32xf32> to vector<8x32xf32>
    %221 = vector.extract_strided_slice %217 {offsets = [0, 0], sizes = [8, 32], strides = [1, 1]} : vector<16x32xf32> to vector<8x32xf32>
    %222 = vector.extract_strided_slice %218 {offsets = [0, 0, 0], sizes = [1, 8, 8], strides = [1, 1, 1]} : vector<2x8x8xf32> to vector<1x8x8xf32>
    %223 = vector.shape_cast %222 : vector<1x8x8xf32> to vector<8x8xf32>
    %224 = vector.extract_strided_slice %219 {offsets = [0, 0], sizes = [8, 8], strides = [1, 1]} : vector<8x32xf32> to vector<8x8xf32>
    %225 = vector.extract_strided_slice %220 {offsets = [0, 0], sizes = [8, 8], strides = [1, 1]} : vector<8x32xf32> to vector<8x8xf32>
    %226 = vector.extract_strided_slice %221 {offsets = [0, 0], sizes = [8, 8], strides = [1, 1]} : vector<8x32xf32> to vector<8x8xf32>
    %227 = tpu.transpose %225, [1, 0] : vector<8x8xf32> -> vector<8x8xf32>
    %cst_77 = arith.constant dense<0.000000e+00> : vector<8x8xf32>
    %228 = tpu.matmul %224, %227, %cst_77 {dimension_numbers = #tpu.dot_dimension_numbers<[1], [0], [0], [1], [0, 0, 1, 1], [], []>} : vector<8x8xf32>, vector<8x8xf32>, vector<8x8xf32> -> vector<8x8xf32>
    %cst_78 = arith.constant 0.353553385 : f32
    %229 = vector.broadcast %cst_78 : f32 to vector<8x8xf32>
    %230 = arith.mulf %228, %229 : vector<8x8xf32>
    %231 = arith.addf %230, %223 : vector<8x8xf32>
    %cst_79 = arith.constant dense<0xFF800000> : vector<8xf32>
    %232 = vector.multi_reduction <maximumf>, %231, %cst_79 [1] : vector<8x8xf32> to vector<8xf32>
    %233 = vector.shape_cast %232 : vector<8xf32> to vector<8x1xf32>
    %234 = vector.broadcast %233 : vector<8x1xf32> to vector<8x8xf32>
    %235 = arith.subf %231, %234 : vector<8x8xf32>
    %236 = math.exp %235 : vector<8x8xf32>
    %cst_80 = arith.constant dense<0.000000e+00> : vector<8xf32>
    %237 = vector.multi_reduction <add>, %236, %cst_80 [1] : vector<8x8xf32> to vector<8xf32>
    %238 = vector.shape_cast %237 : vector<8xf32> to vector<8x1xf32>
    %239 = tpu.reciprocal %238 {approx = true} : vector<8x1xf32> -> vector<8x1xf32>
    %240 = vector.broadcast %239 : vector<8x1xf32> to vector<8x8xf32>
    %241 = arith.mulf %236, %240 : vector<8x8xf32>
    %cst_81 = arith.constant dense<0.000000e+00> : vector<8x8xf32>
    %242 = tpu.matmul %241, %226, %cst_81 {dimension_numbers = #tpu.dot_dimension_numbers<[1], [0], [0], [1], [0, 0, 1, 1], [], []>} : vector<8x8xf32>, vector<8x8xf32>, vector<8x8xf32> -> vector<8x8xf32>
    %243 = vector.extract_strided_slice %219 {offsets = [0, 8], sizes = [8, 8], strides = [1, 1]} : vector<8x32xf32> to vector<8x8xf32>
    %244 = vector.extract_strided_slice %220 {offsets = [0, 8], sizes = [8, 8], strides = [1, 1]} : vector<8x32xf32> to vector<8x8xf32>
    %245 = vector.extract_strided_slice %221 {offsets = [0, 8], sizes = [8, 8], strides = [1, 1]} : vector<8x32xf32> to vector<8x8xf32>
    %246 = tpu.transpose %244, [1, 0] : vector<8x8xf32> -> vector<8x8xf32>
    %cst_82 = arith.constant dense<0.000000e+00> : vector<8x8xf32>
    %247 = tpu.matmul %243, %246, %cst_82 {dimension_numbers = #tpu.dot_dimension_numbers<[1], [0], [0], [1], [0, 0, 1, 1], [], []>} : vector<8x8xf32>, vector<8x8xf32>, vector<8x8xf32> -> vector<8x8xf32>
    %cst_83 = arith.constant 0.353553385 : f32
    %248 = vector.broadcast %cst_83 : f32 to vector<8x8xf32>
    %249 = arith.mulf %247, %248 : vector<8x8xf32>
    %250 = arith.addf %249, %223 : vector<8x8xf32>
    %cst_84 = arith.constant dense<0xFF800000> : vector<8xf32>
    %251 = vector.multi_reduction <maximumf>, %250, %cst_84 [1] : vector<8x8xf32> to vector<8xf32>
    %252 = vector.shape_cast %251 : vector<8xf32> to vector<8x1xf32>
    %253 = vector.broadcast %252 : vector<8x1xf32> to vector<8x8xf32>
    %254 = arith.subf %250, %253 : vector<8x8xf32>
    %255 = math.exp %254 : vector<8x8xf32>
    %cst_85 = arith.constant dense<0.000000e+00> : vector<8xf32>
    %256 = vector.multi_reduction <add>, %255, %cst_85 [1] : vector<8x8xf32> to vector<8xf32>
    %257 = vector.shape_cast %256 : vector<8xf32> to vector<8x1xf32>
    %258 = tpu.reciprocal %257 {approx = true} : vector<8x1xf32> -> vector<8x1xf32>
    %259 = vector.broadcast %258 : vector<8x1xf32> to vector<8x8xf32>
    %260 = arith.mulf %255, %259 : vector<8x8xf32>
    %cst_86 = arith.constant dense<0.000000e+00> : vector<8x8xf32>
    %261 = tpu.matmul %260, %245, %cst_86 {dimension_numbers = #tpu.dot_dimension_numbers<[1], [0], [0], [1], [0, 0, 1, 1], [], []>} : vector<8x8xf32>, vector<8x8xf32>, vector<8x8xf32> -> vector<8x8xf32>
    %262 = vector.extract_strided_slice %219 {offsets = [0, 16], sizes = [8, 8], strides = [1, 1]} : vector<8x32xf32> to vector<8x8xf32>
    %263 = vector.extract_strided_slice %220 {offsets = [0, 16], sizes = [8, 8], strides = [1, 1]} : vector<8x32xf32> to vector<8x8xf32>
    %264 = vector.extract_strided_slice %221 {offsets = [0, 16], sizes = [8, 8], strides = [1, 1]} : vector<8x32xf32> to vector<8x8xf32>
    %265 = tpu.transpose %263, [1, 0] : vector<8x8xf32> -> vector<8x8xf32>
    %cst_87 = arith.constant dense<0.000000e+00> : vector<8x8xf32>
    %266 = tpu.matmul %262, %265, %cst_87 {dimension_numbers = #tpu.dot_dimension_numbers<[1], [0], [0], [1], [0, 0, 1, 1], [], []>} : vector<8x8xf32>, vector<8x8xf32>, vector<8x8xf32> -> vector<8x8xf32>
    %cst_88 = arith.constant 0.353553385 : f32
    %267 = vector.broadcast %cst_88 : f32 to vector<8x8xf32>
    %268 = arith.mulf %266, %267 : vector<8x8xf32>
    %269 = arith.addf %268, %223 : vector<8x8xf32>
    %cst_89 = arith.constant dense<0xFF800000> : vector<8xf32>
    %270 = vector.multi_reduction <maximumf>, %269, %cst_89 [1] : vector<8x8xf32> to vector<8xf32>
    %271 = vector.shape_cast %270 : vector<8xf32> to vector<8x1xf32>
    %272 = vector.broadcast %271 : vector<8x1xf32> to vector<8x8xf32>
    %273 = arith.subf %269, %272 : vector<8x8xf32>
    %274 = math.exp %273 : vector<8x8xf32>
    %cst_90 = arith.constant dense<0.000000e+00> : vector<8xf32>
    %275 = vector.multi_reduction <add>, %274, %cst_90 [1] : vector<8x8xf32> to vector<8xf32>
    %276 = vector.shape_cast %275 : vector<8xf32> to vector<8x1xf32>
    %277 = tpu.reciprocal %276 {approx = true} : vector<8x1xf32> -> vector<8x1xf32>
    %278 = vector.broadcast %277 : vector<8x1xf32> to vector<8x8xf32>
    %279 = arith.mulf %274, %278 : vector<8x8xf32>
    %cst_91 = arith.constant dense<0.000000e+00> : vector<8x8xf32>
    %280 = tpu.matmul %279, %264, %cst_91 {dimension_numbers = #tpu.dot_dimension_numbers<[1], [0], [0], [1], [0, 0, 1, 1], [], []>} : vector<8x8xf32>, vector<8x8xf32>, vector<8x8xf32> -> vector<8x8xf32>
    %281 = vector.extract_strided_slice %219 {offsets = [0, 24], sizes = [8, 8], strides = [1, 1]} : vector<8x32xf32> to vector<8x8xf32>
    %282 = vector.extract_strided_slice %220 {offsets = [0, 24], sizes = [8, 8], strides = [1, 1]} : vector<8x32xf32> to vector<8x8xf32>
    %283 = vector.extract_strided_slice %221 {offsets = [0, 24], sizes = [8, 8], strides = [1, 1]} : vector<8x32xf32> to vector<8x8xf32>
    %284 = tpu.transpose %282, [1, 0] : vector<8x8xf32> -> vector<8x8xf32>
    %cst_92 = arith.constant dense<0.000000e+00> : vector<8x8xf32>
    %285 = tpu.matmul %281, %284, %cst_92 {dimension_numbers = #tpu.dot_dimension_numbers<[1], [0], [0], [1], [0, 0, 1, 1], [], []>} : vector<8x8xf32>, vector<8x8xf32>, vector<8x8xf32> -> vector<8x8xf32>
    %cst_93 = arith.constant 0.353553385 : f32
    %286 = vector.broadcast %cst_93 : f32 to vector<8x8xf32>
    %287 = arith.mulf %285, %286 : vector<8x8xf32>
    %288 = arith.addf %287, %223 : vector<8x8xf32>
    %cst_94 = arith.constant dense<0xFF800000> : vector<8xf32>
    %289 = vector.multi_reduction <maximumf>, %288, %cst_94 [1] : vector<8x8xf32> to vector<8xf32>
    %290 = vector.shape_cast %289 : vector<8xf32> to vector<8x1xf32>
    %291 = vector.broadcast %290 : vector<8x1xf32> to vector<8x8xf32>
    %292 = arith.subf %288, %291 : vector<8x8xf32>
    %293 = math.exp %292 : vector<8x8xf32>
    %cst_95 = arith.constant dense<0.000000e+00> : vector<8xf32>
    %294 = vector.multi_reduction <add>, %293, %cst_95 [1] : vector<8x8xf32> to vector<8xf32>
    %295 = vector.shape_cast %294 : vector<8xf32> to vector<8x1xf32>
    %296 = tpu.reciprocal %295 {approx = true} : vector<8x1xf32> -> vector<8x1xf32>
    %297 = vector.broadcast %296 : vector<8x1xf32> to vector<8x8xf32>
    %298 = arith.mulf %293, %297 : vector<8x8xf32>
    %cst_96 = arith.constant dense<0.000000e+00> : vector<8x8xf32>
    %299 = tpu.matmul %298, %283, %cst_96 {dimension_numbers = #tpu.dot_dimension_numbers<[1], [0], [0], [1], [0, 0, 1, 1], [], []>} : vector<8x8xf32>, vector<8x8xf32>, vector<8x8xf32> -> vector<8x8xf32>
    %300 = tpu.concatenate %242, %261, %280, %299 in 1 : vector<8x8xf32>, vector<8x8xf32>, vector<8x8xf32>, vector<8x8xf32> -> vector<8x32xf32>
    %301 = vector.extract_strided_slice %210 {offsets = [8, 0], sizes = [8, 32], strides = [1, 1]} : vector<16x32xf32> to vector<8x32xf32>
    %302 = vector.extract_strided_slice %216 {offsets = [8, 0], sizes = [8, 32], strides = [1, 1]} : vector<16x32xf32> to vector<8x32xf32>
    %303 = vector.extract_strided_slice %217 {offsets = [8, 0], sizes = [8, 32], strides = [1, 1]} : vector<16x32xf32> to vector<8x32xf32>
    %304 = vector.extract_strided_slice %218 {offsets = [1, 0, 0], sizes = [1, 8, 8], strides = [1, 1, 1]} : vector<2x8x8xf32> to vector<1x8x8xf32>
    %305 = vector.shape_cast %304 : vector<1x8x8xf32> to vector<8x8xf32>
    %306 = vector.extract_strided_slice %301 {offsets = [0, 0], sizes = [8, 8], strides = [1, 1]} : vector<8x32xf32> to vector<8x8xf32>
    %307 = vector.extract_strided_slice %302 {offsets = [0, 0], sizes = [8, 8], strides = [1, 1]} : vector<8x32xf32> to vector<8x8xf32>
    %308 = vector.extract_strided_slice %303 {offsets = [0, 0], sizes = [8, 8], strides = [1, 1]} : vector<8x32xf32> to vector<8x8xf32>
    %309 = tpu.transpose %307, [1, 0] : vector<8x8xf32> -> vector<8x8xf32>
    %cst_97 = arith.constant dense<0.000000e+00> : vector<8x8xf32>
    %310 = tpu.matmul %306, %309, %cst_97 {dimension_numbers = #tpu.dot_dimension_numbers<[1], [0], [0], [1], [0, 0, 1, 1], [], []>} : vector<8x8xf32>, vector<8x8xf32>, vector<8x8xf32> -> vector<8x8xf32>
    %cst_98 = arith.constant 0.353553385 : f32
    %311 = vector.broadcast %cst_98 : f32 to vector<8x8xf32>
    %312 = arith.mulf %310, %311 : vector<8x8xf32>
    %313 = arith.addf %312, %305 : vector<8x8xf32>
    %cst_99 = arith.constant dense<0xFF800000> : vector<8xf32>
    %314 = vector.multi_reduction <maximumf>, %313, %cst_99 [1] : vector<8x8xf32> to vector<8xf32>
    %315 = vector.shape_cast %314 : vector<8xf32> to vector<8x1xf32>
    %316 = vector.broadcast %315 : vector<8x1xf32> to vector<8x8xf32>
    %317 = arith.subf %313, %316 : vector<8x8xf32>
    %318 = math.exp %317 : vector<8x8xf32>
    %cst_100 = arith.constant dense<0.000000e+00> : vector<8xf32>
    %319 = vector.multi_reduction <add>, %318, %cst_100 [1] : vector<8x8xf32> to vector<8xf32>
    %320 = vector.shape_cast %319 : vector<8xf32> to vector<8x1xf32>
    %321 = tpu.reciprocal %320 {approx = true} : vector<8x1xf32> -> vector<8x1xf32>
    %322 = vector.broadcast %321 : vector<8x1xf32> to vector<8x8xf32>
    %323 = arith.mulf %318, %322 : vector<8x8xf32>
    %cst_101 = arith.constant dense<0.000000e+00> : vector<8x8xf32>
    %324 = tpu.matmul %323, %308, %cst_101 {dimension_numbers = #tpu.dot_dimension_numbers<[1], [0], [0], [1], [0, 0, 1, 1], [], []>} : vector<8x8xf32>, vector<8x8xf32>, vector<8x8xf32> -> vector<8x8xf32>
    %325 = vector.extract_strided_slice %301 {offsets = [0, 8], sizes = [8, 8], strides = [1, 1]} : vector<8x32xf32> to vector<8x8xf32>
    %326 = vector.extract_strided_slice %302 {offsets = [0, 8], sizes = [8, 8], strides = [1, 1]} : vector<8x32xf32> to vector<8x8xf32>
    %327 = vector.extract_strided_slice %303 {offsets = [0, 8], sizes = [8, 8], strides = [1, 1]} : vector<8x32xf32> to vector<8x8xf32>
    %328 = tpu.transpose %326, [1, 0] : vector<8x8xf32> -> vector<8x8xf32>
    %cst_102 = arith.constant dense<0.000000e+00> : vector<8x8xf32>
    %329 = tpu.matmul %325, %328, %cst_102 {dimension_numbers = #tpu.dot_dimension_numbers<[1], [0], [0], [1], [0, 0, 1, 1], [], []>} : vector<8x8xf32>, vector<8x8xf32>, vector<8x8xf32> -> vector<8x8xf32>
    %cst_103 = arith.constant 0.353553385 : f32
    %330 = vector.broadcast %cst_103 : f32 to vector<8x8xf32>
    %331 = arith.mulf %329, %330 : vector<8x8xf32>
    %332 = arith.addf %331, %305 : vector<8x8xf32>
    %cst_104 = arith.constant dense<0xFF800000> : vector<8xf32>
    %333 = vector.multi_reduction <maximumf>, %332, %cst_104 [1] : vector<8x8xf32> to vector<8xf32>
    %334 = vector.shape_cast %333 : vector<8xf32> to vector<8x1xf32>
    %335 = vector.broadcast %334 : vector<8x1xf32> to vector<8x8xf32>
    %336 = arith.subf %332, %335 : vector<8x8xf32>
    %337 = math.exp %336 : vector<8x8xf32>
    %cst_105 = arith.constant dense<0.000000e+00> : vector<8xf32>
    %338 = vector.multi_reduction <add>, %337, %cst_105 [1] : vector<8x8xf32> to vector<8xf32>
    %339 = vector.shape_cast %338 : vector<8xf32> to vector<8x1xf32>
    %340 = tpu.reciprocal %339 {approx = true} : vector<8x1xf32> -> vector<8x1xf32>
    %341 = vector.broadcast %340 : vector<8x1xf32> to vector<8x8xf32>
    %342 = arith.mulf %337, %341 : vector<8x8xf32>
    %cst_106 = arith.constant dense<0.000000e+00> : vector<8x8xf32>
    %343 = tpu.matmul %342, %327, %cst_106 {dimension_numbers = #tpu.dot_dimension_numbers<[1], [0], [0], [1], [0, 0, 1, 1], [], []>} : vector<8x8xf32>, vector<8x8xf32>, vector<8x8xf32> -> vector<8x8xf32>
    %344 = vector.extract_strided_slice %301 {offsets = [0, 16], sizes = [8, 8], strides = [1, 1]} : vector<8x32xf32> to vector<8x8xf32>
    %345 = vector.extract_strided_slice %302 {offsets = [0, 16], sizes = [8, 8], strides = [1, 1]} : vector<8x32xf32> to vector<8x8xf32>
    %346 = vector.extract_strided_slice %303 {offsets = [0, 16], sizes = [8, 8], strides = [1, 1]} : vector<8x32xf32> to vector<8x8xf32>
    %347 = tpu.transpose %345, [1, 0] : vector<8x8xf32> -> vector<8x8xf32>
    %cst_107 = arith.constant dense<0.000000e+00> : vector<8x8xf32>
    %348 = tpu.matmul %344, %347, %cst_107 {dimension_numbers = #tpu.dot_dimension_numbers<[1], [0], [0], [1], [0, 0, 1, 1], [], []>} : vector<8x8xf32>, vector<8x8xf32>, vector<8x8xf32> -> vector<8x8xf32>
    %cst_108 = arith.constant 0.353553385 : f32
    %349 = vector.broadcast %cst_108 : f32 to vector<8x8xf32>
    %350 = arith.mulf %348, %349 : vector<8x8xf32>
    %351 = arith.addf %350, %305 : vector<8x8xf32>
    %cst_109 = arith.constant dense<0xFF800000> : vector<8xf32>
    %352 = vector.multi_reduction <maximumf>, %351, %cst_109 [1] : vector<8x8xf32> to vector<8xf32>
    %353 = vector.shape_cast %352 : vector<8xf32> to vector<8x1xf32>
    %354 = vector.broadcast %353 : vector<8x1xf32> to vector<8x8xf32>
    %355 = arith.subf %351, %354 : vector<8x8xf32>
    %356 = math.exp %355 : vector<8x8xf32>
    %cst_110 = arith.constant dense<0.000000e+00> : vector<8xf32>
    %357 = vector.multi_reduction <add>, %356, %cst_110 [1] : vector<8x8xf32> to vector<8xf32>
    %358 = vector.shape_cast %357 : vector<8xf32> to vector<8x1xf32>
    %359 = tpu.reciprocal %358 {approx = true} : vector<8x1xf32> -> vector<8x1xf32>
    %360 = vector.broadcast %359 : vector<8x1xf32> to vector<8x8xf32>
    %361 = arith.mulf %356, %360 : vector<8x8xf32>
    %cst_111 = arith.constant dense<0.000000e+00> : vector<8x8xf32>
    %362 = tpu.matmul %361, %346, %cst_111 {dimension_numbers = #tpu.dot_dimension_numbers<[1], [0], [0], [1], [0, 0, 1, 1], [], []>} : vector<8x8xf32>, vector<8x8xf32>, vector<8x8xf32> -> vector<8x8xf32>
    %363 = vector.extract_strided_slice %301 {offsets = [0, 24], sizes = [8, 8], strides = [1, 1]} : vector<8x32xf32> to vector<8x8xf32>
    %364 = vector.extract_strided_slice %302 {offsets = [0, 24], sizes = [8, 8], strides = [1, 1]} : vector<8x32xf32> to vector<8x8xf32>
    %365 = vector.extract_strided_slice %303 {offsets = [0, 24], sizes = [8, 8], strides = [1, 1]} : vector<8x32xf32> to vector<8x8xf32>
    %366 = tpu.transpose %364, [1, 0] : vector<8x8xf32> -> vector<8x8xf32>
    %cst_112 = arith.constant dense<0.000000e+00> : vector<8x8xf32>
    %367 = tpu.matmul %363, %366, %cst_112 {dimension_numbers = #tpu.dot_dimension_numbers<[1], [0], [0], [1], [0, 0, 1, 1], [], []>} : vector<8x8xf32>, vector<8x8xf32>, vector<8x8xf32> -> vector<8x8xf32>
    %cst_113 = arith.constant 0.353553385 : f32
    %368 = vector.broadcast %cst_113 : f32 to vector<8x8xf32>
    %369 = arith.mulf %367, %368 : vector<8x8xf32>
    %370 = arith.addf %369, %305 : vector<8x8xf32>
    %cst_114 = arith.constant dense<0xFF800000> : vector<8xf32>
    %371 = vector.multi_reduction <maximumf>, %370, %cst_114 [1] : vector<8x8xf32> to vector<8xf32>
    %372 = vector.shape_cast %371 : vector<8xf32> to vector<8x1xf32>
    %373 = vector.broadcast %372 : vector<8x1xf32> to vector<8x8xf32>
    %374 = arith.subf %370, %373 : vector<8x8xf32>
    %375 = math.exp %374 : vector<8x8xf32>
    %cst_115 = arith.constant dense<0.000000e+00> : vector<8xf32>
    %376 = vector.multi_reduction <add>, %375, %cst_115 [1] : vector<8x8xf32> to vector<8xf32>
    %377 = vector.shape_cast %376 : vector<8xf32> to vector<8x1xf32>
    %378 = tpu.reciprocal %377 {approx = true} : vector<8x1xf32> -> vector<8x1xf32>
    %379 = vector.broadcast %378 : vector<8x1xf32> to vector<8x8xf32>
    %380 = arith.mulf %375, %379 : vector<8x8xf32>
    %cst_116 = arith.constant dense<0.000000e+00> : vector<8x8xf32>
    %381 = tpu.matmul %380, %365, %cst_116 {dimension_numbers = #tpu.dot_dimension_numbers<[1], [0], [0], [1], [0, 0, 1, 1], [], []>} : vector<8x8xf32>, vector<8x8xf32>, vector<8x8xf32> -> vector<8x8xf32>
    %382 = tpu.concatenate %324, %343, %362, %381 in 1 : vector<8x8xf32>, vector<8x8xf32>, vector<8x8xf32>, vector<8x8xf32> -> vector<8x32xf32>
    %383 = tpu.concatenate %300, %382 in 0 : vector<8x32xf32>, vector<8x32xf32> -> vector<16x32xf32>
    %c0_117 = arith.constant 0 : index
    %c0_118 = arith.constant 0 : index
    %384 = vector.load %arg14[%c0_117, %c0_118] : memref<32x32xf32, #tpu.memory_space<vmem>>, vector<32x32xf32>
    %cst_119 = arith.constant dense<0.000000e+00> : vector<16x32xf32>
    %385 = tpu.matmul %383, %384, %cst_119 {dimension_numbers = #tpu.dot_dimension_numbers<[1], [0], [0], [1], [0, 0, 1, 1], [], []>} : vector<16x32xf32>, vector<32x32xf32>, vector<16x32xf32> -> vector<16x32xf32>
    %c0_120 = arith.constant 0 : index
    %c0_121 = arith.constant 0 : index
    %386 = vector.load %arg15[%c0_120, %c0_121] : memref<1x32xf32, #tpu.memory_space<vmem>>, vector<1x32xf32>
    %387 = vector.broadcast %386 : vector<1x32xf32> to vector<16x32xf32>
    %388 = arith.addf %385, %387 : vector<16x32xf32>
    %389 = arith.addf %205, %388 : vector<16x32xf32>
    %c0_122 = arith.constant 0 : index
    %c0_123 = arith.constant 0 : index
    %390 = vector.load %arg16[%c0_122, %c0_123] : memref<1x32xf32, #tpu.memory_space<vmem>>, vector<1x32xf32>
    %c0_124 = arith.constant 0 : index
    %c0_125 = arith.constant 0 : index
    %391 = vector.load %arg17[%c0_124, %c0_125] : memref<1x32xf32, #tpu.memory_space<vmem>>, vector<1x32xf32>
    %cst_126 = arith.constant dense<0.000000e+00> : vector<16xf32>
    %392 = vector.multi_reduction <add>, %389, %cst_126 [1] : vector<16x32xf32> to vector<16xf32>
    %393 = vector.shape_cast %392 : vector<16xf32> to vector<16x1xf32>
    %cst_127 = arith.constant 3.200000e+01 : f32
    %394 = vector.broadcast %cst_127 : f32 to vector<16x1xf32>
    %395 = arith.divf %393, %394 : vector<16x1xf32>
    %396 = vector.broadcast %395 : vector<16x1xf32> to vector<16x32xf32>
    %397 = arith.subf %389, %396 : vector<16x32xf32>
    %398 = arith.mulf %397, %397 : vector<16x32xf32>
    %cst_128 = arith.constant dense<0.000000e+00> : vector<16xf32>
    %399 = vector.multi_reduction <add>, %398, %cst_128 [1] : vector<16x32xf32> to vector<16xf32>
    %400 = vector.shape_cast %399 : vector<16xf32> to vector<16x1xf32>
    %cst_129 = arith.constant 3.200000e+01 : f32
    %401 = vector.broadcast %cst_129 : f32 to vector<16x1xf32>
    %402 = arith.divf %400, %401 : vector<16x1xf32>
    %403 = vector.broadcast %395 : vector<16x1xf32> to vector<16x32xf32>
    %404 = arith.subf %389, %403 : vector<16x32xf32>
    %cst_130 = arith.constant 9.99999974E-6 : f32
    %405 = vector.broadcast %cst_130 : f32 to vector<16x1xf32>
    %406 = arith.addf %402, %405 : vector<16x1xf32>
    %407 = math.rsqrt %406 : vector<16x1xf32>
    %408 = vector.broadcast %407 : vector<16x1xf32> to vector<16x32xf32>
    %409 = arith.mulf %404, %408 : vector<16x32xf32>
    %410 = vector.broadcast %390 : vector<1x32xf32> to vector<16x32xf32>
    %411 = arith.mulf %409, %410 : vector<16x32xf32>
    %412 = vector.broadcast %391 : vector<1x32xf32> to vector<16x32xf32>
    %413 = arith.addf %411, %412 : vector<16x32xf32>
    %c0_131 = arith.constant 0 : index
    %c0_132 = arith.constant 0 : index
    %414 = vector.load %arg18[%c0_131, %c0_132] : memref<32x64xf32, #tpu.memory_space<vmem>>, vector<32x64xf32>
    %cst_133 = arith.constant dense<0.000000e+00> : vector<16x64xf32>
    %415 = tpu.matmul %413, %414, %cst_133 {dimension_numbers = #tpu.dot_dimension_numbers<[1], [0], [0], [1], [0, 0, 1, 1], [], []>} : vector<16x32xf32>, vector<32x64xf32>, vector<16x64xf32> -> vector<16x64xf32>
    %c0_134 = arith.constant 0 : index
    %c0_135 = arith.constant 0 : index
    %416 = vector.load %arg19[%c0_134, %c0_135] : memref<1x64xf32, #tpu.memory_space<vmem>>, vector<1x64xf32>
    %417 = vector.broadcast %416 : vector<1x64xf32> to vector<16x64xf32>
    %418 = arith.addf %415, %417 : vector<16x64xf32>
    %cst_136 = arith.constant 0.000000e+00 : f32
    %419 = vector.broadcast %cst_136 : f32 to vector<16x64xf32>
    %420 = arith.maximumf %418, %419 : vector<16x64xf32>
    %c0_137 = arith.constant 0 : index
    %c0_138 = arith.constant 0 : index
    %421 = vector.load %arg20[%c0_137, %c0_138] : memref<64x32xf32, #tpu.memory_space<vmem>>, vector<64x32xf32>
    %cst_139 = arith.constant dense<0.000000e+00> : vector<16x32xf32>
    %422 = tpu.matmul %420, %421, %cst_139 {dimension_numbers = #tpu.dot_dimension_numbers<[1], [0], [0], [1], [0, 0, 1, 1], [], []>} : vector<16x64xf32>, vector<64x32xf32>, vector<16x32xf32> -> vector<16x32xf32>
    %c0_140 = arith.constant 0 : index
    %c0_141 = arith.constant 0 : index
    %423 = vector.load %arg21[%c0_140, %c0_141] : memref<1x32xf32, #tpu.memory_space<vmem>>, vector<1x32xf32>
    %424 = vector.broadcast %423 : vector<1x32xf32> to vector<16x32xf32>
    %425 = arith.addf %422, %424 : vector<16x32xf32>
    %426 = arith.addf %413, %425 : vector<16x32xf32>
    %c0_142 = arith.constant 0 : index
    %c0_143 = arith.constant 0 : index
    %427 = vector.load %arg22[%c0_142, %c0_143] : memref<1x32xf32, #tpu.memory_space<vmem>>, vector<1x32xf32>
    %c0_144 = arith.constant 0 : index
    %c0_145 = arith.constant 0 : index
    %428 = vector.load %arg23[%c0_144, %c0_145] : memref<1x32xf32, #tpu.memory_space<vmem>>, vector<1x32xf32>
    %cst_146 = arith.constant dense<0.000000e+00> : vector<16xf32>
    %429 = vector.multi_reduction <add>, %426, %cst_146 [1] : vector<16x32xf32> to vector<16xf32>
    %430 = vector.shape_cast %429 : vector<16xf32> to vector<16x1xf32>
    %cst_147 = arith.constant 3.200000e+01 : f32
    %431 = vector.broadcast %cst_147 : f32 to vector<16x1xf32>
    %432 = arith.divf %430, %431 : vector<16x1xf32>
    %433 = vector.broadcast %432 : vector<16x1xf32> to vector<16x32xf32>
    %434 = arith.subf %426, %433 : vector<16x32xf32>
    %435 = arith.mulf %434, %434 : vector<16x32xf32>
    %cst_148 = arith.constant dense<0.000000e+00> : vector<16xf32>
    %436 = vector.multi_reduction <add>, %435, %cst_148 [1] : vector<16x32xf32> to vector<16xf32>
    %437 = vector.shape_cast %436 : vector<16xf32> to vector<16x1xf32>
    %cst_149 = arith.constant 3.200000e+01 : f32
    %438 = vector.broadcast %cst_149 : f32 to vector<16x1xf32>
    %439 = arith.divf %437, %438 : vector<16x1xf32>
    %440 = vector.broadcast %432 : vector<16x1xf32> to vector<16x32xf32>
    %441 = arith.subf %426, %440 : vector<16x32xf32>
    %cst_150 = arith.constant 9.99999974E-6 : f32
    %442 = vector.broadcast %cst_150 : f32 to vector<16x1xf32>
    %443 = arith.addf %439, %442 : vector<16x1xf32>
    %444 = math.rsqrt %443 : vector<16x1xf32>
    %445 = vector.broadcast %444 : vector<16x1xf32> to vector<16x32xf32>
    %446 = arith.mulf %441, %445 : vector<16x32xf32>
    %447 = vector.broadcast %427 : vector<1x32xf32> to vector<16x32xf32>
    %448 = arith.mulf %446, %447 : vector<16x32xf32>
    %449 = vector.broadcast %428 : vector<1x32xf32> to vector<16x32xf32>
    %450 = arith.addf %448, %449 : vector<16x32xf32>
    %c0_151 = arith.constant 0 : index
    %c0_152 = arith.constant 0 : index
    %451 = vector.load %arg24[%c0_151, %c0_152] : memref<16x32xf32, #tpu.memory_space<vmem>>, vector<16x32xf32>
    tpu.vector_store %arg24[%c0_151, %c0_152], %450 {strides = array<i32>} : memref<16x32xf32, #tpu.memory_space<vmem>>, vector<16x32xf32>,
    return
  }
}

</mosaic_0001>

<llo_original>
// kernel: transformer_forward.9
$region0: #{transformer_forward.9}
  #allocation0 [shape = 'u32[]', space=smem, size = 0x4, offset = 0x4, fixed_abs, tag = 'smem constant byte address 0x4 - core index']
  #allocation1 [shape = 'u32[144,128]{1,0:T(1,128)}', space=vmem, size = 0x12000, scoped, tag = 'internal scratch']
  %s0 = inlined_call_operand.vmem [shape: f32[16,32], index: 0, kind: input, shape index: {}]
  %s1 = inlined_call_operand.vmem [shape: f32[32,128], index: 1, kind: input, shape index: {}]
  %s2 = inlined_call_operand.vmem [shape: f32[1,128], index: 2, kind: input, shape index: {}]
  %s3 = inlined_call_operand.vmem [shape: f32[16,128], index: 3, kind: output, shape index: {}]
  %s4 = sld [smem:[#allocation0]]
  $region22: #{transformer_forward.9} parent=0
    _
  %s6 = ssub.s32 1, %s4
  %s7 = scalar_select 0, %s6, %s4
  // Predicated region
  $region2: #{transformer_forward.9} parent=0 // pred_check
    _
  $region3: #{transformer_forward.9} parent=0 // pred_check_branch
    %9 = sbr.rel (0) target = $region5
  $region4: #{transformer_forward.9} parent=0 // pred_region
    _
  $region5: #{transformer_forward.9} parent=0 // pred_fallthru
    _
  // Predicated region
  $region6: #{transformer_forward.9} parent=0 // pred_check
    _
  $region7: #{transformer_forward.9} parent=0 // pred_check_branch
    %11 = sbr.rel (0) target = $region9
  $region8: #{transformer_forward.9} parent=0 // pred_region
    _
  $region9: #{transformer_forward.9} parent=0 // pred_fallthru
    _
  // Predicated region
  $region10: #{transformer_forward.9} parent=0 // pred_check
    _
  $region11: #{transformer_forward.9} parent=0 // pred_check_branch
    %13 = sbr.rel (0) target = $region13
  $region12: #{transformer_forward.9} parent=0 // pred_region
    _
  $region13: #{transformer_forward.9} parent=0 // pred_fallthru
    _
  %v14 = vld [vmem:[%s0] sm:$0xff]
  %v15 = vld [vmem:[%s0 + $0x8] sm:$0xff]
  %v16 = vld [vmem:[%s1] sm:$0xff]
  %v17 = vld [vmem:[%s1 + $0x8] sm:$0xff]
  %v18 = vld [vmem:[%s1 + $0x10] sm:$0xff]
  %v19 = vld [vmem:[%s1 + $0x18] sm:$0xff]
  %v20 = vld [vmem:[%s2] sm:$0x1]
  %v22 = vlaneseq
  %v23 = vshrl.u32 %v22, 7
  %v24 = vsub.s32 0, %v23
  %v25 = vrot.slane %v20, %v24
  %vm27 = vcmask 261120
  %v29 = vsel %vm27, %v14, 0
  %v32 = vsel %vm27, %v15, 0
  %34 = vmatprep.subr.mxu0 0.0
  %35 = vmatpush1.msra.mxu0 %v16
  %36 = vmatprep.subr.mxu0 0.0
  %37 = vmatpush1.msra.mxu0 %v17
  %38 = vmatprep.subr.mxu0 0.0
  %39 = vmatpush1.msra.mxu0 %v18
  %40 = vmatprep.subr.mxu0 0.0
  %41 = vmatpush1.msra.mxu0 %v19
  %42 = vmatprep.subr.mxu0 0.0
  %43 = vmatpush1.msra.mxu0 0.0
  %44 = vmatprep.subr.mxu0 0.0
  %45 = vmatpush1.msra.mxu0 0.0
  %46 = vmatprep.subr.mxu0 0.0
  %47 = vmatpush1.msra.mxu0 0.0
  %48 = vmatprep.subr.mxu0 0.0
  %49 = vmatpush1.msra.mxu0 0.0
  %50 = vmatprep.subr.mxu0 0.0
  %51 = vmatpush1.msra.mxu0 0.0
  %52 = vmatprep.subr.mxu0 0.0
  %53 = vmatpush1.msra.mxu0 0.0
  %54 = vmatprep.subr.mxu0 0.0
  %55 = vmatpush1.msra.mxu0 0.0
  %56 = vmatprep.subr.mxu0 0.0
  %57 = vmatpush1.msra.mxu0 0.0
  %58 = vmatprep.subr.mxu0 0.0
  %59 = vmatpush1.msra.mxu0 0.0
  %60 = vmatprep.subr.mxu0 0.0
  %61 = vmatpush1.msra.mxu0 0.0
  %62 = vmatprep.subr.mxu0 0.0
  %63 = vmatpush1.msra.mxu0 0.0
  %64 = vmatprep.subr.mxu0 0.0
  %65 = vmatpush1.msra.mxu0 0.0
  %66 = vmatprep.subr.mxu0 0.0
  %67 = vmatpush1.msra.mxu0 0.0
  %68 = vmatprep.subr.mxu0 0.0
  %69 = vmatpush1.msra.mxu0 0.0
  %70 = vmatprep.subr.mxu0 0.0
  %71 = vmatpush1.msra.mxu0 0.0
  %72 = vmatprep.subr.mxu0 0.0
  %73 = vmatpush1.msra.mxu0 0.0
  %74 = vmatprep.subr.mxu0 0.0
  %75 = vmatpush1.msra.mxu0 0.0
  %76 = vmatprep.subr.mxu0 0.0
  %77 = vmatpush1.msra.mxu0 0.0
  %78 = vmatprep.subr.mxu0 0.0
  %79 = vmatpush1.msra.mxu0 0.0
  %80 = vmatprep.subr.mxu0 0.0
  %81 = vmatpush1.msra.mxu0 0.0
  %82 = vmatprep.subr.mxu0 0.0
  %83 = vmatpush1.msra.mxu0 0.0
  %84 = vmatprep.subr.mxu0 0.0
  %85 = vmatpush1.msra.mxu0 0.0
  %86 = vmatprep.subr.mxu0 0.0
  %87 = vmatpush1.msra.mxu0 0.0
  %88 = vmatprep.subr.mxu0 0.0
  %89 = vmatpush1.msra.mxu0 0.0
  %90 = vmatprep.subr.mxu0 0.0
  %91 = vmatpush1.msra.mxu0 0.0
  %92 = vmatprep.subr.mxu0 0.0
  %93 = vmatpush1.msra.mxu0 0.0
  %94 = vmatprep.subr.mxu0 0.0
  %95 = vmatpush1.msra.mxu0 0.0
  %96 = vmatprep.subr.mxu0 0.0
  %97 = vmatpush1.msra.mxu0 0.0
  %98 = vmatprep.mubr.f32.mxu0 0.0
  %99 = vmatmul.mubr.f32.gmra.mrb[0].mxu0 %v29
  %v100 = vpop.f32.mrb[0].mxu0
  %v101 = vadd.f32 %v25, %v100
  %v102 = vpop.f32.mrb[0].mxu0
  %103 = vmatprep.mubr.f32.mxu0 0.0
  %104 = vmatmul.mubr.f32.gmra.mrb[0].mxu0 %v32
  %v105 = vpop.f32.mrb[0].mxu0
  %v106 = vadd.f32 %v25, %v105
  %v107 = vpop.f32.mrb[0].mxu0
  %108 = vdwg.mxu0
  %109 = vst [vmem:[%s3] sm:$0xff] %v101
  %110 = vst [vmem:[%s3 + $0x8] sm:$0xff] %v106
  // Predicated region
  $region14: #{transformer_forward.9} parent=0 // pred_check
    _
  $region15: #{transformer_forward.9} parent=0 // pred_check_branch
    %112 = sbr.rel (0) target = $region17
  $region16: #{transformer_forward.9} parent=0 // pred_region
    _
  $region17: #{transformer_forward.9} parent=0 // pred_fallthru
    _
  // Predicated region
  $region18: #{transformer_forward.9} parent=0 // pred_check
    _
  $region19: #{transformer_forward.9} parent=0 // pred_check_branch
    %114 = sbr.rel (0) target = $region21
  $region20: #{transformer_forward.9} parent=0 // pred_region
    _
  $region21: #{transformer_forward.9} parent=0 // pred_fallthru
    _

// kernel: transformer_forward.5
$region0: #{transformer_forward.5}
  #allocation0 [shape = 'u32[]', space=smem, size = 0x4, offset = 0x4, fixed_abs, tag = 'smem constant byte address 0x4 - core index']
  #allocation1 [shape = 'u32[144,128]{1,0:T(1,128)}', space=vmem, size = 0x12000, scoped, tag = 'internal scratch']
  %s0 = inlined_call_operand.vmem [shape: f32[16,32], index: 0, kind: input, shape index: {}]
  %s1 = inlined_call_operand.vmem [shape: f32[2,8,8], index: 1, kind: input, shape index: {}]
  %s2 = inlined_call_operand.vmem [shape: f32[32,96], index: 2, kind: input, shape index: {}]
  %s3 = inlined_call_operand.vmem [shape: f32[1,96], index: 3, kind: input, shape index: {}]
  %s4 = inlined_call_operand.vmem [shape: f32[32,32], index: 4, kind: input, shape index: {}]
  %s5 = inlined_call_operand.vmem [shape: f32[1,32], index: 5, kind: input, shape index: {}]
  %s6 = inlined_call_operand.vmem [shape: f32[1,32], index: 6, kind: input, shape index: {}]
  %s7 = inlined_call_operand.vmem [shape: f32[1,32], index: 7, kind: input, shape index: {}]
  %s8 = inlined_call_operand.vmem [shape: f32[32,64], index: 8, kind: input, shape index: {}]
  %s9 = inlined_call_operand.vmem [shape: f32[1,64], index: 9, kind: input, shape index: {}]
  %s10 = inlined_call_operand.vmem [shape: f32[64,32], index: 10, kind: input, shape index: {}]
  %s11 = inlined_call_operand.vmem [shape: f32[1,32], index: 11, kind: input, shape index: {}]
  %s12 = inlined_call_operand.vmem [shape: f32[1,32], index: 12, kind: input, shape index: {}]
  %s13 = inlined_call_operand.vmem [shape: f32[1,32], index: 13, kind: input, shape index: {}]
  %s14 = inlined_call_operand.vmem [shape: f32[16,32], index: 14, kind: output, shape index: {}]
  %s15 = sld [smem:[#allocation0]]
  $region66: #{transformer_forward.5} parent=0
    _
  %s17 = ssub.s32 1, %s15
  %s18 = scalar_select 0, %s17, %s15
  // Predicated region
  $region2: #{transformer_forward.5} parent=0 // pred_check
    _
  $region3: #{transformer_forward.5} parent=0 // pred_check_branch
    %20 = sbr.rel (0) target = $region5
  $region4: #{transformer_forward.5} parent=0 // pred_region
    _
  $region5: #{transformer_forward.5} parent=0 // pred_fallthru
    _
  // Predicated region
  $region6: #{transformer_forward.5} parent=0 // pred_check
    _
  $region7: #{transformer_forward.5} parent=0 // pred_check_branch
    %22 = sbr.rel (0) target = $region9
  $region8: #{transformer_forward.5} parent=0 // pred_region
    _
  $region9: #{transformer_forward.5} parent=0 // pred_fallthru
    _
  // Predicated region
  $region10: #{transformer_forward.5} parent=0 // pred_check
    _
  $region11: #{transformer_forward.5} parent=0 // pred_check_branch
    %24 = sbr.rel (0) target = $region13
  $region12: #{transformer_forward.5} parent=0 // pred_region
    _
  $region13: #{transformer_forward.5} parent=0 // pred_fallthru
    _
  // Predicated region
  $region14: #{transformer_forward.5} parent=0 // pred_check
    _
  $region15: #{transformer_forward.5} parent=0 // pred_check_branch
    %26 = sbr.rel (0) target = $region17
  $region16: #{transformer_forward.5} parent=0 // pred_region
    _
  $region17: #{transformer_forward.5} parent=0 // pred_fallthru
    _
  // Predicated region
  $region18: #{transformer_forward.5} parent=0 // pred_check
    _
  $region19: #{transformer_forward.5} parent=0 // pred_check_branch
    %28 = sbr.rel (0) target = $region21
  $region20: #{transformer_forward.5} parent=0 // pred_region
    _
  $region21: #{transformer_forward.5} parent=0 // pred_fallthru
    _
  // Predicated region
  $region22: #{transformer_forward.5} parent=0 // pred_check
    _
  $region23: #{transformer_forward.5} parent=0 // pred_check_branch
    %30 = sbr.rel (0) target = $region25
  $region24: #{transformer_forward.5} parent=0 // pred_region
    _
  $region25: #{transformer_forward.5} parent=0 // pred_fallthru
    _
  // Predicated region
  $region26: #{transformer_forward.5} parent=0 // pred_check
    _
  $region27: #{transformer_forward.5} parent=0 // pred_check_branch
    %32 = sbr.rel (0) target = $region29
  $region28: #{transformer_forward.5} parent=0 // pred_region
    _
  $region29: #{transformer_forward.5} parent=0 // pred_fallthru
    _
  // Predicated region
  $region30: #{transformer_forward.5} parent=0 // pred_check
    _
  $region31: #{transformer_forward.5} parent=0 // pred_check_branch
    %34 = sbr.rel (0) target = $region33
  $region32: #{transformer_forward.5} parent=0 // pred_region
    _
  $region33: #{transformer_forward.5} parent=0 // pred_fallthru
    _
  // Predicated region
  $region34: #{transformer_forward.5} parent=0 // pred_check
    _
  $region35: #{transformer_forward.5} parent=0 // pred_check_branch
    %36 = sbr.rel (0) target = $region37
  $region36: #{transformer_forward.5} parent=0 // pred_region
    _
  $region37: #{transformer_forward.5} parent=0 // pred_fallthru
    _
  // Predicated region
  $region38: #{transformer_forward.5} parent=0 // pred_check
    _
  $region39: #{transformer_forward.5} parent=0 // pred_check_branch
    %38 = sbr.rel (0) target = $region41
  $region40: #{transformer_forward.5} parent=0 // pred_region
    _
  $region41: #{transformer_forward.5} parent=0 // pred_fallthru
    _
  // Predicated region
  $region42: #{transformer_forward.5} parent=0 // pred_check
    _
  $region43: #{transformer_forward.5} parent=0 // pred_check_branch
    %40 = sbr.rel (0) target = $region45
  $region44: #{transformer_forward.5} parent=0 // pred_region
    _
  $region45: #{transformer_forward.5} parent=0 // pred_fallthru
    _
  // Predicated region
  $region46: #{transformer_forward.5} parent=0 // pred_check
    _
  $region47: #{transformer_forward.5} parent=0 // pred_check_branch
    %42 = sbr.rel (0) target = $region49
  $region48: #{transformer_forward.5} parent=0 // pred_region
    _
  $region49: #{transformer_forward.5} parent=0 // pred_fallthru
    _
  // Predicated region
  $region50: #{transformer_forward.5} parent=0 // pred_check
    _
  $region51: #{transformer_forward.5} parent=0 // pred_check_branch
    %44 = sbr.rel (0) target = $region53
  $region52: #{transformer_forward.5} parent=0 // pred_region
    _
  $region53: #{transformer_forward.5} parent=0 // pred_fallthru
    _
  // Predicated region
  $region54: #{transformer_forward.5} parent=0 // pred_check
    _
  $region55: #{transformer_forward.5} parent=0 // pred_check_branch
    %46 = sbr.rel (0) target = $region57
  $region56: #{transformer_forward.5} parent=0 // pred_region
    _
  $region57: #{transformer_forward.5} parent=0 // pred_fallthru
    _
  %v47 = vld [vmem:[%s0] sm:$0xff]
  %v48 = vld [vmem:[%s0 + $0x8] sm:$0xff]
  %v49 = vld [vmem:[%s2] sm:$0xff]
  %v50 = vld [vmem:[%s2 + $0x8] sm:$0xff]
  %v51 = vld [vmem:[%s2 + $0x10] sm:$0xff]
  %v52 = vld [vmem:[%s2 + $0x18] sm:$0xff]
  %v53 = vld [vmem:[%s3] sm:$0x1]
  %v55 = vlaneseq
  %v56 = vshrl.u32 %v55, 7
  %v57 = vsub.s32 0, %v56
  %v58 = vrot.slane %v53, %v57
  %vm60 = vcmask 261120
  %v62 = vsel %vm60, %v47, 0
  %v65 = vsel %vm60, %v48, 0
  %67 = vmatprep.subr.mxu0 0.0
  %68 = vmatpush1.msra.mxu0 %v49
  %69 = vmatprep.subr.mxu0 0.0
  %70 = vmatpush1.msra.mxu0 %v50
  %71 = vmatprep.subr.mxu0 0.0
  %72 = vmatpush1.msra.mxu0 %v51
  %73 = vmatprep.subr.mxu0 0.0
  %74 = vmatpush1.msra.mxu0 %v52
  %75 = vmatprep.subr.mxu0 0.0
  %76 = vmatpush1.msra.mxu0 0.0
  %77 = vmatprep.subr.mxu0 0.0
  %78 = vmatpush1.msra.mxu0 0.0
  %79 = vmatprep.subr.mxu0 0.0
  %80 = vmatpush1.msra.mxu0 0.0
  %81 = vmatprep.subr.mxu0 0.0
  %82 = vmatpush1.msra.mxu0 0.0
  %83 = vmatprep.subr.mxu0 0.0
  %84 = vmatpush1.msra.mxu0 0.0
  %85 = vmatprep.subr.mxu0 0.0
  %86 = vmatpush1.msra.mxu0 0.0
  %87 = vmatprep.subr.mxu0 0.0
  %88 = vmatpush1.msra.mxu0 0.0
  %89 = vmatprep.subr.mxu0 0.0
  %90 = vmatpush1.msra.mxu0 0.0
  %91 = vmatprep.subr.mxu0 0.0
  %92 = vmatpush1.msra.mxu0 0.0
  %93 = vmatprep.subr.mxu0 0.0
  %94 = vmatpush1.msra.mxu0 0.0
  %95 = vmatprep.subr.mxu0 0.0
  %96 = vmatpush1.msra.mxu0 0.0
  %97 = vmatprep.subr.mxu0 0.0
  %98 = vmatpush1.msra.mxu0 0.0
  %99 = vmatprep.subr.mxu0 0.0
  %100 = vmatpush1.msra.mxu0 0.0
  %101 = vmatprep.subr.mxu0 0.0
  %102 = vmatpush1.msra.mxu0 0.0
  %103 = vmatprep.subr.mxu0 0.0
  %104 = vmatpush1.msra.mxu0 0.0
  %105 = vmatprep.subr.mxu0 0.0
  %106 = vmatpush1.msra.mxu0 0.0
  %107 = vmatprep.subr.mxu0 0.0
  %108 = vmatpush1.msra.mxu0 0.0
  %109 = vmatprep.subr.mxu0 0.0
  %110 = vmatpush1.msra.mxu0 0.0
  %111 = vmatprep.subr.mxu0 0.0
  %112 = vmatpush1.msra.mxu0 0.0
  %113 = vmatprep.subr.mxu0 0.0
  %114 = vmatpush1.msra.mxu0 0.0
  %115 = vmatprep.subr.mxu0 0.0
  %116 = vmatpush1.msra.mxu0 0.0
  %117 = vmatprep.subr.mxu0 0.0
  %118 = vmatpush1.msra.mxu0 0.0
  %119 = vmatprep.subr.mxu0 0.0
  %120 = vmatpush1.msra.mxu0 0.0
  %121 = vmatprep.subr.mxu0 0.0
  %122 = vmatpush1.msra.mxu0 0.0
  %123 = vmatprep.subr.mxu0 0.0
  %124 = vmatpush1.msra.mxu0 0.0
  %125 = vmatprep.subr.mxu0 0.0
  %126 = vmatpush1.msra.mxu0 0.0
  %127 = vmatprep.subr.mxu0 0.0
  %128 = vmatpush1.msra.mxu0 0.0
  %129 = vmatprep.subr.mxu0 0.0
  %130 = vmatpush1.msra.mxu0 0.0
  %131 = vmatprep.mubr.f32.mxu0 0.0
  %132 = vmatmul.mubr.f32.gmra.mrb[0].mxu0 %v62
  %v133 = vpop.f32.mrb[0].mxu0
  %v134 = vadd.f32 %v58, %v133
  %v135 = vpop.f32.mrb[0].mxu0
  %136 = vmatprep.mubr.f32.mxu0 0.0
  %137 = vmatmul.mubr.f32.gmra.mrb[0].mxu0 %v65
  %v138 = vpop.f32.mrb[0].mxu0
  %v139 = vadd.f32 %v58, %v138
  %v140 = vpop.f32.mrb[0].mxu0
  %141 = vdwg.mxu0
  %v142 = vld [vmem:[%s1] sm:$0xff]
  %v143 = vld [vmem:[%s1 + $0x8] sm:$0xff]
  %145 = vrot.lane.b32.xlu0 %v134, 96
  %v146 = vpop.permute.xlu0 %145
  %vm147 = vcmask 64512
  %v148 = vsel %vm147, %v134, 0
  %v150 = vsel %vm147, %v146, 0
  %152 = vmatprep.subr.mxu0 0.0
  %153 = vmatpush1.xpose.msra.mxu0 %v150
  %154 = vmatprep.subr.mxu0 0.0
  %155 = vmatpush1.xpose.msra.mxu0 0.0
  %156 = vmatprep.subr.mxu0 0.0
  %157 = vmatpush1.xpose.msra.mxu0 0.0
  %158 = vmatprep.subr.mxu0 0.0
  %159 = vmatpush1.xpose.msra.mxu0 0.0
  %160 = vmatprep.subr.mxu0 0.0
  %161 = vmatpush1.xpose.msra.mxu0 0.0
  %162 = vmatprep.subr.mxu0 0.0
  %163 = vmatpush1.xpose.msra.mxu0 0.0
  %164 = vmatprep.subr.mxu0 0.0
  %165 = vmatpush1.xpose.msra.mxu0 0.0
  %166 = vmatprep.subr.mxu0 0.0
  %167 = vmatpush1.xpose.msra.mxu0 0.0
  %168 = vmatprep.subr.mxu0 0.0
  %169 = vmatpush1.xpose.msra.mxu0 0.0
  %170 = vmatprep.subr.mxu0 0.0
  %171 = vmatpush1.xpose.msra.mxu0 0.0
  %172 = vmatprep.subr.mxu0 0.0
  %173 = vmatpush1.xpose.msra.mxu0 0.0
  %174 = vmatprep.subr.mxu0 0.0
  %175 = vmatpush1.xpose.msra.mxu0 0.0
  %176 = vmatprep.subr.mxu0 0.0
  %177 = vmatpush1.xpose.msra.mxu0 0.0
  %178 = vmatprep.subr.mxu0 0.0
  %179 = vmatpush1.xpose.msra.mxu0 0.0
  %180 = vmatprep.subr.mxu0 0.0
  %181 = vmatpush1.xpose.msra.mxu0 0.0
  %182 = vmatprep.subr.mxu0 0.0
  %183 = vmatpush1.xpose.msra.mxu0 0.0
  %184 = vmatprep.subr.mxu0 0.0
  %185 = vmatpush1.xpose.msra.mxu0 0.0
  %186 = vmatprep.subr.mxu0 0.0
  %187 = vmatpush1.xpose.msra.mxu0 0.0
  %188 = vmatprep.subr.mxu0 0.0
  %189 = vmatpush1.xpose.msra.mxu0 0.0
  %190 = vmatprep.subr.mxu0 0.0
  %191 = vmatpush1.xpose.msra.mxu0 0.0
  %192 = vmatprep.subr.mxu0 0.0
  %193 = vmatpush1.xpose.msra.mxu0 0.0
  %194 = vmatprep.subr.mxu0 0.0
  %195 = vmatpush1.xpose.msra.mxu0 0.0
  %196 = vmatprep.subr.mxu0 0.0
  %197 = vmatpush1.xpose.msra.mxu0 0.0
  %198 = vmatprep.subr.mxu0 0.0
  %199 = vmatpush1.xpose.msra.mxu0 0.0
  %200 = vmatprep.subr.mxu0 0.0
  %201 = vmatpush1.xpose.msra.mxu0 0.0
  %202 = vmatprep.subr.mxu0 0.0
  %203 = vmatpush1.xpose.msra.mxu0 0.0
  %204 = vmatprep.subr.mxu0 0.0
  %205 = vmatpush1.xpose.msra.mxu0 0.0
  %206 = vmatprep.subr.mxu0 0.0
  %207 = vmatpush1.xpose.msra.mxu0 0.0
  %208 = vmatprep.subr.mxu0 0.0
  %209 = vmatpush1.xpose.msra.mxu0 0.0
  %210 = vmatprep.subr.mxu0 0.0
  %211 = vmatpush1.xpose.msra.mxu0 0.0
  %212 = vmatprep.subr.mxu0 0.0
  %213 = vmatpush1.xpose.msra.mxu0 0.0
  %214 = vmatprep.subr.mxu0 0.0
  %215 = vmatpush1.xpose.msra.mxu0 0.0
  %216 = vmatprep.mubr.f32.mxu0 0.0
  %217 = vmatmul.mubr.f32.gmra.mrb[0].mxu0 %v148
  %v218 = vpop.f32.mrb[0].mxu0
  %v219 = vadd.f32 0.0, %v218
  %v220 = vpop.f32.mrb[0].mxu0
  %221 = vdwg.mxu0
  %v222 = vmul.f32 %v219, 0.35355338
  %v223 = vadd.f32 %v222, %v142
  %v224 = vsel %vm147, %v223, -inf
  %225 = vmax.xlane.f32.xlu0 %v224
  %v226 = vpop.xlane.xlu0 %225
  %v227 = vsub.f32 %v223, %v226
  %v228 = vmul.f32 %v227, 1.442695
  %v229 = vpow.pop %v228
  %v230 = vsel %vm147, %v229, 0.0
  %231 = vadd.xlane.f32.xlu0 %v230
  %v232 = vpop.xlane.xlu0 %231
  %v233 = vrcp.pop %v232
  %v234 = vmul.f32 %v229, %v233
  %235 = vrot.lane.b32.xlu0 %v134, 64
  %v236 = vpop.permute.xlu0 %235
  %v239 = vsel %vm147, %v234, 0
  %241 = vmatprep.subr.mxu0 0.0
  %242 = vmatpush1.msra.mxu0 %v236
  %243 = vmatprep.subr.mxu0 0.0
  %244 = vmatpush1.msra.mxu0 0.0
  %245 = vmatprep.subr.mxu0 0.0
  %246 = vmatpush1.msra.mxu0 0.0
  %247 = vmatprep.subr.mxu0 0.0
  %248 = vmatpush1.msra.mxu0 0.0
  %249 = vmatprep.subr.mxu0 0.0
  %250 = vmatpush1.msra.mxu0 0.0
  %251 = vmatprep.subr.mxu0 0.0
  %252 = vmatpush1.msra.mxu0 0.0
  %253 = vmatprep.subr.mxu0 0.0
  %254 = vmatpush1.msra.mxu0 0.0
  %255 = vmatprep.subr.mxu0 0.0
  %256 = vmatpush1.msra.mxu0 0.0
  %257 = vmatprep.subr.mxu0 0.0
  %258 = vmatpush1.msra.mxu0 0.0
  %259 = vmatprep.subr.mxu0 0.0
  %260 = vmatpush1.msra.mxu0 0.0
  %261 = vmatprep.subr.mxu0 0.0
  %262 = vmatpush1.msra.mxu0 0.0
  %263 = vmatprep.subr.mxu0 0.0
  %264 = vmatpush1.msra.mxu0 0.0
  %265 = vmatprep.subr.mxu0 0.0
  %266 = vmatpush1.msra.mxu0 0.0
  %267 = vmatprep.subr.mxu0 0.0
  %268 = vmatpush1.msra.mxu0 0.0
  %269 = vmatprep.subr.mxu0 0.0
  %270 = vmatpush1.msra.mxu0 0.0
  %271 = vmatprep.subr.mxu0 0.0
  %272 = vmatpush1.msra.mxu0 0.0
  %273 = vmatprep.subr.mxu0 0.0
  %274 = vmatpush1.msra.mxu0 0.0
  %275 = vmatprep.subr.mxu0 0.0
  %276 = vmatpush1.msra.mxu0 0.0
  %277 = vmatprep.subr.mxu0 0.0
  %278 = vmatpush1.msra.mxu0 0.0
  %279 = vmatprep.subr.mxu0 0.0
  %280 = vmatpush1.msra.mxu0 0.0
  %281 = vmatprep.subr.mxu0 0.0
  %282 = vmatpush1.msra.mxu0 0.0
  %283 = vmatprep.subr.mxu0 0.0
  %284 = vmatpush1.msra.mxu0 0.0
  %285 = vmatprep.subr.mxu0 0.0
  %286 = vmatpush1.msra.mxu0 0.0
  %287 = vmatprep.subr.mxu0 0.0
  %288 = vmatpush1.msra.mxu0 0.0
  %289 = vmatprep.subr.mxu0 0.0
  %290 = vmatpush1.msra.mxu0 0.0
  %291 = vmatprep.subr.mxu0 0.0
  %292 = vmatpush1.msra.mxu0 0.0
  %293 = vmatprep.subr.mxu0 0.0
  %294 = vmatpush1.msra.mxu0 0.0
  %295 = vmatprep.subr.mxu0 0.0
  %296 = vmatpush1.msra.mxu0 0.0
  %297 = vmatprep.subr.mxu0 0.0
  %298 = vmatpush1.msra.mxu0 0.0
  %299 = vmatprep.subr.mxu0 0.0
  %300 = vmatpush1.msra.mxu0 0.0
  %301 = vmatprep.subr.mxu0 0.0
  %302 = vmatpush1.msra.mxu0 0.0
  %303 = vmatprep.subr.mxu0 0.0
  %304 = vmatpush1.msra.mxu0 0.0
  %305 = vmatprep.mubr.f32.mxu0 0.0
  %306 = vmatmul.mubr.f32.gmra.mrb[0].mxu0 %v239
  %v307 = vpop.f32.mrb[0].mxu0
  %v308 = vadd.f32 0.0, %v307
  %v309 = vpop.f32.mrb[0].mxu0
  %310 = vdwg.mxu0
  %311 = vrot.lane.b32.xlu0 %v134, 120
  %v312 = vpop.permute.xlu0 %311
  %313 = vrot.lane.b32.xlu0 %v134, 88
  %v314 = vpop.permute.xlu0 %313
  %v315 = vsel %vm147, %v312, 0
  %v317 = vsel %vm147, %v314, 0
  %319 = vmatprep.subr.mxu0 0.0
  %320 = vmatpush1.xpose.msra.mxu0 %v317
  %321 = vmatprep.subr.mxu0 0.0
  %322 = vmatpush1.xpose.msra.mxu0 0.0
  %323 = vmatprep.subr.mxu0 0.0
  %324 = vmatpush1.xpose.msra.mxu0 0.0
  %325 = vmatprep.subr.mxu0 0.0
  %326 = vmatpush1.xpose.msra.mxu0 0.0
  %327 = vmatprep.subr.mxu0 0.0
  %328 = vmatpush1.xpose.msra.mxu0 0.0
  %329 = vmatprep.subr.mxu0 0.0
  %330 = vmatpush1.xpose.msra.mxu0 0.0
  %331 = vmatprep.subr.mxu0 0.0
  %332 = vmatpush1.xpose.msra.mxu0 0.0
  %333 = vmatprep.subr.mxu0 0.0
  %334 = vmatpush1.xpose.msra.mxu0 0.0
  %335 = vmatprep.subr.mxu0 0.0
  %336 = vmatpush1.xpose.msra.mxu0 0.0
  %337 = vmatprep.subr.mxu0 0.0
  %338 = vmatpush1.xpose.msra.mxu0 0.0
  %339 = vmatprep.subr.mxu0 0.0
  %340 = vmatpush1.xpose.msra.mxu0 0.0
  %341 = vmatprep.subr.mxu0 0.0
  %342 = vmatpush1.xpose.msra.mxu0 0.0
  %343 = vmatprep.subr.mxu0 0.0
  %344 = vmatpush1.xpose.msra.mxu0 0.0
  %345 = vmatprep.subr.mxu0 0.0
  %346 = vmatpush1.xpose.msra.mxu0 0.0
  %347 = vmatprep.subr.mxu0 0.0
  %348 = vmatpush1.xpose.msra.mxu0 0.0
  %349 = vmatprep.subr.mxu0 0.0
  %350 = vmatpush1.xpose.msra.mxu0 0.0
  %351 = vmatprep.subr.mxu0 0.0
  %352 = vmatpush1.xpose.msra.mxu0 0.0
  %353 = vmatprep.subr.mxu0 0.0
  %354 = vmatpush1.xpose.msra.mxu0 0.0
  %355 = vmatprep.subr.mxu0 0.0
  %356 = vmatpush1.xpose.msra.mxu0 0.0
  %357 = vmatprep.subr.mxu0 0.0
  %358 = vmatpush1.xpose.msra.mxu0 0.0
  %359 = vmatprep.subr.mxu0 0.0
  %360 = vmatpush1.xpose.msra.mxu0 0.0
  %361 = vmatprep.subr.mxu0 0.0
  %362 = vmatpush1.xpose.msra.mxu0 0.0
  %363 = vmatprep.subr.mxu0 0.0
  %364 = vmatpush1.xpose.msra.mxu0 0.0
  %365 = vmatprep.subr.mxu0 0.0
  %366 = vmatpush1.xpose.msra.mxu0 0.0
  %367 = vmatprep.subr.mxu0 0.0
  %368 = vmatpush1.xpose.msra.mxu0 0.0
  %369 = vmatprep.subr.mxu0 0.0
  %370 = vmatpush1.xpose.msra.mxu0 0.0
  %371 = vmatprep.subr.mxu0 0.0
  %372 = vmatpush1.xpose.msra.mxu0 0.0
  %373 = vmatprep.subr.mxu0 0.0
  %374 = vmatpush1.xpose.msra.mxu0 0.0
  %375 = vmatprep.subr.mxu0 0.0
  %376 = vmatpush1.xpose.msra.mxu0 0.0
  %377 = vmatprep.subr.mxu0 0.0
  %378 = vmatpush1.xpose.msra.mxu0 0.0
  %379 = vmatprep.subr.mxu0 0.0
  %380 = vmatpush1.xpose.msra.mxu0 0.0
  %381 = vmatprep.subr.mxu0 0.0
  %382 = vmatpush1.xpose.msra.mxu0 0.0
  %383 = vmatprep.mubr.f32.mxu0 0.0
  %384 = vmatmul.mubr.f32.gmra.mrb[0].mxu0 %v315
  %v385 = vpop.f32.mrb[0].mxu0
  %v386 = vadd.f32 0.0, %v385
  %v387 = vpop.f32.mrb[0].mxu0
  %388 = vdwg.mxu0
  %v389 = vmul.f32 %v386, 0.35355338
  %v390 = vadd.f32 %v389, %v142
  %v391 = vsel %vm147, %v390, -inf
  %392 = vmax.xlane.f32.xlu0 %v391
  %v393 = vpop.xlane.xlu0 %392
  %v394 = vsub.f32 %v390, %v393
  %v395 = vmul.f32 %v394, 1.442695
  %v396 = vpow.pop %v395
  %v397 = vsel %vm147, %v396, 0.0
  %398 = vadd.xlane.f32.xlu0 %v397
  %v399 = vpop.xlane.xlu0 %398
  %v400 = vrcp.pop %v399
  %v401 = vmul.f32 %v396, %v400
  %402 = vrot.lane.b32.xlu0 %v134, 56
  %v403 = vpop.permute.xlu0 %402
  %v406 = vsel %vm147, %v401, 0
  %408 = vmatprep.subr.mxu0 0.0
  %409 = vmatpush1.msra.mxu0 %v403
  %410 = vmatprep.subr.mxu0 0.0
  %411 = vmatpush1.msra.mxu0 0.0
  %412 = vmatprep.subr.mxu0 0.0
  %413 = vmatpush1.msra.mxu0 0.0
  %414 = vmatprep.subr.mxu0 0.0
  %415 = vmatpush1.msra.mxu0 0.0
  %416 = vmatprep.subr.mxu0 0.0
  %417 = vmatpush1.msra.mxu0 0.0
  %418 = vmatprep.subr.mxu0 0.0
  %419 = vmatpush1.msra.mxu0 0.0
  %420 = vmatprep.subr.mxu0 0.0
  %421 = vmatpush1.msra.mxu0 0.0
  %422 = vmatprep.subr.mxu0 0.0
  %423 = vmatpush1.msra.mxu0 0.0
  %424 = vmatprep.subr.mxu0 0.0
  %425 = vmatpush1.msra.mxu0 0.0
  %426 = vmatprep.subr.mxu0 0.0
  %427 = vmatpush1.msra.mxu0 0.0
  %428 = vmatprep.subr.mxu0 0.0
  %429 = vmatpush1.msra.mxu0 0.0
  %430 = vmatprep.subr.mxu0 0.0
  %431 = vmatpush1.msra.mxu0 0.0
  %432 = vmatprep.subr.mxu0 0.0
  %433 = vmatpush1.msra.mxu0 0.0
  %434 = vmatprep.subr.mxu0 0.0
  %435 = vmatpush1.msra.mxu0 0.0
  %436 = vmatprep.subr.mxu0 0.0
  %437 = vmatpush1.msra.mxu0 0.0
  %438 = vmatprep.subr.mxu0 0.0
  %439 = vmatpush1.msra.mxu0 0.0
  %440 = vmatprep.subr.mxu0 0.0
  %441 = vmatpush1.msra.mxu0 0.0
  %442 = vmatprep.subr.mxu0 0.0
  %443 = vmatpush1.msra.mxu0 0.0
  %444 = vmatprep.subr.mxu0 0.0
  %445 = vmatpush1.msra.mxu0 0.0
  %446 = vmatprep.subr.mxu0 0.0
  %447 = vmatpush1.msra.mxu0 0.0
  %448 = vmatprep.subr.mxu0 0.0
  %449 = vmatpush1.msra.mxu0 0.0
  %450 = vmatprep.subr.mxu0 0.0
  %451 = vmatpush1.msra.mxu0 0.0
  %452 = vmatprep.subr.mxu0 0.0
  %453 = vmatpush1.msra.mxu0 0.0
  %454 = vmatprep.subr.mxu0 0.0
  %455 = vmatpush1.msra.mxu0 0.0
  %456 = vmatprep.subr.mxu0 0.0
  %457 = vmatpush1.msra.mxu0 0.0
  %458 = vmatprep.subr.mxu0 0.0
  %459 = vmatpush1.msra.mxu0 0.0
  %460 = vmatprep.subr.mxu0 0.0
  %461 = vmatpush1.msra.mxu0 0.0
  %462 = vmatprep.subr.mxu0 0.0
  %463 = vmatpush1.msra.mxu0 0.0
  %464 = vmatprep.subr.mxu0 0.0
  %465 = vmatpush1.msra.mxu0 0.0
  %466 = vmatprep.subr.mxu0 0.0
  %467 = vmatpush1.msra.mxu0 0.0
  %468 = vmatprep.subr.mxu0 0.0
  %469 = vmatpush1.msra.mxu0 0.0
  %470 = vmatprep.subr.mxu0 0.0
  %471 = vmatpush1.msra.mxu0 0.0
  %472 = vmatprep.mubr.f32.mxu0 0.0
  %473 = vmatmul.mubr.f32.gmra.mrb[0].mxu0 %v406
  %v474 = vpop.f32.mrb[0].mxu0
  %v475 = vadd.f32 0.0, %v474
  %v476 = vpop.f32.mrb[0].mxu0
  %477 = vdwg.mxu0
  %478 = vrot.lane.b32.xlu0 %v134, 112
  %v479 = vpop.permute.xlu0 %478
  %480 = vrot.lane.b32.xlu0 %v134, 80
  %v481 = vpop.permute.xlu0 %480
  %v482 = vsel %vm147, %v479, 0
  %v484 = vsel %vm147, %v481, 0
  %486 = vmatprep.subr.mxu0 0.0
  %487 = vmatpush1.xpose.msra.mxu0 %v484
  %488 = vmatprep.subr.mxu0 0.0
  %489 = vmatpush1.xpose.msra.mxu0 0.0
  %490 = vmatprep.subr.mxu0 0.0
  %491 = vmatpush1.xpose.msra.mxu0 0.0
  %492 = vmatprep.subr.mxu0 0.0
  %493 = vmatpush1.xpose.msra.mxu0 0.0
  %494 = vmatprep.subr.mxu0 0.0
  %495 = vmatpush1.xpose.msra.mxu0 0.0
  %496 = vmatprep.subr.mxu0 0.0
  %497 = vmatpush1.xpose.msra.mxu0 0.0
  %498 = vmatprep.subr.mxu0 0.0
  %499 = vmatpush1.xpose.msra.mxu0 0.0
  %500 = vmatprep.subr.mxu0 0.0
  %501 = vmatpush1.xpose.msra.mxu0 0.0
  %502 = vmatprep.subr.mxu0 0.0
  %503 = vmatpush1.xpose.msra.mxu0 0.0
  %504 = vmatprep.subr.mxu0 0.0
  %505 = vmatpush1.xpose.msra.mxu0 0.0
  %506 = vmatprep.subr.mxu0 0.0
  %507 = vmatpush1.xpose.msra.mxu0 0.0
  %508 = vmatprep.subr.mxu0 0.0
  %509 = vmatpush1.xpose.msra.mxu0 0.0
  %510 = vmatprep.subr.mxu0 0.0
  %511 = vmatpush1.xpose.msra.mxu0 0.0
  %512 = vmatprep.subr.mxu0 0.0
  %513 = vmatpush1.xpose.msra.mxu0 0.0
  %514 = vmatprep.subr.mxu0 0.0
  %515 = vmatpush1.xpose.msra.mxu0 0.0
  %516 = vmatprep.subr.mxu0 0.0
  %517 = vmatpush1.xpose.msra.mxu0 0.0
  %518 = vmatprep.subr.mxu0 0.0
  %519 = vmatpush1.xpose.msra.mxu0 0.0
  %520 = vmatprep.subr.mxu0 0.0
  %521 = vmatpush1.xpose.msra.mxu0 0.0
  %522 = vmatprep.subr.mxu0 0.0
  %523 = vmatpush1.xpose.msra.mxu0 0.0
  %524 = vmatprep.subr.mxu0 0.0
  %525 = vmatpush1.xpose.msra.mxu0 0.0
  %526 = vmatprep.subr.mxu0 0.0
  %527 = vmatpush1.xpose.msra.mxu0 0.0
  %528 = vmatprep.subr.mxu0 0.0
  %529 = vmatpush1.xpose.msra.mxu0 0.0
  %530 = vmatprep.subr.mxu0 0.0
  %531 = vmatpush1.xpose.msra.mxu0 0.0
  %532 = vmatprep.subr.mxu0 0.0
  %533 = vmatpush1.xpose.msra.mxu0 0.0
  %534 = vmatprep.subr.mxu0 0.0
  %535 = vmatpush1.xpose.msra.mxu0 0.0
  %536 = vmatprep.subr.mxu0 0.0
  %537 = vmatpush1.xpose.msra.mxu0 0.0
  %538 = vmatprep.subr.mxu0 0.0
  %539 = vmatpush1.xpose.msra.mxu0 0.0
  %540 = vmatprep.subr.mxu0 0.0
  %541 = vmatpush1.xpose.msra.mxu0 0.0
  %542 = vmatprep.subr.mxu0 0.0
  %543 = vmatpush1.xpose.msra.mxu0 0.0
  %544 = vmatprep.subr.mxu0 0.0
  %545 = vmatpush1.xpose.msra.mxu0 0.0
  %546 = vmatprep.subr.mxu0 0.0
  %547 = vmatpush1.xpose.msra.mxu0 0.0
  %548 = vmatprep.subr.mxu0 0.0
  %549 = vmatpush1.xpose.msra.mxu0 0.0
  %550 = vmatprep.mubr.f32.mxu0 0.0
  %551 = vmatmul.mubr.f32.gmra.mrb[0].mxu0 %v482
  %v552 = vpop.f32.mrb[0].mxu0
  %v553 = vadd.f32 0.0, %v552
  %v554 = vpop.f32.mrb[0].mxu0
  %555 = vdwg.mxu0
  %v556 = vmul.f32 %v553, 0.35355338
  %v557 = vadd.f32 %v556, %v142
  %v558 = vsel %vm147, %v557, -inf
  %559 = vmax.xlane.f32.xlu0 %v558
  %v560 = vpop.xlane.xlu0 %559
  %v561 = vsub.f32 %v557, %v560
  %v562 = vmul.f32 %v561, 1.442695
  %v563 = vpow.pop %v562
  %v564 = vsel %vm147, %v563, 0.0
  %565 = vadd.xlane.f32.xlu0 %v564
  %v566 = vpop.xlane.xlu0 %565
  %v567 = vrcp.pop %v566
  %v568 = vmul.f32 %v563, %v567
  %569 = vrot.lane.b32.xlu0 %v134, 48
  %v570 = vpop.permute.xlu0 %569
  %v573 = vsel %vm147, %v568, 0
  %575 = vmatprep.subr.mxu0 0.0
  %576 = vmatpush1.msra.mxu0 %v570
  %577 = vmatprep.subr.mxu0 0.0
  %578 = vmatpush1.msra.mxu0 0.0
  %579 = vmatprep.subr.mxu0 0.0
  %580 = vmatpush1.msra.mxu0 0.0
  %581 = vmatprep.subr.mxu0 0.0
  %582 = vmatpush1.msra.mxu0 0.0
  %583 = vmatprep.subr.mxu0 0.0
  %584 = vmatpush1.msra.mxu0 0.0
  %585 = vmatprep.subr.mxu0 0.0
  %586 = vmatpush1.msra.mxu0 0.0
  %587 = vmatprep.subr.mxu0 0.0
  %588 = vmatpush1.msra.mxu0 0.0
  %589 = vmatprep.subr.mxu0 0.0
  %590 = vmatpush1.msra.mxu0 0.0
  %591 = vmatprep.subr.mxu0 0.0
  %592 = vmatpush1.msra.mxu0 0.0
  %593 = vmatprep.subr.mxu0 0.0
  %594 = vmatpush1.msra.mxu0 0.0
  %595 = vmatprep.subr.mxu0 0.0
  %596 = vmatpush1.msra.mxu0 0.0
  %597 = vmatprep.subr.mxu0 0.0
  %598 = vmatpush1.msra.mxu0 0.0
  %599 = vmatprep.subr.mxu0 0.0
  %600 = vmatpush1.msra.mxu0 0.0
  %601 = vmatprep.subr.mxu0 0.0
  %602 = vmatpush1.msra.mxu0 0.0
  %603 = vmatprep.subr.mxu0 0.0
  %604 = vmatpush1.msra.mxu0 0.0
  %605 = vmatprep.subr.mxu0 0.0
  %606 = vmatpush1.msra.mxu0 0.0
  %607 = vmatprep.subr.mxu0 0.0
  %608 = vmatpush1.msra.mxu0 0.0
  %609 = vmatprep.subr.mxu0 0.0
  %610 = vmatpush1.msra.mxu0 0.0
  %611 = vmatprep.subr.mxu0 0.0
  %612 = vmatpush1.msra.mxu0 0.0
  %613 = vmatprep.subr.mxu0 0.0
  %614 = vmatpush1.msra.mxu0 0.0
  %615 = vmatprep.subr.mxu0 0.0
  %616 = vmatpush1.msra.mxu0 0.0
  %617 = vmatprep.subr.mxu0 0.0
  %618 = vmatpush1.msra.mxu0 0.0
  %619 = vmatprep.subr.mxu0 0.0
  %620 = vmatpush1.msra.mxu0 0.0
  %621 = vmatprep.subr.mxu0 0.0
  %622 = vmatpush1.msra.mxu0 0.0
  %623 = vmatprep.subr.mxu0 0.0
  %624 = vmatpush1.msra.mxu0 0.0
  %625 = vmatprep.subr.mxu0 0.0
  %626 = vmatpush1.msra.mxu0 0.0
  %627 = vmatprep.subr.mxu0 0.0
  %628 = vmatpush1.msra.mxu0 0.0
  %629 = vmatprep.subr.mxu0 0.0
  %630 = vmatpush1.msra.mxu0 0.0
  %631 = vmatprep.subr.mxu0 0.0
  %632 = vmatpush1.msra.mxu0 0.0
  %633 = vmatprep.subr.mxu0 0.0
  %634 = vmatpush1.msra.mxu0 0.0
  %635 = vmatprep.subr.mxu0 0.0
  %636 = vmatpush1.msra.mxu0 0.0
  %637 = vmatprep.subr.mxu0 0.0
  %638 = vmatpush1.msra.mxu0 0.0
  %639 = vmatprep.mubr.f32.mxu0 0.0
  %640 = vmatmul.mubr.f32.gmra.mrb[0].mxu0 %v573
  %v641 = vpop.f32.mrb[0].mxu0
  %v642 = vadd.f32 0.0, %v641
  %v643 = vpop.f32.mrb[0].mxu0
  %644 = vdwg.mxu0
  %645 = vrot.lane.b32.xlu0 %v134, 104
  %v646 = vpop.permute.xlu0 %645
  %647 = vrot.lane.b32.xlu0 %v134, 72
  %v648 = vpop.permute.xlu0 %647
  %v649 = vsel %vm147, %v646, 0
  %v651 = vsel %vm147, %v648, 0
  %653 = vmatprep.subr.mxu0 0.0
  %654 = vmatpush1.xpose.msra.mxu0 %v651
  %655 = vmatprep.subr.mxu0 0.0
  %656 = vmatpush1.xpose.msra.mxu0 0.0
  %657 = vmatprep.subr.mxu0 0.0
  %658 = vmatpush1.xpose.msra.mxu0 0.0
  %659 = vmatprep.subr.mxu0 0.0
  %660 = vmatpush1.xpose.msra.mxu0 0.0
  %661 = vmatprep.subr.mxu0 0.0
  %662 = vmatpush1.xpose.msra.mxu0 0.0
  %663 = vmatprep.subr.mxu0 0.0
  %664 = vmatpush1.xpose.msra.mxu0 0.0
  %665 = vmatprep.subr.mxu0 0.0
  %666 = vmatpush1.xpose.msra.mxu0 0.0
  %667 = vmatprep.subr.mxu0 0.0
  %668 = vmatpush1.xpose.msra.mxu0 0.0
  %669 = vmatprep.subr.mxu0 0.0
  %670 = vmatpush1.xpose.msra.mxu0 0.0
  %671 = vmatprep.subr.mxu0 0.0
  %672 = vmatpush1.xpose.msra.mxu0 0.0
  %673 = vmatprep.subr.mxu0 0.0
  %674 = vmatpush1.xpose.msra.mxu0 0.0
  %675 = vmatprep.subr.mxu0 0.0
  %676 = vmatpush1.xpose.msra.mxu0 0.0
  %677 = vmatprep.subr.mxu0 0.0
  %678 = vmatpush1.xpose.msra.mxu0 0.0
  %679 = vmatprep.subr.mxu0 0.0
  %680 = vmatpush1.xpose.msra.mxu0 0.0
  %681 = vmatprep.subr.mxu0 0.0
  %682 = vmatpush1.xpose.msra.mxu0 0.0
  %683 = vmatprep.subr.mxu0 0.0
  %684 = vmatpush1.xpose.msra.mxu0 0.0
  %685 = vmatprep.subr.mxu0 0.0
  %686 = vmatpush1.xpose.msra.mxu0 0.0
  %687 = vmatprep.subr.mxu0 0.0
  %688 = vmatpush1.xpose.msra.mxu0 0.0
  %689 = vmatprep.subr.mxu0 0.0
  %690 = vmatpush1.xpose.msra.mxu0 0.0
  %691 = vmatprep.subr.mxu0 0.0
  %692 = vmatpush1.xpose.msra.mxu0 0.0
  %693 = vmatprep.subr.mxu0 0.0
  %694 = vmatpush1.xpose.msra.mxu0 0.0
  %695 = vmatprep.subr.mxu0 0.0
  %696 = vmatpush1.xpose.msra.mxu0 0.0
  %697 = vmatprep.subr.mxu0 0.0
  %698 = vmatpush1.xpose.msra.mxu0 0.0
  %699 = vmatprep.subr.mxu0 0.0
  %700 = vmatpush1.xpose.msra.mxu0 0.0
  %701 = vmatprep.subr.mxu0 0.0
  %702 = vmatpush1.xpose.msra.mxu0 0.0
  %703 = vmatprep.subr.mxu0 0.0
  %704 = vmatpush1.xpose.msra.mxu0 0.0
  %705 = vmatprep.subr.mxu0 0.0
  %706 = vmatpush1.xpose.msra.mxu0 0.0
  %707 = vmatprep.subr.mxu0 0.0
  %708 = vmatpush1.xpose.msra.mxu0 0.0
  %709 = vmatprep.subr.mxu0 0.0
  %710 = vmatpush1.xpose.msra.mxu0 0.0
  %711 = vmatprep.subr.mxu0 0.0
  %712 = vmatpush1.xpose.msra.mxu0 0.0
  %713 = vmatprep.subr.mxu0 0.0
  %714 = vmatpush1.xpose.msra.mxu0 0.0
  %715 = vmatprep.subr.mxu0 0.0
  %716 = vmatpush1.xpose.msra.mxu0 0.0
  %717 = vmatprep.mubr.f32.mxu0 0.0
  %718 = vmatmul.mubr.f32.gmra.mrb[0].mxu0 %v649
  %v719 = vpop.f32.mrb[0].mxu0
  %v720 = vadd.f32 0.0, %v719
  %v721 = vpop.f32.mrb[0].mxu0
  %722 = vdwg.mxu0
  %v723 = vmul.f32 %v720, 0.35355338
  %v724 = vadd.f32 %v723, %v142
  %v725 = vsel %vm147, %v724, -inf
  %726 = vmax.xlane.f32.xlu0 %v725
  %v727 = vpop.xlane.xlu0 %726
  %v728 = vsub.f32 %v724, %v727
  %v729 = vmul.f32 %v728, 1.442695
  %v730 = vpow.pop %v729
  %v731 = vsel %vm147, %v730, 0.0
  %732 = vadd.xlane.f32.xlu0 %v731
  %v733 = vpop.xlane.xlu0 %732
  %v734 = vrcp.pop %v733
  %v735 = vmul.f32 %v730, %v734
  %736 = vrot.lane.b32.xlu0 %v134, 40
  %v737 = vpop.permute.xlu0 %736
  %v740 = vsel %vm147, %v735, 0
  %742 = vmatprep.subr.mxu0 0.0
  %743 = vmatpush1.msra.mxu0 %v737
  %744 = vmatprep.subr.mxu0 0.0
  %745 = vmatpush1.msra.mxu0 0.0
  %746 = vmatprep.subr.mxu0 0.0
  %747 = vmatpush1.msra.mxu0 0.0
  %748 = vmatprep.subr.mxu0 0.0
  %749 = vmatpush1.msra.mxu0 0.0
  %750 = vmatprep.subr.mxu0 0.0
  %751 = vmatpush1.msra.mxu0 0.0
  %752 = vmatprep.subr.mxu0 0.0
  %753 = vmatpush1.msra.mxu0 0.0
  %754 = vmatprep.subr.mxu0 0.0
  %755 = vmatpush1.msra.mxu0 0.0
  %756 = vmatprep.subr.mxu0 0.0
  %757 = vmatpush1.msra.mxu0 0.0
  %758 = vmatprep.subr.mxu0 0.0
  %759 = vmatpush1.msra.mxu0 0.0
  %760 = vmatprep.subr.mxu0 0.0
  %761 = vmatpush1.msra.mxu0 0.0
  %762 = vmatprep.subr.mxu0 0.0
  %763 = vmatpush1.msra.mxu0 0.0
  %764 = vmatprep.subr.mxu0 0.0
  %765 = vmatpush1.msra.mxu0 0.0
  %766 = vmatprep.subr.mxu0 0.0
  %767 = vmatpush1.msra.mxu0 0.0
  %768 = vmatprep.subr.mxu0 0.0
  %769 = vmatpush1.msra.mxu0 0.0
  %770 = vmatprep.subr.mxu0 0.0
  %771 = vmatpush1.msra.mxu0 0.0
  %772 = vmatprep.subr.mxu0 0.0
  %773 = vmatpush1.msra.mxu0 0.0
  %774 = vmatprep.subr.mxu0 0.0
  %775 = vmatpush1.msra.mxu0 0.0
  %776 = vmatprep.subr.mxu0 0.0
  %777 = vmatpush1.msra.mxu0 0.0
  %778 = vmatprep.subr.mxu0 0.0
  %779 = vmatpush1.msra.mxu0 0.0
  %780 = vmatprep.subr.mxu0 0.0
  %781 = vmatpush1.msra.mxu0 0.0
  %782 = vmatprep.subr.mxu0 0.0
  %783 = vmatpush1.msra.mxu0 0.0
  %784 = vmatprep.subr.mxu0 0.0
  %785 = vmatpush1.msra.mxu0 0.0
  %786 = vmatprep.subr.mxu0 0.0
  %787 = vmatpush1.msra.mxu0 0.0
  %788 = vmatprep.subr.mxu0 0.0
  %789 = vmatpush1.msra.mxu0 0.0
  %790 = vmatprep.subr.mxu0 0.0
  %791 = vmatpush1.msra.mxu0 0.0
  %792 = vmatprep.subr.mxu0 0.0
  %793 = vmatpush1.msra.mxu0 0.0
  %794 = vmatprep.subr.mxu0 0.0
  %795 = vmatpush1.msra.mxu0 0.0
  %796 = vmatprep.subr.mxu0 0.0
  %797 = vmatpush1.msra.mxu0 0.0
  %798 = vmatprep.subr.mxu0 0.0
  %799 = vmatpush1.msra.mxu0 0.0
  %800 = vmatprep.subr.mxu0 0.0
  %801 = vmatpush1.msra.mxu0 0.0
  %802 = vmatprep.subr.mxu0 0.0
  %803 = vmatpush1.msra.mxu0 0.0
  %804 = vmatprep.subr.mxu0 0.0
  %805 = vmatpush1.msra.mxu0 0.0
  %806 = vmatprep.mubr.f32.mxu0 0.0
  %807 = vmatmul.mubr.f32.gmra.mrb[0].mxu0 %v740
  %v808 = vpop.f32.mrb[0].mxu0
  %v809 = vadd.f32 0.0, %v808
  %v810 = vpop.f32.mrb[0].mxu0
  %811 = vdwg.mxu0
  %813 = vrot.lane.b32.xlu0 %v475, 8
  %v814 = vpop.permute.xlu0 %813
  %817 = vrot.lane.b32.xlu0 %v642, 16
  %v818 = vpop.permute.xlu0 %817
  %821 = vrot.lane.b32.xlu0 %v809, 24
  %v822 = vpop.permute.xlu0 %821
  %v824 = vsel %vm147, %v308, %v814
  %vm825 = vcmask 130048
  %v826 = vsel %vm825, %v824, %v818
  %vm827 = vcmask 195584
  %v828 = vsel %vm827, %v826, %v822
  %830 = vrot.lane.b32.xlu0 %v139, 96
  %v831 = vpop.permute.xlu0 %830
  %v832 = vsel %vm147, %v139, 0
  %v834 = vsel %vm147, %v831, 0
  %836 = vmatprep.subr.mxu0 0.0
  %837 = vmatpush1.xpose.msra.mxu0 %v834
  %838 = vmatprep.subr.mxu0 0.0
  %839 = vmatpush1.xpose.msra.mxu0 0.0
  %840 = vmatprep.subr.mxu0 0.0
  %841 = vmatpush1.xpose.msra.mxu0 0.0
  %842 = vmatprep.subr.mxu0 0.0
  %843 = vmatpush1.xpose.msra.mxu0 0.0
  %844 = vmatprep.subr.mxu0 0.0
  %845 = vmatpush1.xpose.msra.mxu0 0.0
  %846 = vmatprep.subr.mxu0 0.0
  %847 = vmatpush1.xpose.msra.mxu0 0.0
  %848 = vmatprep.subr.mxu0 0.0
  %849 = vmatpush1.xpose.msra.mxu0 0.0
  %850 = vmatprep.subr.mxu0 0.0
  %851 = vmatpush1.xpose.msra.mxu0 0.0
  %852 = vmatprep.subr.mxu0 0.0
  %853 = vmatpush1.xpose.msra.mxu0 0.0
  %854 = vmatprep.subr.mxu0 0.0
  %855 = vmatpush1.xpose.msra.mxu0 0.0
  %856 = vmatprep.subr.mxu0 0.0
  %857 = vmatpush1.xpose.msra.mxu0 0.0
  %858 = vmatprep.subr.mxu0 0.0
  %859 = vmatpush1.xpose.msra.mxu0 0.0
  %860 = vmatprep.subr.mxu0 0.0
  %861 = vmatpush1.xpose.msra.mxu0 0.0
  %862 = vmatprep.subr.mxu0 0.0
  %863 = vmatpush1.xpose.msra.mxu0 0.0
  %864 = vmatprep.subr.mxu0 0.0
  %865 = vmatpush1.xpose.msra.mxu0 0.0
  %866 = vmatprep.subr.mxu0 0.0
  %867 = vmatpush1.xpose.msra.mxu0 0.0
  %868 = vmatprep.subr.mxu0 0.0
  %869 = vmatpush1.xpose.msra.mxu0 0.0
  %870 = vmatprep.subr.mxu0 0.0
  %871 = vmatpush1.xpose.msra.mxu0 0.0
  %872 = vmatprep.subr.mxu0 0.0
  %873 = vmatpush1.xpose.msra.mxu0 0.0
  %874 = vmatprep.subr.mxu0 0.0
  %875 = vmatpush1.xpose.msra.mxu0 0.0
  %876 = vmatprep.subr.mxu0 0.0
  %877 = vmatpush1.xpose.msra.mxu0 0.0
  %878 = vmatprep.subr.mxu0 0.0
  %879 = vmatpush1.xpose.msra.mxu0 0.0
  %880 = vmatprep.subr.mxu0 0.0
  %881 = vmatpush1.xpose.msra.mxu0 0.0
  %882 = vmatprep.subr.mxu0 0.0
  %883 = vmatpush1.xpose.msra.mxu0 0.0
  %884 = vmatprep.subr.mxu0 0.0
  %885 = vmatpush1.xpose.msra.mxu0 0.0
  %886 = vmatprep.subr.mxu0 0.0
  %887 = vmatpush1.xpose.msra.mxu0 0.0
  %888 = vmatprep.subr.mxu0 0.0
  %889 = vmatpush1.xpose.msra.mxu0 0.0
  %890 = vmatprep.subr.mxu0 0.0
  %891 = vmatpush1.xpose.msra.mxu0 0.0
  %892 = vmatprep.subr.mxu0 0.0
  %893 = vmatpush1.xpose.msra.mxu0 0.0
  %894 = vmatprep.subr.mxu0 0.0
  %895 = vmatpush1.xpose.msra.mxu0 0.0
  %896 = vmatprep.subr.mxu0 0.0
  %897 = vmatpush1.xpose.msra.mxu0 0.0
  %898 = vmatprep.subr.mxu0 0.0
  %899 = vmatpush1.xpose.msra.mxu0 0.0
  %900 = vmatprep.mubr.f32.mxu0 0.0
  %901 = vmatmul.mubr.f32.gmra.mrb[0].mxu0 %v832
  %v902 = vpop.f32.mrb[0].mxu0
  %v903 = vadd.f32 0.0, %v902
  %v904 = vpop.f32.mrb[0].mxu0
  %905 = vdwg.mxu0
  %v906 = vmul.f32 %v903, 0.35355338
  %v907 = vadd.f32 %v906, %v143
  %v908 = vsel %vm147, %v907, -inf
  %909 = vmax.xlane.f32.xlu0 %v908
  %v910 = vpop.xlane.xlu0 %909
  %v911 = vsub.f32 %v907, %v910
  %v912 = vmul.f32 %v911, 1.442695
  %v913 = vpow.pop %v912
  %v914 = vsel %vm147, %v913, 0.0
  %915 = vadd.xlane.f32.xlu0 %v914
  %v916 = vpop.xlane.xlu0 %915
  %v917 = vrcp.pop %v916
  %v918 = vmul.f32 %v913, %v917
  %919 = vrot.lane.b32.xlu0 %v139, 64
  %v920 = vpop.permute.xlu0 %919
  %v923 = vsel %vm147, %v918, 0
  %925 = vmatprep.subr.mxu0 0.0
  %926 = vmatpush1.msra.mxu0 %v920
  %927 = vmatprep.subr.mxu0 0.0
  %928 = vmatpush1.msra.mxu0 0.0
  %929 = vmatprep.subr.mxu0 0.0
  %930 = vmatpush1.msra.mxu0 0.0
  %931 = vmatprep.subr.mxu0 0.0
  %932 = vmatpush1.msra.mxu0 0.0
  %933 = vmatprep.subr.mxu0 0.0
  %934 = vmatpush1.msra.mxu0 0.0
  %935 = vmatprep.subr.mxu0 0.0
  %936 = vmatpush1.msra.mxu0 0.0
  %937 = vmatprep.subr.mxu0 0.0
  %938 = vmatpush1.msra.mxu0 0.0
  %939 = vmatprep.subr.mxu0 0.0
  %940 = vmatpush1.msra.mxu0 0.0
  %941 = vmatprep.subr.mxu0 0.0
  %942 = vmatpush1.msra.mxu0 0.0
  %943 = vmatprep.subr.mxu0 0.0
  %944 = vmatpush1.msra.mxu0 0.0
  %945 = vmatprep.subr.mxu0 0.0
  %946 = vmatpush1.msra.mxu0 0.0
  %947 = vmatprep.subr.mxu0 0.0
  %948 = vmatpush1.msra.mxu0 0.0
  %949 = vmatprep.subr.mxu0 0.0
  %950 = vmatpush1.msra.mxu0 0.0
  %951 = vmatprep.subr.mxu0 0.0
  %952 = vmatpush1.msra.mxu0 0.0
  %953 = vmatprep.subr.mxu0 0.0
  %954 = vmatpush1.msra.mxu0 0.0
  %955 = vmatprep.subr.mxu0 0.0
  %956 = vmatpush1.msra.mxu0 0.0
  %957 = vmatprep.subr.mxu0 0.0
  %958 = vmatpush1.msra.mxu0 0.0
  %959 = vmatprep.subr.mxu0 0.0
  %960 = vmatpush1.msra.mxu0 0.0
  %961 = vmatprep.subr.mxu0 0.0
  %962 = vmatpush1.msra.mxu0 0.0
  %963 = vmatprep.subr.mxu0 0.0
  %964 = vmatpush1.msra.mxu0 0.0
  %965 = vmatprep.subr.mxu0 0.0
  %966 = vmatpush1.msra.mxu0 0.0
  %967 = vmatprep.subr.mxu0 0.0
  %968 = vmatpush1.msra.mxu0 0.0
  %969 = vmatprep.subr.mxu0 0.0
  %970 = vmatpush1.msra.mxu0 0.0
  %971 = vmatprep.subr.mxu0 0.0
  %972 = vmatpush1.msra.mxu0 0.0
  %973 = vmatprep.subr.mxu0 0.0
  %974 = vmatpush1.msra.mxu0 0.0
  %975 = vmatprep.subr.mxu0 0.0
  %976 = vmatpush1.msra.mxu0 0.0
  %977 = vmatprep.subr.mxu0 0.0
  %978 = vmatpush1.msra.mxu0 0.0
  %979 = vmatprep.subr.mxu0 0.0
  %980 = vmatpush1.msra.mxu0 0.0
  %981 = vmatprep.subr.mxu0 0.0
  %982 = vmatpush1.msra.mxu0 0.0
  %983 = vmatprep.subr.mxu0 0.0
  %984 = vmatpush1.msra.mxu0 0.0
  %985 = vmatprep.subr.mxu0 0.0
  %986 = vmatpush1.msra.mxu0 0.0
  %987 = vmatprep.subr.mxu0 0.0
  %988 = vmatpush1.msra.mxu0 0.0
  %989 = vmatprep.mubr.f32.mxu0 0.0
  %990 = vmatmul.mubr.f32.gmra.mrb[0].mxu0 %v923
  %v991 = vpop.f32.mrb[0].mxu0
  %v992 = vadd.f32 0.0, %v991
  %v993 = vpop.f32.mrb[0].mxu0
  %994 = vdwg.mxu0
  %995 = vrot.lane.b32.xlu0 %v139, 120
  %v996 = vpop.permute.xlu0 %995
  %997 = vrot.lane.b32.xlu0 %v139, 88
  %v998 = vpop.permute.xlu0 %997
  %v999 = vsel %vm147, %v996, 0
  %v1001 = vsel %vm147, %v998, 0
  %1003 = vmatprep.subr.mxu0 0.0
  %1004 = vmatpush1.xpose.msra.mxu0 %v1001
  %1005 = vmatprep.subr.mxu0 0.0
  %1006 = vmatpush1.xpose.msra.mxu0 0.0
  %1007 = vmatprep.subr.mxu0 0.0
  %1008 = vmatpush1.xpose.msra.mxu0 0.0
  %1009 = vmatprep.subr.mxu0 0.0
  %1010 = vmatpush1.xpose.msra.mxu0 0.0
  %1011 = vmatprep.subr.mxu0 0.0
  %1012 = vmatpush1.xpose.msra.mxu0 0.0
  %1013 = vmatprep.subr.mxu0 0.0
  %1014 = vmatpush1.xpose.msra.mxu0 0.0
  %1015 = vmatprep.subr.mxu0 0.0
  %1016 = vmatpush1.xpose.msra.mxu0 0.0
  %1017 = vmatprep.subr.mxu0 0.0
  %1018 = vmatpush1.xpose.msra.mxu0 0.0
  %1019 = vmatprep.subr.mxu0 0.0
  %1020 = vmatpush1.xpose.msra.mxu0 0.0
  %1021 = vmatprep.subr.mxu0 0.0
  %1022 = vmatpush1.xpose.msra.mxu0 0.0
  %1023 = vmatprep.subr.mxu0 0.0
  %1024 = vmatpush1.xpose.msra.mxu0 0.0
  %1025 = vmatprep.subr.mxu0 0.0
  %1026 = vmatpush1.xpose.msra.mxu0 0.0
  %1027 = vmatprep.subr.mxu0 0.0
  %1028 = vmatpush1.xpose.msra.mxu0 0.0
  %1029 = vmatprep.subr.mxu0 0.0
  %1030 = vmatpush1.xpose.msra.mxu0 0.0
  %1031 = vmatprep.subr.mxu0 0.0
  %1032 = vmatpush1.xpose.msra.mxu0 0.0
  %1033 = vmatprep.subr.mxu0 0.0
  %1034 = vmatpush1.xpose.msra.mxu0 0.0
  %1035 = vmatprep.subr.mxu0 0.0
  %1036 = vmatpush1.xpose.msra.mxu0 0.0
  %1037 = vmatprep.subr.mxu0 0.0
  %1038 = vmatpush1.xpose.msra.mxu0 0.0
  %1039 = vmatprep.subr.mxu0 0.0
  %1040 = vmatpush1.xpose.msra.mxu0 0.0
  %1041 = vmatprep.subr.mxu0 0.0
  %1042 = vmatpush1.xpose.msra.mxu0 0.0
  %1043 = vmatprep.subr.mxu0 0.0
  %1044 = vmatpush1.xpose.msra.mxu0 0.0
  %1045 = vmatprep.subr.mxu0 0.0
  %1046 = vmatpush1.xpose.msra.mxu0 0.0
  %1047 = vmatprep.subr.mxu0 0.0
  %1048 = vmatpush1.xpose.msra.mxu0 0.0
  %1049 = vmatprep.subr.mxu0 0.0
  %1050 = vmatpush1.xpose.msra.mxu0 0.0
  %1051 = vmatprep.subr.mxu0 0.0
  %1052 = vmatpush1.xpose.msra.mxu0 0.0
  %1053 = vmatprep.subr.mxu0 0.0
  %1054 = vmatpush1.xpose.msra.mxu0 0.0
  %1055 = vmatprep.subr.mxu0 0.0
  %1056 = vmatpush1.xpose.msra.mxu0 0.0
  %1057 = vmatprep.subr.mxu0 0.0
  %1058 = vmatpush1.xpose.msra.mxu0 0.0
  %1059 = vmatprep.subr.mxu0 0.0
  %1060 = vmatpush1.xpose.msra.mxu0 0.0
  %1061 = vmatprep.subr.mxu0 0.0
  %1062 = vmatpush1.xpose.msra.mxu0 0.0
  %1063 = vmatprep.subr.mxu0 0.0
  %1064 = vmatpush1.xpose.msra.mxu0 0.0
  %1065 = vmatprep.subr.mxu0 0.0
  %1066 = vmatpush1.xpose.msra.mxu0 0.0
  %1067 = vmatprep.mubr.f32.mxu0 0.0
  %1068 = vmatmul.mubr.f32.gmra.mrb[0].mxu0 %v999
  %v1069 = vpop.f32.mrb[0].mxu0
  %v1070 = vadd.f32 0.0, %v1069
  %v1071 = vpop.f32.mrb[0].mxu0
  %1072 = vdwg.mxu0
  %v1073 = vmul.f32 %v1070, 0.35355338
  %v1074 = vadd.f32 %v1073, %v143
  %v1075 = vsel %vm147, %v1074, -inf
  %1076 = vmax.xlane.f32.xlu0 %v1075
  %v1077 = vpop.xlane.xlu0 %1076
  %v1078 = vsub.f32 %v1074, %v1077
  %v1079 = vmul.f32 %v1078, 1.442695
  %v1080 = vpow.pop %v1079
  %v1081 = vsel %vm147, %v1080, 0.0
  %1082 = vadd.xlane.f32.xlu0 %v1081
  %v1083 = vpop.xlane.xlu0 %1082
  %v1084 = vrcp.pop %v1083
  %v1085 = vmul.f32 %v1080, %v1084
  %1086 = vrot.lane.b32.xlu0 %v139, 56
  %v1087 = vpop.permute.xlu0 %1086
  %v1090 = vsel %vm147, %v1085, 0
  %1092 = vmatprep.subr.mxu0 0.0
  %1093 = vmatpush1.msra.mxu0 %v1087
  %1094 = vmatprep.subr.mxu0 0.0
  %1095 = vmatpush1.msra.mxu0 0.0
  %1096 = vmatprep.subr.mxu0 0.0
  %1097 = vmatpush1.msra.mxu0 0.0
  %1098 = vmatprep.subr.mxu0 0.0
  %1099 = vmatpush1.msra.mxu0 0.0
  %1100 = vmatprep.subr.mxu0 0.0
  %1101 = vmatpush1.msra.mxu0 0.0
  %1102 = vmatprep.subr.mxu0 0.0
  %1103 = vmatpush1.msra.mxu0 0.0
  %1104 = vmatprep.subr.mxu0 0.0
  %1105 = vmatpush1.msra.mxu0 0.0
  %1106 = vmatprep.subr.mxu0 0.0
  %1107 = vmatpush1.msra.mxu0 0.0
  %1108 = vmatprep.subr.mxu0 0.0
  %1109 = vmatpush1.msra.mxu0 0.0
  %1110 = vmatprep.subr.mxu0 0.0
  %1111 = vmatpush1.msra.mxu0 0.0
  %1112 = vmatprep.subr.mxu0 0.0
  %1113 = vmatpush1.msra.mxu0 0.0
  %1114 = vmatprep.subr.mxu0 0.0
  %1115 = vmatpush1.msra.mxu0 0.0
  %1116 = vmatprep.subr.mxu0 0.0
  %1117 = vmatpush1.msra.mxu0 0.0
  %1118 = vmatprep.subr.mxu0 0.0
  %1119 = vmatpush1.msra.mxu0 0.0
  %1120 = vmatprep.subr.mxu0 0.0
  %1121 = vmatpush1.msra.mxu0 0.0
  %1122 = vmatprep.subr.mxu0 0.0
  %1123 = vmatpush1.msra.mxu0 0.0
  %1124 = vmatprep.subr.mxu0 0.0
  %1125 = vmatpush1.msra.mxu0 0.0
  %1126 = vmatprep.subr.mxu0 0.0
  %1127 = vmatpush1.msra.mxu0 0.0
  %1128 = vmatprep.subr.mxu0 0.0
  %1129 = vmatpush1.msra.mxu0 0.0
  %1130 = vmatprep.subr.mxu0 0.0
  %1131 = vmatpush1.msra.mxu0 0.0
  %1132 = vmatprep.subr.mxu0 0.0
  %1133 = vmatpush1.msra.mxu0 0.0
  %1134 = vmatprep.subr.mxu0 0.0
  %1135 = vmatpush1.msra.mxu0 0.0
  %1136 = vmatprep.subr.mxu0 0.0
  %1137 = vmatpush1.msra.mxu0 0.0
  %1138 = vmatprep.subr.mxu0 0.0
  %1139 = vmatpush1.msra.mxu0 0.0
  %1140 = vmatprep.subr.mxu0 0.0
  %1141 = vmatpush1.msra.mxu0 0.0
  %1142 = vmatprep.subr.mxu0 0.0
  %1143 = vmatpush1.msra.mxu0 0.0
  %1144 = vmatprep.subr.mxu0 0.0
  %1145 = vmatpush1.msra.mxu0 0.0
  %1146 = vmatprep.subr.mxu0 0.0
  %1147 = vmatpush1.msra.mxu0 0.0
  %1148 = vmatprep.subr.mxu0 0.0
  %1149 = vmatpush1.msra.mxu0 0.0
  %1150 = vmatprep.subr.mxu0 0.0
  %1151 = vmatpush1.msra.mxu0 0.0
  %1152 = vmatprep.subr.mxu0 0.0
  %1153 = vmatpush1.msra.mxu0 0.0
  %1154 = vmatprep.subr.mxu0 0.0
  %1155 = vmatpush1.msra.mxu0 0.0
  %1156 = vmatprep.mubr.f32.mxu0 0.0
  %1157 = vmatmul.mubr.f32.gmra.mrb[0].mxu0 %v1090
  %v1158 = vpop.f32.mrb[0].mxu0
  %v1159 = vadd.f32 0.0, %v1158
  %v1160 = vpop.f32.mrb[0].mxu0
  %1161 = vdwg.mxu0
  %1162 = vrot.lane.b32.xlu0 %v139, 112
  %v1163 = vpop.permute.xlu0 %1162
  %1164 = vrot.lane.b32.xlu0 %v139, 80
  %v1165 = vpop.permute.xlu0 %1164
  %v1166 = vsel %vm147, %v1163, 0
  %v1168 = vsel %vm147, %v1165, 0
  %1170 = vmatprep.subr.mxu0 0.0
  %1171 = vmatpush1.xpose.msra.mxu0 %v1168
  %1172 = vmatprep.subr.mxu0 0.0
  %1173 = vmatpush1.xpose.msra.mxu0 0.0
  %1174 = vmatprep.subr.mxu0 0.0
  %1175 = vmatpush1.xpose.msra.mxu0 0.0
  %1176 = vmatprep.subr.mxu0 0.0
  %1177 = vmatpush1.xpose.msra.mxu0 0.0
  %1178 = vmatprep.subr.mxu0 0.0
  %1179 = vmatpush1.xpose.msra.mxu0 0.0
  %1180 = vmatprep.subr.mxu0 0.0
  %1181 = vmatpush1.xpose.msra.mxu0 0.0
  %1182 = vmatprep.subr.mxu0 0.0
  %1183 = vmatpush1.xpose.msra.mxu0 0.0
  %1184 = vmatprep.subr.mxu0 0.0
  %1185 = vmatpush1.xpose.msra.mxu0 0.0
  %1186 = vmatprep.subr.mxu0 0.0
  %1187 = vmatpush1.xpose.msra.mxu0 0.0
  %1188 = vmatprep.subr.mxu0 0.0
  %1189 = vmatpush1.xpose.msra.mxu0 0.0
  %1190 = vmatprep.subr.mxu0 0.0
  %1191 = vmatpush1.xpose.msra.mxu0 0.0
  %1192 = vmatprep.subr.mxu0 0.0
  %1193 = vmatpush1.xpose.msra.mxu0 0.0
  %1194 = vmatprep.subr.mxu0 0.0
  %1195 = vmatpush1.xpose.msra.mxu0 0.0
  %1196 = vmatprep.subr.mxu0 0.0
  %1197 = vmatpush1.xpose.msra.mxu0 0.0
  %1198 = vmatprep.subr.mxu0 0.0
  %1199 = vmatpush1.xpose.msra.mxu0 0.0
  %1200 = vmatprep.subr.mxu0 0.0
  %1201 = vmatpush1.xpose.msra.mxu0 0.0
  %1202 = vmatprep.subr.mxu0 0.0
  %1203 = vmatpush1.xpose.msra.mxu0 0.0
  %1204 = vmatprep.subr.mxu0 0.0
  %1205 = vmatpush1.xpose.msra.mxu0 0.0
  %1206 = vmatprep.subr.mxu0 0.0
  %1207 = vmatpush1.xpose.msra.mxu0 0.0
  %1208 = vmatprep.subr.mxu0 0.0
  %1209 = vmatpush1.xpose.msra.mxu0 0.0
  %1210 = vmatprep.subr.mxu0 0.0
  %1211 = vmatpush1.xpose.msra.mxu0 0.0
  %1212 = vmatprep.subr.mxu0 0.0
  %1213 = vmatpush1.xpose.msra.mxu0 0.0
  %1214 = vmatprep.subr.mxu0 0.0
  %1215 = vmatpush1.xpose.msra.mxu0 0.0
  %1216 = vmatprep.subr.mxu0 0.0
  %1217 = vmatpush1.xpose.msra.mxu0 0.0
  %1218 = vmatprep.subr.mxu0 0.0
  %1219 = vmatpush1.xpose.msra.mxu0 0.0
  %1220 = vmatprep.subr.mxu0 0.0
  %1221 = vmatpush1.xpose.msra.mxu0 0.0
  %1222 = vmatprep.subr.mxu0 0.0
  %1223 = vmatpush1.xpose.msra.mxu0 0.0
  %1224 = vmatprep.subr.mxu0 0.0
  %1225 = vmatpush1.xpose.msra.mxu0 0.0
  %1226 = vmatprep.subr.mxu0 0.0
  %1227 = vmatpush1.xpose.msra.mxu0 0.0
  %1228 = vmatprep.subr.mxu0 0.0
  %1229 = vmatpush1.xpose.msra.mxu0 0.0
  %1230 = vmatprep.subr.mxu0 0.0
  %1231 = vmatpush1.xpose.msra.mxu0 0.0
  %1232 = vmatprep.subr.mxu0 0.0
  %1233 = vmatpush1.xpose.msra.mxu0 0.0
  %1234 = vmatprep.mubr.f32.mxu0 0.0
  %1235 = vmatmul.mubr.f32.gmra.mrb[0].mxu0 %v1166
  %v1236 = vpop.f32.mrb[0].mxu0
  %v1237 = vadd.f32 0.0, %v1236
  %v1238 = vpop.f32.mrb[0].mxu0
  %1239 = vdwg.mxu0
  %v1240 = vmul.f32 %v1237, 0.35355338
  %v1241 = vadd.f32 %v1240, %v143
  %v1242 = vsel %vm147, %v1241, -inf
  %1243 = vmax.xlane.f32.xlu0 %v1242
  %v1244 = vpop.xlane.xlu0 %1243
  %v1245 = vsub.f32 %v1241, %v1244
  %v1246 = vmul.f32 %v1245, 1.442695
  %v1247 = vpow.pop %v1246
  %v1248 = vsel %vm147, %v1247, 0.0
  %1249 = vadd.xlane.f32.xlu0 %v1248
  %v1250 = vpop.xlane.xlu0 %1249
  %v1251 = vrcp.pop %v1250
  %v1252 = vmul.f32 %v1247, %v1251
  %1253 = vrot.lane.b32.xlu0 %v139, 48
  %v1254 = vpop.permute.xlu0 %1253
  %v1257 = vsel %vm147, %v1252, 0
  %1259 = vmatprep.subr.mxu0 0.0
  %1260 = vmatpush1.msra.mxu0 %v1254
  %1261 = vmatprep.subr.mxu0 0.0
  %1262 = vmatpush1.msra.mxu0 0.0
  %1263 = vmatprep.subr.mxu0 0.0
  %1264 = vmatpush1.msra.mxu0 0.0
  %1265 = vmatprep.subr.mxu0 0.0
  %1266 = vmatpush1.msra.mxu0 0.0
  %1267 = vmatprep.subr.mxu0 0.0
  %1268 = vmatpush1.msra.mxu0 0.0
  %1269 = vmatprep.subr.mxu0 0.0
  %1270 = vmatpush1.msra.mxu0 0.0
  %1271 = vmatprep.subr.mxu0 0.0
  %1272 = vmatpush1.msra.mxu0 0.0
  %1273 = vmatprep.subr.mxu0 0.0
  %1274 = vmatpush1.msra.mxu0 0.0
  %1275 = vmatprep.subr.mxu0 0.0
  %1276 = vmatpush1.msra.mxu0 0.0
  %1277 = vmatprep.subr.mxu0 0.0
  %1278 = vmatpush1.msra.mxu0 0.0
  %1279 = vmatprep.subr.mxu0 0.0
  %1280 = vmatpush1.msra.mxu0 0.0
  %1281 = vmatprep.subr.mxu0 0.0
  %1282 = vmatpush1.msra.mxu0 0.0
  %1283 = vmatprep.subr.mxu0 0.0
  %1284 = vmatpush1.msra.mxu0 0.0
  %1285 = vmatprep.subr.mxu0 0.0
  %1286 = vmatpush1.msra.mxu0 0.0
  %1287 = vmatprep.subr.mxu0 0.0
  %1288 = vmatpush1.msra.mxu0 0.0
  %1289 = vmatprep.subr.mxu0 0.0
  %1290 = vmatpush1.msra.mxu0 0.0
  %1291 = vmatprep.subr.mxu0 0.0
  %1292 = vmatpush1.msra.mxu0 0.0
  %1293 = vmatprep.subr.mxu0 0.0
  %1294 = vmatpush1.msra.mxu0 0.0
  %1295 = vmatprep.subr.mxu0 0.0
  %1296 = vmatpush1.msra.mxu0 0.0
  %1297 = vmatprep.subr.mxu0 0.0
  %1298 = vmatpush1.msra.mxu0 0.0
  %1299 = vmatprep.subr.mxu0 0.0
  %1300 = vmatpush1.msra.mxu0 0.0
  %1301 = vmatprep.subr.mxu0 0.0
  %1302 = vmatpush1.msra.mxu0 0.0
  %1303 = vmatprep.subr.mxu0 0.0
  %1304 = vmatpush1.msra.mxu0 0.0
  %1305 = vmatprep.subr.mxu0 0.0
  %1306 = vmatpush1.msra.mxu0 0.0
  %1307 = vmatprep.subr.mxu0 0.0
  %1308 = vmatpush1.msra.mxu0 0.0
  %1309 = vmatprep.subr.mxu0 0.0
  %1310 = vmatpush1.msra.mxu0 0.0
  %1311 = vmatprep.subr.mxu0 0.0
  %1312 = vmatpush1.msra.mxu0 0.0
  %1313 = vmatprep.subr.mxu0 0.0
  %1314 = vmatpush1.msra.mxu0 0.0
  %1315 = vmatprep.subr.mxu0 0.0
  %1316 = vmatpush1.msra.mxu0 0.0
  %1317 = vmatprep.subr.mxu0 0.0
  %1318 = vmatpush1.msra.mxu0 0.0
  %1319 = vmatprep.subr.mxu0 0.0
  %1320 = vmatpush1.msra.mxu0 0.0
  %1321 = vmatprep.subr.mxu0 0.0
  %1322 = vmatpush1.msra.mxu0 0.0
  %1323 = vmatprep.mubr.f32.mxu0 0.0
  %1324 = vmatmul.mubr.f32.gmra.mrb[0].mxu0 %v1257
  %v1325 = vpop.f32.mrb[0].mxu0
  %v1326 = vadd.f32 0.0, %v1325
  %v1327 = vpop.f32.mrb[0].mxu0
  %1328 = vdwg.mxu0
  %1329 = vrot.lane.b32.xlu0 %v139, 104
  %v1330 = vpop.permute.xlu0 %1329
  %1331 = vrot.lane.b32.xlu0 %v139, 72
  %v1332 = vpop.permute.xlu0 %1331
  %v1333 = vsel %vm147, %v1330, 0
  %v1335 = vsel %vm147, %v1332, 0
  %1337 = vmatprep.subr.mxu0 0.0
  %1338 = vmatpush1.xpose.msra.mxu0 %v1335
  %1339 = vmatprep.subr.mxu0 0.0
  %1340 = vmatpush1.xpose.msra.mxu0 0.0
  %1341 = vmatprep.subr.mxu0 0.0
  %1342 = vmatpush1.xpose.msra.mxu0 0.0
  %1343 = vmatprep.subr.mxu0 0.0
  %1344 = vmatpush1.xpose.msra.mxu0 0.0
  %1345 = vmatprep.subr.mxu0 0.0
  %1346 = vmatpush1.xpose.msra.mxu0 0.0
  %1347 = vmatprep.subr.mxu0 0.0
  %1348 = vmatpush1.xpose.msra.mxu0 0.0
  %1349 = vmatprep.subr.mxu0 0.0
  %1350 = vmatpush1.xpose.msra.mxu0 0.0
  %1351 = vmatprep.subr.mxu0 0.0
  %1352 = vmatpush1.xpose.msra.mxu0 0.0
  %1353 = vmatprep.subr.mxu0 0.0
  %1354 = vmatpush1.xpose.msra.mxu0 0.0
  %1355 = vmatprep.subr.mxu0 0.0
  %1356 = vmatpush1.xpose.msra.mxu0 0.0
  %1357 = vmatprep.subr.mxu0 0.0
  %1358 = vmatpush1.xpose.msra.mxu0 0.0
  %1359 = vmatprep.subr.mxu0 0.0
  %1360 = vmatpush1.xpose.msra.mxu0 0.0
  %1361 = vmatprep.subr.mxu0 0.0
  %1362 = vmatpush1.xpose.msra.mxu0 0.0
  %1363 = vmatprep.subr.mxu0 0.0
  %1364 = vmatpush1.xpose.msra.mxu0 0.0
  %1365 = vmatprep.subr.mxu0 0.0
  %1366 = vmatpush1.xpose.msra.mxu0 0.0
  %1367 = vmatprep.subr.mxu0 0.0
  %1368 = vmatpush1.xpose.msra.mxu0 0.0
  %1369 = vmatprep.subr.mxu0 0.0
  %1370 = vmatpush1.xpose.msra.mxu0 0.0
  %1371 = vmatprep.subr.mxu0 0.0
  %1372 = vmatpush1.xpose.msra.mxu0 0.0
  %1373 = vmatprep.subr.mxu0 0.0
  %1374 = vmatpush1.xpose.msra.mxu0 0.0
  %1375 = vmatprep.subr.mxu0 0.0
  %1376 = vmatpush1.xpose.msra.mxu0 0.0
  %1377 = vmatprep.subr.mxu0 0.0
  %1378 = vmatpush1.xpose.msra.mxu0 0.0
  %1379 = vmatprep.subr.mxu0 0.0
  %1380 = vmatpush1.xpose.msra.mxu0 0.0
  %1381 = vmatprep.subr.mxu0 0.0
  %1382 = vmatpush1.xpose.msra.mxu0 0.0
  %1383 = vmatprep.subr.mxu0 0.0
  %1384 = vmatpush1.xpose.msra.mxu0 0.0
  %1385 = vmatprep.subr.mxu0 0.0
  %1386 = vmatpush1.xpose.msra.mxu0 0.0
  %1387 = vmatprep.subr.mxu0 0.0
  %1388 = vmatpush1.xpose.msra.mxu0 0.0
  %1389 = vmatprep.subr.mxu0 0.0
  %1390 = vmatpush1.xpose.msra.mxu0 0.0
  %1391 = vmatprep.subr.mxu0 0.0
  %1392 = vmatpush1.xpose.msra.mxu0 0.0
  %1393 = vmatprep.subr.mxu0 0.0
  %1394 = vmatpush1.xpose.msra.mxu0 0.0
  %1395 = vmatprep.subr.mxu0 0.0
  %1396 = vmatpush1.xpose.msra.mxu0 0.0
  %1397 = vmatprep.subr.mxu0 0.0
  %1398 = vmatpush1.xpose.msra.mxu0 0.0
  %1399 = vmatprep.subr.mxu0 0.0
  %1400 = vmatpush1.xpose.msra.mxu0 0.0
  %1401 = vmatprep.mubr.f32.mxu0 0.0
  %1402 = vmatmul.mubr.f32.gmra.mrb[0].mxu0 %v1333
  %v1403 = vpop.f32.mrb[0].mxu0
  %v1404 = vadd.f32 0.0, %v1403
  %v1405 = vpop.f32.mrb[0].mxu0
  %1406 = vdwg.mxu0
  %v1407 = vmul.f32 %v1404, 0.35355338
  %v1408 = vadd.f32 %v1407, %v143
  %v1409 = vsel %vm147, %v1408, -inf
  %1410 = vmax.xlane.f32.xlu0 %v1409
  %v1411 = vpop.xlane.xlu0 %1410
  %v1412 = vsub.f32 %v1408, %v1411
  %v1413 = vmul.f32 %v1412, 1.442695
  %v1414 = vpow.pop %v1413
  %v1415 = vsel %vm147, %v1414, 0.0
  %1416 = vadd.xlane.f32.xlu0 %v1415
  %v1417 = vpop.xlane.xlu0 %1416
  %v1418 = vrcp.pop %v1417
  %v1419 = vmul.f32 %v1414, %v1418
  %1420 = vrot.lane.b32.xlu0 %v139, 40
  %v1421 = vpop.permute.xlu0 %1420
  %v1424 = vsel %vm147, %v1419, 0
  %1426 = vmatprep.subr.mxu0 0.0
  %1427 = vmatpush1.msra.mxu0 %v1421
  %1428 = vmatprep.subr.mxu0 0.0
  %1429 = vmatpush1.msra.mxu0 0.0
  %1430 = vmatprep.subr.mxu0 0.0
  %1431 = vmatpush1.msra.mxu0 0.0
  %1432 = vmatprep.subr.mxu0 0.0
  %1433 = vmatpush1.msra.mxu0 0.0
  %1434 = vmatprep.subr.mxu0 0.0
  %1435 = vmatpush1.msra.mxu0 0.0
  %1436 = vmatprep.subr.mxu0 0.0
  %1437 = vmatpush1.msra.mxu0 0.0
  %1438 = vmatprep.subr.mxu0 0.0
  %1439 = vmatpush1.msra.mxu0 0.0
  %1440 = vmatprep.subr.mxu0 0.0
  %1441 = vmatpush1.msra.mxu0 0.0
  %1442 = vmatprep.subr.mxu0 0.0
  %1443 = vmatpush1.msra.mxu0 0.0
  %1444 = vmatprep.subr.mxu0 0.0
  %1445 = vmatpush1.msra.mxu0 0.0
  %1446 = vmatprep.subr.mxu0 0.0
  %1447 = vmatpush1.msra.mxu0 0.0
  %1448 = vmatprep.subr.mxu0 0.0
  %1449 = vmatpush1.msra.mxu0 0.0
  %1450 = vmatprep.subr.mxu0 0.0
  %1451 = vmatpush1.msra.mxu0 0.0
  %1452 = vmatprep.subr.mxu0 0.0
  %1453 = vmatpush1.msra.mxu0 0.0
  %1454 = vmatprep.subr.mxu0 0.0
  %1455 = vmatpush1.msra.mxu0 0.0
  %1456 = vmatprep.subr.mxu0 0.0
  %1457 = vmatpush1.msra.mxu0 0.0
  %1458 = vmatprep.subr.mxu0 0.0
  %1459 = vmatpush1.msra.mxu0 0.0
  %1460 = vmatprep.subr.mxu0 0.0
  %1461 = vmatpush1.msra.mxu0 0.0
  %1462 = vmatprep.subr.mxu0 0.0
  %1463 = vmatpush1.msra.mxu0 0.0
  %1464 = vmatprep.subr.mxu0 0.0
  %1465 = vmatpush1.msra.mxu0 0.0
  %1466 = vmatprep.subr.mxu0 0.0
  %1467 = vmatpush1.msra.mxu0 0.0
  %1468 = vmatprep.subr.mxu0 0.0
  %1469 = vmatpush1.msra.mxu0 0.0
  %1470 = vmatprep.subr.mxu0 0.0
  %1471 = vmatpush1.msra.mxu0 0.0
  %1472 = vmatprep.subr.mxu0 0.0
  %1473 = vmatpush1.msra.mxu0 0.0
  %1474 = vmatprep.subr.mxu0 0.0
  %1475 = vmatpush1.msra.mxu0 0.0
  %1476 = vmatprep.subr.mxu0 0.0
  %1477 = vmatpush1.msra.mxu0 0.0
  %1478 = vmatprep.subr.mxu0 0.0
  %1479 = vmatpush1.msra.mxu0 0.0
  %1480 = vmatprep.subr.mxu0 0.0
  %1481 = vmatpush1.msra.mxu0 0.0
  %1482 = vmatprep.subr.mxu0 0.0
  %1483 = vmatpush1.msra.mxu0 0.0
  %1484 = vmatprep.subr.mxu0 0.0
  %1485 = vmatpush1.msra.mxu0 0.0
  %1486 = vmatprep.subr.mxu0 0.0
  %1487 = vmatpush1.msra.mxu0 0.0
  %1488 = vmatprep.subr.mxu0 0.0
  %1489 = vmatpush1.msra.mxu0 0.0
  %1490 = vmatprep.mubr.f32.mxu0 0.0
  %1491 = vmatmul.mubr.f32.gmra.mrb[0].mxu0 %v1424
  %v1492 = vpop.f32.mrb[0].mxu0
  %v1493 = vadd.f32 0.0, %v1492
  %v1494 = vpop.f32.mrb[0].mxu0
  %1495 = vdwg.mxu0
  %1497 = vrot.lane.b32.xlu0 %v1159, 8
  %v1498 = vpop.permute.xlu0 %1497
  %1501 = vrot.lane.b32.xlu0 %v1326, 16
  %v1502 = vpop.permute.xlu0 %1501
  %1505 = vrot.lane.b32.xlu0 %v1493, 24
  %v1506 = vpop.permute.xlu0 %1505
  %v1508 = vsel %vm147, %v992, %v1498
  %v1509 = vsel %vm825, %v1508, %v1502
  %v1510 = vsel %vm827, %v1509, %v1506
  %v1511 = vld [vmem:[%s4] sm:$0xff]
  %v1512 = vld [vmem:[%s4 + $0x8] sm:$0xff]
  %v1513 = vld [vmem:[%s4 + $0x10] sm:$0xff]
  %v1514 = vld [vmem:[%s4 + $0x18] sm:$0xff]
  %v1515 = vld [vmem:[%s5] sm:$0x1]
  %v1517 = vlaneseq
  %v1518 = vshrl.u32 %v1517, 7
  %v1519 = vsub.s32 0, %v1518
  %v1520 = vrot.slane %v1515, %v1519
  %v1523 = vsel %vm60, %v828, 0
  %v1526 = vsel %vm60, %v1510, 0
  %1528 = vmatprep.subr.mxu0 0.0
  %1529 = vmatpush1.msra.mxu0 %v1511
  %1530 = vmatprep.subr.mxu0 0.0
  %1531 = vmatpush1.msra.mxu0 %v1512
  %1532 = vmatprep.subr.mxu0 0.0
  %1533 = vmatpush1.msra.mxu0 %v1513
  %1534 = vmatprep.subr.mxu0 0.0
  %1535 = vmatpush1.msra.mxu0 %v1514
  %1536 = vmatprep.subr.mxu0 0.0
  %1537 = vmatpush1.msra.mxu0 0.0
  %1538 = vmatprep.subr.mxu0 0.0
  %1539 = vmatpush1.msra.mxu0 0.0
  %1540 = vmatprep.subr.mxu0 0.0
  %1541 = vmatpush1.msra.mxu0 0.0
  %1542 = vmatprep.subr.mxu0 0.0
  %1543 = vmatpush1.msra.mxu0 0.0
  %1544 = vmatprep.subr.mxu0 0.0
  %1545 = vmatpush1.msra.mxu0 0.0
  %1546 = vmatprep.subr.mxu0 0.0
  %1547 = vmatpush1.msra.mxu0 0.0
  %1548 = vmatprep.subr.mxu0 0.0
  %1549 = vmatpush1.msra.mxu0 0.0
  %1550 = vmatprep.subr.mxu0 0.0
  %1551 = vmatpush1.msra.mxu0 0.0
  %1552 = vmatprep.subr.mxu0 0.0
  %1553 = vmatpush1.msra.mxu0 0.0
  %1554 = vmatprep.subr.mxu0 0.0
  %1555 = vmatpush1.msra.mxu0 0.0
  %1556 = vmatprep.subr.mxu0 0.0
  %1557 = vmatpush1.msra.mxu0 0.0
  %1558 = vmatprep.subr.mxu0 0.0
  %1559 = vmatpush1.msra.mxu0 0.0
  %1560 = vmatprep.subr.mxu0 0.0
  %1561 = vmatpush1.msra.mxu0 0.0
  %1562 = vmatprep.subr.mxu0 0.0
  %1563 = vmatpush1.msra.mxu0 0.0
  %1564 = vmatprep.subr.mxu0 0.0
  %1565 = vmatpush1.msra.mxu0 0.0
  %1566 = vmatprep.subr.mxu0 0.0
  %1567 = vmatpush1.msra.mxu0 0.0
  %1568 = vmatprep.subr.mxu0 0.0
  %1569 = vmatpush1.msra.mxu0 0.0
  %1570 = vmatprep.subr.mxu0 0.0
  %1571 = vmatpush1.msra.mxu0 0.0
  %1572 = vmatprep.subr.mxu0 0.0
  %1573 = vmatpush1.msra.mxu0 0.0
  %1574 = vmatprep.subr.mxu0 0.0
  %1575 = vmatpush1.msra.mxu0 0.0
  %1576 = vmatprep.subr.mxu0 0.0
  %1577 = vmatpush1.msra.mxu0 0.0
  %1578 = vmatprep.subr.mxu0 0.0
  %1579 = vmatpush1.msra.mxu0 0.0
  %1580 = vmatprep.subr.mxu0 0.0
  %1581 = vmatpush1.msra.mxu0 0.0
  %1582 = vmatprep.subr.mxu0 0.0
  %1583 = vmatpush1.msra.mxu0 0.0
  %1584 = vmatprep.subr.mxu0 0.0
  %1585 = vmatpush1.msra.mxu0 0.0
  %1586 = vmatprep.subr.mxu0 0.0
  %1587 = vmatpush1.msra.mxu0 0.0
  %1588 = vmatprep.subr.mxu0 0.0
  %1589 = vmatpush1.msra.mxu0 0.0
  %1590 = vmatprep.subr.mxu0 0.0
  %1591 = vmatpush1.msra.mxu0 0.0
  %1592 = vmatprep.mubr.f32.mxu0 0.0
  %1593 = vmatmul.mubr.f32.gmra.mrb[0].mxu0 %v1523
  %v1594 = vpop.f32.mrb[0].mxu0
  %v1595 = vadd.f32 %v1520, %v1594
  %v1596 = vpop.f32.mrb[0].mxu0
  %1597 = vmatprep.mubr.f32.mxu0 0.0
  %1598 = vmatmul.mubr.f32.gmra.mrb[0].mxu0 %v1526
  %v1599 = vpop.f32.mrb[0].mxu0
  %v1600 = vadd.f32 %v1520, %v1599
  %v1601 = vpop.f32.mrb[0].mxu0
  %1602 = vdwg.mxu0
  %v1603 = vadd.f32 %v47, %v1595
  %v1604 = vadd.f32 %v48, %v1600
  %v1605 = vld [vmem:[%s6] sm:$0x1]
  %v1606 = vld [vmem:[%s7] sm:$0x1]
  %v1607 = vsel %vm60, %v1603, 0.0
  %1608 = vadd.xlane.f32.xlu0 %v1607
  %v1609 = vpop.xlane.xlu0 %1608
  %v1610 = vsel %vm60, %v1604, 0.0
  %1611 = vadd.xlane.f32.xlu0 %v1610
  %v1612 = vpop.xlane.xlu0 %1611
  %v1613 = vrcp.pop 32.0
  %v1614 = vmul.f32 %v1609, %v1613
  %v1615 = vmul.f32 %v1612, %v1613
  %v1616 = vsub.f32 %v1603, %v1614
  %v1617 = vsub.f32 %v1604, %v1615
  %v1618 = vmul.f32 %v1616, %v1616
  %v1619 = vmul.f32 %v1617, %v1617
  %v1620 = vsel %vm60, %v1618, 0.0
  %1621 = vadd.xlane.f32.xlu0 %v1620
  %v1622 = vpop.xlane.xlu0 %1621
  %v1623 = vsel %vm60, %v1619, 0.0
  %1624 = vadd.xlane.f32.xlu0 %v1623
  %v1625 = vpop.xlane.xlu0 %1624
  %v1626 = vmul.f32 %v1622, %v1613
  %v1627 = vmul.f32 %v1625, %v1613
  %v1628 = vadd.f32 %v1626, 1e-05
  %v1629 = vadd.f32 %v1627, 1e-05
  %v1630 = vrsqrt.pop %v1628
  %v1631 = vrsqrt.pop %v1629
  %v1632 = vmul.f32 %v1616, %v1630
  %v1633 = vmul.f32 %v1617, %v1631
  %v1635 = vlaneseq
  %v1636 = vshrl.u32 %v1635, 7
  %v1637 = vsub.s32 0, %v1636
  %v1638 = vrot.slane %v1605, %v1637
  %v1640 = vmul.f32 %v1632, %v1638
  %v1641 = vmul.f32 %v1633, %v1638
  %v1643 = vlaneseq
  %v1644 = vshrl.u32 %v1643, 7
  %v1645 = vsub.s32 0, %v1644
  %v1646 = vrot.slane %v1606, %v1645
  %v1648 = vadd.f32 %v1640, %v1646
  %v1649 = vadd.f32 %v1641, %v1646
  %v1650 = vld [vmem:[%s8] sm:$0xff]
  %v1651 = vld [vmem:[%s8 + $0x8] sm:$0xff]
  %v1652 = vld [vmem:[%s8 + $0x10] sm:$0xff]
  %v1653 = vld [vmem:[%s8 + $0x18] sm:$0xff]
  %v1654 = vld [vmem:[%s9] sm:$0x1]
  %v1656 = vlaneseq
  %v1657 = vshrl.u32 %v1656, 7
  %v1658 = vsub.s32 0, %v1657
  %v1659 = vrot.slane %v1654, %v1658
  %v1662 = vsel %vm60, %v1648, 0
  %v1665 = vsel %vm60, %v1649, 0
  %1667 = vmatprep.subr.mxu0 0.0
  %1668 = vmatpush1.msra.mxu0 %v1650
  %1669 = vmatprep.subr.mxu0 0.0
  %1670 = vmatpush1.msra.mxu0 %v1651
  %1671 = vmatprep.subr.mxu0 0.0
  %1672 = vmatpush1.msra.mxu0 %v1652
  %1673 = vmatprep.subr.mxu0 0.0
  %1674 = vmatpush1.msra.mxu0 %v1653
  %1675 = vmatprep.subr.mxu0 0.0
  %1676 = vmatpush1.msra.mxu0 0.0
  %1677 = vmatprep.subr.mxu0 0.0
  %1678 = vmatpush1.msra.mxu0 0.0
  %1679 = vmatprep.subr.mxu0 0.0
  %1680 = vmatpush1.msra.mxu0 0.0
  %1681 = vmatprep.subr.mxu0 0.0
  %1682 = vmatpush1.msra.mxu0 0.0
  %1683 = vmatprep.subr.mxu0 0.0
  %1684 = vmatpush1.msra.mxu0 0.0
  %1685 = vmatprep.subr.mxu0 0.0
  %1686 = vmatpush1.msra.mxu0 0.0
  %1687 = vmatprep.subr.mxu0 0.0
  %1688 = vmatpush1.msra.mxu0 0.0
  %1689 = vmatprep.subr.mxu0 0.0
  %1690 = vmatpush1.msra.mxu0 0.0
  %1691 = vmatprep.subr.mxu0 0.0
  %1692 = vmatpush1.msra.mxu0 0.0
  %1693 = vmatprep.subr.mxu0 0.0
  %1694 = vmatpush1.msra.mxu0 0.0
  %1695 = vmatprep.subr.mxu0 0.0
  %1696 = vmatpush1.msra.mxu0 0.0
  %1697 = vmatprep.subr.mxu0 0.0
  %1698 = vmatpush1.msra.mxu0 0.0
  %1699 = vmatprep.subr.mxu0 0.0
  %1700 = vmatpush1.msra.mxu0 0.0
  %1701 = vmatprep.subr.mxu0 0.0
  %1702 = vmatpush1.msra.mxu0 0.0
  %1703 = vmatprep.subr.mxu0 0.0
  %1704 = vmatpush1.msra.mxu0 0.0
  %1705 = vmatprep.subr.mxu0 0.0
  %1706 = vmatpush1.msra.mxu0 0.0
  %1707 = vmatprep.subr.mxu0 0.0
  %1708 = vmatpush1.msra.mxu0 0.0
  %1709 = vmatprep.subr.mxu0 0.0
  %1710 = vmatpush1.msra.mxu0 0.0
  %1711 = vmatprep.subr.mxu0 0.0
  %1712 = vmatpush1.msra.mxu0 0.0
  %1713 = vmatprep.subr.mxu0 0.0
  %1714 = vmatpush1.msra.mxu0 0.0
  %1715 = vmatprep.subr.mxu0 0.0
  %1716 = vmatpush1.msra.mxu0 0.0
  %1717 = vmatprep.subr.mxu0 0.0
  %1718 = vmatpush1.msra.mxu0 0.0
  %1719 = vmatprep.subr.mxu0 0.0
  %1720 = vmatpush1.msra.mxu0 0.0
  %1721 = vmatprep.subr.mxu0 0.0
  %1722 = vmatpush1.msra.mxu0 0.0
  %1723 = vmatprep.subr.mxu0 0.0
  %1724 = vmatpush1.msra.mxu0 0.0
  %1725 = vmatprep.subr.mxu0 0.0
  %1726 = vmatpush1.msra.mxu0 0.0
  %1727 = vmatprep.subr.mxu0 0.0
  %1728 = vmatpush1.msra.mxu0 0.0
  %1729 = vmatprep.subr.mxu0 0.0
  %1730 = vmatpush1.msra.mxu0 0.0
  %1731 = vmatprep.mubr.f32.mxu0 0.0
  %1732 = vmatmul.mubr.f32.gmra.mrb[0].mxu0 %v1662
  %v1733 = vpop.f32.mrb[0].mxu0
  %v1734 = vadd.f32 %v1659, %v1733
  %v1735 = vpop.f32.mrb[0].mxu0
  %1736 = vmatprep.mubr.f32.mxu0 0.0
  %1737 = vmatmul.mubr.f32.gmra.mrb[0].mxu0 %v1665
  %v1738 = vpop.f32.mrb[0].mxu0
  %v1739 = vadd.f32 %v1659, %v1738
  %v1740 = vpop.f32.mrb[0].mxu0
  %1741 = vdwg.mxu0
  %v1742 = vmax.f32 %v1734, 0.0
  %v1743 = vmax.f32 %v1739, 0.0
  %v1744 = vld [vmem:[%s10] sm:$0xff]
  %v1745 = vld [vmem:[%s10 + $0x8] sm:$0xff]
  %v1746 = vld [vmem:[%s10 + $0x10] sm:$0xff]
  %v1747 = vld [vmem:[%s10 + $0x18] sm:$0xff]
  %v1748 = vld [vmem:[%s10 + $0x20] sm:$0xff]
  %v1749 = vld [vmem:[%s10 + $0x28] sm:$0xff]
  %v1750 = vld [vmem:[%s10 + $0x30] sm:$0xff]
  %v1751 = vld [vmem:[%s10 + $0x38] sm:$0xff]
  %v1752 = vld [vmem:[%s11] sm:$0x1]
  %v1754 = vlaneseq
  %v1755 = vshrl.u32 %v1754, 7
  %v1756 = vsub.s32 0, %v1755
  %v1757 = vrot.slane %v1752, %v1756
  %vm1759 = vcmask 523264
  %v1761 = vsel %vm1759, %v1742, 0
  %v1764 = vsel %vm1759, %v1743, 0
  %1766 = vmatprep.subr.mxu0 0.0
  %1767 = vmatpush1.msra.mxu0 %v1744
  %1768 = vmatprep.subr.mxu0 0.0
  %1769 = vmatpush1.msra.mxu0 %v1745
  %1770 = vmatprep.subr.mxu0 0.0
  %1771 = vmatpush1.msra.mxu0 %v1746
  %1772 = vmatprep.subr.mxu0 0.0
  %1773 = vmatpush1.msra.mxu0 %v1747
  %1774 = vmatprep.subr.mxu0 0.0
  %1775 = vmatpush1.msra.mxu0 %v1748
  %1776 = vmatprep.subr.mxu0 0.0
  %1777 = vmatpush1.msra.mxu0 %v1749
  %1778 = vmatprep.subr.mxu0 0.0
  %1779 = vmatpush1.msra.mxu0 %v1750
  %1780 = vmatprep.subr.mxu0 0.0
  %1781 = vmatpush1.msra.mxu0 %v1751
  %1782 = vmatprep.subr.mxu0 0.0
  %1783 = vmatpush1.msra.mxu0 0.0
  %1784 = vmatprep.subr.mxu0 0.0
  %1785 = vmatpush1.msra.mxu0 0.0
  %1786 = vmatprep.subr.mxu0 0.0
  %1787 = vmatpush1.msra.mxu0 0.0
  %1788 = vmatprep.subr.mxu0 0.0
  %1789 = vmatpush1.msra.mxu0 0.0
  %1790 = vmatprep.subr.mxu0 0.0
  %1791 = vmatpush1.msra.mxu0 0.0
  %1792 = vmatprep.subr.mxu0 0.0
  %1793 = vmatpush1.msra.mxu0 0.0
  %1794 = vmatprep.subr.mxu0 0.0
  %1795 = vmatpush1.msra.mxu0 0.0
  %1796 = vmatprep.subr.mxu0 0.0
  %1797 = vmatpush1.msra.mxu0 0.0
  %1798 = vmatprep.subr.mxu0 0.0
  %1799 = vmatpush1.msra.mxu0 0.0
  %1800 = vmatprep.subr.mxu0 0.0
  %1801 = vmatpush1.msra.mxu0 0.0
  %1802 = vmatprep.subr.mxu0 0.0
  %1803 = vmatpush1.msra.mxu0 0.0
  %1804 = vmatprep.subr.mxu0 0.0
  %1805 = vmatpush1.msra.mxu0 0.0
  %1806 = vmatprep.subr.mxu0 0.0
  %1807 = vmatpush1.msra.mxu0 0.0
  %1808 = vmatprep.subr.mxu0 0.0
  %1809 = vmatpush1.msra.mxu0 0.0
  %1810 = vmatprep.subr.mxu0 0.0
  %1811 = vmatpush1.msra.mxu0 0.0
  %1812 = vmatprep.subr.mxu0 0.0
  %1813 = vmatpush1.msra.mxu0 0.0
  %1814 = vmatprep.subr.mxu0 0.0
  %1815 = vmatpush1.msra.mxu0 0.0
  %1816 = vmatprep.subr.mxu0 0.0
  %1817 = vmatpush1.msra.mxu0 0.0
  %1818 = vmatprep.subr.mxu0 0.0
  %1819 = vmatpush1.msra.mxu0 0.0
  %1820 = vmatprep.subr.mxu0 0.0
  %1821 = vmatpush1.msra.mxu0 0.0
  %1822 = vmatprep.subr.mxu0 0.0
  %1823 = vmatpush1.msra.mxu0 0.0
  %1824 = vmatprep.subr.mxu0 0.0
  %1825 = vmatpush1.msra.mxu0 0.0
  %1826 = vmatprep.subr.mxu0 0.0
  %1827 = vmatpush1.msra.mxu0 0.0
  %1828 = vmatprep.subr.mxu0 0.0
  %1829 = vmatpush1.msra.mxu0 0.0
  %1830 = vmatprep.mubr.f32.mxu0 0.0
  %1831 = vmatmul.mubr.f32.gmra.mrb[0].mxu0 %v1761
  %v1832 = vpop.f32.mrb[0].mxu0
  %v1833 = vadd.f32 %v1757, %v1832
  %v1834 = vpop.f32.mrb[0].mxu0
  %1835 = vmatprep.mubr.f32.mxu0 0.0
  %1836 = vmatmul.mubr.f32.gmra.mrb[0].mxu0 %v1764
  %v1837 = vpop.f32.mrb[0].mxu0
  %v1838 = vadd.f32 %v1757, %v1837
  %v1839 = vpop.f32.mrb[0].mxu0
  %1840 = vdwg.mxu0
  %v1841 = vadd.f32 %v1648, %v1833
  %v1842 = vadd.f32 %v1649, %v1838
  %v1843 = vld [vmem:[%s12] sm:$0x1]
  %v1844 = vld [vmem:[%s13] sm:$0x1]
  %v1845 = vsel %vm60, %v1841, 0.0
  %1846 = vadd.xlane.f32.xlu0 %v1845
  %v1847 = vpop.xlane.xlu0 %1846
  %v1848 = vsel %vm60, %v1842, 0.0
  %1849 = vadd.xlane.f32.xlu0 %v1848
  %v1850 = vpop.xlane.xlu0 %1849
  %v1851 = vmul.f32 %v1847, %v1613
  %v1852 = vmul.f32 %v1850, %v1613
  %v1853 = vsub.f32 %v1841, %v1851
  %v1854 = vsub.f32 %v1842, %v1852
  %v1855 = vmul.f32 %v1853, %v1853
  %v1856 = vmul.f32 %v1854, %v1854
  %v1857 = vsel %vm60, %v1855, 0.0
  %1858 = vadd.xlane.f32.xlu0 %v1857
  %v1859 = vpop.xlane.xlu0 %1858
  %v1860 = vsel %vm60, %v1856, 0.0
  %1861 = vadd.xlane.f32.xlu0 %v1860
  %v1862 = vpop.xlane.xlu0 %1861
  %v1863 = vmul.f32 %v1859, %v1613
  %v1864 = vmul.f32 %v1862, %v1613
  %v1865 = vadd.f32 %v1863, 1e-05
  %v1866 = vadd.f32 %v1864, 1e-05
  %v1867 = vrsqrt.pop %v1865
  %v1868 = vrsqrt.pop %v1866
  %v1869 = vmul.f32 %v1853, %v1867
  %v1870 = vmul.f32 %v1854, %v1868
  %v1872 = vlaneseq
  %v1873 = vshrl.u32 %v1872, 7
  %v1874 = vsub.s32 0, %v1873
  %v1875 = vrot.slane %v1843, %v1874
  %v1877 = vmul.f32 %v1869, %v1875
  %v1878 = vmul.f32 %v1870, %v1875
  %v1880 = vlaneseq
  %v1881 = vshrl.u32 %v1880, 7
  %v1882 = vsub.s32 0, %v1881
  %v1883 = vrot.slane %v1844, %v1882
  %v1885 = vadd.f32 %v1877, %v1883
  %v1886 = vadd.f32 %v1878, %v1883
  %1887 = vst.msk [vmem:[%s14] sm:$0xff] %vm60, %v1885
  %1888 = vst.msk [vmem:[%s14 + $0x8] sm:$0xff] %vm60, %v1886
  // Predicated region
  $region58: #{transformer_forward.5} parent=0 // pred_check
    _
  $region59: #{transformer_forward.5} parent=0 // pred_check_branch
    %1890 = sbr.rel (0) target = $region61
  $region60: #{transformer_forward.5} parent=0 // pred_region
    _
  $region61: #{transformer_forward.5} parent=0 // pred_fallthru
    _
  // Predicated region
  $region62: #{transformer_forward.5} parent=0 // pred_check
    _
  $region63: #{transformer_forward.5} parent=0 // pred_check_branch
    %1892 = sbr.rel (0) target = $region65
  $region64: #{transformer_forward.5} parent=0 // pred_region
    _
  $region65: #{transformer_forward.5} parent=0 // pred_fallthru
    _

// kernel: transformer_forward.8
$region0: #{transformer_forward.8}
  #allocation0 [shape = 'u32[]', space=smem, size = 0x4, offset = 0x4, fixed_abs, tag = 'smem constant byte address 0x4 - core index']
  #allocation1 [shape = 'u32[144,128]{1,0:T(1,128)}', space=vmem, size = 0x12000, scoped, tag = 'internal scratch']
  %s0 = inlined_call_operand.vmem [shape: f32[16,32], index: 0, kind: input, shape index: {}]
  %s1 = inlined_call_operand.vmem [shape: f32[16,32], index: 1, kind: input, shape index: {}]
  %s2 = inlined_call_operand.vmem [shape: f32[2,8,8], index: 2, kind: input, shape index: {}]
  %s3 = inlined_call_operand.vmem [shape: f32[2,8,8], index: 3, kind: input, shape index: {}]
  %s4 = inlined_call_operand.vmem [shape: f32[32,96], index: 4, kind: input, shape index: {}]
  %s5 = inlined_call_operand.vmem [shape: f32[1,96], index: 5, kind: input, shape index: {}]
  %s6 = inlined_call_operand.vmem [shape: f32[32,32], index: 6, kind: input, shape index: {}]
  %s7 = inlined_call_operand.vmem [shape: f32[1,32], index: 7, kind: input, shape index: {}]
  %s8 = inlined_call_operand.vmem [shape: f32[1,32], index: 8, kind: input, shape index: {}]
  %s9 = inlined_call_operand.vmem [shape: f32[1,32], index: 9, kind: input, shape index: {}]
  %s10 = inlined_call_operand.vmem [shape: f32[32,32], index: 10, kind: input, shape index: {}]
  %s11 = inlined_call_operand.vmem [shape: f32[1,32], index: 11, kind: input, shape index: {}]
  %s12 = inlined_call_operand.vmem [shape: f32[32,64], index: 12, kind: input, shape index: {}]
  %s13 = inlined_call_operand.vmem [shape: f32[1,64], index: 13, kind: input, shape index: {}]
  %s14 = inlined_call_operand.vmem [shape: f32[32,32], index: 14, kind: input, shape index: {}]
  %s15 = inlined_call_operand.vmem [shape: f32[1,32], index: 15, kind: input, shape index: {}]
  %s16 = inlined_call_operand.vmem [shape: f32[1,32], index: 16, kind: input, shape index: {}]
  %s17 = inlined_call_operand.vmem [shape: f32[1,32], index: 17, kind: input, shape index: {}]
  %s18 = inlined_call_operand.vmem [shape: f32[32,64], index: 18, kind: input, shape index: {}]
  %s19 = inlined_call_operand.vmem [shape: f32[1,64], index: 19, kind: input, shape index: {}]
  %s20 = inlined_call_operand.vmem [shape: f32[64,32], index: 20, kind: input, shape index: {}]
  %s21 = inlined_call_operand.vmem [shape: f32[1,32], index: 21, kind: input, shape index: {}]
  %s22 = inlined_call_operand.vmem [shape: f32[1,32], index: 22, kind: input, shape index: {}]
  %s23 = inlined_call_operand.hbm [shape: f32[1,32], index: 23, kind: input, shape index: {}]
  %s24 = inlined_call_operand.vmem [shape: f32[16,32], index: 24, kind: output, shape index: {}]
  %s25 = sld [smem:[#allocation0]]
  $region110: #{transformer_forward.8} parent=0
    _
  %s27 = ssub.s32 1, %s25
  %s28 = scalar_select 0, %s27, %s25
  $region1: #{transformer_forward.8} parent=0
    #allocation2 [shape = 'u8[512]{0}', space=vmem, size = 0x400, scoped, tag = 'input window, operand 23, single buffered']
    #allocation3 [shape = 's32[1]{0}', space=sflag, size = 0x4, scoped, tag = 'scoped memory for transformer_forward.8']
    %29 = vsyncpa [#allocation3], 0
    // Predicated region
    $region2: #{transformer_forward.8} parent=1 // pred_check
      _
    $region3: #{transformer_forward.8} parent=1 // pred_check_branch
      %31 = sbr.rel (0) target = $region5
    $region4: #{transformer_forward.8} parent=1 // pred_region
      _
    $region5: #{transformer_forward.8} parent=1 // pred_fallthru
      _
    // Predicated region
    $region6: #{transformer_forward.8} parent=1 // pred_check
      _
    $region7: #{transformer_forward.8} parent=1 // pred_check_branch
      %33 = sbr.rel (0) target = $region9
    $region8: #{transformer_forward.8} parent=1 // pred_region
      _
    $region9: #{transformer_forward.8} parent=1 // pred_fallthru
      _
    // Predicated region
    $region10: #{transformer_forward.8} parent=1 // pred_check
      _
    $region11: #{transformer_forward.8} parent=1 // pred_check_branch
      %35 = sbr.rel (0) target = $region13
    $region12: #{transformer_forward.8} parent=1 // pred_region
      _
    $region13: #{transformer_forward.8} parent=1 // pred_fallthru
      _
    // Predicated region
    $region14: #{transformer_forward.8} parent=1 // pred_check
      _
    $region15: #{transformer_forward.8} parent=1 // pred_check_branch
      %37 = sbr.rel (0) target = $region17
    $region16: #{transformer_forward.8} parent=1 // pred_region
      _
    $region17: #{transformer_forward.8} parent=1 // pred_fallthru
      _
    // Predicated region
    $region18: #{transformer_forward.8} parent=1 // pred_check
      _
    $region19: #{transformer_forward.8} parent=1 // pred_check_branch
      %39 = sbr.rel (0) target = $region21
    $region20: #{transformer_forward.8} parent=1 // pred_region
      _
    $region21: #{transformer_forward.8} parent=1 // pred_fallthru
      _
    // Predicated region
    $region22: #{transformer_forward.8} parent=1 // pred_check
      _
    $region23: #{transformer_forward.8} parent=1 // pred_check_branch
      %41 = sbr.rel (0) target = $region25
    $region24: #{transformer_forward.8} parent=1 // pred_region
      _
    $region25: #{transformer_forward.8} parent=1 // pred_fallthru
      _
    // Predicated region
    $region26: #{transformer_forward.8} parent=1 // pred_check
      _
    $region27: #{transformer_forward.8} parent=1 // pred_check_branch
      %43 = sbr.rel (0) target = $region29
    $region28: #{transformer_forward.8} parent=1 // pred_region
      _
    $region29: #{transformer_forward.8} parent=1 // pred_fallthru
      _
    // Predicated region
    $region30: #{transformer_forward.8} parent=1 // pred_check
      _
    $region31: #{transformer_forward.8} parent=1 // pred_check_branch
      %45 = sbr.rel (0) target = $region33
    $region32: #{transformer_forward.8} parent=1 // pred_region
      _
    $region33: #{transformer_forward.8} parent=1 // pred_fallthru
      _
    // Predicated region
    $region34: #{transformer_forward.8} parent=1 // pred_check
      _
    $region35: #{transformer_forward.8} parent=1 // pred_check_branch
      %47 = sbr.rel (0) target = $region37
    $region36: #{transformer_forward.8} parent=1 // pred_region
      _
    $region37: #{transformer_forward.8} parent=1 // pred_fallthru
      _
    // Predicated region
    $region38: #{transformer_forward.8} parent=1 // pred_check
      _
    $region39: #{transformer_forward.8} parent=1 // pred_check_branch
      %49 = sbr.rel (0) target = $region41
    $region40: #{transformer_forward.8} parent=1 // pred_region
      _
    $region41: #{transformer_forward.8} parent=1 // pred_fallthru
      _
    // Predicated region
    $region42: #{transformer_forward.8} parent=1 // pred_check
      _
    $region43: #{transformer_forward.8} parent=1 // pred_check_branch
      %51 = sbr.rel (0) target = $region45
    $region44: #{transformer_forward.8} parent=1 // pred_region
      _
    $region45: #{transformer_forward.8} parent=1 // pred_fallthru
      _
    // Predicated region
    $region46: #{transformer_forward.8} parent=1 // pred_check
      _
    $region47: #{transformer_forward.8} parent=1 // pred_check_branch
      %53 = sbr.rel (0) target = $region49
    $region48: #{transformer_forward.8} parent=1 // pred_region
      _
    $region49: #{transformer_forward.8} parent=1 // pred_fallthru
      _
    // Predicated region
    $region50: #{transformer_forward.8} parent=1 // pred_check
      _
    $region51: #{transformer_forward.8} parent=1 // pred_check_branch
      %55 = sbr.rel (0) target = $region53
    $region52: #{transformer_forward.8} parent=1 // pred_region
      _
    $region53: #{transformer_forward.8} parent=1 // pred_fallthru
      _
    // Predicated region
    $region54: #{transformer_forward.8} parent=1 // pred_check
      _
    $region55: #{transformer_forward.8} parent=1 // pred_check_branch
      %57 = sbr.rel (0) target = $region57
    $region56: #{transformer_forward.8} parent=1 // pred_region
      _
    $region57: #{transformer_forward.8} parent=1 // pred_fallthru
      _
    // Predicated region
    $region58: #{transformer_forward.8} parent=1 // pred_check
      _
    $region59: #{transformer_forward.8} parent=1 // pred_check_branch
      %59 = sbr.rel (0) target = $region61
    $region60: #{transformer_forward.8} parent=1 // pred_region
      _
    $region61: #{transformer_forward.8} parent=1 // pred_fallthru
      _
    // Predicated region
    $region62: #{transformer_forward.8} parent=1 // pred_check
      _
    $region63: #{transformer_forward.8} parent=1 // pred_check_branch
      %61 = sbr.rel (0) target = $region65
    $region64: #{transformer_forward.8} parent=1 // pred_region
      _
    $region65: #{transformer_forward.8} parent=1 // pred_fallthru
      _
    // Predicated region
    $region66: #{transformer_forward.8} parent=1 // pred_check
      _
    $region67: #{transformer_forward.8} parent=1 // pred_check_branch
      %63 = sbr.rel (0) target = $region69
    $region68: #{transformer_forward.8} parent=1 // pred_region
      _
    $region69: #{transformer_forward.8} parent=1 // pred_fallthru
      _
    // Predicated region
    $region70: #{transformer_forward.8} parent=1 // pred_check
      _
    $region71: #{transformer_forward.8} parent=1 // pred_check_branch
      %65 = sbr.rel (0) target = $region73
    $region72: #{transformer_forward.8} parent=1 // pred_region
      _
    $region73: #{transformer_forward.8} parent=1 // pred_fallthru
      _
    // Predicated region
    $region74: #{transformer_forward.8} parent=1 // pred_check
      _
    $region75: #{transformer_forward.8} parent=1 // pred_check_branch
      %67 = sbr.rel (0) target = $region77
    $region76: #{transformer_forward.8} parent=1 // pred_region
      _
    $region77: #{transformer_forward.8} parent=1 // pred_fallthru
      _
    // Predicated region
    $region78: #{transformer_forward.8} parent=1 // pred_check
      _
    $region79: #{transformer_forward.8} parent=1 // pred_check_branch
      %69 = sbr.rel (0) target = $region81
    $region80: #{transformer_forward.8} parent=1 // pred_region
      _
    $region81: #{transformer_forward.8} parent=1 // pred_fallthru
      _
    // Predicated region
    $region82: #{transformer_forward.8} parent=1 // pred_check
      _
    $region83: #{transformer_forward.8} parent=1 // pred_check_branch
      %71 = sbr.rel (0) target = $region85
    $region84: #{transformer_forward.8} parent=1 // pred_region
      _
    $region85: #{transformer_forward.8} parent=1 // pred_fallthru
      _
    // Predicated region
    $region86: #{transformer_forward.8} parent=1 // pred_check
      _
    $region87: #{transformer_forward.8} parent=1 // pred_check_branch
      %73 = sbr.rel (0) target = $region89
    $region88: #{transformer_forward.8} parent=1 // pred_region
      _
    $region89: #{transformer_forward.8} parent=1 // pred_fallthru
      _
    // Predicated region
    $region90: #{transformer_forward.8} parent=1 // pred_check
      _
    $region91: #{transformer_forward.8} parent=1 // pred_check_branch
      %75 = sbr.rel (0) target = $region93
    $region92: #{transformer_forward.8} parent=1 // pred_region
      _
    $region93: #{transformer_forward.8} parent=1 // pred_fallthru
      _
    // Predicated region
    $region94: #{transformer_forward.8} parent=1 // pred_check
      _
    $region95: #{transformer_forward.8} parent=1 // pred_check_branch
      %77 = sbr.rel (0) target = $region97
    $region96: #{transformer_forward.8} parent=1 // pred_region
      %s79 = ssub.s32 16, 16
      %80 = vsyncadd [#allocation3], %s79
      %s82 = sshll.u32 [#allocation2], 4
      %s83 = int_to_ptr.vmem [resolvable:$true] %s82
      %85 = dma.hbm_to_vmem [thread:$0]  %s23, 16, %s83, [#allocation3]
    $region97: #{transformer_forward.8} parent=1 // pred_fallthru
      _
    // Predicated region
    $region98: #{transformer_forward.8} parent=1 // pred_check
      _
    $region99: #{transformer_forward.8} parent=1 // pred_check_branch
      %87 = sbr.rel (0) target = $region101
    $region100: #{transformer_forward.8} parent=1 // pred_region
      %88 = dma.done [#allocation3], 16
    $region101: #{transformer_forward.8} parent=1 // pred_fallthru
      _
    %v89 = vld [vmem:[%s0] sm:$0xff]
    %v90 = vld [vmem:[%s0 + $0x8] sm:$0xff]
    %v91 = vld [vmem:[%s1] sm:$0xff]
    %v92 = vld [vmem:[%s1 + $0x8] sm:$0xff]
    %v93 = vld [vmem:[%s4] sm:$0xff]
    %v94 = vld [vmem:[%s4 + $0x8] sm:$0xff]
    %v95 = vld [vmem:[%s4 + $0x10] sm:$0xff]
    %v96 = vld [vmem:[%s4 + $0x18] sm:$0xff]
    %v97 = vld [vmem:[%s5] sm:$0x1]
    %v99 = vlaneseq
    %v100 = vshrl.u32 %v99, 7
    %v101 = vsub.s32 0, %v100
    %v102 = vrot.slane %v97, %v101
    %vm104 = vcmask 261120
    %v106 = vsel %vm104, %v89, 0
    %v109 = vsel %vm104, %v90, 0
    %111 = vmatprep.subr.mxu0 0.0
    %112 = vmatpush1.msra.mxu0 %v93
    %113 = vmatprep.subr.mxu0 0.0
    %114 = vmatpush1.msra.mxu0 %v94
    %115 = vmatprep.subr.mxu0 0.0
    %116 = vmatpush1.msra.mxu0 %v95
    %117 = vmatprep.subr.mxu0 0.0
    %118 = vmatpush1.msra.mxu0 %v96
    %119 = vmatprep.subr.mxu0 0.0
    %120 = vmatpush1.msra.mxu0 0.0
    %121 = vmatprep.subr.mxu0 0.0
    %122 = vmatpush1.msra.mxu0 0.0
    %123 = vmatprep.subr.mxu0 0.0
    %124 = vmatpush1.msra.mxu0 0.0
    %125 = vmatprep.subr.mxu0 0.0
    %126 = vmatpush1.msra.mxu0 0.0
    %127 = vmatprep.subr.mxu0 0.0
    %128 = vmatpush1.msra.mxu0 0.0
    %129 = vmatprep.subr.mxu0 0.0
    %130 = vmatpush1.msra.mxu0 0.0
    %131 = vmatprep.subr.mxu0 0.0
    %132 = vmatpush1.msra.mxu0 0.0
    %133 = vmatprep.subr.mxu0 0.0
    %134 = vmatpush1.msra.mxu0 0.0
    %135 = vmatprep.subr.mxu0 0.0
    %136 = vmatpush1.msra.mxu0 0.0
    %137 = vmatprep.subr.mxu0 0.0
    %138 = vmatpush1.msra.mxu0 0.0
    %139 = vmatprep.subr.mxu0 0.0
    %140 = vmatpush1.msra.mxu0 0.0
    %141 = vmatprep.subr.mxu0 0.0
    %142 = vmatpush1.msra.mxu0 0.0
    %143 = vmatprep.subr.mxu0 0.0
    %144 = vmatpush1.msra.mxu0 0.0
    %145 = vmatprep.subr.mxu0 0.0
    %146 = vmatpush1.msra.mxu0 0.0
    %147 = vmatprep.subr.mxu0 0.0
    %148 = vmatpush1.msra.mxu0 0.0
    %149 = vmatprep.subr.mxu0 0.0
    %150 = vmatpush1.msra.mxu0 0.0
    %151 = vmatprep.subr.mxu0 0.0
    %152 = vmatpush1.msra.mxu0 0.0
    %153 = vmatprep.subr.mxu0 0.0
    %154 = vmatpush1.msra.mxu0 0.0
    %155 = vmatprep.subr.mxu0 0.0
    %156 = vmatpush1.msra.mxu0 0.0
    %157 = vmatprep.subr.mxu0 0.0
    %158 = vmatpush1.msra.mxu0 0.0
    %159 = vmatprep.subr.mxu0 0.0
    %160 = vmatpush1.msra.mxu0 0.0
    %161 = vmatprep.subr.mxu0 0.0
    %162 = vmatpush1.msra.mxu0 0.0
    %163 = vmatprep.subr.mxu0 0.0
    %164 = vmatpush1.msra.mxu0 0.0
    %165 = vmatprep.subr.mxu0 0.0
    %166 = vmatpush1.msra.mxu0 0.0
    %167 = vmatprep.subr.mxu0 0.0
    %168 = vmatpush1.msra.mxu0 0.0
    %169 = vmatprep.subr.mxu0 0.0
    %170 = vmatpush1.msra.mxu0 0.0
    %171 = vmatprep.subr.mxu0 0.0
    %172 = vmatpush1.msra.mxu0 0.0
    %173 = vmatprep.subr.mxu0 0.0
    %174 = vmatpush1.msra.mxu0 0.0
    %175 = vmatprep.mubr.f32.mxu0 0.0
    %176 = vmatmul.mubr.f32.gmra.mrb[0].mxu0 %v106
    %v177 = vpop.f32.mrb[0].mxu0
    %v178 = vadd.f32 %v102, %v177
    %v179 = vpop.f32.mrb[0].mxu0
    %180 = vmatprep.mubr.f32.mxu0 0.0
    %181 = vmatmul.mubr.f32.gmra.mrb[0].mxu0 %v109
    %v182 = vpop.f32.mrb[0].mxu0
    %v183 = vadd.f32 %v102, %v182
    %v184 = vpop.f32.mrb[0].mxu0
    %185 = vdwg.mxu0
    %v186 = vld [vmem:[%s2] sm:$0xff]
    %v187 = vld [vmem:[%s2 + $0x8] sm:$0xff]
    %189 = vrot.lane.b32.xlu0 %v178, 96
    %v190 = vpop.permute.xlu0 %189
    %vm191 = vcmask 64512
    %v192 = vsel %vm191, %v178, 0
    %v194 = vsel %vm191, %v190, 0
    %196 = vmatprep.subr.mxu0 0.0
    %197 = vmatpush1.xpose.msra.mxu0 %v194
    %198 = vmatprep.subr.mxu0 0.0
    %199 = vmatpush1.xpose.msra.mxu0 0.0
    %200 = vmatprep.subr.mxu0 0.0
    %201 = vmatpush1.xpose.msra.mxu0 0.0
    %202 = vmatprep.subr.mxu0 0.0
    %203 = vmatpush1.xpose.msra.mxu0 0.0
    %204 = vmatprep.subr.mxu0 0.0
    %205 = vmatpush1.xpose.msra.mxu0 0.0
    %206 = vmatprep.subr.mxu0 0.0
    %207 = vmatpush1.xpose.msra.mxu0 0.0
    %208 = vmatprep.subr.mxu0 0.0
    %209 = vmatpush1.xpose.msra.mxu0 0.0
    %210 = vmatprep.subr.mxu0 0.0
    %211 = vmatpush1.xpose.msra.mxu0 0.0
    %212 = vmatprep.subr.mxu0 0.0
    %213 = vmatpush1.xpose.msra.mxu0 0.0
    %214 = vmatprep.subr.mxu0 0.0
    %215 = vmatpush1.xpose.msra.mxu0 0.0
    %216 = vmatprep.subr.mxu0 0.0
    %217 = vmatpush1.xpose.msra.mxu0 0.0
    %218 = vmatprep.subr.mxu0 0.0
    %219 = vmatpush1.xpose.msra.mxu0 0.0
    %220 = vmatprep.subr.mxu0 0.0
    %221 = vmatpush1.xpose.msra.mxu0 0.0
    %222 = vmatprep.subr.mxu0 0.0
    %223 = vmatpush1.xpose.msra.mxu0 0.0
    %224 = vmatprep.subr.mxu0 0.0
    %225 = vmatpush1.xpose.msra.mxu0 0.0
    %226 = vmatprep.subr.mxu0 0.0
    %227 = vmatpush1.xpose.msra.mxu0 0.0
    %228 = vmatprep.subr.mxu0 0.0
    %229 = vmatpush1.xpose.msra.mxu0 0.0
    %230 = vmatprep.subr.mxu0 0.0
    %231 = vmatpush1.xpose.msra.mxu0 0.0
    %232 = vmatprep.subr.mxu0 0.0
    %233 = vmatpush1.xpose.msra.mxu0 0.0
    %234 = vmatprep.subr.mxu0 0.0
    %235 = vmatpush1.xpose.msra.mxu0 0.0
    %236 = vmatprep.subr.mxu0 0.0
    %237 = vmatpush1.xpose.msra.mxu0 0.0
    %238 = vmatprep.subr.mxu0 0.0
    %239 = vmatpush1.xpose.msra.mxu0 0.0
    %240 = vmatprep.subr.mxu0 0.0
    %241 = vmatpush1.xpose.msra.mxu0 0.0
    %242 = vmatprep.subr.mxu0 0.0
    %243 = vmatpush1.xpose.msra.mxu0 0.0
    %244 = vmatprep.subr.mxu0 0.0
    %245 = vmatpush1.xpose.msra.mxu0 0.0
    %246 = vmatprep.subr.mxu0 0.0
    %247 = vmatpush1.xpose.msra.mxu0 0.0
    %248 = vmatprep.subr.mxu0 0.0
    %249 = vmatpush1.xpose.msra.mxu0 0.0
    %250 = vmatprep.subr.mxu0 0.0
    %251 = vmatpush1.xpose.msra.mxu0 0.0
    %252 = vmatprep.subr.mxu0 0.0
    %253 = vmatpush1.xpose.msra.mxu0 0.0
    %254 = vmatprep.subr.mxu0 0.0
    %255 = vmatpush1.xpose.msra.mxu0 0.0
    %256 = vmatprep.subr.mxu0 0.0
    %257 = vmatpush1.xpose.msra.mxu0 0.0
    %258 = vmatprep.subr.mxu0 0.0
    %259 = vmatpush1.xpose.msra.mxu0 0.0
    %260 = vmatprep.mubr.f32.mxu0 0.0
    %261 = vmatmul.mubr.f32.gmra.mrb[0].mxu0 %v192
    %v262 = vpop.f32.mrb[0].mxu0
    %v263 = vadd.f32 0.0, %v262
    %v264 = vpop.f32.mrb[0].mxu0
    %265 = vdwg.mxu0
    %v266 = vmul.f32 %v263, 0.35355338
    %v267 = vadd.f32 %v266, %v186
    %v268 = vsel %vm191, %v267, -inf
    %269 = vmax.xlane.f32.xlu0 %v268
    %v270 = vpop.xlane.xlu0 %269
    %v271 = vsub.f32 %v267, %v270
    %v272 = vmul.f32 %v271, 1.442695
    %v273 = vpow.pop %v272
    %v274 = vsel %vm191, %v273, 0.0
    %275 = vadd.xlane.f32.xlu0 %v274
    %v276 = vpop.xlane.xlu0 %275
    %v277 = vrcp.pop %v276
    %v278 = vmul.f32 %v273, %v277
    %279 = vrot.lane.b32.xlu0 %v178, 64
    %v280 = vpop.permute.xlu0 %279
    %v283 = vsel %vm191, %v278, 0
    %285 = vmatprep.subr.mxu0 0.0
    %286 = vmatpush1.msra.mxu0 %v280
    %287 = vmatprep.subr.mxu0 0.0
    %288 = vmatpush1.msra.mxu0 0.0
    %289 = vmatprep.subr.mxu0 0.0
    %290 = vmatpush1.msra.mxu0 0.0
    %291 = vmatprep.subr.mxu0 0.0
    %292 = vmatpush1.msra.mxu0 0.0
    %293 = vmatprep.subr.mxu0 0.0
    %294 = vmatpush1.msra.mxu0 0.0
    %295 = vmatprep.subr.mxu0 0.0
    %296 = vmatpush1.msra.mxu0 0.0
    %297 = vmatprep.subr.mxu0 0.0
    %298 = vmatpush1.msra.mxu0 0.0
    %299 = vmatprep.subr.mxu0 0.0
    %300 = vmatpush1.msra.mxu0 0.0
    %301 = vmatprep.subr.mxu0 0.0
    %302 = vmatpush1.msra.mxu0 0.0
    %303 = vmatprep.subr.mxu0 0.0
    %304 = vmatpush1.msra.mxu0 0.0
    %305 = vmatprep.subr.mxu0 0.0
    %306 = vmatpush1.msra.mxu0 0.0
    %307 = vmatprep.subr.mxu0 0.0
    %308 = vmatpush1.msra.mxu0 0.0
    %309 = vmatprep.subr.mxu0 0.0
    %310 = vmatpush1.msra.mxu0 0.0
    %311 = vmatprep.subr.mxu0 0.0
    %312 = vmatpush1.msra.mxu0 0.0
    %313 = vmatprep.subr.mxu0 0.0
    %314 = vmatpush1.msra.mxu0 0.0
    %315 = vmatprep.subr.mxu0 0.0
    %316 = vmatpush1.msra.mxu0 0.0
    %317 = vmatprep.subr.mxu0 0.0
    %318 = vmatpush1.msra.mxu0 0.0
    %319 = vmatprep.subr.mxu0 0.0
    %320 = vmatpush1.msra.mxu0 0.0
    %321 = vmatprep.subr.mxu0 0.0
    %322 = vmatpush1.msra.mxu0 0.0
    %323 = vmatprep.subr.mxu0 0.0
    %324 = vmatpush1.msra.mxu0 0.0
    %325 = vmatprep.subr.mxu0 0.0
    %326 = vmatpush1.msra.mxu0 0.0
    %327 = vmatprep.subr.mxu0 0.0
    %328 = vmatpush1.msra.mxu0 0.0
    %329 = vmatprep.subr.mxu0 0.0
    %330 = vmatpush1.msra.mxu0 0.0
    %331 = vmatprep.subr.mxu0 0.0
    %332 = vmatpush1.msra.mxu0 0.0
    %333 = vmatprep.subr.mxu0 0.0
    %334 = vmatpush1.msra.mxu0 0.0
    %335 = vmatprep.subr.mxu0 0.0
    %336 = vmatpush1.msra.mxu0 0.0
    %337 = vmatprep.subr.mxu0 0.0
    %338 = vmatpush1.msra.mxu0 0.0
    %339 = vmatprep.subr.mxu0 0.0
    %340 = vmatpush1.msra.mxu0 0.0
    %341 = vmatprep.subr.mxu0 0.0
    %342 = vmatpush1.msra.mxu0 0.0
    %343 = vmatprep.subr.mxu0 0.0
    %344 = vmatpush1.msra.mxu0 0.0
    %345 = vmatprep.subr.mxu0 0.0
    %346 = vmatpush1.msra.mxu0 0.0
    %347 = vmatprep.subr.mxu0 0.0
    %348 = vmatpush1.msra.mxu0 0.0
    %349 = vmatprep.mubr.f32.mxu0 0.0
    %350 = vmatmul.mubr.f32.gmra.mrb[0].mxu0 %v283
    %v351 = vpop.f32.mrb[0].mxu0
    %v352 = vadd.f32 0.0, %v351
    %v353 = vpop.f32.mrb[0].mxu0
    %354 = vdwg.mxu0
    %355 = vrot.lane.b32.xlu0 %v178, 120
    %v356 = vpop.permute.xlu0 %355
    %357 = vrot.lane.b32.xlu0 %v178, 88
    %v358 = vpop.permute.xlu0 %357
    %v359 = vsel %vm191, %v356, 0
    %v361 = vsel %vm191, %v358, 0
    %363 = vmatprep.subr.mxu0 0.0
    %364 = vmatpush1.xpose.msra.mxu0 %v361
    %365 = vmatprep.subr.mxu0 0.0
    %366 = vmatpush1.xpose.msra.mxu0 0.0
    %367 = vmatprep.subr.mxu0 0.0
    %368 = vmatpush1.xpose.msra.mxu0 0.0
    %369 = vmatprep.subr.mxu0 0.0
    %370 = vmatpush1.xpose.msra.mxu0 0.0
    %371 = vmatprep.subr.mxu0 0.0
    %372 = vmatpush1.xpose.msra.mxu0 0.0
    %373 = vmatprep.subr.mxu0 0.0
    %374 = vmatpush1.xpose.msra.mxu0 0.0
    %375 = vmatprep.subr.mxu0 0.0
    %376 = vmatpush1.xpose.msra.mxu0 0.0
    %377 = vmatprep.subr.mxu0 0.0
    %378 = vmatpush1.xpose.msra.mxu0 0.0
    %379 = vmatprep.subr.mxu0 0.0
    %380 = vmatpush1.xpose.msra.mxu0 0.0
    %381 = vmatprep.subr.mxu0 0.0
    %382 = vmatpush1.xpose.msra.mxu0 0.0
    %383 = vmatprep.subr.mxu0 0.0
    %384 = vmatpush1.xpose.msra.mxu0 0.0
    %385 = vmatprep.subr.mxu0 0.0
    %386 = vmatpush1.xpose.msra.mxu0 0.0
    %387 = vmatprep.subr.mxu0 0.0
    %388 = vmatpush1.xpose.msra.mxu0 0.0
    %389 = vmatprep.subr.mxu0 0.0
    %390 = vmatpush1.xpose.msra.mxu0 0.0
    %391 = vmatprep.subr.mxu0 0.0
    %392 = vmatpush1.xpose.msra.mxu0 0.0
    %393 = vmatprep.subr.mxu0 0.0
    %394 = vmatpush1.xpose.msra.mxu0 0.0
    %395 = vmatprep.subr.mxu0 0.0
    %396 = vmatpush1.xpose.msra.mxu0 0.0
    %397 = vmatprep.subr.mxu0 0.0
    %398 = vmatpush1.xpose.msra.mxu0 0.0
    %399 = vmatprep.subr.mxu0 0.0
    %400 = vmatpush1.xpose.msra.mxu0 0.0
    %401 = vmatprep.subr.mxu0 0.0
    %402 = vmatpush1.xpose.msra.mxu0 0.0
    %403 = vmatprep.subr.mxu0 0.0
    %404 = vmatpush1.xpose.msra.mxu0 0.0
    %405 = vmatprep.subr.mxu0 0.0
    %406 = vmatpush1.xpose.msra.mxu0 0.0
    %407 = vmatprep.subr.mxu0 0.0
    %408 = vmatpush1.xpose.msra.mxu0 0.0
    %409 = vmatprep.subr.mxu0 0.0
    %410 = vmatpush1.xpose.msra.mxu0 0.0
    %411 = vmatprep.subr.mxu0 0.0
    %412 = vmatpush1.xpose.msra.mxu0 0.0
    %413 = vmatprep.subr.mxu0 0.0
    %414 = vmatpush1.xpose.msra.mxu0 0.0
    %415 = vmatprep.subr.mxu0 0.0
    %416 = vmatpush1.xpose.msra.mxu0 0.0
    %417 = vmatprep.subr.mxu0 0.0
    %418 = vmatpush1.xpose.msra.mxu0 0.0
    %419 = vmatprep.subr.mxu0 0.0
    %420 = vmatpush1.xpose.msra.mxu0 0.0
    %421 = vmatprep.subr.mxu0 0.0
    %422 = vmatpush1.xpose.msra.mxu0 0.0
    %423 = vmatprep.subr.mxu0 0.0
    %424 = vmatpush1.xpose.msra.mxu0 0.0
    %425 = vmatprep.subr.mxu0 0.0
    %426 = vmatpush1.xpose.msra.mxu0 0.0
    %427 = vmatprep.mubr.f32.mxu0 0.0
    %428 = vmatmul.mubr.f32.gmra.mrb[0].mxu0 %v359
    %v429 = vpop.f32.mrb[0].mxu0
    %v430 = vadd.f32 0.0, %v429
    %v431 = vpop.f32.mrb[0].mxu0
    %432 = vdwg.mxu0
    %v433 = vmul.f32 %v430, 0.35355338
    %v434 = vadd.f32 %v433, %v186
    %v435 = vsel %vm191, %v434, -inf
    %436 = vmax.xlane.f32.xlu0 %v435
    %v437 = vpop.xlane.xlu0 %436
    %v438 = vsub.f32 %v434, %v437
    %v439 = vmul.f32 %v438, 1.442695
    %v440 = vpow.pop %v439
    %v441 = vsel %vm191, %v440, 0.0
    %442 = vadd.xlane.f32.xlu0 %v441
    %v443 = vpop.xlane.xlu0 %442
    %v444 = vrcp.pop %v443
    %v445 = vmul.f32 %v440, %v444
    %446 = vrot.lane.b32.xlu0 %v178, 56
    %v447 = vpop.permute.xlu0 %446
    %v450 = vsel %vm191, %v445, 0
    %452 = vmatprep.subr.mxu0 0.0
    %453 = vmatpush1.msra.mxu0 %v447
    %454 = vmatprep.subr.mxu0 0.0
    %455 = vmatpush1.msra.mxu0 0.0
    %456 = vmatprep.subr.mxu0 0.0
    %457 = vmatpush1.msra.mxu0 0.0
    %458 = vmatprep.subr.mxu0 0.0
    %459 = vmatpush1.msra.mxu0 0.0
    %460 = vmatprep.subr.mxu0 0.0
    %461 = vmatpush1.msra.mxu0 0.0
    %462 = vmatprep.subr.mxu0 0.0
    %463 = vmatpush1.msra.mxu0 0.0
    %464 = vmatprep.subr.mxu0 0.0
    %465 = vmatpush1.msra.mxu0 0.0
    %466 = vmatprep.subr.mxu0 0.0
    %467 = vmatpush1.msra.mxu0 0.0
    %468 = vmatprep.subr.mxu0 0.0
    %469 = vmatpush1.msra.mxu0 0.0
    %470 = vmatprep.subr.mxu0 0.0
    %471 = vmatpush1.msra.mxu0 0.0
    %472 = vmatprep.subr.mxu0 0.0
    %473 = vmatpush1.msra.mxu0 0.0
    %474 = vmatprep.subr.mxu0 0.0
    %475 = vmatpush1.msra.mxu0 0.0
    %476 = vmatprep.subr.mxu0 0.0
    %477 = vmatpush1.msra.mxu0 0.0
    %478 = vmatprep.subr.mxu0 0.0
    %479 = vmatpush1.msra.mxu0 0.0
    %480 = vmatprep.subr.mxu0 0.0
    %481 = vmatpush1.msra.mxu0 0.0
    %482 = vmatprep.subr.mxu0 0.0
    %483 = vmatpush1.msra.mxu0 0.0
    %484 = vmatprep.subr.mxu0 0.0
    %485 = vmatpush1.msra.mxu0 0.0
    %486 = vmatprep.subr.mxu0 0.0
    %487 = vmatpush1.msra.mxu0 0.0
    %488 = vmatprep.subr.mxu0 0.0
    %489 = vmatpush1.msra.mxu0 0.0
    %490 = vmatprep.subr.mxu0 0.0
    %491 = vmatpush1.msra.mxu0 0.0
    %492 = vmatprep.subr.mxu0 0.0
    %493 = vmatpush1.msra.mxu0 0.0
    %494 = vmatprep.subr.mxu0 0.0
    %495 = vmatpush1.msra.mxu0 0.0
    %496 = vmatprep.subr.mxu0 0.0
    %497 = vmatpush1.msra.mxu0 0.0
    %498 = vmatprep.subr.mxu0 0.0
    %499 = vmatpush1.msra.mxu0 0.0
    %500 = vmatprep.subr.mxu0 0.0
    %501 = vmatpush1.msra.mxu0 0.0
    %502 = vmatprep.subr.mxu0 0.0
    %503 = vmatpush1.msra.mxu0 0.0
    %504 = vmatprep.subr.mxu0 0.0
    %505 = vmatpush1.msra.mxu0 0.0
    %506 = vmatprep.subr.mxu0 0.0
    %507 = vmatpush1.msra.mxu0 0.0
    %508 = vmatprep.subr.mxu0 0.0
    %509 = vmatpush1.msra.mxu0 0.0
    %510 = vmatprep.subr.mxu0 0.0
    %511 = vmatpush1.msra.mxu0 0.0
    %512 = vmatprep.subr.mxu0 0.0
    %513 = vmatpush1.msra.mxu0 0.0
    %514 = vmatprep.subr.mxu0 0.0
    %515 = vmatpush1.msra.mxu0 0.0
    %516 = vmatprep.mubr.f32.mxu0 0.0
    %517 = vmatmul.mubr.f32.gmra.mrb[0].mxu0 %v450
    %v518 = vpop.f32.mrb[0].mxu0
    %v519 = vadd.f32 0.0, %v518
    %v520 = vpop.f32.mrb[0].mxu0
    %521 = vdwg.mxu0
    %522 = vrot.lane.b32.xlu0 %v178, 112
    %v523 = vpop.permute.xlu0 %522
    %524 = vrot.lane.b32.xlu0 %v178, 80
    %v525 = vpop.permute.xlu0 %524
    %v526 = vsel %vm191, %v523, 0
    %v528 = vsel %vm191, %v525, 0
    %530 = vmatprep.subr.mxu0 0.0
    %531 = vmatpush1.xpose.msra.mxu0 %v528
    %532 = vmatprep.subr.mxu0 0.0
    %533 = vmatpush1.xpose.msra.mxu0 0.0
    %534 = vmatprep.subr.mxu0 0.0
    %535 = vmatpush1.xpose.msra.mxu0 0.0
    %536 = vmatprep.subr.mxu0 0.0
    %537 = vmatpush1.xpose.msra.mxu0 0.0
    %538 = vmatprep.subr.mxu0 0.0
    %539 = vmatpush1.xpose.msra.mxu0 0.0
    %540 = vmatprep.subr.mxu0 0.0
    %541 = vmatpush1.xpose.msra.mxu0 0.0
    %542 = vmatprep.subr.mxu0 0.0
    %543 = vmatpush1.xpose.msra.mxu0 0.0
    %544 = vmatprep.subr.mxu0 0.0
    %545 = vmatpush1.xpose.msra.mxu0 0.0
    %546 = vmatprep.subr.mxu0 0.0
    %547 = vmatpush1.xpose.msra.mxu0 0.0
    %548 = vmatprep.subr.mxu0 0.0
    %549 = vmatpush1.xpose.msra.mxu0 0.0
    %550 = vmatprep.subr.mxu0 0.0
    %551 = vmatpush1.xpose.msra.mxu0 0.0
    %552 = vmatprep.subr.mxu0 0.0
    %553 = vmatpush1.xpose.msra.mxu0 0.0
    %554 = vmatprep.subr.mxu0 0.0
    %555 = vmatpush1.xpose.msra.mxu0 0.0
    %556 = vmatprep.subr.mxu0 0.0
    %557 = vmatpush1.xpose.msra.mxu0 0.0
    %558 = vmatprep.subr.mxu0 0.0
    %559 = vmatpush1.xpose.msra.mxu0 0.0
    %560 = vmatprep.subr.mxu0 0.0
    %561 = vmatpush1.xpose.msra.mxu0 0.0
    %562 = vmatprep.subr.mxu0 0.0
    %563 = vmatpush1.xpose.msra.mxu0 0.0
    %564 = vmatprep.subr.mxu0 0.0
    %565 = vmatpush1.xpose.msra.mxu0 0.0
    %566 = vmatprep.subr.mxu0 0.0
    %567 = vmatpush1.xpose.msra.mxu0 0.0
    %568 = vmatprep.subr.mxu0 0.0
    %569 = vmatpush1.xpose.msra.mxu0 0.0
    %570 = vmatprep.subr.mxu0 0.0
    %571 = vmatpush1.xpose.msra.mxu0 0.0
    %572 = vmatprep.subr.mxu0 0.0
    %573 = vmatpush1.xpose.msra.mxu0 0.0
    %574 = vmatprep.subr.mxu0 0.0
    %575 = vmatpush1.xpose.msra.mxu0 0.0
    %576 = vmatprep.subr.mxu0 0.0
    %577 = vmatpush1.xpose.msra.mxu0 0.0
    %578 = vmatprep.subr.mxu0 0.0
    %579 = vmatpush1.xpose.msra.mxu0 0.0
    %580 = vmatprep.subr.mxu0 0.0
    %581 = vmatpush1.xpose.msra.mxu0 0.0
    %582 = vmatprep.subr.mxu0 0.0
    %583 = vmatpush1.xpose.msra.mxu0 0.0
    %584 = vmatprep.subr.mxu0 0.0
    %585 = vmatpush1.xpose.msra.mxu0 0.0
    %586 = vmatprep.subr.mxu0 0.0
    %587 = vmatpush1.xpose.msra.mxu0 0.0
    %588 = vmatprep.subr.mxu0 0.0
    %589 = vmatpush1.xpose.msra.mxu0 0.0
    %590 = vmatprep.subr.mxu0 0.0
    %591 = vmatpush1.xpose.msra.mxu0 0.0
    %592 = vmatprep.subr.mxu0 0.0
    %593 = vmatpush1.xpose.msra.mxu0 0.0
    %594 = vmatprep.mubr.f32.mxu0 0.0
    %595 = vmatmul.mubr.f32.gmra.mrb[0].mxu0 %v526
    %v596 = vpop.f32.mrb[0].mxu0
    %v597 = vadd.f32 0.0, %v596
    %v598 = vpop.f32.mrb[0].mxu0
    %599 = vdwg.mxu0
    %v600 = vmul.f32 %v597, 0.35355338
    %v601 = vadd.f32 %v600, %v186
    %v602 = vsel %vm191, %v601, -inf
    %603 = vmax.xlane.f32.xlu0 %v602
    %v604 = vpop.xlane.xlu0 %603
    %v605 = vsub.f32 %v601, %v604
    %v606 = vmul.f32 %v605, 1.442695
    %v607 = vpow.pop %v606
    %v608 = vsel %vm191, %v607, 0.0
    %609 = vadd.xlane.f32.xlu0 %v608
    %v610 = vpop.xlane.xlu0 %609
    %v611 = vrcp.pop %v610
    %v612 = vmul.f32 %v607, %v611
    %613 = vrot.lane.b32.xlu0 %v178, 48
    %v614 = vpop.permute.xlu0 %613
    %v617 = vsel %vm191, %v612, 0
    %619 = vmatprep.subr.mxu0 0.0
    %620 = vmatpush1.msra.mxu0 %v614
    %621 = vmatprep.subr.mxu0 0.0
    %622 = vmatpush1.msra.mxu0 0.0
    %623 = vmatprep.subr.mxu0 0.0
    %624 = vmatpush1.msra.mxu0 0.0
    %625 = vmatprep.subr.mxu0 0.0
    %626 = vmatpush1.msra.mxu0 0.0
    %627 = vmatprep.subr.mxu0 0.0
    %628 = vmatpush1.msra.mxu0 0.0
    %629 = vmatprep.subr.mxu0 0.0
    %630 = vmatpush1.msra.mxu0 0.0
    %631 = vmatprep.subr.mxu0 0.0
    %632 = vmatpush1.msra.mxu0 0.0
    %633 = vmatprep.subr.mxu0 0.0
    %634 = vmatpush1.msra.mxu0 0.0
    %635 = vmatprep.subr.mxu0 0.0
    %636 = vmatpush1.msra.mxu0 0.0
    %637 = vmatprep.subr.mxu0 0.0
    %638 = vmatpush1.msra.mxu0 0.0
    %639 = vmatprep.subr.mxu0 0.0
    %640 = vmatpush1.msra.mxu0 0.0
    %641 = vmatprep.subr.mxu0 0.0
    %642 = vmatpush1.msra.mxu0 0.0
    %643 = vmatprep.subr.mxu0 0.0
    %644 = vmatpush1.msra.mxu0 0.0
    %645 = vmatprep.subr.mxu0 0.0
    %646 = vmatpush1.msra.mxu0 0.0
    %647 = vmatprep.subr.mxu0 0.0
    %648 = vmatpush1.msra.mxu0 0.0
    %649 = vmatprep.subr.mxu0 0.0
    %650 = vmatpush1.msra.mxu0 0.0
    %651 = vmatprep.subr.mxu0 0.0
    %652 = vmatpush1.msra.mxu0 0.0
    %653 = vmatprep.subr.mxu0 0.0
    %654 = vmatpush1.msra.mxu0 0.0
    %655 = vmatprep.subr.mxu0 0.0
    %656 = vmatpush1.msra.mxu0 0.0
    %657 = vmatprep.subr.mxu0 0.0
    %658 = vmatpush1.msra.mxu0 0.0
    %659 = vmatprep.subr.mxu0 0.0
    %660 = vmatpush1.msra.mxu0 0.0
    %661 = vmatprep.subr.mxu0 0.0
    %662 = vmatpush1.msra.mxu0 0.0
    %663 = vmatprep.subr.mxu0 0.0
    %664 = vmatpush1.msra.mxu0 0.0
    %665 = vmatprep.subr.mxu0 0.0
    %666 = vmatpush1.msra.mxu0 0.0
    %667 = vmatprep.subr.mxu0 0.0
    %668 = vmatpush1.msra.mxu0 0.0
    %669 = vmatprep.subr.mxu0 0.0
    %670 = vmatpush1.msra.mxu0 0.0
    %671 = vmatprep.subr.mxu0 0.0
    %672 = vmatpush1.msra.mxu0 0.0
    %673 = vmatprep.subr.mxu0 0.0
    %674 = vmatpush1.msra.mxu0 0.0
    %675 = vmatprep.subr.mxu0 0.0
    %676 = vmatpush1.msra.mxu0 0.0
    %677 = vmatprep.subr.mxu0 0.0
    %678 = vmatpush1.msra.mxu0 0.0
    %679 = vmatprep.subr.mxu0 0.0
    %680 = vmatpush1.msra.mxu0 0.0
    %681 = vmatprep.subr.mxu0 0.0
    %682 = vmatpush1.msra.mxu0 0.0
    %683 = vmatprep.mubr.f32.mxu0 0.0
    %684 = vmatmul.mubr.f32.gmra.mrb[0].mxu0 %v617
    %v685 = vpop.f32.mrb[0].mxu0
    %v686 = vadd.f32 0.0, %v685
    %v687 = vpop.f32.mrb[0].mxu0
    %688 = vdwg.mxu0
    %689 = vrot.lane.b32.xlu0 %v178, 104
    %v690 = vpop.permute.xlu0 %689
    %691 = vrot.lane.b32.xlu0 %v178, 72
    %v692 = vpop.permute.xlu0 %691
    %v693 = vsel %vm191, %v690, 0
    %v695 = vsel %vm191, %v692, 0
    %697 = vmatprep.subr.mxu0 0.0
    %698 = vmatpush1.xpose.msra.mxu0 %v695
    %699 = vmatprep.subr.mxu0 0.0
    %700 = vmatpush1.xpose.msra.mxu0 0.0
    %701 = vmatprep.subr.mxu0 0.0
    %702 = vmatpush1.xpose.msra.mxu0 0.0
    %703 = vmatprep.subr.mxu0 0.0
    %704 = vmatpush1.xpose.msra.mxu0 0.0
    %705 = vmatprep.subr.mxu0 0.0
    %706 = vmatpush1.xpose.msra.mxu0 0.0
    %707 = vmatprep.subr.mxu0 0.0
    %708 = vmatpush1.xpose.msra.mxu0 0.0
    %709 = vmatprep.subr.mxu0 0.0
    %710 = vmatpush1.xpose.msra.mxu0 0.0
    %711 = vmatprep.subr.mxu0 0.0
    %712 = vmatpush1.xpose.msra.mxu0 0.0
    %713 = vmatprep.subr.mxu0 0.0
    %714 = vmatpush1.xpose.msra.mxu0 0.0
    %715 = vmatprep.subr.mxu0 0.0
    %716 = vmatpush1.xpose.msra.mxu0 0.0
    %717 = vmatprep.subr.mxu0 0.0
    %718 = vmatpush1.xpose.msra.mxu0 0.0
    %719 = vmatprep.subr.mxu0 0.0
    %720 = vmatpush1.xpose.msra.mxu0 0.0
    %721 = vmatprep.subr.mxu0 0.0
    %722 = vmatpush1.xpose.msra.mxu0 0.0
    %723 = vmatprep.subr.mxu0 0.0
    %724 = vmatpush1.xpose.msra.mxu0 0.0
    %725 = vmatprep.subr.mxu0 0.0
    %726 = vmatpush1.xpose.msra.mxu0 0.0
    %727 = vmatprep.subr.mxu0 0.0
    %728 = vmatpush1.xpose.msra.mxu0 0.0
    %729 = vmatprep.subr.mxu0 0.0
    %730 = vmatpush1.xpose.msra.mxu0 0.0
    %731 = vmatprep.subr.mxu0 0.0
    %732 = vmatpush1.xpose.msra.mxu0 0.0
    %733 = vmatprep.subr.mxu0 0.0
    %734 = vmatpush1.xpose.msra.mxu0 0.0
    %735 = vmatprep.subr.mxu0 0.0
    %736 = vmatpush1.xpose.msra.mxu0 0.0
    %737 = vmatprep.subr.mxu0 0.0
    %738 = vmatpush1.xpose.msra.mxu0 0.0
    %739 = vmatprep.subr.mxu0 0.0
    %740 = vmatpush1.xpose.msra.mxu0 0.0
    %741 = vmatprep.subr.mxu0 0.0
    %742 = vmatpush1.xpose.msra.mxu0 0.0
    %743 = vmatprep.subr.mxu0 0.0
    %744 = vmatpush1.xpose.msra.mxu0 0.0
    %745 = vmatprep.subr.mxu0 0.0
    %746 = vmatpush1.xpose.msra.mxu0 0.0
    %747 = vmatprep.subr.mxu0 0.0
    %748 = vmatpush1.xpose.msra.mxu0 0.0
    %749 = vmatprep.subr.mxu0 0.0
    %750 = vmatpush1.xpose.msra.mxu0 0.0
    %751 = vmatprep.subr.mxu0 0.0
    %752 = vmatpush1.xpose.msra.mxu0 0.0
    %753 = vmatprep.subr.mxu0 0.0
    %754 = vmatpush1.xpose.msra.mxu0 0.0
    %755 = vmatprep.subr.mxu0 0.0
    %756 = vmatpush1.xpose.msra.mxu0 0.0
    %757 = vmatprep.subr.mxu0 0.0
    %758 = vmatpush1.xpose.msra.mxu0 0.0
    %759 = vmatprep.subr.mxu0 0.0
    %760 = vmatpush1.xpose.msra.mxu0 0.0
    %761 = vmatprep.mubr.f32.mxu0 0.0
    %762 = vmatmul.mubr.f32.gmra.mrb[0].mxu0 %v693
    %v763 = vpop.f32.mrb[0].mxu0
    %v764 = vadd.f32 0.0, %v763
    %v765 = vpop.f32.mrb[0].mxu0
    %766 = vdwg.mxu0
    %v767 = vmul.f32 %v764, 0.35355338
    %v768 = vadd.f32 %v767, %v186
    %v769 = vsel %vm191, %v768, -inf
    %770 = vmax.xlane.f32.xlu0 %v769
    %v771 = vpop.xlane.xlu0 %770
    %v772 = vsub.f32 %v768, %v771
    %v773 = vmul.f32 %v772, 1.442695
    %v774 = vpow.pop %v773
    %v775 = vsel %vm191, %v774, 0.0
    %776 = vadd.xlane.f32.xlu0 %v775
    %v777 = vpop.xlane.xlu0 %776
    %v778 = vrcp.pop %v777
    %v779 = vmul.f32 %v774, %v778
    %780 = vrot.lane.b32.xlu0 %v178, 40
    %v781 = vpop.permute.xlu0 %780
    %v784 = vsel %vm191, %v779, 0
    %786 = vmatprep.subr.mxu0 0.0
    %787 = vmatpush1.msra.mxu0 %v781
    %788 = vmatprep.subr.mxu0 0.0
    %789 = vmatpush1.msra.mxu0 0.0
    %790 = vmatprep.subr.mxu0 0.0
    %791 = vmatpush1.msra.mxu0 0.0
    %792 = vmatprep.subr.mxu0 0.0
    %793 = vmatpush1.msra.mxu0 0.0
    %794 = vmatprep.subr.mxu0 0.0
    %795 = vmatpush1.msra.mxu0 0.0
    %796 = vmatprep.subr.mxu0 0.0
    %797 = vmatpush1.msra.mxu0 0.0
    %798 = vmatprep.subr.mxu0 0.0
    %799 = vmatpush1.msra.mxu0 0.0
    %800 = vmatprep.subr.mxu0 0.0
    %801 = vmatpush1.msra.mxu0 0.0
    %802 = vmatprep.subr.mxu0 0.0
    %803 = vmatpush1.msra.mxu0 0.0
    %804 = vmatprep.subr.mxu0 0.0
    %805 = vmatpush1.msra.mxu0 0.0
    %806 = vmatprep.subr.mxu0 0.0
    %807 = vmatpush1.msra.mxu0 0.0
    %808 = vmatprep.subr.mxu0 0.0
    %809 = vmatpush1.msra.mxu0 0.0
    %810 = vmatprep.subr.mxu0 0.0
    %811 = vmatpush1.msra.mxu0 0.0
    %812 = vmatprep.subr.mxu0 0.0
    %813 = vmatpush1.msra.mxu0 0.0
    %814 = vmatprep.subr.mxu0 0.0
    %815 = vmatpush1.msra.mxu0 0.0
    %816 = vmatprep.subr.mxu0 0.0
    %817 = vmatpush1.msra.mxu0 0.0
    %818 = vmatprep.subr.mxu0 0.0
    %819 = vmatpush1.msra.mxu0 0.0
    %820 = vmatprep.subr.mxu0 0.0
    %821 = vmatpush1.msra.mxu0 0.0
    %822 = vmatprep.subr.mxu0 0.0
    %823 = vmatpush1.msra.mxu0 0.0
    %824 = vmatprep.subr.mxu0 0.0
    %825 = vmatpush1.msra.mxu0 0.0
    %826 = vmatprep.subr.mxu0 0.0
    %827 = vmatpush1.msra.mxu0 0.0
    %828 = vmatprep.subr.mxu0 0.0
    %829 = vmatpush1.msra.mxu0 0.0
    %830 = vmatprep.subr.mxu0 0.0
    %831 = vmatpush1.msra.mxu0 0.0
    %832 = vmatprep.subr.mxu0 0.0
    %833 = vmatpush1.msra.mxu0 0.0
    %834 = vmatprep.subr.mxu0 0.0
    %835 = vmatpush1.msra.mxu0 0.0
    %836 = vmatprep.subr.mxu0 0.0
    %837 = vmatpush1.msra.mxu0 0.0
    %838 = vmatprep.subr.mxu0 0.0
    %839 = vmatpush1.msra.mxu0 0.0
    %840 = vmatprep.subr.mxu0 0.0
    %841 = vmatpush1.msra.mxu0 0.0
    %842 = vmatprep.subr.mxu0 0.0
    %843 = vmatpush1.msra.mxu0 0.0
    %844 = vmatprep.subr.mxu0 0.0
    %845 = vmatpush1.msra.mxu0 0.0
    %846 = vmatprep.subr.mxu0 0.0
    %847 = vmatpush1.msra.mxu0 0.0
    %848 = vmatprep.subr.mxu0 0.0
    %849 = vmatpush1.msra.mxu0 0.0
    %850 = vmatprep.mubr.f32.mxu0 0.0
    %851 = vmatmul.mubr.f32.gmra.mrb[0].mxu0 %v784
    %v852 = vpop.f32.mrb[0].mxu0
    %v853 = vadd.f32 0.0, %v852
    %v854 = vpop.f32.mrb[0].mxu0
    %855 = vdwg.mxu0
    %857 = vrot.lane.b32.xlu0 %v519, 8
    %v858 = vpop.permute.xlu0 %857
    %861 = vrot.lane.b32.xlu0 %v686, 16
    %v862 = vpop.permute.xlu0 %861
    %865 = vrot.lane.b32.xlu0 %v853, 24
    %v866 = vpop.permute.xlu0 %865
    %v868 = vsel %vm191, %v352, %v858
    %vm869 = vcmask 130048
    %v870 = vsel %vm869, %v868, %v862
    %vm871 = vcmask 195584
    %v872 = vsel %vm871, %v870, %v866
    %874 = vrot.lane.b32.xlu0 %v183, 96
    %v875 = vpop.permute.xlu0 %874
    %v876 = vsel %vm191, %v183, 0
    %v878 = vsel %vm191, %v875, 0
    %880 = vmatprep.subr.mxu0 0.0
    %881 = vmatpush1.xpose.msra.mxu0 %v878
    %882 = vmatprep.subr.mxu0 0.0
    %883 = vmatpush1.xpose.msra.mxu0 0.0
    %884 = vmatprep.subr.mxu0 0.0
    %885 = vmatpush1.xpose.msra.mxu0 0.0
    %886 = vmatprep.subr.mxu0 0.0
    %887 = vmatpush1.xpose.msra.mxu0 0.0
    %888 = vmatprep.subr.mxu0 0.0
    %889 = vmatpush1.xpose.msra.mxu0 0.0
    %890 = vmatprep.subr.mxu0 0.0
    %891 = vmatpush1.xpose.msra.mxu0 0.0
    %892 = vmatprep.subr.mxu0 0.0
    %893 = vmatpush1.xpose.msra.mxu0 0.0
    %894 = vmatprep.subr.mxu0 0.0
    %895 = vmatpush1.xpose.msra.mxu0 0.0
    %896 = vmatprep.subr.mxu0 0.0
    %897 = vmatpush1.xpose.msra.mxu0 0.0
    %898 = vmatprep.subr.mxu0 0.0
    %899 = vmatpush1.xpose.msra.mxu0 0.0
    %900 = vmatprep.subr.mxu0 0.0
    %901 = vmatpush1.xpose.msra.mxu0 0.0
    %902 = vmatprep.subr.mxu0 0.0
    %903 = vmatpush1.xpose.msra.mxu0 0.0
    %904 = vmatprep.subr.mxu0 0.0
    %905 = vmatpush1.xpose.msra.mxu0 0.0
    %906 = vmatprep.subr.mxu0 0.0
    %907 = vmatpush1.xpose.msra.mxu0 0.0
    %908 = vmatprep.subr.mxu0 0.0
    %909 = vmatpush1.xpose.msra.mxu0 0.0
    %910 = vmatprep.subr.mxu0 0.0
    %911 = vmatpush1.xpose.msra.mxu0 0.0
    %912 = vmatprep.subr.mxu0 0.0
    %913 = vmatpush1.xpose.msra.mxu0 0.0
    %914 = vmatprep.subr.mxu0 0.0
    %915 = vmatpush1.xpose.msra.mxu0 0.0
    %916 = vmatprep.subr.mxu0 0.0
    %917 = vmatpush1.xpose.msra.mxu0 0.0
    %918 = vmatprep.subr.mxu0 0.0
    %919 = vmatpush1.xpose.msra.mxu0 0.0
    %920 = vmatprep.subr.mxu0 0.0
    %921 = vmatpush1.xpose.msra.mxu0 0.0
    %922 = vmatprep.subr.mxu0 0.0
    %923 = vmatpush1.xpose.msra.mxu0 0.0
    %924 = vmatprep.subr.mxu0 0.0
    %925 = vmatpush1.xpose.msra.mxu0 0.0
    %926 = vmatprep.subr.mxu0 0.0
    %927 = vmatpush1.xpose.msra.mxu0 0.0
    %928 = vmatprep.subr.mxu0 0.0
    %929 = vmatpush1.xpose.msra.mxu0 0.0
    %930 = vmatprep.subr.mxu0 0.0
    %931 = vmatpush1.xpose.msra.mxu0 0.0
    %932 = vmatprep.subr.mxu0 0.0
    %933 = vmatpush1.xpose.msra.mxu0 0.0
    %934 = vmatprep.subr.mxu0 0.0
    %935 = vmatpush1.xpose.msra.mxu0 0.0
    %936 = vmatprep.subr.mxu0 0.0
    %937 = vmatpush1.xpose.msra.mxu0 0.0
    %938 = vmatprep.subr.mxu0 0.0
    %939 = vmatpush1.xpose.msra.mxu0 0.0
    %940 = vmatprep.subr.mxu0 0.0
    %941 = vmatpush1.xpose.msra.mxu0 0.0
    %942 = vmatprep.subr.mxu0 0.0
    %943 = vmatpush1.xpose.msra.mxu0 0.0
    %944 = vmatprep.mubr.f32.mxu0 0.0
    %945 = vmatmul.mubr.f32.gmra.mrb[0].mxu0 %v876
    %v946 = vpop.f32.mrb[0].mxu0
    %v947 = vadd.f32 0.0, %v946
    %v948 = vpop.f32.mrb[0].mxu0
    %949 = vdwg.mxu0
    %v950 = vmul.f32 %v947, 0.35355338
    %v951 = vadd.f32 %v950, %v187
    %v952 = vsel %vm191, %v951, -inf
    %953 = vmax.xlane.f32.xlu0 %v952
    %v954 = vpop.xlane.xlu0 %953
    %v955 = vsub.f32 %v951, %v954
    %v956 = vmul.f32 %v955, 1.442695
    %v957 = vpow.pop %v956
    %v958 = vsel %vm191, %v957, 0.0
    %959 = vadd.xlane.f32.xlu0 %v958
    %v960 = vpop.xlane.xlu0 %959
    %v961 = vrcp.pop %v960
    %v962 = vmul.f32 %v957, %v961
    %963 = vrot.lane.b32.xlu0 %v183, 64
    %v964 = vpop.permute.xlu0 %963
    %v967 = vsel %vm191, %v962, 0
    %969 = vmatprep.subr.mxu0 0.0
    %970 = vmatpush1.msra.mxu0 %v964
    %971 = vmatprep.subr.mxu0 0.0
    %972 = vmatpush1.msra.mxu0 0.0
    %973 = vmatprep.subr.mxu0 0.0
    %974 = vmatpush1.msra.mxu0 0.0
    %975 = vmatprep.subr.mxu0 0.0
    %976 = vmatpush1.msra.mxu0 0.0
    %977 = vmatprep.subr.mxu0 0.0
    %978 = vmatpush1.msra.mxu0 0.0
    %979 = vmatprep.subr.mxu0 0.0
    %980 = vmatpush1.msra.mxu0 0.0
    %981 = vmatprep.subr.mxu0 0.0
    %982 = vmatpush1.msra.mxu0 0.0
    %983 = vmatprep.subr.mxu0 0.0
    %984 = vmatpush1.msra.mxu0 0.0
    %985 = vmatprep.subr.mxu0 0.0
    %986 = vmatpush1.msra.mxu0 0.0
    %987 = vmatprep.subr.mxu0 0.0
    %988 = vmatpush1.msra.mxu0 0.0
    %989 = vmatprep.subr.mxu0 0.0
    %990 = vmatpush1.msra.mxu0 0.0
    %991 = vmatprep.subr.mxu0 0.0
    %992 = vmatpush1.msra.mxu0 0.0
    %993 = vmatprep.subr.mxu0 0.0
    %994 = vmatpush1.msra.mxu0 0.0
    %995 = vmatprep.subr.mxu0 0.0
    %996 = vmatpush1.msra.mxu0 0.0
    %997 = vmatprep.subr.mxu0 0.0
    %998 = vmatpush1.msra.mxu0 0.0
    %999 = vmatprep.subr.mxu0 0.0
    %1000 = vmatpush1.msra.mxu0 0.0
    %1001 = vmatprep.subr.mxu0 0.0
    %1002 = vmatpush1.msra.mxu0 0.0
    %1003 = vmatprep.subr.mxu0 0.0
    %1004 = vmatpush1.msra.mxu0 0.0
    %1005 = vmatprep.subr.mxu0 0.0
    %1006 = vmatpush1.msra.mxu0 0.0
    %1007 = vmatprep.subr.mxu0 0.0
    %1008 = vmatpush1.msra.mxu0 0.0
    %1009 = vmatprep.subr.mxu0 0.0
    %1010 = vmatpush1.msra.mxu0 0.0
    %1011 = vmatprep.subr.mxu0 0.0
    %1012 = vmatpush1.msra.mxu0 0.0
    %1013 = vmatprep.subr.mxu0 0.0
    %1014 = vmatpush1.msra.mxu0 0.0
    %1015 = vmatprep.subr.mxu0 0.0
    %1016 = vmatpush1.msra.mxu0 0.0
    %1017 = vmatprep.subr.mxu0 0.0
    %1018 = vmatpush1.msra.mxu0 0.0
    %1019 = vmatprep.subr.mxu0 0.0
    %1020 = vmatpush1.msra.mxu0 0.0
    %1021 = vmatprep.subr.mxu0 0.0
    %1022 = vmatpush1.msra.mxu0 0.0
    %1023 = vmatprep.subr.mxu0 0.0
    %1024 = vmatpush1.msra.mxu0 0.0
    %1025 = vmatprep.subr.mxu0 0.0
    %1026 = vmatpush1.msra.mxu0 0.0
    %1027 = vmatprep.subr.mxu0 0.0
    %1028 = vmatpush1.msra.mxu0 0.0
    %1029 = vmatprep.subr.mxu0 0.0
    %1030 = vmatpush1.msra.mxu0 0.0
    %1031 = vmatprep.subr.mxu0 0.0
    %1032 = vmatpush1.msra.mxu0 0.0
    %1033 = vmatprep.mubr.f32.mxu0 0.0
    %1034 = vmatmul.mubr.f32.gmra.mrb[0].mxu0 %v967
    %v1035 = vpop.f32.mrb[0].mxu0
    %v1036 = vadd.f32 0.0, %v1035
    %v1037 = vpop.f32.mrb[0].mxu0
    %1038 = vdwg.mxu0
    %1039 = vrot.lane.b32.xlu0 %v183, 120
    %v1040 = vpop.permute.xlu0 %1039
    %1041 = vrot.lane.b32.xlu0 %v183, 88
    %v1042 = vpop.permute.xlu0 %1041
    %v1043 = vsel %vm191, %v1040, 0
    %v1045 = vsel %vm191, %v1042, 0
    %1047 = vmatprep.subr.mxu0 0.0
    %1048 = vmatpush1.xpose.msra.mxu0 %v1045
    %1049 = vmatprep.subr.mxu0 0.0
    %1050 = vmatpush1.xpose.msra.mxu0 0.0
    %1051 = vmatprep.subr.mxu0 0.0
    %1052 = vmatpush1.xpose.msra.mxu0 0.0
    %1053 = vmatprep.subr.mxu0 0.0
    %1054 = vmatpush1.xpose.msra.mxu0 0.0
    %1055 = vmatprep.subr.mxu0 0.0
    %1056 = vmatpush1.xpose.msra.mxu0 0.0
    %1057 = vmatprep.subr.mxu0 0.0
    %1058 = vmatpush1.xpose.msra.mxu0 0.0
    %1059 = vmatprep.subr.mxu0 0.0
    %1060 = vmatpush1.xpose.msra.mxu0 0.0
    %1061 = vmatprep.subr.mxu0 0.0
    %1062 = vmatpush1.xpose.msra.mxu0 0.0
    %1063 = vmatprep.subr.mxu0 0.0
    %1064 = vmatpush1.xpose.msra.mxu0 0.0
    %1065 = vmatprep.subr.mxu0 0.0
    %1066 = vmatpush1.xpose.msra.mxu0 0.0
    %1067 = vmatprep.subr.mxu0 0.0
    %1068 = vmatpush1.xpose.msra.mxu0 0.0
    %1069 = vmatprep.subr.mxu0 0.0
    %1070 = vmatpush1.xpose.msra.mxu0 0.0
    %1071 = vmatprep.subr.mxu0 0.0
    %1072 = vmatpush1.xpose.msra.mxu0 0.0
    %1073 = vmatprep.subr.mxu0 0.0
    %1074 = vmatpush1.xpose.msra.mxu0 0.0
    %1075 = vmatprep.subr.mxu0 0.0
    %1076 = vmatpush1.xpose.msra.mxu0 0.0
    %1077 = vmatprep.subr.mxu0 0.0
    %1078 = vmatpush1.xpose.msra.mxu0 0.0
    %1079 = vmatprep.subr.mxu0 0.0
    %1080 = vmatpush1.xpose.msra.mxu0 0.0
    %1081 = vmatprep.subr.mxu0 0.0
    %1082 = vmatpush1.xpose.msra.mxu0 0.0
    %1083 = vmatprep.subr.mxu0 0.0
    %1084 = vmatpush1.xpose.msra.mxu0 0.0
    %1085 = vmatprep.subr.mxu0 0.0
    %1086 = vmatpush1.xpose.msra.mxu0 0.0
    %1087 = vmatprep.subr.mxu0 0.0
    %1088 = vmatpush1.xpose.msra.mxu0 0.0
    %1089 = vmatprep.subr.mxu0 0.0
    %1090 = vmatpush1.xpose.msra.mxu0 0.0
    %1091 = vmatprep.subr.mxu0 0.0
    %1092 = vmatpush1.xpose.msra.mxu0 0.0
    %1093 = vmatprep.subr.mxu0 0.0
    %1094 = vmatpush1.xpose.msra.mxu0 0.0
    %1095 = vmatprep.subr.mxu0 0.0
    %1096 = vmatpush1.xpose.msra.mxu0 0.0
    %1097 = vmatprep.subr.mxu0 0.0
    %1098 = vmatpush1.xpose.msra.mxu0 0.0
    %1099 = vmatprep.subr.mxu0 0.0
    %1100 = vmatpush1.xpose.msra.mxu0 0.0
    %1101 = vmatprep.subr.mxu0 0.0
    %1102 = vmatpush1.xpose.msra.mxu0 0.0
    %1103 = vmatprep.subr.mxu0 0.0
    %1104 = vmatpush1.xpose.msra.mxu0 0.0
    %1105 = vmatprep.subr.mxu0 0.0
    %1106 = vmatpush1.xpose.msra.mxu0 0.0
    %1107 = vmatprep.subr.mxu0 0.0
    %1108 = vmatpush1.xpose.msra.mxu0 0.0
    %1109 = vmatprep.subr.mxu0 0.0
    %1110 = vmatpush1.xpose.msra.mxu0 0.0
    %1111 = vmatprep.mubr.f32.mxu0 0.0
    %1112 = vmatmul.mubr.f32.gmra.mrb[0].mxu0 %v1043
    %v1113 = vpop.f32.mrb[0].mxu0
    %v1114 = vadd.f32 0.0, %v1113
    %v1115 = vpop.f32.mrb[0].mxu0
    %1116 = vdwg.mxu0
    %v1117 = vmul.f32 %v1114, 0.35355338
    %v1118 = vadd.f32 %v1117, %v187
    %v1119 = vsel %vm191, %v1118, -inf
    %1120 = vmax.xlane.f32.xlu0 %v1119
    %v1121 = vpop.xlane.xlu0 %1120
    %v1122 = vsub.f32 %v1118, %v1121
    %v1123 = vmul.f32 %v1122, 1.442695
    %v1124 = vpow.pop %v1123
    %v1125 = vsel %vm191, %v1124, 0.0
    %1126 = vadd.xlane.f32.xlu0 %v1125
    %v1127 = vpop.xlane.xlu0 %1126
    %v1128 = vrcp.pop %v1127
    %v1129 = vmul.f32 %v1124, %v1128
    %1130 = vrot.lane.b32.xlu0 %v183, 56
    %v1131 = vpop.permute.xlu0 %1130
    %v1134 = vsel %vm191, %v1129, 0
    %1136 = vmatprep.subr.mxu0 0.0
    %1137 = vmatpush1.msra.mxu0 %v1131
    %1138 = vmatprep.subr.mxu0 0.0
    %1139 = vmatpush1.msra.mxu0 0.0
    %1140 = vmatprep.subr.mxu0 0.0
    %1141 = vmatpush1.msra.mxu0 0.0
    %1142 = vmatprep.subr.mxu0 0.0
    %1143 = vmatpush1.msra.mxu0 0.0
    %1144 = vmatprep.subr.mxu0 0.0
    %1145 = vmatpush1.msra.mxu0 0.0
    %1146 = vmatprep.subr.mxu0 0.0
    %1147 = vmatpush1.msra.mxu0 0.0
    %1148 = vmatprep.subr.mxu0 0.0
    %1149 = vmatpush1.msra.mxu0 0.0
    %1150 = vmatprep.subr.mxu0 0.0
    %1151 = vmatpush1.msra.mxu0 0.0
    %1152 = vmatprep.subr.mxu0 0.0
    %1153 = vmatpush1.msra.mxu0 0.0
    %1154 = vmatprep.subr.mxu0 0.0
    %1155 = vmatpush1.msra.mxu0 0.0
    %1156 = vmatprep.subr.mxu0 0.0
    %1157 = vmatpush1.msra.mxu0 0.0
    %1158 = vmatprep.subr.mxu0 0.0
    %1159 = vmatpush1.msra.mxu0 0.0
    %1160 = vmatprep.subr.mxu0 0.0
    %1161 = vmatpush1.msra.mxu0 0.0
    %1162 = vmatprep.subr.mxu0 0.0
    %1163 = vmatpush1.msra.mxu0 0.0
    %1164 = vmatprep.subr.mxu0 0.0
    %1165 = vmatpush1.msra.mxu0 0.0
    %1166 = vmatprep.subr.mxu0 0.0
    %1167 = vmatpush1.msra.mxu0 0.0
    %1168 = vmatprep.subr.mxu0 0.0
    %1169 = vmatpush1.msra.mxu0 0.0
    %1170 = vmatprep.subr.mxu0 0.0
    %1171 = vmatpush1.msra.mxu0 0.0
    %1172 = vmatprep.subr.mxu0 0.0
    %1173 = vmatpush1.msra.mxu0 0.0
    %1174 = vmatprep.subr.mxu0 0.0
    %1175 = vmatpush1.msra.mxu0 0.0
    %1176 = vmatprep.subr.mxu0 0.0
    %1177 = vmatpush1.msra.mxu0 0.0
    %1178 = vmatprep.subr.mxu0 0.0
    %1179 = vmatpush1.msra.mxu0 0.0
    %1180 = vmatprep.subr.mxu0 0.0
    %1181 = vmatpush1.msra.mxu0 0.0
    %1182 = vmatprep.subr.mxu0 0.0
    %1183 = vmatpush1.msra.mxu0 0.0
    %1184 = vmatprep.subr.mxu0 0.0
    %1185 = vmatpush1.msra.mxu0 0.0
    %1186 = vmatprep.subr.mxu0 0.0
    %1187 = vmatpush1.msra.mxu0 0.0
    %1188 = vmatprep.subr.mxu0 0.0
    %1189 = vmatpush1.msra.mxu0 0.0
    %1190 = vmatprep.subr.mxu0 0.0
    %1191 = vmatpush1.msra.mxu0 0.0
    %1192 = vmatprep.subr.mxu0 0.0
    %1193 = vmatpush1.msra.mxu0 0.0
    %1194 = vmatprep.subr.mxu0 0.0
    %1195 = vmatpush1.msra.mxu0 0.0
    %1196 = vmatprep.subr.mxu0 0.0
    %1197 = vmatpush1.msra.mxu0 0.0
    %1198 = vmatprep.subr.mxu0 0.0
    %1199 = vmatpush1.msra.mxu0 0.0
    %1200 = vmatprep.mubr.f32.mxu0 0.0
    %1201 = vmatmul.mubr.f32.gmra.mrb[0].mxu0 %v1134
    %v1202 = vpop.f32.mrb[0].mxu0
    %v1203 = vadd.f32 0.0, %v1202
    %v1204 = vpop.f32.mrb[0].mxu0
    %1205 = vdwg.mxu0
    %1206 = vrot.lane.b32.xlu0 %v183, 112
    %v1207 = vpop.permute.xlu0 %1206
    %1208 = vrot.lane.b32.xlu0 %v183, 80
    %v1209 = vpop.permute.xlu0 %1208
    %v1210 = vsel %vm191, %v1207, 0
    %v1212 = vsel %vm191, %v1209, 0
    %1214 = vmatprep.subr.mxu0 0.0
    %1215 = vmatpush1.xpose.msra.mxu0 %v1212
    %1216 = vmatprep.subr.mxu0 0.0
    %1217 = vmatpush1.xpose.msra.mxu0 0.0
    %1218 = vmatprep.subr.mxu0 0.0
    %1219 = vmatpush1.xpose.msra.mxu0 0.0
    %1220 = vmatprep.subr.mxu0 0.0
    %1221 = vmatpush1.xpose.msra.mxu0 0.0
    %1222 = vmatprep.subr.mxu0 0.0
    %1223 = vmatpush1.xpose.msra.mxu0 0.0
    %1224 = vmatprep.subr.mxu0 0.0
    %1225 = vmatpush1.xpose.msra.mxu0 0.0
    %1226 = vmatprep.subr.mxu0 0.0
    %1227 = vmatpush1.xpose.msra.mxu0 0.0
    %1228 = vmatprep.subr.mxu0 0.0
    %1229 = vmatpush1.xpose.msra.mxu0 0.0
    %1230 = vmatprep.subr.mxu0 0.0
    %1231 = vmatpush1.xpose.msra.mxu0 0.0
    %1232 = vmatprep.subr.mxu0 0.0
    %1233 = vmatpush1.xpose.msra.mxu0 0.0
    %1234 = vmatprep.subr.mxu0 0.0
    %1235 = vmatpush1.xpose.msra.mxu0 0.0
    %1236 = vmatprep.subr.mxu0 0.0
    %1237 = vmatpush1.xpose.msra.mxu0 0.0
    %1238 = vmatprep.subr.mxu0 0.0
    %1239 = vmatpush1.xpose.msra.mxu0 0.0
    %1240 = vmatprep.subr.mxu0 0.0
    %1241 = vmatpush1.xpose.msra.mxu0 0.0
    %1242 = vmatprep.subr.mxu0 0.0
    %1243 = vmatpush1.xpose.msra.mxu0 0.0
    %1244 = vmatprep.subr.mxu0 0.0
    %1245 = vmatpush1.xpose.msra.mxu0 0.0
    %1246 = vmatprep.subr.mxu0 0.0
    %1247 = vmatpush1.xpose.msra.mxu0 0.0
    %1248 = vmatprep.subr.mxu0 0.0
    %1249 = vmatpush1.xpose.msra.mxu0 0.0
    %1250 = vmatprep.subr.mxu0 0.0
    %1251 = vmatpush1.xpose.msra.mxu0 0.0
    %1252 = vmatprep.subr.mxu0 0.0
    %1253 = vmatpush1.xpose.msra.mxu0 0.0
    %1254 = vmatprep.subr.mxu0 0.0
    %1255 = vmatpush1.xpose.msra.mxu0 0.0
    %1256 = vmatprep.subr.mxu0 0.0
    %1257 = vmatpush1.xpose.msra.mxu0 0.0
    %1258 = vmatprep.subr.mxu0 0.0
    %1259 = vmatpush1.xpose.msra.mxu0 0.0
    %1260 = vmatprep.subr.mxu0 0.0
    %1261 = vmatpush1.xpose.msra.mxu0 0.0
    %1262 = vmatprep.subr.mxu0 0.0
    %1263 = vmatpush1.xpose.msra.mxu0 0.0
    %1264 = vmatprep.subr.mxu0 0.0
    %1265 = vmatpush1.xpose.msra.mxu0 0.0
    %1266 = vmatprep.subr.mxu0 0.0
    %1267 = vmatpush1.xpose.msra.mxu0 0.0
    %1268 = vmatprep.subr.mxu0 0.0
    %1269 = vmatpush1.xpose.msra.mxu0 0.0
    %1270 = vmatprep.subr.mxu0 0.0
    %1271 = vmatpush1.xpose.msra.mxu0 0.0
    %1272 = vmatprep.subr.mxu0 0.0
    %1273 = vmatpush1.xpose.msra.mxu0 0.0
    %1274 = vmatprep.subr.mxu0 0.0
    %1275 = vmatpush1.xpose.msra.mxu0 0.0
    %1276 = vmatprep.subr.mxu0 0.0
    %1277 = vmatpush1.xpose.msra.mxu0 0.0
    %1278 = vmatprep.mubr.f32.mxu0 0.0
    %1279 = vmatmul.mubr.f32.gmra.mrb[0].mxu0 %v1210
    %v1280 = vpop.f32.mrb[0].mxu0
    %v1281 = vadd.f32 0.0, %v1280
    %v1282 = vpop.f32.mrb[0].mxu0
    %1283 = vdwg.mxu0
    %v1284 = vmul.f32 %v1281, 0.35355338
    %v1285 = vadd.f32 %v1284, %v187
    %v1286 = vsel %vm191, %v1285, -inf
    %1287 = vmax.xlane.f32.xlu0 %v1286
    %v1288 = vpop.xlane.xlu0 %1287
    %v1289 = vsub.f32 %v1285, %v1288
    %v1290 = vmul.f32 %v1289, 1.442695
    %v1291 = vpow.pop %v1290
    %v1292 = vsel %vm191, %v1291, 0.0
    %1293 = vadd.xlane.f32.xlu0 %v1292
    %v1294 = vpop.xlane.xlu0 %1293
    %v1295 = vrcp.pop %v1294
    %v1296 = vmul.f32 %v1291, %v1295
    %1297 = vrot.lane.b32.xlu0 %v183, 48
    %v1298 = vpop.permute.xlu0 %1297
    %v1301 = vsel %vm191, %v1296, 0
    %1303 = vmatprep.subr.mxu0 0.0
    %1304 = vmatpush1.msra.mxu0 %v1298
    %1305 = vmatprep.subr.mxu0 0.0
    %1306 = vmatpush1.msra.mxu0 0.0
    %1307 = vmatprep.subr.mxu0 0.0
    %1308 = vmatpush1.msra.mxu0 0.0
    %1309 = vmatprep.subr.mxu0 0.0
    %1310 = vmatpush1.msra.mxu0 0.0
    %1311 = vmatprep.subr.mxu0 0.0
    %1312 = vmatpush1.msra.mxu0 0.0
    %1313 = vmatprep.subr.mxu0 0.0
    %1314 = vmatpush1.msra.mxu0 0.0
    %1315 = vmatprep.subr.mxu0 0.0
    %1316 = vmatpush1.msra.mxu0 0.0
    %1317 = vmatprep.subr.mxu0 0.0
    %1318 = vmatpush1.msra.mxu0 0.0
    %1319 = vmatprep.subr.mxu0 0.0
    %1320 = vmatpush1.msra.mxu0 0.0
    %1321 = vmatprep.subr.mxu0 0.0
    %1322 = vmatpush1.msra.mxu0 0.0
    %1323 = vmatprep.subr.mxu0 0.0
    %1324 = vmatpush1.msra.mxu0 0.0
    %1325 = vmatprep.subr.mxu0 0.0
    %1326 = vmatpush1.msra.mxu0 0.0
    %1327 = vmatprep.subr.mxu0 0.0
    %1328 = vmatpush1.msra.mxu0 0.0
    %1329 = vmatprep.subr.mxu0 0.0
    %1330 = vmatpush1.msra.mxu0 0.0
    %1331 = vmatprep.subr.mxu0 0.0
    %1332 = vmatpush1.msra.mxu0 0.0
    %1333 = vmatprep.subr.mxu0 0.0
    %1334 = vmatpush1.msra.mxu0 0.0
    %1335 = vmatprep.subr.mxu0 0.0
    %1336 = vmatpush1.msra.mxu0 0.0
    %1337 = vmatprep.subr.mxu0 0.0
    %1338 = vmatpush1.msra.mxu0 0.0
    %1339 = vmatprep.subr.mxu0 0.0
    %1340 = vmatpush1.msra.mxu0 0.0
    %1341 = vmatprep.subr.mxu0 0.0
    %1342 = vmatpush1.msra.mxu0 0.0
    %1343 = vmatprep.subr.mxu0 0.0
    %1344 = vmatpush1.msra.mxu0 0.0
    %1345 = vmatprep.subr.mxu0 0.0
    %1346 = vmatpush1.msra.mxu0 0.0
    %1347 = vmatprep.subr.mxu0 0.0
    %1348 = vmatpush1.msra.mxu0 0.0
    %1349 = vmatprep.subr.mxu0 0.0
    %1350 = vmatpush1.msra.mxu0 0.0
    %1351 = vmatprep.subr.mxu0 0.0
    %1352 = vmatpush1.msra.mxu0 0.0
    %1353 = vmatprep.subr.mxu0 0.0
    %1354 = vmatpush1.msra.mxu0 0.0
    %1355 = vmatprep.subr.mxu0 0.0
    %1356 = vmatpush1.msra.mxu0 0.0
    %1357 = vmatprep.subr.mxu0 0.0
    %1358 = vmatpush1.msra.mxu0 0.0
    %1359 = vmatprep.subr.mxu0 0.0
    %1360 = vmatpush1.msra.mxu0 0.0
    %1361 = vmatprep.subr.mxu0 0.0
    %1362 = vmatpush1.msra.mxu0 0.0
    %1363 = vmatprep.subr.mxu0 0.0
    %1364 = vmatpush1.msra.mxu0 0.0
    %1365 = vmatprep.subr.mxu0 0.0
    %1366 = vmatpush1.msra.mxu0 0.0
    %1367 = vmatprep.mubr.f32.mxu0 0.0
    %1368 = vmatmul.mubr.f32.gmra.mrb[0].mxu0 %v1301
    %v1369 = vpop.f32.mrb[0].mxu0
    %v1370 = vadd.f32 0.0, %v1369
    %v1371 = vpop.f32.mrb[0].mxu0
    %1372 = vdwg.mxu0
    %1373 = vrot.lane.b32.xlu0 %v183, 104
    %v1374 = vpop.permute.xlu0 %1373
    %1375 = vrot.lane.b32.xlu0 %v183, 72
    %v1376 = vpop.permute.xlu0 %1375
    %v1377 = vsel %vm191, %v1374, 0
    %v1379 = vsel %vm191, %v1376, 0
    %1381 = vmatprep.subr.mxu0 0.0
    %1382 = vmatpush1.xpose.msra.mxu0 %v1379
    %1383 = vmatprep.subr.mxu0 0.0
    %1384 = vmatpush1.xpose.msra.mxu0 0.0
    %1385 = vmatprep.subr.mxu0 0.0
    %1386 = vmatpush1.xpose.msra.mxu0 0.0
    %1387 = vmatprep.subr.mxu0 0.0
    %1388 = vmatpush1.xpose.msra.mxu0 0.0
    %1389 = vmatprep.subr.mxu0 0.0
    %1390 = vmatpush1.xpose.msra.mxu0 0.0
    %1391 = vmatprep.subr.mxu0 0.0
    %1392 = vmatpush1.xpose.msra.mxu0 0.0
    %1393 = vmatprep.subr.mxu0 0.0
    %1394 = vmatpush1.xpose.msra.mxu0 0.0
    %1395 = vmatprep.subr.mxu0 0.0
    %1396 = vmatpush1.xpose.msra.mxu0 0.0
    %1397 = vmatprep.subr.mxu0 0.0
    %1398 = vmatpush1.xpose.msra.mxu0 0.0
    %1399 = vmatprep.subr.mxu0 0.0
    %1400 = vmatpush1.xpose.msra.mxu0 0.0
    %1401 = vmatprep.subr.mxu0 0.0
    %1402 = vmatpush1.xpose.msra.mxu0 0.0
    %1403 = vmatprep.subr.mxu0 0.0
    %1404 = vmatpush1.xpose.msra.mxu0 0.0
    %1405 = vmatprep.subr.mxu0 0.0
    %1406 = vmatpush1.xpose.msra.mxu0 0.0
    %1407 = vmatprep.subr.mxu0 0.0
    %1408 = vmatpush1.xpose.msra.mxu0 0.0
    %1409 = vmatprep.subr.mxu0 0.0
    %1410 = vmatpush1.xpose.msra.mxu0 0.0
    %1411 = vmatprep.subr.mxu0 0.0
    %1412 = vmatpush1.xpose.msra.mxu0 0.0
    %1413 = vmatprep.subr.mxu0 0.0
    %1414 = vmatpush1.xpose.msra.mxu0 0.0
    %1415 = vmatprep.subr.mxu0 0.0
    %1416 = vmatpush1.xpose.msra.mxu0 0.0
    %1417 = vmatprep.subr.mxu0 0.0
    %1418 = vmatpush1.xpose.msra.mxu0 0.0
    %1419 = vmatprep.subr.mxu0 0.0
    %1420 = vmatpush1.xpose.msra.mxu0 0.0
    %1421 = vmatprep.subr.mxu0 0.0
    %1422 = vmatpush1.xpose.msra.mxu0 0.0
    %1423 = vmatprep.subr.mxu0 0.0
    %1424 = vmatpush1.xpose.msra.mxu0 0.0
    %1425 = vmatprep.subr.mxu0 0.0
    %1426 = vmatpush1.xpose.msra.mxu0 0.0
    %1427 = vmatprep.subr.mxu0 0.0
    %1428 = vmatpush1.xpose.msra.mxu0 0.0
    %1429 = vmatprep.subr.mxu0 0.0
    %1430 = vmatpush1.xpose.msra.mxu0 0.0
    %1431 = vmatprep.subr.mxu0 0.0
    %1432 = vmatpush1.xpose.msra.mxu0 0.0
    %1433 = vmatprep.subr.mxu0 0.0
    %1434 = vmatpush1.xpose.msra.mxu0 0.0
    %1435 = vmatprep.subr.mxu0 0.0
    %1436 = vmatpush1.xpose.msra.mxu0 0.0
    %1437 = vmatprep.subr.mxu0 0.0
    %1438 = vmatpush1.xpose.msra.mxu0 0.0
    %1439 = vmatprep.subr.mxu0 0.0
    %1440 = vmatpush1.xpose.msra.mxu0 0.0
    %1441 = vmatprep.subr.mxu0 0.0
    %1442 = vmatpush1.xpose.msra.mxu0 0.0
    %1443 = vmatprep.subr.mxu0 0.0
    %1444 = vmatpush1.xpose.msra.mxu0 0.0
    %1445 = vmatprep.mubr.f32.mxu0 0.0
    %1446 = vmatmul.mubr.f32.gmra.mrb[0].mxu0 %v1377
    %v1447 = vpop.f32.mrb[0].mxu0
    %v1448 = vadd.f32 0.0, %v1447
    %v1449 = vpop.f32.mrb[0].mxu0
    %1450 = vdwg.mxu0
    %v1451 = vmul.f32 %v1448, 0.35355338
    %v1452 = vadd.f32 %v1451, %v187
    %v1453 = vsel %vm191, %v1452, -inf
    %1454 = vmax.xlane.f32.xlu0 %v1453
    %v1455 = vpop.xlane.xlu0 %1454
    %v1456 = vsub.f32 %v1452, %v1455
    %v1457 = vmul.f32 %v1456, 1.442695
    %v1458 = vpow.pop %v1457
    %v1459 = vsel %vm191, %v1458, 0.0
    %1460 = vadd.xlane.f32.xlu0 %v1459
    %v1461 = vpop.xlane.xlu0 %1460
    %v1462 = vrcp.pop %v1461
    %v1463 = vmul.f32 %v1458, %v1462
    %1464 = vrot.lane.b32.xlu0 %v183, 40
    %v1465 = vpop.permute.xlu0 %1464
    %v1468 = vsel %vm191, %v1463, 0
    %1470 = vmatprep.subr.mxu0 0.0
    %1471 = vmatpush1.msra.mxu0 %v1465
    %1472 = vmatprep.subr.mxu0 0.0
    %1473 = vmatpush1.msra.mxu0 0.0
    %1474 = vmatprep.subr.mxu0 0.0
    %1475 = vmatpush1.msra.mxu0 0.0
    %1476 = vmatprep.subr.mxu0 0.0
    %1477 = vmatpush1.msra.mxu0 0.0
    %1478 = vmatprep.subr.mxu0 0.0
    %1479 = vmatpush1.msra.mxu0 0.0
    %1480 = vmatprep.subr.mxu0 0.0
    %1481 = vmatpush1.msra.mxu0 0.0
    %1482 = vmatprep.subr.mxu0 0.0
    %1483 = vmatpush1.msra.mxu0 0.0
    %1484 = vmatprep.subr.mxu0 0.0
    %1485 = vmatpush1.msra.mxu0 0.0
    %1486 = vmatprep.subr.mxu0 0.0
    %1487 = vmatpush1.msra.mxu0 0.0
    %1488 = vmatprep.subr.mxu0 0.0
    %1489 = vmatpush1.msra.mxu0 0.0
    %1490 = vmatprep.subr.mxu0 0.0
    %1491 = vmatpush1.msra.mxu0 0.0
    %1492 = vmatprep.subr.mxu0 0.0
    %1493 = vmatpush1.msra.mxu0 0.0
    %1494 = vmatprep.subr.mxu0 0.0
    %1495 = vmatpush1.msra.mxu0 0.0
    %1496 = vmatprep.subr.mxu0 0.0
    %1497 = vmatpush1.msra.mxu0 0.0
    %1498 = vmatprep.subr.mxu0 0.0
    %1499 = vmatpush1.msra.mxu0 0.0
    %1500 = vmatprep.subr.mxu0 0.0
    %1501 = vmatpush1.msra.mxu0 0.0
    %1502 = vmatprep.subr.mxu0 0.0
    %1503 = vmatpush1.msra.mxu0 0.0
    %1504 = vmatprep.subr.mxu0 0.0
    %1505 = vmatpush1.msra.mxu0 0.0
    %1506 = vmatprep.subr.mxu0 0.0
    %1507 = vmatpush1.msra.mxu0 0.0
    %1508 = vmatprep.subr.mxu0 0.0
    %1509 = vmatpush1.msra.mxu0 0.0
    %1510 = vmatprep.subr.mxu0 0.0
    %1511 = vmatpush1.msra.mxu0 0.0
    %1512 = vmatprep.subr.mxu0 0.0
    %1513 = vmatpush1.msra.mxu0 0.0
    %1514 = vmatprep.subr.mxu0 0.0
    %1515 = vmatpush1.msra.mxu0 0.0
    %1516 = vmatprep.subr.mxu0 0.0
    %1517 = vmatpush1.msra.mxu0 0.0
    %1518 = vmatprep.subr.mxu0 0.0
    %1519 = vmatpush1.msra.mxu0 0.0
    %1520 = vmatprep.subr.mxu0 0.0
    %1521 = vmatpush1.msra.mxu0 0.0
    %1522 = vmatprep.subr.mxu0 0.0
    %1523 = vmatpush1.msra.mxu0 0.0
    %1524 = vmatprep.subr.mxu0 0.0
    %1525 = vmatpush1.msra.mxu0 0.0
    %1526 = vmatprep.subr.mxu0 0.0
    %1527 = vmatpush1.msra.mxu0 0.0
    %1528 = vmatprep.subr.mxu0 0.0
    %1529 = vmatpush1.msra.mxu0 0.0
    %1530 = vmatprep.subr.mxu0 0.0
    %1531 = vmatpush1.msra.mxu0 0.0
    %1532 = vmatprep.subr.mxu0 0.0
    %1533 = vmatpush1.msra.mxu0 0.0
    %1534 = vmatprep.mubr.f32.mxu0 0.0
    %1535 = vmatmul.mubr.f32.gmra.mrb[0].mxu0 %v1468
    %v1536 = vpop.f32.mrb[0].mxu0
    %v1537 = vadd.f32 0.0, %v1536
    %v1538 = vpop.f32.mrb[0].mxu0
    %1539 = vdwg.mxu0
    %1541 = vrot.lane.b32.xlu0 %v1203, 8
    %v1542 = vpop.permute.xlu0 %1541
    %1545 = vrot.lane.b32.xlu0 %v1370, 16
    %v1546 = vpop.permute.xlu0 %1545
    %1549 = vrot.lane.b32.xlu0 %v1537, 24
    %v1550 = vpop.permute.xlu0 %1549
    %v1552 = vsel %vm191, %v1036, %v1542
    %v1553 = vsel %vm869, %v1552, %v1546
    %v1554 = vsel %vm871, %v1553, %v1550
    %v1555 = vld [vmem:[%s6] sm:$0xff]
    %v1556 = vld [vmem:[%s6 + $0x8] sm:$0xff]
    %v1557 = vld [vmem:[%s6 + $0x10] sm:$0xff]
    %v1558 = vld [vmem:[%s6 + $0x18] sm:$0xff]
    %v1559 = vld [vmem:[%s7] sm:$0x1]
    %v1561 = vlaneseq
    %v1562 = vshrl.u32 %v1561, 7
    %v1563 = vsub.s32 0, %v1562
    %v1564 = vrot.slane %v1559, %v1563
    %v1567 = vsel %vm104, %v872, 0
    %v1570 = vsel %vm104, %v1554, 0
    %1572 = vmatprep.subr.mxu0 0.0
    %1573 = vmatpush1.msra.mxu0 %v1555
    %1574 = vmatprep.subr.mxu0 0.0
    %1575 = vmatpush1.msra.mxu0 %v1556
    %1576 = vmatprep.subr.mxu0 0.0
    %1577 = vmatpush1.msra.mxu0 %v1557
    %1578 = vmatprep.subr.mxu0 0.0
    %1579 = vmatpush1.msra.mxu0 %v1558
    %1580 = vmatprep.subr.mxu0 0.0
    %1581 = vmatpush1.msra.mxu0 0.0
    %1582 = vmatprep.subr.mxu0 0.0
    %1583 = vmatpush1.msra.mxu0 0.0
    %1584 = vmatprep.subr.mxu0 0.0
    %1585 = vmatpush1.msra.mxu0 0.0
    %1586 = vmatprep.subr.mxu0 0.0
    %1587 = vmatpush1.msra.mxu0 0.0
    %1588 = vmatprep.subr.mxu0 0.0
    %1589 = vmatpush1.msra.mxu0 0.0
    %1590 = vmatprep.subr.mxu0 0.0
    %1591 = vmatpush1.msra.mxu0 0.0
    %1592 = vmatprep.subr.mxu0 0.0
    %1593 = vmatpush1.msra.mxu0 0.0
    %1594 = vmatprep.subr.mxu0 0.0
    %1595 = vmatpush1.msra.mxu0 0.0
    %1596 = vmatprep.subr.mxu0 0.0
    %1597 = vmatpush1.msra.mxu0 0.0
    %1598 = vmatprep.subr.mxu0 0.0
    %1599 = vmatpush1.msra.mxu0 0.0
    %1600 = vmatprep.subr.mxu0 0.0
    %1601 = vmatpush1.msra.mxu0 0.0
    %1602 = vmatprep.subr.mxu0 0.0
    %1603 = vmatpush1.msra.mxu0 0.0
    %1604 = vmatprep.subr.mxu0 0.0
    %1605 = vmatpush1.msra.mxu0 0.0
    %1606 = vmatprep.subr.mxu0 0.0
    %1607 = vmatpush1.msra.mxu0 0.0
    %1608 = vmatprep.subr.mxu0 0.0
    %1609 = vmatpush1.msra.mxu0 0.0
    %1610 = vmatprep.subr.mxu0 0.0
    %1611 = vmatpush1.msra.mxu0 0.0
    %1612 = vmatprep.subr.mxu0 0.0
    %1613 = vmatpush1.msra.mxu0 0.0
    %1614 = vmatprep.subr.mxu0 0.0
    %1615 = vmatpush1.msra.mxu0 0.0
    %1616 = vmatprep.subr.mxu0 0.0
    %1617 = vmatpush1.msra.mxu0 0.0
    %1618 = vmatprep.subr.mxu0 0.0
    %1619 = vmatpush1.msra.mxu0 0.0
    %1620 = vmatprep.subr.mxu0 0.0
    %1621 = vmatpush1.msra.mxu0 0.0
    %1622 = vmatprep.subr.mxu0 0.0
    %1623 = vmatpush1.msra.mxu0 0.0
    %1624 = vmatprep.subr.mxu0 0.0
    %1625 = vmatpush1.msra.mxu0 0.0
    %1626 = vmatprep.subr.mxu0 0.0
    %1627 = vmatpush1.msra.mxu0 0.0
    %1628 = vmatprep.subr.mxu0 0.0
    %1629 = vmatpush1.msra.mxu0 0.0
    %1630 = vmatprep.subr.mxu0 0.0
    %1631 = vmatpush1.msra.mxu0 0.0
    %1632 = vmatprep.subr.mxu0 0.0
    %1633 = vmatpush1.msra.mxu0 0.0
    %1634 = vmatprep.subr.mxu0 0.0
    %1635 = vmatpush1.msra.mxu0 0.0
    %1636 = vmatprep.mubr.f32.mxu0 0.0
    %1637 = vmatmul.mubr.f32.gmra.mrb[0].mxu0 %v1567
    %v1638 = vpop.f32.mrb[0].mxu0
    %v1639 = vadd.f32 %v1564, %v1638
    %v1640 = vpop.f32.mrb[0].mxu0
    %1641 = vmatprep.mubr.f32.mxu0 0.0
    %1642 = vmatmul.mubr.f32.gmra.mrb[0].mxu0 %v1570
    %v1643 = vpop.f32.mrb[0].mxu0
    %v1644 = vadd.f32 %v1564, %v1643
    %v1645 = vpop.f32.mrb[0].mxu0
    %1646 = vdwg.mxu0
    %v1647 = vadd.f32 %v89, %v1639
    %v1648 = vadd.f32 %v90, %v1644
    %v1649 = vld [vmem:[%s8] sm:$0x1]
    %v1650 = vld [vmem:[%s9] sm:$0x1]
    %v1651 = vsel %vm104, %v1647, 0.0
    %1652 = vadd.xlane.f32.xlu0 %v1651
    %v1653 = vpop.xlane.xlu0 %1652
    %v1654 = vsel %vm104, %v1648, 0.0
    %1655 = vadd.xlane.f32.xlu0 %v1654
    %v1656 = vpop.xlane.xlu0 %1655
    %v1657 = vrcp.pop 32.0
    %v1658 = vmul.f32 %v1653, %v1657
    %v1659 = vmul.f32 %v1656, %v1657
    %v1660 = vsub.f32 %v1647, %v1658
    %v1661 = vsub.f32 %v1648, %v1659
    %v1662 = vmul.f32 %v1660, %v1660
    %v1663 = vmul.f32 %v1661, %v1661
    %v1664 = vsel %vm104, %v1662, 0.0
    %1665 = vadd.xlane.f32.xlu0 %v1664
    %v1666 = vpop.xlane.xlu0 %1665
    %v1667 = vsel %vm104, %v1663, 0.0
    %1668 = vadd.xlane.f32.xlu0 %v1667
    %v1669 = vpop.xlane.xlu0 %1668
    %v1670 = vmul.f32 %v1666, %v1657
    %v1671 = vmul.f32 %v1669, %v1657
    %v1672 = vadd.f32 %v1670, 1e-05
    %v1673 = vadd.f32 %v1671, 1e-05
    %v1674 = vrsqrt.pop %v1672
    %v1675 = vrsqrt.pop %v1673
    %v1676 = vmul.f32 %v1660, %v1674
    %v1677 = vmul.f32 %v1661, %v1675
    %v1679 = vlaneseq
    %v1680 = vshrl.u32 %v1679, 7
    %v1681 = vsub.s32 0, %v1680
    %v1682 = vrot.slane %v1649, %v1681
    %v1684 = vmul.f32 %v1676, %v1682
    %v1685 = vmul.f32 %v1677, %v1682
    %v1687 = vlaneseq
    %v1688 = vshrl.u32 %v1687, 7
    %v1689 = vsub.s32 0, %v1688
    %v1690 = vrot.slane %v1650, %v1689
    %v1692 = vadd.f32 %v1684, %v1690
    %v1693 = vadd.f32 %v1685, %v1690
    %v1694 = vld [vmem:[%s10] sm:$0xff]
    %v1695 = vld [vmem:[%s10 + $0x8] sm:$0xff]
    %v1696 = vld [vmem:[%s10 + $0x10] sm:$0xff]
    %v1697 = vld [vmem:[%s10 + $0x18] sm:$0xff]
    %v1698 = vld [vmem:[%s11] sm:$0x1]
    %v1700 = vlaneseq
    %v1701 = vshrl.u32 %v1700, 7
    %v1702 = vsub.s32 0, %v1701
    %v1703 = vrot.slane %v1698, %v1702
    %v1706 = vsel %vm104, %v1692, 0
    %v1709 = vsel %vm104, %v1693, 0
    %1711 = vmatprep.subr.mxu0 0.0
    %1712 = vmatpush1.msra.mxu0 %v1694
    %1713 = vmatprep.subr.mxu0 0.0
    %1714 = vmatpush1.msra.mxu0 %v1695
    %1715 = vmatprep.subr.mxu0 0.0
    %1716 = vmatpush1.msra.mxu0 %v1696
    %1717 = vmatprep.subr.mxu0 0.0
    %1718 = vmatpush1.msra.mxu0 %v1697
    %1719 = vmatprep.subr.mxu0 0.0
    %1720 = vmatpush1.msra.mxu0 0.0
    %1721 = vmatprep.subr.mxu0 0.0
    %1722 = vmatpush1.msra.mxu0 0.0
    %1723 = vmatprep.subr.mxu0 0.0
    %1724 = vmatpush1.msra.mxu0 0.0
    %1725 = vmatprep.subr.mxu0 0.0
    %1726 = vmatpush1.msra.mxu0 0.0
    %1727 = vmatprep.subr.mxu0 0.0
    %1728 = vmatpush1.msra.mxu0 0.0
    %1729 = vmatprep.subr.mxu0 0.0
    %1730 = vmatpush1.msra.mxu0 0.0
    %1731 = vmatprep.subr.mxu0 0.0
    %1732 = vmatpush1.msra.mxu0 0.0
    %1733 = vmatprep.subr.mxu0 0.0
    %1734 = vmatpush1.msra.mxu0 0.0
    %1735 = vmatprep.subr.mxu0 0.0
    %1736 = vmatpush1.msra.mxu0 0.0
    %1737 = vmatprep.subr.mxu0 0.0
    %1738 = vmatpush1.msra.mxu0 0.0
    %1739 = vmatprep.subr.mxu0 0.0
    %1740 = vmatpush1.msra.mxu0 0.0
    %1741 = vmatprep.subr.mxu0 0.0
    %1742 = vmatpush1.msra.mxu0 0.0
    %1743 = vmatprep.subr.mxu0 0.0
    %1744 = vmatpush1.msra.mxu0 0.0
    %1745 = vmatprep.subr.mxu0 0.0
    %1746 = vmatpush1.msra.mxu0 0.0
    %1747 = vmatprep.subr.mxu0 0.0
    %1748 = vmatpush1.msra.mxu0 0.0
    %1749 = vmatprep.subr.mxu0 0.0
    %1750 = vmatpush1.msra.mxu0 0.0
    %1751 = vmatprep.subr.mxu0 0.0
    %1752 = vmatpush1.msra.mxu0 0.0
    %1753 = vmatprep.subr.mxu0 0.0
    %1754 = vmatpush1.msra.mxu0 0.0
    %1755 = vmatprep.subr.mxu0 0.0
    %1756 = vmatpush1.msra.mxu0 0.0
    %1757 = vmatprep.subr.mxu0 0.0
    %1758 = vmatpush1.msra.mxu0 0.0
    %1759 = vmatprep.subr.mxu0 0.0
    %1760 = vmatpush1.msra.mxu0 0.0
    %1761 = vmatprep.subr.mxu0 0.0
    %1762 = vmatpush1.msra.mxu0 0.0
    %1763 = vmatprep.subr.mxu0 0.0
    %1764 = vmatpush1.msra.mxu0 0.0
    %1765 = vmatprep.subr.mxu0 0.0
    %1766 = vmatpush1.msra.mxu0 0.0
    %1767 = vmatprep.subr.mxu0 0.0
    %1768 = vmatpush1.msra.mxu0 0.0
    %1769 = vmatprep.subr.mxu0 0.0
    %1770 = vmatpush1.msra.mxu0 0.0
    %1771 = vmatprep.subr.mxu0 0.0
    %1772 = vmatpush1.msra.mxu0 0.0
    %1773 = vmatprep.subr.mxu0 0.0
    %1774 = vmatpush1.msra.mxu0 0.0
    %1775 = vmatprep.mubr.f32.mxu0 0.0
    %1776 = vmatmul.mubr.f32.gmra.mrb[0].mxu0 %v1706
    %v1777 = vpop.f32.mrb[0].mxu0
    %v1778 = vadd.f32 %v1703, %v1777
    %v1779 = vpop.f32.mrb[0].mxu0
    %1780 = vmatprep.mubr.f32.mxu0 0.0
    %1781 = vmatmul.mubr.f32.gmra.mrb[0].mxu0 %v1709
    %v1782 = vpop.f32.mrb[0].mxu0
    %v1783 = vadd.f32 %v1703, %v1782
    %v1784 = vpop.f32.mrb[0].mxu0
    %1785 = vdwg.mxu0
    %v1786 = vld [vmem:[%s12] sm:$0xff]
    %v1787 = vld [vmem:[%s12 + $0x8] sm:$0xff]
    %v1788 = vld [vmem:[%s12 + $0x10] sm:$0xff]
    %v1789 = vld [vmem:[%s12 + $0x18] sm:$0xff]
    %v1790 = vld [vmem:[%s13] sm:$0x1]
    %v1792 = vlaneseq
    %v1793 = vshrl.u32 %v1792, 7
    %v1794 = vsub.s32 0, %v1793
    %v1795 = vrot.slane %v1790, %v1794
    %v1798 = vsel %vm104, %v91, 0
    %v1801 = vsel %vm104, %v92, 0
    %1803 = vmatprep.subr.mxu0 0.0
    %1804 = vmatpush1.msra.mxu0 %v1786
    %1805 = vmatprep.subr.mxu0 0.0
    %1806 = vmatpush1.msra.mxu0 %v1787
    %1807 = vmatprep.subr.mxu0 0.0
    %1808 = vmatpush1.msra.mxu0 %v1788
    %1809 = vmatprep.subr.mxu0 0.0
    %1810 = vmatpush1.msra.mxu0 %v1789
    %1811 = vmatprep.subr.mxu0 0.0
    %1812 = vmatpush1.msra.mxu0 0.0
    %1813 = vmatprep.subr.mxu0 0.0
    %1814 = vmatpush1.msra.mxu0 0.0
    %1815 = vmatprep.subr.mxu0 0.0
    %1816 = vmatpush1.msra.mxu0 0.0
    %1817 = vmatprep.subr.mxu0 0.0
    %1818 = vmatpush1.msra.mxu0 0.0
    %1819 = vmatprep.subr.mxu0 0.0
    %1820 = vmatpush1.msra.mxu0 0.0
    %1821 = vmatprep.subr.mxu0 0.0
    %1822 = vmatpush1.msra.mxu0 0.0
    %1823 = vmatprep.subr.mxu0 0.0
    %1824 = vmatpush1.msra.mxu0 0.0
    %1825 = vmatprep.subr.mxu0 0.0
    %1826 = vmatpush1.msra.mxu0 0.0
    %1827 = vmatprep.subr.mxu0 0.0
    %1828 = vmatpush1.msra.mxu0 0.0
    %1829 = vmatprep.subr.mxu0 0.0
    %1830 = vmatpush1.msra.mxu0 0.0
    %1831 = vmatprep.subr.mxu0 0.0
    %1832 = vmatpush1.msra.mxu0 0.0
    %1833 = vmatprep.subr.mxu0 0.0
    %1834 = vmatpush1.msra.mxu0 0.0
    %1835 = vmatprep.subr.mxu0 0.0
    %1836 = vmatpush1.msra.mxu0 0.0
    %1837 = vmatprep.subr.mxu0 0.0
    %1838 = vmatpush1.msra.mxu0 0.0
    %1839 = vmatprep.subr.mxu0 0.0
    %1840 = vmatpush1.msra.mxu0 0.0
    %1841 = vmatprep.subr.mxu0 0.0
    %1842 = vmatpush1.msra.mxu0 0.0
    %1843 = vmatprep.subr.mxu0 0.0
    %1844 = vmatpush1.msra.mxu0 0.0
    %1845 = vmatprep.subr.mxu0 0.0
    %1846 = vmatpush1.msra.mxu0 0.0
    %1847 = vmatprep.subr.mxu0 0.0
    %1848 = vmatpush1.msra.mxu0 0.0
    %1849 = vmatprep.subr.mxu0 0.0
    %1850 = vmatpush1.msra.mxu0 0.0
    %1851 = vmatprep.subr.mxu0 0.0
    %1852 = vmatpush1.msra.mxu0 0.0
    %1853 = vmatprep.subr.mxu0 0.0
    %1854 = vmatpush1.msra.mxu0 0.0
    %1855 = vmatprep.subr.mxu0 0.0
    %1856 = vmatpush1.msra.mxu0 0.0
    %1857 = vmatprep.subr.mxu0 0.0
    %1858 = vmatpush1.msra.mxu0 0.0
    %1859 = vmatprep.subr.mxu0 0.0
    %1860 = vmatpush1.msra.mxu0 0.0
    %1861 = vmatprep.subr.mxu0 0.0
    %1862 = vmatpush1.msra.mxu0 0.0
    %1863 = vmatprep.subr.mxu0 0.0
    %1864 = vmatpush1.msra.mxu0 0.0
    %1865 = vmatprep.subr.mxu0 0.0
    %1866 = vmatpush1.msra.mxu0 0.0
    %1867 = vmatprep.mubr.f32.mxu0 0.0
    %1868 = vmatmul.mubr.f32.gmra.mrb[0].mxu0 %v1798
    %v1869 = vpop.f32.mrb[0].mxu0
    %v1870 = vadd.f32 %v1795, %v1869
    %v1871 = vpop.f32.mrb[0].mxu0
    %1872 = vmatprep.mubr.f32.mxu0 0.0
    %1873 = vmatmul.mubr.f32.gmra.mrb[0].mxu0 %v1801
    %v1874 = vpop.f32.mrb[0].mxu0
    %v1875 = vadd.f32 %v1795, %v1874
    %v1876 = vpop.f32.mrb[0].mxu0
    %1877 = vdwg.mxu0
    %v1878 = vld [vmem:[%s3] sm:$0xff]
    %v1879 = vld [vmem:[%s3 + $0x8] sm:$0xff]
    %v1881 = vsel %vm191, %v1778, 0
    %v1884 = vsel %vm191, %v1870, 0
    %1886 = vmatprep.subr.mxu0 0.0
    %1887 = vmatpush1.xpose.msra.mxu0 %v1884
    %1888 = vmatprep.subr.mxu0 0.0
    %1889 = vmatpush1.xpose.msra.mxu0 0.0
    %1890 = vmatprep.subr.mxu0 0.0
    %1891 = vmatpush1.xpose.msra.mxu0 0.0
    %1892 = vmatprep.subr.mxu0 0.0
    %1893 = vmatpush1.xpose.msra.mxu0 0.0
    %1894 = vmatprep.subr.mxu0 0.0
    %1895 = vmatpush1.xpose.msra.mxu0 0.0
    %1896 = vmatprep.subr.mxu0 0.0
    %1897 = vmatpush1.xpose.msra.mxu0 0.0
    %1898 = vmatprep.subr.mxu0 0.0
    %1899 = vmatpush1.xpose.msra.mxu0 0.0
    %1900 = vmatprep.subr.mxu0 0.0
    %1901 = vmatpush1.xpose.msra.mxu0 0.0
    %1902 = vmatprep.subr.mxu0 0.0
    %1903 = vmatpush1.xpose.msra.mxu0 0.0
    %1904 = vmatprep.subr.mxu0 0.0
    %1905 = vmatpush1.xpose.msra.mxu0 0.0
    %1906 = vmatprep.subr.mxu0 0.0
    %1907 = vmatpush1.xpose.msra.mxu0 0.0
    %1908 = vmatprep.subr.mxu0 0.0
    %1909 = vmatpush1.xpose.msra.mxu0 0.0
    %1910 = vmatprep.subr.mxu0 0.0
    %1911 = vmatpush1.xpose.msra.mxu0 0.0
    %1912 = vmatprep.subr.mxu0 0.0
    %1913 = vmatpush1.xpose.msra.mxu0 0.0
    %1914 = vmatprep.subr.mxu0 0.0
    %1915 = vmatpush1.xpose.msra.mxu0 0.0
    %1916 = vmatprep.subr.mxu0 0.0
    %1917 = vmatpush1.xpose.msra.mxu0 0.0
    %1918 = vmatprep.subr.mxu0 0.0
    %1919 = vmatpush1.xpose.msra.mxu0 0.0
    %1920 = vmatprep.subr.mxu0 0.0
    %1921 = vmatpush1.xpose.msra.mxu0 0.0
    %1922 = vmatprep.subr.mxu0 0.0
    %1923 = vmatpush1.xpose.msra.mxu0 0.0
    %1924 = vmatprep.subr.mxu0 0.0
    %1925 = vmatpush1.xpose.msra.mxu0 0.0
    %1926 = vmatprep.subr.mxu0 0.0
    %1927 = vmatpush1.xpose.msra.mxu0 0.0
    %1928 = vmatprep.subr.mxu0 0.0
    %1929 = vmatpush1.xpose.msra.mxu0 0.0
    %1930 = vmatprep.subr.mxu0 0.0
    %1931 = vmatpush1.xpose.msra.mxu0 0.0
    %1932 = vmatprep.subr.mxu0 0.0
    %1933 = vmatpush1.xpose.msra.mxu0 0.0
    %1934 = vmatprep.subr.mxu0 0.0
    %1935 = vmatpush1.xpose.msra.mxu0 0.0
    %1936 = vmatprep.subr.mxu0 0.0
    %1937 = vmatpush1.xpose.msra.mxu0 0.0
    %1938 = vmatprep.subr.mxu0 0.0
    %1939 = vmatpush1.xpose.msra.mxu0 0.0
    %1940 = vmatprep.subr.mxu0 0.0
    %1941 = vmatpush1.xpose.msra.mxu0 0.0
    %1942 = vmatprep.subr.mxu0 0.0
    %1943 = vmatpush1.xpose.msra.mxu0 0.0
    %1944 = vmatprep.subr.mxu0 0.0
    %1945 = vmatpush1.xpose.msra.mxu0 0.0
    %1946 = vmatprep.subr.mxu0 0.0
    %1947 = vmatpush1.xpose.msra.mxu0 0.0
    %1948 = vmatprep.subr.mxu0 0.0
    %1949 = vmatpush1.xpose.msra.mxu0 0.0
    %1950 = vmatprep.mubr.f32.mxu0 0.0
    %1951 = vmatmul.mubr.f32.gmra.mrb[0].mxu0 %v1881
    %v1952 = vpop.f32.mrb[0].mxu0
    %v1953 = vadd.f32 0.0, %v1952
    %v1954 = vpop.f32.mrb[0].mxu0
    %1955 = vdwg.mxu0
    %v1956 = vmul.f32 %v1953, 0.35355338
    %v1957 = vadd.f32 %v1956, %v1878
    %v1958 = vsel %vm191, %v1957, -inf
    %1959 = vmax.xlane.f32.xlu0 %v1958
    %v1960 = vpop.xlane.xlu0 %1959
    %v1961 = vsub.f32 %v1957, %v1960
    %v1962 = vmul.f32 %v1961, 1.442695
    %v1963 = vpow.pop %v1962
    %v1964 = vsel %vm191, %v1963, 0.0
    %1965 = vadd.xlane.f32.xlu0 %v1964
    %v1966 = vpop.xlane.xlu0 %1965
    %v1967 = vrcp.pop %v1966
    %v1968 = vmul.f32 %v1963, %v1967
    %1969 = vrot.lane.b32.xlu0 %v1870, 96
    %v1970 = vpop.permute.xlu0 %1969
    %v1973 = vsel %vm191, %v1968, 0
    %1975 = vmatprep.subr.mxu0 0.0
    %1976 = vmatpush1.msra.mxu0 %v1970
    %1977 = vmatprep.subr.mxu0 0.0
    %1978 = vmatpush1.msra.mxu0 0.0
    %1979 = vmatprep.subr.mxu0 0.0
    %1980 = vmatpush1.msra.mxu0 0.0
    %1981 = vmatprep.subr.mxu0 0.0
    %1982 = vmatpush1.msra.mxu0 0.0
    %1983 = vmatprep.subr.mxu0 0.0
    %1984 = vmatpush1.msra.mxu0 0.0
    %1985 = vmatprep.subr.mxu0 0.0
    %1986 = vmatpush1.msra.mxu0 0.0
    %1987 = vmatprep.subr.mxu0 0.0
    %1988 = vmatpush1.msra.mxu0 0.0
    %1989 = vmatprep.subr.mxu0 0.0
    %1990 = vmatpush1.msra.mxu0 0.0
    %1991 = vmatprep.subr.mxu0 0.0
    %1992 = vmatpush1.msra.mxu0 0.0
    %1993 = vmatprep.subr.mxu0 0.0
    %1994 = vmatpush1.msra.mxu0 0.0
    %1995 = vmatprep.subr.mxu0 0.0
    %1996 = vmatpush1.msra.mxu0 0.0
    %1997 = vmatprep.subr.mxu0 0.0
    %1998 = vmatpush1.msra.mxu0 0.0
    %1999 = vmatprep.subr.mxu0 0.0
    %2000 = vmatpush1.msra.mxu0 0.0
    %2001 = vmatprep.subr.mxu0 0.0
    %2002 = vmatpush1.msra.mxu0 0.0
    %2003 = vmatprep.subr.mxu0 0.0
    %2004 = vmatpush1.msra.mxu0 0.0
    %2005 = vmatprep.subr.mxu0 0.0
    %2006 = vmatpush1.msra.mxu0 0.0
    %2007 = vmatprep.subr.mxu0 0.0
    %2008 = vmatpush1.msra.mxu0 0.0
    %2009 = vmatprep.subr.mxu0 0.0
    %2010 = vmatpush1.msra.mxu0 0.0
    %2011 = vmatprep.subr.mxu0 0.0
    %2012 = vmatpush1.msra.mxu0 0.0
    %2013 = vmatprep.subr.mxu0 0.0
    %2014 = vmatpush1.msra.mxu0 0.0
    %2015 = vmatprep.subr.mxu0 0.0
    %2016 = vmatpush1.msra.mxu0 0.0
    %2017 = vmatprep.subr.mxu0 0.0
    %2018 = vmatpush1.msra.mxu0 0.0
    %2019 = vmatprep.subr.mxu0 0.0
    %2020 = vmatpush1.msra.mxu0 0.0
    %2021 = vmatprep.subr.mxu0 0.0
    %2022 = vmatpush1.msra.mxu0 0.0
    %2023 = vmatprep.subr.mxu0 0.0
    %2024 = vmatpush1.msra.mxu0 0.0
    %2025 = vmatprep.subr.mxu0 0.0
    %2026 = vmatpush1.msra.mxu0 0.0
    %2027 = vmatprep.subr.mxu0 0.0
    %2028 = vmatpush1.msra.mxu0 0.0
    %2029 = vmatprep.subr.mxu0 0.0
    %2030 = vmatpush1.msra.mxu0 0.0
    %2031 = vmatprep.subr.mxu0 0.0
    %2032 = vmatpush1.msra.mxu0 0.0
    %2033 = vmatprep.subr.mxu0 0.0
    %2034 = vmatpush1.msra.mxu0 0.0
    %2035 = vmatprep.subr.mxu0 0.0
    %2036 = vmatpush1.msra.mxu0 0.0
    %2037 = vmatprep.subr.mxu0 0.0
    %2038 = vmatpush1.msra.mxu0 0.0
    %2039 = vmatprep.mubr.f32.mxu0 0.0
    %2040 = vmatmul.mubr.f32.gmra.mrb[0].mxu0 %v1973
    %v2041 = vpop.f32.mrb[0].mxu0
    %v2042 = vadd.f32 0.0, %v2041
    %v2043 = vpop.f32.mrb[0].mxu0
    %2044 = vdwg.mxu0
    %2045 = vrot.lane.b32.xlu0 %v1778, 120
    %v2046 = vpop.permute.xlu0 %2045
    %2047 = vrot.lane.b32.xlu0 %v1870, 120
    %v2048 = vpop.permute.xlu0 %2047
    %v2049 = vsel %vm191, %v2046, 0
    %v2051 = vsel %vm191, %v2048, 0
    %2053 = vmatprep.subr.mxu0 0.0
    %2054 = vmatpush1.xpose.msra.mxu0 %v2051
    %2055 = vmatprep.subr.mxu0 0.0
    %2056 = vmatpush1.xpose.msra.mxu0 0.0
    %2057 = vmatprep.subr.mxu0 0.0
    %2058 = vmatpush1.xpose.msra.mxu0 0.0
    %2059 = vmatprep.subr.mxu0 0.0
    %2060 = vmatpush1.xpose.msra.mxu0 0.0
    %2061 = vmatprep.subr.mxu0 0.0
    %2062 = vmatpush1.xpose.msra.mxu0 0.0
    %2063 = vmatprep.subr.mxu0 0.0
    %2064 = vmatpush1.xpose.msra.mxu0 0.0
    %2065 = vmatprep.subr.mxu0 0.0
    %2066 = vmatpush1.xpose.msra.mxu0 0.0
    %2067 = vmatprep.subr.mxu0 0.0
    %2068 = vmatpush1.xpose.msra.mxu0 0.0
    %2069 = vmatprep.subr.mxu0 0.0
    %2070 = vmatpush1.xpose.msra.mxu0 0.0
    %2071 = vmatprep.subr.mxu0 0.0
    %2072 = vmatpush1.xpose.msra.mxu0 0.0
    %2073 = vmatprep.subr.mxu0 0.0
    %2074 = vmatpush1.xpose.msra.mxu0 0.0
    %2075 = vmatprep.subr.mxu0 0.0
    %2076 = vmatpush1.xpose.msra.mxu0 0.0
    %2077 = vmatprep.subr.mxu0 0.0
    %2078 = vmatpush1.xpose.msra.mxu0 0.0
    %2079 = vmatprep.subr.mxu0 0.0
    %2080 = vmatpush1.xpose.msra.mxu0 0.0
    %2081 = vmatprep.subr.mxu0 0.0
    %2082 = vmatpush1.xpose.msra.mxu0 0.0
    %2083 = vmatprep.subr.mxu0 0.0
    %2084 = vmatpush1.xpose.msra.mxu0 0.0
    %2085 = vmatprep.subr.mxu0 0.0
    %2086 = vmatpush1.xpose.msra.mxu0 0.0
    %2087 = vmatprep.subr.mxu0 0.0
    %2088 = vmatpush1.xpose.msra.mxu0 0.0
    %2089 = vmatprep.subr.mxu0 0.0
    %2090 = vmatpush1.xpose.msra.mxu0 0.0
    %2091 = vmatprep.subr.mxu0 0.0
    %2092 = vmatpush1.xpose.msra.mxu0 0.0
    %2093 = vmatprep.subr.mxu0 0.0
    %2094 = vmatpush1.xpose.msra.mxu0 0.0
    %2095 = vmatprep.subr.mxu0 0.0
    %2096 = vmatpush1.xpose.msra.mxu0 0.0
    %2097 = vmatprep.subr.mxu0 0.0
    %2098 = vmatpush1.xpose.msra.mxu0 0.0
    %2099 = vmatprep.subr.mxu0 0.0
    %2100 = vmatpush1.xpose.msra.mxu0 0.0
    %2101 = vmatprep.subr.mxu0 0.0
    %2102 = vmatpush1.xpose.msra.mxu0 0.0
    %2103 = vmatprep.subr.mxu0 0.0
    %2104 = vmatpush1.xpose.msra.mxu0 0.0
    %2105 = vmatprep.subr.mxu0 0.0
    %2106 = vmatpush1.xpose.msra.mxu0 0.0
    %2107 = vmatprep.subr.mxu0 0.0
    %2108 = vmatpush1.xpose.msra.mxu0 0.0
    %2109 = vmatprep.subr.mxu0 0.0
    %2110 = vmatpush1.xpose.msra.mxu0 0.0
    %2111 = vmatprep.subr.mxu0 0.0
    %2112 = vmatpush1.xpose.msra.mxu0 0.0
    %2113 = vmatprep.subr.mxu0 0.0
    %2114 = vmatpush1.xpose.msra.mxu0 0.0
    %2115 = vmatprep.subr.mxu0 0.0
    %2116 = vmatpush1.xpose.msra.mxu0 0.0
    %2117 = vmatprep.mubr.f32.mxu0 0.0
    %2118 = vmatmul.mubr.f32.gmra.mrb[0].mxu0 %v2049
    %v2119 = vpop.f32.mrb[0].mxu0
    %v2120 = vadd.f32 0.0, %v2119
    %v2121 = vpop.f32.mrb[0].mxu0
    %2122 = vdwg.mxu0
    %v2123 = vmul.f32 %v2120, 0.35355338
    %v2124 = vadd.f32 %v2123, %v1878
    %v2125 = vsel %vm191, %v2124, -inf
    %2126 = vmax.xlane.f32.xlu0 %v2125
    %v2127 = vpop.xlane.xlu0 %2126
    %v2128 = vsub.f32 %v2124, %v2127
    %v2129 = vmul.f32 %v2128, 1.442695
    %v2130 = vpow.pop %v2129
    %v2131 = vsel %vm191, %v2130, 0.0
    %2132 = vadd.xlane.f32.xlu0 %v2131
    %v2133 = vpop.xlane.xlu0 %2132
    %v2134 = vrcp.pop %v2133
    %v2135 = vmul.f32 %v2130, %v2134
    %2136 = vrot.lane.b32.xlu0 %v1870, 88
    %v2137 = vpop.permute.xlu0 %2136
    %v2140 = vsel %vm191, %v2135, 0
    %2142 = vmatprep.subr.mxu0 0.0
    %2143 = vmatpush1.msra.mxu0 %v2137
    %2144 = vmatprep.subr.mxu0 0.0
    %2145 = vmatpush1.msra.mxu0 0.0
    %2146 = vmatprep.subr.mxu0 0.0
    %2147 = vmatpush1.msra.mxu0 0.0
    %2148 = vmatprep.subr.mxu0 0.0
    %2149 = vmatpush1.msra.mxu0 0.0
    %2150 = vmatprep.subr.mxu0 0.0
    %2151 = vmatpush1.msra.mxu0 0.0
    %2152 = vmatprep.subr.mxu0 0.0
    %2153 = vmatpush1.msra.mxu0 0.0
    %2154 = vmatprep.subr.mxu0 0.0
    %2155 = vmatpush1.msra.mxu0 0.0
    %2156 = vmatprep.subr.mxu0 0.0
    %2157 = vmatpush1.msra.mxu0 0.0
    %2158 = vmatprep.subr.mxu0 0.0
    %2159 = vmatpush1.msra.mxu0 0.0
    %2160 = vmatprep.subr.mxu0 0.0
    %2161 = vmatpush1.msra.mxu0 0.0
    %2162 = vmatprep.subr.mxu0 0.0
    %2163 = vmatpush1.msra.mxu0 0.0
    %2164 = vmatprep.subr.mxu0 0.0
    %2165 = vmatpush1.msra.mxu0 0.0
    %2166 = vmatprep.subr.mxu0 0.0
    %2167 = vmatpush1.msra.mxu0 0.0
    %2168 = vmatprep.subr.mxu0 0.0
    %2169 = vmatpush1.msra.mxu0 0.0
    %2170 = vmatprep.subr.mxu0 0.0
    %2171 = vmatpush1.msra.mxu0 0.0
    %2172 = vmatprep.subr.mxu0 0.0
    %2173 = vmatpush1.msra.mxu0 0.0
    %2174 = vmatprep.subr.mxu0 0.0
    %2175 = vmatpush1.msra.mxu0 0.0
    %2176 = vmatprep.subr.mxu0 0.0
    %2177 = vmatpush1.msra.mxu0 0.0
    %2178 = vmatprep.subr.mxu0 0.0
    %2179 = vmatpush1.msra.mxu0 0.0
    %2180 = vmatprep.subr.mxu0 0.0
    %2181 = vmatpush1.msra.mxu0 0.0
    %2182 = vmatprep.subr.mxu0 0.0
    %2183 = vmatpush1.msra.mxu0 0.0
    %2184 = vmatprep.subr.mxu0 0.0
    %2185 = vmatpush1.msra.mxu0 0.0
    %2186 = vmatprep.subr.mxu0 0.0
    %2187 = vmatpush1.msra.mxu0 0.0
    %2188 = vmatprep.subr.mxu0 0.0
    %2189 = vmatpush1.msra.mxu0 0.0
    %2190 = vmatprep.subr.mxu0 0.0
    %2191 = vmatpush1.msra.mxu0 0.0
    %2192 = vmatprep.subr.mxu0 0.0
    %2193 = vmatpush1.msra.mxu0 0.0
    %2194 = vmatprep.subr.mxu0 0.0
    %2195 = vmatpush1.msra.mxu0 0.0
    %2196 = vmatprep.subr.mxu0 0.0
    %2197 = vmatpush1.msra.mxu0 0.0
    %2198 = vmatprep.subr.mxu0 0.0
    %2199 = vmatpush1.msra.mxu0 0.0
    %2200 = vmatprep.subr.mxu0 0.0
    %2201 = vmatpush1.msra.mxu0 0.0
    %2202 = vmatprep.subr.mxu0 0.0
    %2203 = vmatpush1.msra.mxu0 0.0
    %2204 = vmatprep.subr.mxu0 0.0
    %2205 = vmatpush1.msra.mxu0 0.0
    %2206 = vmatprep.mubr.f32.mxu0 0.0
    %2207 = vmatmul.mubr.f32.gmra.mrb[0].mxu0 %v2140
    %v2208 = vpop.f32.mrb[0].mxu0
    %v2209 = vadd.f32 0.0, %v2208
    %v2210 = vpop.f32.mrb[0].mxu0
    %2211 = vdwg.mxu0
    %2212 = vrot.lane.b32.xlu0 %v1778, 112
    %v2213 = vpop.permute.xlu0 %2212
    %2214 = vrot.lane.b32.xlu0 %v1870, 112
    %v2215 = vpop.permute.xlu0 %2214
    %v2216 = vsel %vm191, %v2213, 0
    %v2218 = vsel %vm191, %v2215, 0
    %2220 = vmatprep.subr.mxu0 0.0
    %2221 = vmatpush1.xpose.msra.mxu0 %v2218
    %2222 = vmatprep.subr.mxu0 0.0
    %2223 = vmatpush1.xpose.msra.mxu0 0.0
    %2224 = vmatprep.subr.mxu0 0.0
    %2225 = vmatpush1.xpose.msra.mxu0 0.0
    %2226 = vmatprep.subr.mxu0 0.0
    %2227 = vmatpush1.xpose.msra.mxu0 0.0
    %2228 = vmatprep.subr.mxu0 0.0
    %2229 = vmatpush1.xpose.msra.mxu0 0.0
    %2230 = vmatprep.subr.mxu0 0.0
    %2231 = vmatpush1.xpose.msra.mxu0 0.0
    %2232 = vmatprep.subr.mxu0 0.0
    %2233 = vmatpush1.xpose.msra.mxu0 0.0
    %2234 = vmatprep.subr.mxu0 0.0
    %2235 = vmatpush1.xpose.msra.mxu0 0.0
    %2236 = vmatprep.subr.mxu0 0.0
    %2237 = vmatpush1.xpose.msra.mxu0 0.0
    %2238 = vmatprep.subr.mxu0 0.0
    %2239 = vmatpush1.xpose.msra.mxu0 0.0
    %2240 = vmatprep.subr.mxu0 0.0
    %2241 = vmatpush1.xpose.msra.mxu0 0.0
    %2242 = vmatprep.subr.mxu0 0.0
    %2243 = vmatpush1.xpose.msra.mxu0 0.0
    %2244 = vmatprep.subr.mxu0 0.0
    %2245 = vmatpush1.xpose.msra.mxu0 0.0
    %2246 = vmatprep.subr.mxu0 0.0
    %2247 = vmatpush1.xpose.msra.mxu0 0.0
    %2248 = vmatprep.subr.mxu0 0.0
    %2249 = vmatpush1.xpose.msra.mxu0 0.0
    %2250 = vmatprep.subr.mxu0 0.0
    %2251 = vmatpush1.xpose.msra.mxu0 0.0
    %2252 = vmatprep.subr.mxu0 0.0
    %2253 = vmatpush1.xpose.msra.mxu0 0.0
    %2254 = vmatprep.subr.mxu0 0.0
    %2255 = vmatpush1.xpose.msra.mxu0 0.0
    %2256 = vmatprep.subr.mxu0 0.0
    %2257 = vmatpush1.xpose.msra.mxu0 0.0
    %2258 = vmatprep.subr.mxu0 0.0
    %2259 = vmatpush1.xpose.msra.mxu0 0.0
    %2260 = vmatprep.subr.mxu0 0.0
    %2261 = vmatpush1.xpose.msra.mxu0 0.0
    %2262 = vmatprep.subr.mxu0 0.0
    %2263 = vmatpush1.xpose.msra.mxu0 0.0
    %2264 = vmatprep.subr.mxu0 0.0
    %2265 = vmatpush1.xpose.msra.mxu0 0.0
    %2266 = vmatprep.subr.mxu0 0.0
    %2267 = vmatpush1.xpose.msra.mxu0 0.0
    %2268 = vmatprep.subr.mxu0 0.0
    %2269 = vmatpush1.xpose.msra.mxu0 0.0
    %2270 = vmatprep.subr.mxu0 0.0
    %2271 = vmatpush1.xpose.msra.mxu0 0.0
    %2272 = vmatprep.subr.mxu0 0.0
    %2273 = vmatpush1.xpose.msra.mxu0 0.0
    %2274 = vmatprep.subr.mxu0 0.0
    %2275 = vmatpush1.xpose.msra.mxu0 0.0
    %2276 = vmatprep.subr.mxu0 0.0
    %2277 = vmatpush1.xpose.msra.mxu0 0.0
    %2278 = vmatprep.subr.mxu0 0.0
    %2279 = vmatpush1.xpose.msra.mxu0 0.0
    %2280 = vmatprep.subr.mxu0 0.0
    %2281 = vmatpush1.xpose.msra.mxu0 0.0
    %2282 = vmatprep.subr.mxu0 0.0
    %2283 = vmatpush1.xpose.msra.mxu0 0.0
    %2284 = vmatprep.mubr.f32.mxu0 0.0
    %2285 = vmatmul.mubr.f32.gmra.mrb[0].mxu0 %v2216
    %v2286 = vpop.f32.mrb[0].mxu0
    %v2287 = vadd.f32 0.0, %v2286
    %v2288 = vpop.f32.mrb[0].mxu0
    %2289 = vdwg.mxu0
    %v2290 = vmul.f32 %v2287, 0.35355338
    %v2291 = vadd.f32 %v2290, %v1878
    %v2292 = vsel %vm191, %v2291, -inf
    %2293 = vmax.xlane.f32.xlu0 %v2292
    %v2294 = vpop.xlane.xlu0 %2293
    %v2295 = vsub.f32 %v2291, %v2294
    %v2296 = vmul.f32 %v2295, 1.442695
    %v2297 = vpow.pop %v2296
    %v2298 = vsel %vm191, %v2297, 0.0
    %2299 = vadd.xlane.f32.xlu0 %v2298
    %v2300 = vpop.xlane.xlu0 %2299
    %v2301 = vrcp.pop %v2300
    %v2302 = vmul.f32 %v2297, %v2301
    %2303 = vrot.lane.b32.xlu0 %v1870, 80
    %v2304 = vpop.permute.xlu0 %2303
    %v2307 = vsel %vm191, %v2302, 0
    %2309 = vmatprep.subr.mxu0 0.0
    %2310 = vmatpush1.msra.mxu0 %v2304
    %2311 = vmatprep.subr.mxu0 0.0
    %2312 = vmatpush1.msra.mxu0 0.0
    %2313 = vmatprep.subr.mxu0 0.0
    %2314 = vmatpush1.msra.mxu0 0.0
    %2315 = vmatprep.subr.mxu0 0.0
    %2316 = vmatpush1.msra.mxu0 0.0
    %2317 = vmatprep.subr.mxu0 0.0
    %2318 = vmatpush1.msra.mxu0 0.0
    %2319 = vmatprep.subr.mxu0 0.0
    %2320 = vmatpush1.msra.mxu0 0.0
    %2321 = vmatprep.subr.mxu0 0.0
    %2322 = vmatpush1.msra.mxu0 0.0
    %2323 = vmatprep.subr.mxu0 0.0
    %2324 = vmatpush1.msra.mxu0 0.0
    %2325 = vmatprep.subr.mxu0 0.0
    %2326 = vmatpush1.msra.mxu0 0.0
    %2327 = vmatprep.subr.mxu0 0.0
    %2328 = vmatpush1.msra.mxu0 0.0
    %2329 = vmatprep.subr.mxu0 0.0
    %2330 = vmatpush1.msra.mxu0 0.0
    %2331 = vmatprep.subr.mxu0 0.0
    %2332 = vmatpush1.msra.mxu0 0.0
    %2333 = vmatprep.subr.mxu0 0.0
    %2334 = vmatpush1.msra.mxu0 0.0
    %2335 = vmatprep.subr.mxu0 0.0
    %2336 = vmatpush1.msra.mxu0 0.0
    %2337 = vmatprep.subr.mxu0 0.0
    %2338 = vmatpush1.msra.mxu0 0.0
    %2339 = vmatprep.subr.mxu0 0.0
    %2340 = vmatpush1.msra.mxu0 0.0
    %2341 = vmatprep.subr.mxu0 0.0
    %2342 = vmatpush1.msra.mxu0 0.0
    %2343 = vmatprep.subr.mxu0 0.0
    %2344 = vmatpush1.msra.mxu0 0.0
    %2345 = vmatprep.subr.mxu0 0.0
    %2346 = vmatpush1.msra.mxu0 0.0
    %2347 = vmatprep.subr.mxu0 0.0
    %2348 = vmatpush1.msra.mxu0 0.0
    %2349 = vmatprep.subr.mxu0 0.0
    %2350 = vmatpush1.msra.mxu0 0.0
    %2351 = vmatprep.subr.mxu0 0.0
    %2352 = vmatpush1.msra.mxu0 0.0
    %2353 = vmatprep.subr.mxu0 0.0
    %2354 = vmatpush1.msra.mxu0 0.0
    %2355 = vmatprep.subr.mxu0 0.0
    %2356 = vmatpush1.msra.mxu0 0.0
    %2357 = vmatprep.subr.mxu0 0.0
    %2358 = vmatpush1.msra.mxu0 0.0
    %2359 = vmatprep.subr.mxu0 0.0
    %2360 = vmatpush1.msra.mxu0 0.0
    %2361 = vmatprep.subr.mxu0 0.0
    %2362 = vmatpush1.msra.mxu0 0.0
    %2363 = vmatprep.subr.mxu0 0.0
    %2364 = vmatpush1.msra.mxu0 0.0
    %2365 = vmatprep.subr.mxu0 0.0
    %2366 = vmatpush1.msra.mxu0 0.0
    %2367 = vmatprep.subr.mxu0 0.0
    %2368 = vmatpush1.msra.mxu0 0.0
    %2369 = vmatprep.subr.mxu0 0.0
    %2370 = vmatpush1.msra.mxu0 0.0
    %2371 = vmatprep.subr.mxu0 0.0
    %2372 = vmatpush1.msra.mxu0 0.0
    %2373 = vmatprep.mubr.f32.mxu0 0.0
    %2374 = vmatmul.mubr.f32.gmra.mrb[0].mxu0 %v2307
    %v2375 = vpop.f32.mrb[0].mxu0
    %v2376 = vadd.f32 0.0, %v2375
    %v2377 = vpop.f32.mrb[0].mxu0
    %2378 = vdwg.mxu0
    %2379 = vrot.lane.b32.xlu0 %v1778, 104
    %v2380 = vpop.permute.xlu0 %2379
    %2381 = vrot.lane.b32.xlu0 %v1870, 104
    %v2382 = vpop.permute.xlu0 %2381
    %v2383 = vsel %vm191, %v2380, 0
    %v2385 = vsel %vm191, %v2382, 0
    %2387 = vmatprep.subr.mxu0 0.0
    %2388 = vmatpush1.xpose.msra.mxu0 %v2385
    %2389 = vmatprep.subr.mxu0 0.0
    %2390 = vmatpush1.xpose.msra.mxu0 0.0
    %2391 = vmatprep.subr.mxu0 0.0
    %2392 = vmatpush1.xpose.msra.mxu0 0.0
    %2393 = vmatprep.subr.mxu0 0.0
    %2394 = vmatpush1.xpose.msra.mxu0 0.0
    %2395 = vmatprep.subr.mxu0 0.0
    %2396 = vmatpush1.xpose.msra.mxu0 0.0
    %2397 = vmatprep.subr.mxu0 0.0
    %2398 = vmatpush1.xpose.msra.mxu0 0.0
    %2399 = vmatprep.subr.mxu0 0.0
    %2400 = vmatpush1.xpose.msra.mxu0 0.0
    %2401 = vmatprep.subr.mxu0 0.0
    %2402 = vmatpush1.xpose.msra.mxu0 0.0
    %2403 = vmatprep.subr.mxu0 0.0
    %2404 = vmatpush1.xpose.msra.mxu0 0.0
    %2405 = vmatprep.subr.mxu0 0.0
    %2406 = vmatpush1.xpose.msra.mxu0 0.0
    %2407 = vmatprep.subr.mxu0 0.0
    %2408 = vmatpush1.xpose.msra.mxu0 0.0
    %2409 = vmatprep.subr.mxu0 0.0
    %2410 = vmatpush1.xpose.msra.mxu0 0.0
    %2411 = vmatprep.subr.mxu0 0.0
    %2412 = vmatpush1.xpose.msra.mxu0 0.0
    %2413 = vmatprep.subr.mxu0 0.0
    %2414 = vmatpush1.xpose.msra.mxu0 0.0
    %2415 = vmatprep.subr.mxu0 0.0
    %2416 = vmatpush1.xpose.msra.mxu0 0.0
    %2417 = vmatprep.subr.mxu0 0.0
    %2418 = vmatpush1.xpose.msra.mxu0 0.0
    %2419 = vmatprep.subr.mxu0 0.0
    %2420 = vmatpush1.xpose.msra.mxu0 0.0
    %2421 = vmatprep.subr.mxu0 0.0
    %2422 = vmatpush1.xpose.msra.mxu0 0.0
    %2423 = vmatprep.subr.mxu0 0.0
    %2424 = vmatpush1.xpose.msra.mxu0 0.0
    %2425 = vmatprep.subr.mxu0 0.0
    %2426 = vmatpush1.xpose.msra.mxu0 0.0
    %2427 = vmatprep.subr.mxu0 0.0
    %2428 = vmatpush1.xpose.msra.mxu0 0.0
    %2429 = vmatprep.subr.mxu0 0.0
    %2430 = vmatpush1.xpose.msra.mxu0 0.0
    %2431 = vmatprep.subr.mxu0 0.0
    %2432 = vmatpush1.xpose.msra.mxu0 0.0
    %2433 = vmatprep.subr.mxu0 0.0
    %2434 = vmatpush1.xpose.msra.mxu0 0.0
    %2435 = vmatprep.subr.mxu0 0.0
    %2436 = vmatpush1.xpose.msra.mxu0 0.0
    %2437 = vmatprep.subr.mxu0 0.0
    %2438 = vmatpush1.xpose.msra.mxu0 0.0
    %2439 = vmatprep.subr.mxu0 0.0
    %2440 = vmatpush1.xpose.msra.mxu0 0.0
    %2441 = vmatprep.subr.mxu0 0.0
    %2442 = vmatpush1.xpose.msra.mxu0 0.0
    %2443 = vmatprep.subr.mxu0 0.0
    %2444 = vmatpush1.xpose.msra.mxu0 0.0
    %2445 = vmatprep.subr.mxu0 0.0
    %2446 = vmatpush1.xpose.msra.mxu0 0.0
    %2447 = vmatprep.subr.mxu0 0.0
    %2448 = vmatpush1.xpose.msra.mxu0 0.0
    %2449 = vmatprep.subr.mxu0 0.0
    %2450 = vmatpush1.xpose.msra.mxu0 0.0
    %2451 = vmatprep.mubr.f32.mxu0 0.0
    %2452 = vmatmul.mubr.f32.gmra.mrb[0].mxu0 %v2383
    %v2453 = vpop.f32.mrb[0].mxu0
    %v2454 = vadd.f32 0.0, %v2453
    %v2455 = vpop.f32.mrb[0].mxu0
    %2456 = vdwg.mxu0
    %v2457 = vmul.f32 %v2454, 0.35355338
    %v2458 = vadd.f32 %v2457, %v1878
    %v2459 = vsel %vm191, %v2458, -inf
    %2460 = vmax.xlane.f32.xlu0 %v2459
    %v2461 = vpop.xlane.xlu0 %2460
    %v2462 = vsub.f32 %v2458, %v2461
    %v2463 = vmul.f32 %v2462, 1.442695
    %v2464 = vpow.pop %v2463
    %v2465 = vsel %vm191, %v2464, 0.0
    %2466 = vadd.xlane.f32.xlu0 %v2465
    %v2467 = vpop.xlane.xlu0 %2466
    %v2468 = vrcp.pop %v2467
    %v2469 = vmul.f32 %v2464, %v2468
    %2470 = vrot.lane.b32.xlu0 %v1870, 72
    %v2471 = vpop.permute.xlu0 %2470
    %v2474 = vsel %vm191, %v2469, 0
    %2476 = vmatprep.subr.mxu0 0.0
    %2477 = vmatpush1.msra.mxu0 %v2471
    %2478 = vmatprep.subr.mxu0 0.0
    %2479 = vmatpush1.msra.mxu0 0.0
    %2480 = vmatprep.subr.mxu0 0.0
    %2481 = vmatpush1.msra.mxu0 0.0
    %2482 = vmatprep.subr.mxu0 0.0
    %2483 = vmatpush1.msra.mxu0 0.0
    %2484 = vmatprep.subr.mxu0 0.0
    %2485 = vmatpush1.msra.mxu0 0.0
    %2486 = vmatprep.subr.mxu0 0.0
    %2487 = vmatpush1.msra.mxu0 0.0
    %2488 = vmatprep.subr.mxu0 0.0
    %2489 = vmatpush1.msra.mxu0 0.0
    %2490 = vmatprep.subr.mxu0 0.0
    %2491 = vmatpush1.msra.mxu0 0.0
    %2492 = vmatprep.subr.mxu0 0.0
    %2493 = vmatpush1.msra.mxu0 0.0
    %2494 = vmatprep.subr.mxu0 0.0
    %2495 = vmatpush1.msra.mxu0 0.0
    %2496 = vmatprep.subr.mxu0 0.0
    %2497 = vmatpush1.msra.mxu0 0.0
    %2498 = vmatprep.subr.mxu0 0.0
    %2499 = vmatpush1.msra.mxu0 0.0
    %2500 = vmatprep.subr.mxu0 0.0
    %2501 = vmatpush1.msra.mxu0 0.0
    %2502 = vmatprep.subr.mxu0 0.0
    %2503 = vmatpush1.msra.mxu0 0.0
    %2504 = vmatprep.subr.mxu0 0.0
    %2505 = vmatpush1.msra.mxu0 0.0
    %2506 = vmatprep.subr.mxu0 0.0
    %2507 = vmatpush1.msra.mxu0 0.0
    %2508 = vmatprep.subr.mxu0 0.0
    %2509 = vmatpush1.msra.mxu0 0.0
    %2510 = vmatprep.subr.mxu0 0.0
    %2511 = vmatpush1.msra.mxu0 0.0
    %2512 = vmatprep.subr.mxu0 0.0
    %2513 = vmatpush1.msra.mxu0 0.0
    %2514 = vmatprep.subr.mxu0 0.0
    %2515 = vmatpush1.msra.mxu0 0.0
    %2516 = vmatprep.subr.mxu0 0.0
    %2517 = vmatpush1.msra.mxu0 0.0
    %2518 = vmatprep.subr.mxu0 0.0
    %2519 = vmatpush1.msra.mxu0 0.0
    %2520 = vmatprep.subr.mxu0 0.0
    %2521 = vmatpush1.msra.mxu0 0.0
    %2522 = vmatprep.subr.mxu0 0.0
    %2523 = vmatpush1.msra.mxu0 0.0
    %2524 = vmatprep.subr.mxu0 0.0
    %2525 = vmatpush1.msra.mxu0 0.0
    %2526 = vmatprep.subr.mxu0 0.0
    %2527 = vmatpush1.msra.mxu0 0.0
    %2528 = vmatprep.subr.mxu0 0.0
    %2529 = vmatpush1.msra.mxu0 0.0
    %2530 = vmatprep.subr.mxu0 0.0
    %2531 = vmatpush1.msra.mxu0 0.0
    %2532 = vmatprep.subr.mxu0 0.0
    %2533 = vmatpush1.msra.mxu0 0.0
    %2534 = vmatprep.subr.mxu0 0.0
    %2535 = vmatpush1.msra.mxu0 0.0
    %2536 = vmatprep.subr.mxu0 0.0
    %2537 = vmatpush1.msra.mxu0 0.0
    %2538 = vmatprep.subr.mxu0 0.0
    %2539 = vmatpush1.msra.mxu0 0.0
    %2540 = vmatprep.mubr.f32.mxu0 0.0
    %2541 = vmatmul.mubr.f32.gmra.mrb[0].mxu0 %v2474
    %v2542 = vpop.f32.mrb[0].mxu0
    %v2543 = vadd.f32 0.0, %v2542
    %v2544 = vpop.f32.mrb[0].mxu0
    %2545 = vdwg.mxu0
    %2547 = vrot.lane.b32.xlu0 %v2209, 8
    %v2548 = vpop.permute.xlu0 %2547
    %2551 = vrot.lane.b32.xlu0 %v2376, 16
    %v2552 = vpop.permute.xlu0 %2551
    %2555 = vrot.lane.b32.xlu0 %v2543, 24
    %v2556 = vpop.permute.xlu0 %2555
    %v2558 = vsel %vm191, %v2042, %v2548
    %v2559 = vsel %vm869, %v2558, %v2552
    %v2560 = vsel %vm871, %v2559, %v2556
    %v2562 = vsel %vm191, %v1783, 0
    %v2565 = vsel %vm191, %v1875, 0
    %2567 = vmatprep.subr.mxu0 0.0
    %2568 = vmatpush1.xpose.msra.mxu0 %v2565
    %2569 = vmatprep.subr.mxu0 0.0
    %2570 = vmatpush1.xpose.msra.mxu0 0.0
    %2571 = vmatprep.subr.mxu0 0.0
    %2572 = vmatpush1.xpose.msra.mxu0 0.0
    %2573 = vmatprep.subr.mxu0 0.0
    %2574 = vmatpush1.xpose.msra.mxu0 0.0
    %2575 = vmatprep.subr.mxu0 0.0
    %2576 = vmatpush1.xpose.msra.mxu0 0.0
    %2577 = vmatprep.subr.mxu0 0.0
    %2578 = vmatpush1.xpose.msra.mxu0 0.0
    %2579 = vmatprep.subr.mxu0 0.0
    %2580 = vmatpush1.xpose.msra.mxu0 0.0
    %2581 = vmatprep.subr.mxu0 0.0
    %2582 = vmatpush1.xpose.msra.mxu0 0.0
    %2583 = vmatprep.subr.mxu0 0.0
    %2584 = vmatpush1.xpose.msra.mxu0 0.0
    %2585 = vmatprep.subr.mxu0 0.0
    %2586 = vmatpush1.xpose.msra.mxu0 0.0
    %2587 = vmatprep.subr.mxu0 0.0
    %2588 = vmatpush1.xpose.msra.mxu0 0.0
    %2589 = vmatprep.subr.mxu0 0.0
    %2590 = vmatpush1.xpose.msra.mxu0 0.0
    %2591 = vmatprep.subr.mxu0 0.0
    %2592 = vmatpush1.xpose.msra.mxu0 0.0
    %2593 = vmatprep.subr.mxu0 0.0
    %2594 = vmatpush1.xpose.msra.mxu0 0.0
    %2595 = vmatprep.subr.mxu0 0.0
    %2596 = vmatpush1.xpose.msra.mxu0 0.0
    %2597 = vmatprep.subr.mxu0 0.0
    %2598 = vmatpush1.xpose.msra.mxu0 0.0
    %2599 = vmatprep.subr.mxu0 0.0
    %2600 = vmatpush1.xpose.msra.mxu0 0.0
    %2601 = vmatprep.subr.mxu0 0.0
    %2602 = vmatpush1.xpose.msra.mxu0 0.0
    %2603 = vmatprep.subr.mxu0 0.0
    %2604 = vmatpush1.xpose.msra.mxu0 0.0
    %2605 = vmatprep.subr.mxu0 0.0
    %2606 = vmatpush1.xpose.msra.mxu0 0.0
    %2607 = vmatprep.subr.mxu0 0.0
    %2608 = vmatpush1.xpose.msra.mxu0 0.0
    %2609 = vmatprep.subr.mxu0 0.0
    %2610 = vmatpush1.xpose.msra.mxu0 0.0
    %2611 = vmatprep.subr.mxu0 0.0
    %2612 = vmatpush1.xpose.msra.mxu0 0.0
    %2613 = vmatprep.subr.mxu0 0.0
    %2614 = vmatpush1.xpose.msra.mxu0 0.0
    %2615 = vmatprep.subr.mxu0 0.0
    %2616 = vmatpush1.xpose.msra.mxu0 0.0
    %2617 = vmatprep.subr.mxu0 0.0
    %2618 = vmatpush1.xpose.msra.mxu0 0.0
    %2619 = vmatprep.subr.mxu0 0.0
    %2620 = vmatpush1.xpose.msra.mxu0 0.0
    %2621 = vmatprep.subr.mxu0 0.0
    %2622 = vmatpush1.xpose.msra.mxu0 0.0
    %2623 = vmatprep.subr.mxu0 0.0
    %2624 = vmatpush1.xpose.msra.mxu0 0.0
    %2625 = vmatprep.subr.mxu0 0.0
    %2626 = vmatpush1.xpose.msra.mxu0 0.0
    %2627 = vmatprep.subr.mxu0 0.0
    %2628 = vmatpush1.xpose.msra.mxu0 0.0
    %2629 = vmatprep.subr.mxu0 0.0
    %2630 = vmatpush1.xpose.msra.mxu0 0.0
    %2631 = vmatprep.mubr.f32.mxu0 0.0
    %2632 = vmatmul.mubr.f32.gmra.mrb[0].mxu0 %v2562
    %v2633 = vpop.f32.mrb[0].mxu0
    %v2634 = vadd.f32 0.0, %v2633
    %v2635 = vpop.f32.mrb[0].mxu0
    %2636 = vdwg.mxu0
    %v2637 = vmul.f32 %v2634, 0.35355338
    %v2638 = vadd.f32 %v2637, %v1879
    %v2639 = vsel %vm191, %v2638, -inf
    %2640 = vmax.xlane.f32.xlu0 %v2639
    %v2641 = vpop.xlane.xlu0 %2640
    %v2642 = vsub.f32 %v2638, %v2641
    %v2643 = vmul.f32 %v2642, 1.442695
    %v2644 = vpow.pop %v2643
    %v2645 = vsel %vm191, %v2644, 0.0
    %2646 = vadd.xlane.f32.xlu0 %v2645
    %v2647 = vpop.xlane.xlu0 %2646
    %v2648 = vrcp.pop %v2647
    %v2649 = vmul.f32 %v2644, %v2648
    %2650 = vrot.lane.b32.xlu0 %v1875, 96
    %v2651 = vpop.permute.xlu0 %2650
    %v2654 = vsel %vm191, %v2649, 0
    %2656 = vmatprep.subr.mxu0 0.0
    %2657 = vmatpush1.msra.mxu0 %v2651
    %2658 = vmatprep.subr.mxu0 0.0
    %2659 = vmatpush1.msra.mxu0 0.0
    %2660 = vmatprep.subr.mxu0 0.0
    %2661 = vmatpush1.msra.mxu0 0.0
    %2662 = vmatprep.subr.mxu0 0.0
    %2663 = vmatpush1.msra.mxu0 0.0
    %2664 = vmatprep.subr.mxu0 0.0
    %2665 = vmatpush1.msra.mxu0 0.0
    %2666 = vmatprep.subr.mxu0 0.0
    %2667 = vmatpush1.msra.mxu0 0.0
    %2668 = vmatprep.subr.mxu0 0.0
    %2669 = vmatpush1.msra.mxu0 0.0
    %2670 = vmatprep.subr.mxu0 0.0
    %2671 = vmatpush1.msra.mxu0 0.0
    %2672 = vmatprep.subr.mxu0 0.0
    %2673 = vmatpush1.msra.mxu0 0.0
    %2674 = vmatprep.subr.mxu0 0.0
    %2675 = vmatpush1.msra.mxu0 0.0
    %2676 = vmatprep.subr.mxu0 0.0
    %2677 = vmatpush1.msra.mxu0 0.0
    %2678 = vmatprep.subr.mxu0 0.0
    %2679 = vmatpush1.msra.mxu0 0.0
    %2680 = vmatprep.subr.mxu0 0.0
    %2681 = vmatpush1.msra.mxu0 0.0
    %2682 = vmatprep.subr.mxu0 0.0
    %2683 = vmatpush1.msra.mxu0 0.0
    %2684 = vmatprep.subr.mxu0 0.0
    %2685 = vmatpush1.msra.mxu0 0.0
    %2686 = vmatprep.subr.mxu0 0.0
    %2687 = vmatpush1.msra.mxu0 0.0
    %2688 = vmatprep.subr.mxu0 0.0
    %2689 = vmatpush1.msra.mxu0 0.0
    %2690 = vmatprep.subr.mxu0 0.0
    %2691 = vmatpush1.msra.mxu0 0.0
    %2692 = vmatprep.subr.mxu0 0.0
    %2693 = vmatpush1.msra.mxu0 0.0
    %2694 = vmatprep.subr.mxu0 0.0
    %2695 = vmatpush1.msra.mxu0 0.0
    %2696 = vmatprep.subr.mxu0 0.0
    %2697 = vmatpush1.msra.mxu0 0.0
    %2698 = vmatprep.subr.mxu0 0.0
    %2699 = vmatpush1.msra.mxu0 0.0
    %2700 = vmatprep.subr.mxu0 0.0
    %2701 = vmatpush1.msra.mxu0 0.0
    %2702 = vmatprep.subr.mxu0 0.0
    %2703 = vmatpush1.msra.mxu0 0.0
    %2704 = vmatprep.subr.mxu0 0.0
    %2705 = vmatpush1.msra.mxu0 0.0
    %2706 = vmatprep.subr.mxu0 0.0
    %2707 = vmatpush1.msra.mxu0 0.0
    %2708 = vmatprep.subr.mxu0 0.0
    %2709 = vmatpush1.msra.mxu0 0.0
    %2710 = vmatprep.subr.mxu0 0.0
    %2711 = vmatpush1.msra.mxu0 0.0
    %2712 = vmatprep.subr.mxu0 0.0
    %2713 = vmatpush1.msra.mxu0 0.0
    %2714 = vmatprep.subr.mxu0 0.0
    %2715 = vmatpush1.msra.mxu0 0.0
    %2716 = vmatprep.subr.mxu0 0.0
    %2717 = vmatpush1.msra.mxu0 0.0
    %2718 = vmatprep.subr.mxu0 0.0
    %2719 = vmatpush1.msra.mxu0 0.0
    %2720 = vmatprep.mubr.f32.mxu0 0.0
    %2721 = vmatmul.mubr.f32.gmra.mrb[0].mxu0 %v2654
    %v2722 = vpop.f32.mrb[0].mxu0
    %v2723 = vadd.f32 0.0, %v2722
    %v2724 = vpop.f32.mrb[0].mxu0
    %2725 = vdwg.mxu0
    %2726 = vrot.lane.b32.xlu0 %v1783, 120
    %v2727 = vpop.permute.xlu0 %2726
    %2728 = vrot.lane.b32.xlu0 %v1875, 120
    %v2729 = vpop.permute.xlu0 %2728
    %v2730 = vsel %vm191, %v2727, 0
    %v2732 = vsel %vm191, %v2729, 0
    %2734 = vmatprep.subr.mxu0 0.0
    %2735 = vmatpush1.xpose.msra.mxu0 %v2732
    %2736 = vmatprep.subr.mxu0 0.0
    %2737 = vmatpush1.xpose.msra.mxu0 0.0
    %2738 = vmatprep.subr.mxu0 0.0
    %2739 = vmatpush1.xpose.msra.mxu0 0.0
    %2740 = vmatprep.subr.mxu0 0.0
    %2741 = vmatpush1.xpose.msra.mxu0 0.0
    %2742 = vmatprep.subr.mxu0 0.0
    %2743 = vmatpush1.xpose.msra.mxu0 0.0
    %2744 = vmatprep.subr.mxu0 0.0
    %2745 = vmatpush1.xpose.msra.mxu0 0.0
    %2746 = vmatprep.subr.mxu0 0.0
    %2747 = vmatpush1.xpose.msra.mxu0 0.0
    %2748 = vmatprep.subr.mxu0 0.0
    %2749 = vmatpush1.xpose.msra.mxu0 0.0
    %2750 = vmatprep.subr.mxu0 0.0
    %2751 = vmatpush1.xpose.msra.mxu0 0.0
    %2752 = vmatprep.subr.mxu0 0.0
    %2753 = vmatpush1.xpose.msra.mxu0 0.0
    %2754 = vmatprep.subr.mxu0 0.0
    %2755 = vmatpush1.xpose.msra.mxu0 0.0
    %2756 = vmatprep.subr.mxu0 0.0
    %2757 = vmatpush1.xpose.msra.mxu0 0.0
    %2758 = vmatprep.subr.mxu0 0.0
    %2759 = vmatpush1.xpose.msra.mxu0 0.0
    %2760 = vmatprep.subr.mxu0 0.0
    %2761 = vmatpush1.xpose.msra.mxu0 0.0
    %2762 = vmatprep.subr.mxu0 0.0
    %2763 = vmatpush1.xpose.msra.mxu0 0.0
    %2764 = vmatprep.subr.mxu0 0.0
    %2765 = vmatpush1.xpose.msra.mxu0 0.0
    %2766 = vmatprep.subr.mxu0 0.0
    %2767 = vmatpush1.xpose.msra.mxu0 0.0
    %2768 = vmatprep.subr.mxu0 0.0
    %2769 = vmatpush1.xpose.msra.mxu0 0.0
    %2770 = vmatprep.subr.mxu0 0.0
    %2771 = vmatpush1.xpose.msra.mxu0 0.0
    %2772 = vmatprep.subr.mxu0 0.0
    %2773 = vmatpush1.xpose.msra.mxu0 0.0
    %2774 = vmatprep.subr.mxu0 0.0
    %2775 = vmatpush1.xpose.msra.mxu0 0.0
    %2776 = vmatprep.subr.mxu0 0.0
    %2777 = vmatpush1.xpose.msra.mxu0 0.0
    %2778 = vmatprep.subr.mxu0 0.0
    %2779 = vmatpush1.xpose.msra.mxu0 0.0
    %2780 = vmatprep.subr.mxu0 0.0
    %2781 = vmatpush1.xpose.msra.mxu0 0.0
    %2782 = vmatprep.subr.mxu0 0.0
    %2783 = vmatpush1.xpose.msra.mxu0 0.0
    %2784 = vmatprep.subr.mxu0 0.0
    %2785 = vmatpush1.xpose.msra.mxu0 0.0
    %2786 = vmatprep.subr.mxu0 0.0
    %2787 = vmatpush1.xpose.msra.mxu0 0.0
    %2788 = vmatprep.subr.mxu0 0.0
    %2789 = vmatpush1.xpose.msra.mxu0 0.0
    %2790 = vmatprep.subr.mxu0 0.0
    %2791 = vmatpush1.xpose.msra.mxu0 0.0
    %2792 = vmatprep.subr.mxu0 0.0
    %2793 = vmatpush1.xpose.msra.mxu0 0.0
    %2794 = vmatprep.subr.mxu0 0.0
    %2795 = vmatpush1.xpose.msra.mxu0 0.0
    %2796 = vmatprep.subr.mxu0 0.0
    %2797 = vmatpush1.xpose.msra.mxu0 0.0
    %2798 = vmatprep.mubr.f32.mxu0 0.0
    %2799 = vmatmul.mubr.f32.gmra.mrb[0].mxu0 %v2730
    %v2800 = vpop.f32.mrb[0].mxu0
    %v2801 = vadd.f32 0.0, %v2800
    %v2802 = vpop.f32.mrb[0].mxu0
    %2803 = vdwg.mxu0
    %v2804 = vmul.f32 %v2801, 0.35355338
    %v2805 = vadd.f32 %v2804, %v1879
    %v2806 = vsel %vm191, %v2805, -inf
    %2807 = vmax.xlane.f32.xlu0 %v2806
    %v2808 = vpop.xlane.xlu0 %2807
    %v2809 = vsub.f32 %v2805, %v2808
    %v2810 = vmul.f32 %v2809, 1.442695
    %v2811 = vpow.pop %v2810
    %v2812 = vsel %vm191, %v2811, 0.0
    %2813 = vadd.xlane.f32.xlu0 %v2812
    %v2814 = vpop.xlane.xlu0 %2813
    %v2815 = vrcp.pop %v2814
    %v2816 = vmul.f32 %v2811, %v2815
    %2817 = vrot.lane.b32.xlu0 %v1875, 88
    %v2818 = vpop.permute.xlu0 %2817
    %v2821 = vsel %vm191, %v2816, 0
    %2823 = vmatprep.subr.mxu0 0.0
    %2824 = vmatpush1.msra.mxu0 %v2818
    %2825 = vmatprep.subr.mxu0 0.0
    %2826 = vmatpush1.msra.mxu0 0.0
    %2827 = vmatprep.subr.mxu0 0.0
    %2828 = vmatpush1.msra.mxu0 0.0
    %2829 = vmatprep.subr.mxu0 0.0
    %2830 = vmatpush1.msra.mxu0 0.0
    %2831 = vmatprep.subr.mxu0 0.0
    %2832 = vmatpush1.msra.mxu0 0.0
    %2833 = vmatprep.subr.mxu0 0.0
    %2834 = vmatpush1.msra.mxu0 0.0
    %2835 = vmatprep.subr.mxu0 0.0
    %2836 = vmatpush1.msra.mxu0 0.0
    %2837 = vmatprep.subr.mxu0 0.0
    %2838 = vmatpush1.msra.mxu0 0.0
    %2839 = vmatprep.subr.mxu0 0.0
    %2840 = vmatpush1.msra.mxu0 0.0
    %2841 = vmatprep.subr.mxu0 0.0
    %2842 = vmatpush1.msra.mxu0 0.0
    %2843 = vmatprep.subr.mxu0 0.0
    %2844 = vmatpush1.msra.mxu0 0.0
    %2845 = vmatprep.subr.mxu0 0.0
    %2846 = vmatpush1.msra.mxu0 0.0
    %2847 = vmatprep.subr.mxu0 0.0
    %2848 = vmatpush1.msra.mxu0 0.0
    %2849 = vmatprep.subr.mxu0 0.0
    %2850 = vmatpush1.msra.mxu0 0.0
    %2851 = vmatprep.subr.mxu0 0.0
    %2852 = vmatpush1.msra.mxu0 0.0
    %2853 = vmatprep.subr.mxu0 0.0
    %2854 = vmatpush1.msra.mxu0 0.0
    %2855 = vmatprep.subr.mxu0 0.0
    %2856 = vmatpush1.msra.mxu0 0.0
    %2857 = vmatprep.subr.mxu0 0.0
    %2858 = vmatpush1.msra.mxu0 0.0
    %2859 = vmatprep.subr.mxu0 0.0
    %2860 = vmatpush1.msra.mxu0 0.0
    %2861 = vmatprep.subr.mxu0 0.0
    %2862 = vmatpush1.msra.mxu0 0.0
    %2863 = vmatprep.subr.mxu0 0.0
    %2864 = vmatpush1.msra.mxu0 0.0
    %2865 = vmatprep.subr.mxu0 0.0
    %2866 = vmatpush1.msra.mxu0 0.0
    %2867 = vmatprep.subr.mxu0 0.0
    %2868 = vmatpush1.msra.mxu0 0.0
    %2869 = vmatprep.subr.mxu0 0.0
    %2870 = vmatpush1.msra.mxu0 0.0
    %2871 = vmatprep.subr.mxu0 0.0
    %2872 = vmatpush1.msra.mxu0 0.0
    %2873 = vmatprep.subr.mxu0 0.0
    %2874 = vmatpush1.msra.mxu0 0.0
    %2875 = vmatprep.subr.mxu0 0.0
    %2876 = vmatpush1.msra.mxu0 0.0
    %2877 = vmatprep.subr.mxu0 0.0
    %2878 = vmatpush1.msra.mxu0 0.0
    %2879 = vmatprep.subr.mxu0 0.0
    %2880 = vmatpush1.msra.mxu0 0.0
    %2881 = vmatprep.subr.mxu0 0.0
    %2882 = vmatpush1.msra.mxu0 0.0
    %2883 = vmatprep.subr.mxu0 0.0
    %2884 = vmatpush1.msra.mxu0 0.0
    %2885 = vmatprep.subr.mxu0 0.0
    %2886 = vmatpush1.msra.mxu0 0.0
    %2887 = vmatprep.mubr.f32.mxu0 0.0
    %2888 = vmatmul.mubr.f32.gmra.mrb[0].mxu0 %v2821
    %v2889 = vpop.f32.mrb[0].mxu0
    %v2890 = vadd.f32 0.0, %v2889
    %v2891 = vpop.f32.mrb[0].mxu0
    %2892 = vdwg.mxu0
    %2893 = vrot.lane.b32.xlu0 %v1783, 112
    %v2894 = vpop.permute.xlu0 %2893
    %2895 = vrot.lane.b32.xlu0 %v1875, 112
    %v2896 = vpop.permute.xlu0 %2895
    %v2897 = vsel %vm191, %v2894, 0
    %v2899 = vsel %vm191, %v2896, 0
    %2901 = vmatprep.subr.mxu0 0.0
    %2902 = vmatpush1.xpose.msra.mxu0 %v2899
    %2903 = vmatprep.subr.mxu0 0.0
    %2904 = vmatpush1.xpose.msra.mxu0 0.0
    %2905 = vmatprep.subr.mxu0 0.0
    %2906 = vmatpush1.xpose.msra.mxu0 0.0
    %2907 = vmatprep.subr.mxu0 0.0
    %2908 = vmatpush1.xpose.msra.mxu0 0.0
    %2909 = vmatprep.subr.mxu0 0.0
    %2910 = vmatpush1.xpose.msra.mxu0 0.0
    %2911 = vmatprep.subr.mxu0 0.0
    %2912 = vmatpush1.xpose.msra.mxu0 0.0
    %2913 = vmatprep.subr.mxu0 0.0
    %2914 = vmatpush1.xpose.msra.mxu0 0.0
    %2915 = vmatprep.subr.mxu0 0.0
    %2916 = vmatpush1.xpose.msra.mxu0 0.0
    %2917 = vmatprep.subr.mxu0 0.0
    %2918 = vmatpush1.xpose.msra.mxu0 0.0
    %2919 = vmatprep.subr.mxu0 0.0
    %2920 = vmatpush1.xpose.msra.mxu0 0.0
    %2921 = vmatprep.subr.mxu0 0.0
    %2922 = vmatpush1.xpose.msra.mxu0 0.0
    %2923 = vmatprep.subr.mxu0 0.0
    %2924 = vmatpush1.xpose.msra.mxu0 0.0
    %2925 = vmatprep.subr.mxu0 0.0
    %2926 = vmatpush1.xpose.msra.mxu0 0.0
    %2927 = vmatprep.subr.mxu0 0.0
    %2928 = vmatpush1.xpose.msra.mxu0 0.0
    %2929 = vmatprep.subr.mxu0 0.0
    %2930 = vmatpush1.xpose.msra.mxu0 0.0
    %2931 = vmatprep.subr.mxu0 0.0
    %2932 = vmatpush1.xpose.msra.mxu0 0.0
    %2933 = vmatprep.subr.mxu0 0.0
    %2934 = vmatpush1.xpose.msra.mxu0 0.0
    %2935 = vmatprep.subr.mxu0 0.0
    %2936 = vmatpush1.xpose.msra.mxu0 0.0
    %2937 = vmatprep.subr.mxu0 0.0
    %2938 = vmatpush1.xpose.msra.mxu0 0.0
    %2939 = vmatprep.subr.mxu0 0.0
    %2940 = vmatpush1.xpose.msra.mxu0 0.0
    %2941 = vmatprep.subr.mxu0 0.0
    %2942 = vmatpush1.xpose.msra.mxu0 0.0
    %2943 = vmatprep.subr.mxu0 0.0
    %2944 = vmatpush1.xpose.msra.mxu0 0.0
    %2945 = vmatprep.subr.mxu0 0.0
    %2946 = vmatpush1.xpose.msra.mxu0 0.0
    %2947 = vmatprep.subr.mxu0 0.0
    %2948 = vmatpush1.xpose.msra.mxu0 0.0
    %2949 = vmatprep.subr.mxu0 0.0
    %2950 = vmatpush1.xpose.msra.mxu0 0.0
    %2951 = vmatprep.subr.mxu0 0.0
    %2952 = vmatpush1.xpose.msra.mxu0 0.0
    %2953 = vmatprep.subr.mxu0 0.0
    %2954 = vmatpush1.xpose.msra.mxu0 0.0
    %2955 = vmatprep.subr.mxu0 0.0
    %2956 = vmatpush1.xpose.msra.mxu0 0.0
    %2957 = vmatprep.subr.mxu0 0.0
    %2958 = vmatpush1.xpose.msra.mxu0 0.0
    %2959 = vmatprep.subr.mxu0 0.0
    %2960 = vmatpush1.xpose.msra.mxu0 0.0
    %2961 = vmatprep.subr.mxu0 0.0
    %2962 = vmatpush1.xpose.msra.mxu0 0.0
    %2963 = vmatprep.subr.mxu0 0.0
    %2964 = vmatpush1.xpose.msra.mxu0 0.0
    %2965 = vmatprep.mubr.f32.mxu0 0.0
    %2966 = vmatmul.mubr.f32.gmra.mrb[0].mxu0 %v2897
    %v2967 = vpop.f32.mrb[0].mxu0
    %v2968 = vadd.f32 0.0, %v2967
    %v2969 = vpop.f32.mrb[0].mxu0
    %2970 = vdwg.mxu0
    %v2971 = vmul.f32 %v2968, 0.35355338
    %v2972 = vadd.f32 %v2971, %v1879
    %v2973 = vsel %vm191, %v2972, -inf
    %2974 = vmax.xlane.f32.xlu0 %v2973
    %v2975 = vpop.xlane.xlu0 %2974
    %v2976 = vsub.f32 %v2972, %v2975
    %v2977 = vmul.f32 %v2976, 1.442695
    %v2978 = vpow.pop %v2977
    %v2979 = vsel %vm191, %v2978, 0.0
    %2980 = vadd.xlane.f32.xlu0 %v2979
    %v2981 = vpop.xlane.xlu0 %2980
    %v2982 = vrcp.pop %v2981
    %v2983 = vmul.f32 %v2978, %v2982
    %2984 = vrot.lane.b32.xlu0 %v1875, 80
    %v2985 = vpop.permute.xlu0 %2984
    %v2988 = vsel %vm191, %v2983, 0
    %2990 = vmatprep.subr.mxu0 0.0
    %2991 = vmatpush1.msra.mxu0 %v2985
    %2992 = vmatprep.subr.mxu0 0.0
    %2993 = vmatpush1.msra.mxu0 0.0
    %2994 = vmatprep.subr.mxu0 0.0
    %2995 = vmatpush1.msra.mxu0 0.0
    %2996 = vmatprep.subr.mxu0 0.0
    %2997 = vmatpush1.msra.mxu0 0.0
    %2998 = vmatprep.subr.mxu0 0.0
    %2999 = vmatpush1.msra.mxu0 0.0
    %3000 = vmatprep.subr.mxu0 0.0
    %3001 = vmatpush1.msra.mxu0 0.0
    %3002 = vmatprep.subr.mxu0 0.0
    %3003 = vmatpush1.msra.mxu0 0.0
    %3004 = vmatprep.subr.mxu0 0.0
    %3005 = vmatpush1.msra.mxu0 0.0
    %3006 = vmatprep.subr.mxu0 0.0
    %3007 = vmatpush1.msra.mxu0 0.0
    %3008 = vmatprep.subr.mxu0 0.0
    %3009 = vmatpush1.msra.mxu0 0.0
    %3010 = vmatprep.subr.mxu0 0.0
    %3011 = vmatpush1.msra.mxu0 0.0
    %3012 = vmatprep.subr.mxu0 0.0
    %3013 = vmatpush1.msra.mxu0 0.0
    %3014 = vmatprep.subr.mxu0 0.0
    %3015 = vmatpush1.msra.mxu0 0.0
    %3016 = vmatprep.subr.mxu0 0.0
    %3017 = vmatpush1.msra.mxu0 0.0
    %3018 = vmatprep.subr.mxu0 0.0
    %3019 = vmatpush1.msra.mxu0 0.0
    %3020 = vmatprep.subr.mxu0 0.0
    %3021 = vmatpush1.msra.mxu0 0.0
    %3022 = vmatprep.subr.mxu0 0.0
    %3023 = vmatpush1.msra.mxu0 0.0
    %3024 = vmatprep.subr.mxu0 0.0
    %3025 = vmatpush1.msra.mxu0 0.0
    %3026 = vmatprep.subr.mxu0 0.0
    %3027 = vmatpush1.msra.mxu0 0.0
    %3028 = vmatprep.subr.mxu0 0.0
    %3029 = vmatpush1.msra.mxu0 0.0
    %3030 = vmatprep.subr.mxu0 0.0
    %3031 = vmatpush1.msra.mxu0 0.0
    %3032 = vmatprep.subr.mxu0 0.0
    %3033 = vmatpush1.msra.mxu0 0.0
    %3034 = vmatprep.subr.mxu0 0.0
    %3035 = vmatpush1.msra.mxu0 0.0
    %3036 = vmatprep.subr.mxu0 0.0
    %3037 = vmatpush1.msra.mxu0 0.0
    %3038 = vmatprep.subr.mxu0 0.0
    %3039 = vmatpush1.msra.mxu0 0.0
    %3040 = vmatprep.subr.mxu0 0.0
    %3041 = vmatpush1.msra.mxu0 0.0
    %3042 = vmatprep.subr.mxu0 0.0
    %3043 = vmatpush1.msra.mxu0 0.0
    %3044 = vmatprep.subr.mxu0 0.0
    %3045 = vmatpush1.msra.mxu0 0.0
    %3046 = vmatprep.subr.mxu0 0.0
    %3047 = vmatpush1.msra.mxu0 0.0
    %3048 = vmatprep.subr.mxu0 0.0
    %3049 = vmatpush1.msra.mxu0 0.0
    %3050 = vmatprep.subr.mxu0 0.0
    %3051 = vmatpush1.msra.mxu0 0.0
    %3052 = vmatprep.subr.mxu0 0.0
    %3053 = vmatpush1.msra.mxu0 0.0
    %3054 = vmatprep.mubr.f32.mxu0 0.0
    %3055 = vmatmul.mubr.f32.gmra.mrb[0].mxu0 %v2988
    %v3056 = vpop.f32.mrb[0].mxu0
    %v3057 = vadd.f32 0.0, %v3056
    %v3058 = vpop.f32.mrb[0].mxu0
    %3059 = vdwg.mxu0
    %3060 = vrot.lane.b32.xlu0 %v1783, 104
    %v3061 = vpop.permute.xlu0 %3060
    %3062 = vrot.lane.b32.xlu0 %v1875, 104
    %v3063 = vpop.permute.xlu0 %3062
    %v3064 = vsel %vm191, %v3061, 0
    %v3066 = vsel %vm191, %v3063, 0
    %3068 = vmatprep.subr.mxu0 0.0
    %3069 = vmatpush1.xpose.msra.mxu0 %v3066
    %3070 = vmatprep.subr.mxu0 0.0
    %3071 = vmatpush1.xpose.msra.mxu0 0.0
    %3072 = vmatprep.subr.mxu0 0.0
    %3073 = vmatpush1.xpose.msra.mxu0 0.0
    %3074 = vmatprep.subr.mxu0 0.0
    %3075 = vmatpush1.xpose.msra.mxu0 0.0
    %3076 = vmatprep.subr.mxu0 0.0
    %3077 = vmatpush1.xpose.msra.mxu0 0.0
    %3078 = vmatprep.subr.mxu0 0.0
    %3079 = vmatpush1.xpose.msra.mxu0 0.0
    %3080 = vmatprep.subr.mxu0 0.0
    %3081 = vmatpush1.xpose.msra.mxu0 0.0
    %3082 = vmatprep.subr.mxu0 0.0
    %3083 = vmatpush1.xpose.msra.mxu0 0.0
    %3084 = vmatprep.subr.mxu0 0.0
    %3085 = vmatpush1.xpose.msra.mxu0 0.0
    %3086 = vmatprep.subr.mxu0 0.0
    %3087 = vmatpush1.xpose.msra.mxu0 0.0
    %3088 = vmatprep.subr.mxu0 0.0
    %3089 = vmatpush1.xpose.msra.mxu0 0.0
    %3090 = vmatprep.subr.mxu0 0.0
    %3091 = vmatpush1.xpose.msra.mxu0 0.0
    %3092 = vmatprep.subr.mxu0 0.0
    %3093 = vmatpush1.xpose.msra.mxu0 0.0
    %3094 = vmatprep.subr.mxu0 0.0
    %3095 = vmatpush1.xpose.msra.mxu0 0.0
    %3096 = vmatprep.subr.mxu0 0.0
    %3097 = vmatpush1.xpose.msra.mxu0 0.0
    %3098 = vmatprep.subr.mxu0 0.0
    %3099 = vmatpush1.xpose.msra.mxu0 0.0
    %3100 = vmatprep.subr.mxu0 0.0
    %3101 = vmatpush1.xpose.msra.mxu0 0.0
    %3102 = vmatprep.subr.mxu0 0.0
    %3103 = vmatpush1.xpose.msra.mxu0 0.0
    %3104 = vmatprep.subr.mxu0 0.0
    %3105 = vmatpush1.xpose.msra.mxu0 0.0
    %3106 = vmatprep.subr.mxu0 0.0
    %3107 = vmatpush1.xpose.msra.mxu0 0.0
    %3108 = vmatprep.subr.mxu0 0.0
    %3109 = vmatpush1.xpose.msra.mxu0 0.0
    %3110 = vmatprep.subr.mxu0 0.0
    %3111 = vmatpush1.xpose.msra.mxu0 0.0
    %3112 = vmatprep.subr.mxu0 0.0
    %3113 = vmatpush1.xpose.msra.mxu0 0.0
    %3114 = vmatprep.subr.mxu0 0.0
    %3115 = vmatpush1.xpose.msra.mxu0 0.0
    %3116 = vmatprep.subr.mxu0 0.0
    %3117 = vmatpush1.xpose.msra.mxu0 0.0
    %3118 = vmatprep.subr.mxu0 0.0
    %3119 = vmatpush1.xpose.msra.mxu0 0.0
    %3120 = vmatprep.subr.mxu0 0.0
    %3121 = vmatpush1.xpose.msra.mxu0 0.0
    %3122 = vmatprep.subr.mxu0 0.0
    %3123 = vmatpush1.xpose.msra.mxu0 0.0
    %3124 = vmatprep.subr.mxu0 0.0
    %3125 = vmatpush1.xpose.msra.mxu0 0.0
    %3126 = vmatprep.subr.mxu0 0.0
    %3127 = vmatpush1.xpose.msra.mxu0 0.0
    %3128 = vmatprep.subr.mxu0 0.0
    %3129 = vmatpush1.xpose.msra.mxu0 0.0
    %3130 = vmatprep.subr.mxu0 0.0
    %3131 = vmatpush1.xpose.msra.mxu0 0.0
    %3132 = vmatprep.mubr.f32.mxu0 0.0
    %3133 = vmatmul.mubr.f32.gmra.mrb[0].mxu0 %v3064
    %v3134 = vpop.f32.mrb[0].mxu0
    %v3135 = vadd.f32 0.0, %v3134
    %v3136 = vpop.f32.mrb[0].mxu0
    %3137 = vdwg.mxu0
    %v3138 = vmul.f32 %v3135, 0.35355338
    %v3139 = vadd.f32 %v3138, %v1879
    %v3140 = vsel %vm191, %v3139, -inf
    %3141 = vmax.xlane.f32.xlu0 %v3140
    %v3142 = vpop.xlane.xlu0 %3141
    %v3143 = vsub.f32 %v3139, %v3142
    %v3144 = vmul.f32 %v3143, 1.442695
    %v3145 = vpow.pop %v3144
    %v3146 = vsel %vm191, %v3145, 0.0
    %3147 = vadd.xlane.f32.xlu0 %v3146
    %v3148 = vpop.xlane.xlu0 %3147
    %v3149 = vrcp.pop %v3148
    %v3150 = vmul.f32 %v3145, %v3149
    %3151 = vrot.lane.b32.xlu0 %v1875, 72
    %v3152 = vpop.permute.xlu0 %3151
    %v3155 = vsel %vm191, %v3150, 0
    %3157 = vmatprep.subr.mxu0 0.0
    %3158 = vmatpush1.msra.mxu0 %v3152
    %3159 = vmatprep.subr.mxu0 0.0
    %3160 = vmatpush1.msra.mxu0 0.0
    %3161 = vmatprep.subr.mxu0 0.0
    %3162 = vmatpush1.msra.mxu0 0.0
    %3163 = vmatprep.subr.mxu0 0.0
    %3164 = vmatpush1.msra.mxu0 0.0
    %3165 = vmatprep.subr.mxu0 0.0
    %3166 = vmatpush1.msra.mxu0 0.0
    %3167 = vmatprep.subr.mxu0 0.0
    %3168 = vmatpush1.msra.mxu0 0.0
    %3169 = vmatprep.subr.mxu0 0.0
    %3170 = vmatpush1.msra.mxu0 0.0
    %3171 = vmatprep.subr.mxu0 0.0
    %3172 = vmatpush1.msra.mxu0 0.0
    %3173 = vmatprep.subr.mxu0 0.0
    %3174 = vmatpush1.msra.mxu0 0.0
    %3175 = vmatprep.subr.mxu0 0.0
    %3176 = vmatpush1.msra.mxu0 0.0
    %3177 = vmatprep.subr.mxu0 0.0
    %3178 = vmatpush1.msra.mxu0 0.0
    %3179 = vmatprep.subr.mxu0 0.0
    %3180 = vmatpush1.msra.mxu0 0.0
    %3181 = vmatprep.subr.mxu0 0.0
    %3182 = vmatpush1.msra.mxu0 0.0
    %3183 = vmatprep.subr.mxu0 0.0
    %3184 = vmatpush1.msra.mxu0 0.0
    %3185 = vmatprep.subr.mxu0 0.0
    %3186 = vmatpush1.msra.mxu0 0.0
    %3187 = vmatprep.subr.mxu0 0.0
    %3188 = vmatpush1.msra.mxu0 0.0
    %3189 = vmatprep.subr.mxu0 0.0
    %3190 = vmatpush1.msra.mxu0 0.0
    %3191 = vmatprep.subr.mxu0 0.0
    %3192 = vmatpush1.msra.mxu0 0.0
    %3193 = vmatprep.subr.mxu0 0.0
    %3194 = vmatpush1.msra.mxu0 0.0
    %3195 = vmatprep.subr.mxu0 0.0
    %3196 = vmatpush1.msra.mxu0 0.0
    %3197 = vmatprep.subr.mxu0 0.0
    %3198 = vmatpush1.msra.mxu0 0.0
    %3199 = vmatprep.subr.mxu0 0.0
    %3200 = vmatpush1.msra.mxu0 0.0
    %3201 = vmatprep.subr.mxu0 0.0
    %3202 = vmatpush1.msra.mxu0 0.0
    %3203 = vmatprep.subr.mxu0 0.0
    %3204 = vmatpush1.msra.mxu0 0.0
    %3205 = vmatprep.subr.mxu0 0.0
    %3206 = vmatpush1.msra.mxu0 0.0
    %3207 = vmatprep.subr.mxu0 0.0
    %3208 = vmatpush1.msra.mxu0 0.0
    %3209 = vmatprep.subr.mxu0 0.0
    %3210 = vmatpush1.msra.mxu0 0.0
    %3211 = vmatprep.subr.mxu0 0.0
    %3212 = vmatpush1.msra.mxu0 0.0
    %3213 = vmatprep.subr.mxu0 0.0
    %3214 = vmatpush1.msra.mxu0 0.0
    %3215 = vmatprep.subr.mxu0 0.0
    %3216 = vmatpush1.msra.mxu0 0.0
    %3217 = vmatprep.subr.mxu0 0.0
    %3218 = vmatpush1.msra.mxu0 0.0
    %3219 = vmatprep.subr.mxu0 0.0
    %3220 = vmatpush1.msra.mxu0 0.0
    %3221 = vmatprep.mubr.f32.mxu0 0.0
    %3222 = vmatmul.mubr.f32.gmra.mrb[0].mxu0 %v3155
    %v3223 = vpop.f32.mrb[0].mxu0
    %v3224 = vadd.f32 0.0, %v3223
    %v3225 = vpop.f32.mrb[0].mxu0
    %3226 = vdwg.mxu0
    %3228 = vrot.lane.b32.xlu0 %v2890, 8
    %v3229 = vpop.permute.xlu0 %3228
    %3232 = vrot.lane.b32.xlu0 %v3057, 16
    %v3233 = vpop.permute.xlu0 %3232
    %3236 = vrot.lane.b32.xlu0 %v3224, 24
    %v3237 = vpop.permute.xlu0 %3236
    %v3239 = vsel %vm191, %v2723, %v3229
    %v3240 = vsel %vm869, %v3239, %v3233
    %v3241 = vsel %vm871, %v3240, %v3237
    %v3242 = vld [vmem:[%s14] sm:$0xff]
    %v3243 = vld [vmem:[%s14 + $0x8] sm:$0xff]
    %v3244 = vld [vmem:[%s14 + $0x10] sm:$0xff]
    %v3245 = vld [vmem:[%s14 + $0x18] sm:$0xff]
    %v3246 = vld [vmem:[%s15] sm:$0x1]
    %v3248 = vlaneseq
    %v3249 = vshrl.u32 %v3248, 7
    %v3250 = vsub.s32 0, %v3249
    %v3251 = vrot.slane %v3246, %v3250
    %v3254 = vsel %vm104, %v2560, 0
    %v3257 = vsel %vm104, %v3241, 0
    %3259 = vmatprep.subr.mxu0 0.0
    %3260 = vmatpush1.msra.mxu0 %v3242
    %3261 = vmatprep.subr.mxu0 0.0
    %3262 = vmatpush1.msra.mxu0 %v3243
    %3263 = vmatprep.subr.mxu0 0.0
    %3264 = vmatpush1.msra.mxu0 %v3244
    %3265 = vmatprep.subr.mxu0 0.0
    %3266 = vmatpush1.msra.mxu0 %v3245
    %3267 = vmatprep.subr.mxu0 0.0
    %3268 = vmatpush1.msra.mxu0 0.0
    %3269 = vmatprep.subr.mxu0 0.0
    %3270 = vmatpush1.msra.mxu0 0.0
    %3271 = vmatprep.subr.mxu0 0.0
    %3272 = vmatpush1.msra.mxu0 0.0
    %3273 = vmatprep.subr.mxu0 0.0
    %3274 = vmatpush1.msra.mxu0 0.0
    %3275 = vmatprep.subr.mxu0 0.0
    %3276 = vmatpush1.msra.mxu0 0.0
    %3277 = vmatprep.subr.mxu0 0.0
    %3278 = vmatpush1.msra.mxu0 0.0
    %3279 = vmatprep.subr.mxu0 0.0
    %3280 = vmatpush1.msra.mxu0 0.0
    %3281 = vmatprep.subr.mxu0 0.0
    %3282 = vmatpush1.msra.mxu0 0.0
    %3283 = vmatprep.subr.mxu0 0.0
    %3284 = vmatpush1.msra.mxu0 0.0
    %3285 = vmatprep.subr.mxu0 0.0
    %3286 = vmatpush1.msra.mxu0 0.0
    %3287 = vmatprep.subr.mxu0 0.0
    %3288 = vmatpush1.msra.mxu0 0.0
    %3289 = vmatprep.subr.mxu0 0.0
    %3290 = vmatpush1.msra.mxu0 0.0
    %3291 = vmatprep.subr.mxu0 0.0
    %3292 = vmatpush1.msra.mxu0 0.0
    %3293 = vmatprep.subr.mxu0 0.0
    %3294 = vmatpush1.msra.mxu0 0.0
    %3295 = vmatprep.subr.mxu0 0.0
    %3296 = vmatpush1.msra.mxu0 0.0
    %3297 = vmatprep.subr.mxu0 0.0
    %3298 = vmatpush1.msra.mxu0 0.0
    %3299 = vmatprep.subr.mxu0 0.0
    %3300 = vmatpush1.msra.mxu0 0.0
    %3301 = vmatprep.subr.mxu0 0.0
    %3302 = vmatpush1.msra.mxu0 0.0
    %3303 = vmatprep.subr.mxu0 0.0
    %3304 = vmatpush1.msra.mxu0 0.0
    %3305 = vmatprep.subr.mxu0 0.0
    %3306 = vmatpush1.msra.mxu0 0.0
    %3307 = vmatprep.subr.mxu0 0.0
    %3308 = vmatpush1.msra.mxu0 0.0
    %3309 = vmatprep.subr.mxu0 0.0
    %3310 = vmatpush1.msra.mxu0 0.0
    %3311 = vmatprep.subr.mxu0 0.0
    %3312 = vmatpush1.msra.mxu0 0.0
    %3313 = vmatprep.subr.mxu0 0.0
    %3314 = vmatpush1.msra.mxu0 0.0
    %3315 = vmatprep.subr.mxu0 0.0
    %3316 = vmatpush1.msra.mxu0 0.0
    %3317 = vmatprep.subr.mxu0 0.0
    %3318 = vmatpush1.msra.mxu0 0.0
    %3319 = vmatprep.subr.mxu0 0.0
    %3320 = vmatpush1.msra.mxu0 0.0
    %3321 = vmatprep.subr.mxu0 0.0
    %3322 = vmatpush1.msra.mxu0 0.0
    %3323 = vmatprep.mubr.f32.mxu0 0.0
    %3324 = vmatmul.mubr.f32.gmra.mrb[0].mxu0 %v3254
    %v3325 = vpop.f32.mrb[0].mxu0
    %v3326 = vadd.f32 %v3251, %v3325
    %v3327 = vpop.f32.mrb[0].mxu0
    %3328 = vmatprep.mubr.f32.mxu0 0.0
    %3329 = vmatmul.mubr.f32.gmra.mrb[0].mxu0 %v3257
    %v3330 = vpop.f32.mrb[0].mxu0
    %v3331 = vadd.f32 %v3251, %v3330
    %v3332 = vpop.f32.mrb[0].mxu0
    %3333 = vdwg.mxu0
    %v3334 = vadd.f32 %v1692, %v3326
    %v3335 = vadd.f32 %v1693, %v3331
    %v3336 = vld [vmem:[%s16] sm:$0x1]
    %v3337 = vld [vmem:[%s17] sm:$0x1]
    %v3338 = vsel %vm104, %v3334, 0.0
    %3339 = vadd.xlane.f32.xlu0 %v3338
    %v3340 = vpop.xlane.xlu0 %3339
    %v3341 = vsel %vm104, %v3335, 0.0
    %3342 = vadd.xlane.f32.xlu0 %v3341
    %v3343 = vpop.xlane.xlu0 %3342
    %v3344 = vmul.f32 %v3340, %v1657
    %v3345 = vmul.f32 %v3343, %v1657
    %v3346 = vsub.f32 %v3334, %v3344
    %v3347 = vsub.f32 %v3335, %v3345
    %v3348 = vmul.f32 %v3346, %v3346
    %v3349 = vmul.f32 %v3347, %v3347
    %v3350 = vsel %vm104, %v3348, 0.0
    %3351 = vadd.xlane.f32.xlu0 %v3350
    %v3352 = vpop.xlane.xlu0 %3351
    %v3353 = vsel %vm104, %v3349, 0.0
    %3354 = vadd.xlane.f32.xlu0 %v3353
    %v3355 = vpop.xlane.xlu0 %3354
    %v3356 = vmul.f32 %v3352, %v1657
    %v3357 = vmul.f32 %v3355, %v1657
    %v3358 = vadd.f32 %v3356, 1e-05
    %v3359 = vadd.f32 %v3357, 1e-05
    %v3360 = vrsqrt.pop %v3358
    %v3361 = vrsqrt.pop %v3359
    %v3362 = vmul.f32 %v3346, %v3360
    %v3363 = vmul.f32 %v3347, %v3361
    %v3365 = vlaneseq
    %v3366 = vshrl.u32 %v3365, 7
    %v3367 = vsub.s32 0, %v3366
    %v3368 = vrot.slane %v3336, %v3367
    %v3370 = vmul.f32 %v3362, %v3368
    %v3371 = vmul.f32 %v3363, %v3368
    %v3373 = vlaneseq
    %v3374 = vshrl.u32 %v3373, 7
    %v3375 = vsub.s32 0, %v3374
    %v3376 = vrot.slane %v3337, %v3375
    %v3378 = vadd.f32 %v3370, %v3376
    %v3379 = vadd.f32 %v3371, %v3376
    %v3380 = vld [vmem:[%s18] sm:$0xff]
    %v3381 = vld [vmem:[%s18 + $0x8] sm:$0xff]
    %v3382 = vld [vmem:[%s18 + $0x10] sm:$0xff]
    %v3383 = vld [vmem:[%s18 + $0x18] sm:$0xff]
    %v3384 = vld [vmem:[%s19] sm:$0x1]
    %v3386 = vlaneseq
    %v3387 = vshrl.u32 %v3386, 7
    %v3388 = vsub.s32 0, %v3387
    %v3389 = vrot.slane %v3384, %v3388
    %v3392 = vsel %vm104, %v3378, 0
    %v3395 = vsel %vm104, %v3379, 0
    %3397 = vmatprep.subr.mxu0 0.0
    %3398 = vmatpush1.msra.mxu0 %v3380
    %3399 = vmatprep.subr.mxu0 0.0
    %3400 = vmatpush1.msra.mxu0 %v3381
    %3401 = vmatprep.subr.mxu0 0.0
    %3402 = vmatpush1.msra.mxu0 %v3382
    %3403 = vmatprep.subr.mxu0 0.0
    %3404 = vmatpush1.msra.mxu0 %v3383
    %3405 = vmatprep.subr.mxu0 0.0
    %3406 = vmatpush1.msra.mxu0 0.0
    %3407 = vmatprep.subr.mxu0 0.0
    %3408 = vmatpush1.msra.mxu0 0.0
    %3409 = vmatprep.subr.mxu0 0.0
    %3410 = vmatpush1.msra.mxu0 0.0
    %3411 = vmatprep.subr.mxu0 0.0
    %3412 = vmatpush1.msra.mxu0 0.0
    %3413 = vmatprep.subr.mxu0 0.0
    %3414 = vmatpush1.msra.mxu0 0.0
    %3415 = vmatprep.subr.mxu0 0.0
    %3416 = vmatpush1.msra.mxu0 0.0
    %3417 = vmatprep.subr.mxu0 0.0
    %3418 = vmatpush1.msra.mxu0 0.0
    %3419 = vmatprep.subr.mxu0 0.0
    %3420 = vmatpush1.msra.mxu0 0.0
    %3421 = vmatprep.subr.mxu0 0.0
    %3422 = vmatpush1.msra.mxu0 0.0
    %3423 = vmatprep.subr.mxu0 0.0
    %3424 = vmatpush1.msra.mxu0 0.0
    %3425 = vmatprep.subr.mxu0 0.0
    %3426 = vmatpush1.msra.mxu0 0.0
    %3427 = vmatprep.subr.mxu0 0.0
    %3428 = vmatpush1.msra.mxu0 0.0
    %3429 = vmatprep.subr.mxu0 0.0
    %3430 = vmatpush1.msra.mxu0 0.0
    %3431 = vmatprep.subr.mxu0 0.0
    %3432 = vmatpush1.msra.mxu0 0.0
    %3433 = vmatprep.subr.mxu0 0.0
    %3434 = vmatpush1.msra.mxu0 0.0
    %3435 = vmatprep.subr.mxu0 0.0
    %3436 = vmatpush1.msra.mxu0 0.0
    %3437 = vmatprep.subr.mxu0 0.0
    %3438 = vmatpush1.msra.mxu0 0.0
    %3439 = vmatprep.subr.mxu0 0.0
    %3440 = vmatpush1.msra.mxu0 0.0
    %3441 = vmatprep.subr.mxu0 0.0
    %3442 = vmatpush1.msra.mxu0 0.0
    %3443 = vmatprep.subr.mxu0 0.0
    %3444 = vmatpush1.msra.mxu0 0.0
    %3445 = vmatprep.subr.mxu0 0.0
    %3446 = vmatpush1.msra.mxu0 0.0
    %3447 = vmatprep.subr.mxu0 0.0
    %3448 = vmatpush1.msra.mxu0 0.0
    %3449 = vmatprep.subr.mxu0 0.0
    %3450 = vmatpush1.msra.mxu0 0.0
    %3451 = vmatprep.subr.mxu0 0.0
    %3452 = vmatpush1.msra.mxu0 0.0
    %3453 = vmatprep.subr.mxu0 0.0
    %3454 = vmatpush1.msra.mxu0 0.0
    %3455 = vmatprep.subr.mxu0 0.0
    %3456 = vmatpush1.msra.mxu0 0.0
    %3457 = vmatprep.subr.mxu0 0.0
    %3458 = vmatpush1.msra.mxu0 0.0
    %3459 = vmatprep.subr.mxu0 0.0
    %3460 = vmatpush1.msra.mxu0 0.0
    %3461 = vmatprep.mubr.f32.mxu0 0.0
    %3462 = vmatmul.mubr.f32.gmra.mrb[0].mxu0 %v3392
    %v3463 = vpop.f32.mrb[0].mxu0
    %v3464 = vadd.f32 %v3389, %v3463
    %v3465 = vpop.f32.mrb[0].mxu0
    %3466 = vmatprep.mubr.f32.mxu0 0.0
    %3467 = vmatmul.mubr.f32.gmra.mrb[0].mxu0 %v3395
    %v3468 = vpop.f32.mrb[0].mxu0
    %v3469 = vadd.f32 %v3389, %v3468
    %v3470 = vpop.f32.mrb[0].mxu0
    %3471 = vdwg.mxu0
    %v3472 = vmax.f32 %v3464, 0.0
    %v3473 = vmax.f32 %v3469, 0.0
    %v3474 = vld [vmem:[%s20] sm:$0xff]
    %v3475 = vld [vmem:[%s20 + $0x8] sm:$0xff]
    %v3476 = vld [vmem:[%s20 + $0x10] sm:$0xff]
    %v3477 = vld [vmem:[%s20 + $0x18] sm:$0xff]
    %v3478 = vld [vmem:[%s20 + $0x20] sm:$0xff]
    %v3479 = vld [vmem:[%s20 + $0x28] sm:$0xff]
    %v3480 = vld [vmem:[%s20 + $0x30] sm:$0xff]
    %v3481 = vld [vmem:[%s20 + $0x38] sm:$0xff]
    %v3482 = vld [vmem:[%s21] sm:$0x1]
    %v3484 = vlaneseq
    %v3485 = vshrl.u32 %v3484, 7
    %v3486 = vsub.s32 0, %v3485
    %v3487 = vrot.slane %v3482, %v3486
    %vm3489 = vcmask 523264
    %v3491 = vsel %vm3489, %v3472, 0
    %v3494 = vsel %vm3489, %v3473, 0
    %3496 = vmatprep.subr.mxu0 0.0
    %3497 = vmatpush1.msra.mxu0 %v3474
    %3498 = vmatprep.subr.mxu0 0.0
    %3499 = vmatpush1.msra.mxu0 %v3475
    %3500 = vmatprep.subr.mxu0 0.0
    %3501 = vmatpush1.msra.mxu0 %v3476
    %3502 = vmatprep.subr.mxu0 0.0
    %3503 = vmatpush1.msra.mxu0 %v3477
    %3504 = vmatprep.subr.mxu0 0.0
    %3505 = vmatpush1.msra.mxu0 %v3478
    %3506 = vmatprep.subr.mxu0 0.0
    %3507 = vmatpush1.msra.mxu0 %v3479
    %3508 = vmatprep.subr.mxu0 0.0
    %3509 = vmatpush1.msra.mxu0 %v3480
    %3510 = vmatprep.subr.mxu0 0.0
    %3511 = vmatpush1.msra.mxu0 %v3481
    %3512 = vmatprep.subr.mxu0 0.0
    %3513 = vmatpush1.msra.mxu0 0.0
    %3514 = vmatprep.subr.mxu0 0.0
    %3515 = vmatpush1.msra.mxu0 0.0
    %3516 = vmatprep.subr.mxu0 0.0
    %3517 = vmatpush1.msra.mxu0 0.0
    %3518 = vmatprep.subr.mxu0 0.0
    %3519 = vmatpush1.msra.mxu0 0.0
    %3520 = vmatprep.subr.mxu0 0.0
    %3521 = vmatpush1.msra.mxu0 0.0
    %3522 = vmatprep.subr.mxu0 0.0
    %3523 = vmatpush1.msra.mxu0 0.0
    %3524 = vmatprep.subr.mxu0 0.0
    %3525 = vmatpush1.msra.mxu0 0.0
    %3526 = vmatprep.subr.mxu0 0.0
    %3527 = vmatpush1.msra.mxu0 0.0
    %3528 = vmatprep.subr.mxu0 0.0
    %3529 = vmatpush1.msra.mxu0 0.0
    %3530 = vmatprep.subr.mxu0 0.0
    %3531 = vmatpush1.msra.mxu0 0.0
    %3532 = vmatprep.subr.mxu0 0.0
    %3533 = vmatpush1.msra.mxu0 0.0
    %3534 = vmatprep.subr.mxu0 0.0
    %3535 = vmatpush1.msra.mxu0 0.0
    %3536 = vmatprep.subr.mxu0 0.0
    %3537 = vmatpush1.msra.mxu0 0.0
    %3538 = vmatprep.subr.mxu0 0.0
    %3539 = vmatpush1.msra.mxu0 0.0
    %3540 = vmatprep.subr.mxu0 0.0
    %3541 = vmatpush1.msra.mxu0 0.0
    %3542 = vmatprep.subr.mxu0 0.0
    %3543 = vmatpush1.msra.mxu0 0.0
    %3544 = vmatprep.subr.mxu0 0.0
    %3545 = vmatpush1.msra.mxu0 0.0
    %3546 = vmatprep.subr.mxu0 0.0
    %3547 = vmatpush1.msra.mxu0 0.0
    %3548 = vmatprep.subr.mxu0 0.0
    %3549 = vmatpush1.msra.mxu0 0.0
    %3550 = vmatprep.subr.mxu0 0.0
    %3551 = vmatpush1.msra.mxu0 0.0
    %3552 = vmatprep.subr.mxu0 0.0
    %3553 = vmatpush1.msra.mxu0 0.0
    %3554 = vmatprep.subr.mxu0 0.0
    %3555 = vmatpush1.msra.mxu0 0.0
    %3556 = vmatprep.subr.mxu0 0.0
    %3557 = vmatpush1.msra.mxu0 0.0
    %3558 = vmatprep.subr.mxu0 0.0
    %3559 = vmatpush1.msra.mxu0 0.0
    %3560 = vmatprep.mubr.f32.mxu0 0.0
    %3561 = vmatmul.mubr.f32.gmra.mrb[0].mxu0 %v3491
    %v3562 = vpop.f32.mrb[0].mxu0
    %v3563 = vadd.f32 %v3487, %v3562
    %v3564 = vpop.f32.mrb[0].mxu0
    %3565 = vmatprep.mubr.f32.mxu0 0.0
    %3566 = vmatmul.mubr.f32.gmra.mrb[0].mxu0 %v3494
    %v3567 = vpop.f32.mrb[0].mxu0
    %v3568 = vadd.f32 %v3487, %v3567
    %v3569 = vpop.f32.mrb[0].mxu0
    %3570 = vdwg.mxu0
    %v3571 = vadd.f32 %v3378, %v3563
    %v3572 = vadd.f32 %v3379, %v3568
    %v3573 = vld [vmem:[%s22] sm:$0x1]
    %v3574 = vld [vmem:[#allocation2] sm:$0x1]
    %v3575 = vsel %vm104, %v3571, 0.0
    %3576 = vadd.xlane.f32.xlu0 %v3575
    %v3577 = vpop.xlane.xlu0 %3576
    %v3578 = vsel %vm104, %v3572, 0.0
    %3579 = vadd.xlane.f32.xlu0 %v3578
    %v3580 = vpop.xlane.xlu0 %3579
    %v3581 = vmul.f32 %v3577, %v1657
    %v3582 = vmul.f32 %v3580, %v1657
    %v3583 = vsub.f32 %v3571, %v3581
    %v3584 = vsub.f32 %v3572, %v3582
    %v3585 = vmul.f32 %v3583, %v3583
    %v3586 = vmul.f32 %v3584, %v3584
    %v3587 = vsel %vm104, %v3585, 0.0
    %3588 = vadd.xlane.f32.xlu0 %v3587
    %v3589 = vpop.xlane.xlu0 %3588
    %v3590 = vsel %vm104, %v3586, 0.0
    %3591 = vadd.xlane.f32.xlu0 %v3590
    %v3592 = vpop.xlane.xlu0 %3591
    %v3593 = vmul.f32 %v3589, %v1657
    %v3594 = vmul.f32 %v3592, %v1657
    %v3595 = vadd.f32 %v3593, 1e-05
    %v3596 = vadd.f32 %v3594, 1e-05
    %v3597 = vrsqrt.pop %v3595
    %v3598 = vrsqrt.pop %v3596
    %v3599 = vmul.f32 %v3583, %v3597
    %v3600 = vmul.f32 %v3584, %v3598
    %v3602 = vlaneseq
    %v3603 = vshrl.u32 %v3602, 7
    %v3604 = vsub.s32 0, %v3603
    %v3605 = vrot.slane %v3573, %v3604
    %v3607 = vmul.f32 %v3599, %v3605
    %v3608 = vmul.f32 %v3600, %v3605
    %v3610 = vlaneseq
    %v3611 = vshrl.u32 %v3610, 7
    %v3612 = vsub.s32 0, %v3611
    %v3613 = vrot.slane %v3574, %v3612
    %v3615 = vadd.f32 %v3607, %v3613
    %v3616 = vadd.f32 %v3608, %v3613
    %3617 = vst.msk [vmem:[%s24] sm:$0xff] %vm104, %v3615
    %3618 = vst.msk [vmem:[%s24 + $0x8] sm:$0xff] %vm104, %v3616
    // Predicated region
    $region102: #{transformer_forward.8} parent=1 // pred_check
      _
    $region103: #{transformer_forward.8} parent=1 // pred_check_branch
      %3620 = sbr.rel (0) target = $region105
    $region104: #{transformer_forward.8} parent=1 // pred_region
      _
    $region105: #{transformer_forward.8} parent=1 // pred_fallthru
      _
    // Predicated region
    $region106: #{transformer_forward.8} parent=1 // pred_check
      _
    $region107: #{transformer_forward.8} parent=1 // pred_check_branch
      %3622 = sbr.rel (0) target = $region109
    $region108: #{transformer_forward.8} parent=1 // pred_region
      _
    $region109: #{transformer_forward.8} parent=1 // pred_fallthru
      _
    %3623 = vsyncpa [#allocation3], 1

// kernel: transformer_forward.7
$region0: #{transformer_forward.7}
  #allocation0 [shape = 'u32[]', space=smem, size = 0x4, offset = 0x4, fixed_abs, tag = 'smem constant byte address 0x4 - core index']
  #allocation1 [shape = 'u32[144,128]{1,0:T(1,128)}', space=vmem, size = 0x12000, scoped, tag = 'internal scratch']
  %s0 = inlined_call_operand.vmem [shape: f32[16,32], index: 0, kind: input, shape index: {}]
  %s1 = inlined_call_operand.vmem [shape: f32[16,32], index: 1, kind: input, shape index: {}]
  %s2 = inlined_call_operand.vmem [shape: f32[2,8,8], index: 2, kind: input, shape index: {}]
  %s3 = inlined_call_operand.vmem [shape: f32[2,8,8], index: 3, kind: input, shape index: {}]
  %s4 = inlined_call_operand.vmem [shape: f32[32,96], index: 4, kind: input, shape index: {}]
  %s5 = inlined_call_operand.vmem [shape: f32[1,96], index: 5, kind: input, shape index: {}]
  %s6 = inlined_call_operand.vmem [shape: f32[32,32], index: 6, kind: input, shape index: {}]
  %s7 = inlined_call_operand.vmem [shape: f32[1,32], index: 7, kind: input, shape index: {}]
  %s8 = inlined_call_operand.vmem [shape: f32[1,32], index: 8, kind: input, shape index: {}]
  %s9 = inlined_call_operand.vmem [shape: f32[1,32], index: 9, kind: input, shape index: {}]
  %s10 = inlined_call_operand.vmem [shape: f32[32,32], index: 10, kind: input, shape index: {}]
  %s11 = inlined_call_operand.vmem [shape: f32[1,32], index: 11, kind: input, shape index: {}]
  %s12 = inlined_call_operand.vmem [shape: f32[32,64], index: 12, kind: input, shape index: {}]
  %s13 = inlined_call_operand.vmem [shape: f32[1,64], index: 13, kind: input, shape index: {}]
  %s14 = inlined_call_operand.vmem [shape: f32[32,32], index: 14, kind: input, shape index: {}]
  %s15 = inlined_call_operand.vmem [shape: f32[1,32], index: 15, kind: input, shape index: {}]
  %s16 = inlined_call_operand.vmem [shape: f32[1,32], index: 16, kind: input, shape index: {}]
  %s17 = inlined_call_operand.vmem [shape: f32[1,32], index: 17, kind: input, shape index: {}]
  %s18 = inlined_call_operand.vmem [shape: f32[32,64], index: 18, kind: input, shape index: {}]
  %s19 = inlined_call_operand.vmem [shape: f32[1,64], index: 19, kind: input, shape index: {}]
  %s20 = inlined_call_operand.vmem [shape: f32[64,32], index: 20, kind: input, shape index: {}]
  %s21 = inlined_call_operand.vmem [shape: f32[1,32], index: 21, kind: input, shape index: {}]
  %s22 = inlined_call_operand.vmem [shape: f32[1,32], index: 22, kind: input, shape index: {}]
  %s23 = inlined_call_operand.vmem [shape: f32[1,32], index: 23, kind: input, shape index: {}]
  %s24 = inlined_call_operand.vmem [shape: f32[16,32], index: 24, kind: output, shape index: {}]
  %s25 = sld [smem:[#allocation0]]
  $region106: #{transformer_forward.7} parent=0
    _
  %s27 = ssub.s32 1, %s25
  %s28 = scalar_select 0, %s27, %s25
  // Predicated region
  $region2: #{transformer_forward.7} parent=0 // pred_check
    _
  $region3: #{transformer_forward.7} parent=0 // pred_check_branch
    %30 = sbr.rel (0) target = $region5
  $region4: #{transformer_forward.7} parent=0 // pred_region
    _
  $region5: #{transformer_forward.7} parent=0 // pred_fallthru
    _
  // Predicated region
  $region6: #{transformer_forward.7} parent=0 // pred_check
    _
  $region7: #{transformer_forward.7} parent=0 // pred_check_branch
    %32 = sbr.rel (0) target = $region9
  $region8: #{transformer_forward.7} parent=0 // pred_region
    _
  $region9: #{transformer_forward.7} parent=0 // pred_fallthru
    _
  // Predicated region
  $region10: #{transformer_forward.7} parent=0 // pred_check
    _
  $region11: #{transformer_forward.7} parent=0 // pred_check_branch
    %34 = sbr.rel (0) target = $region13
  $region12: #{transformer_forward.7} parent=0 // pred_region
    _
  $region13: #{transformer_forward.7} parent=0 // pred_fallthru
    _
  // Predicated region
  $region14: #{transformer_forward.7} parent=0 // pred_check
    _
  $region15: #{transformer_forward.7} parent=0 // pred_check_branch
    %36 = sbr.rel (0) target = $region17
  $region16: #{transformer_forward.7} parent=0 // pred_region
    _
  $region17: #{transformer_forward.7} parent=0 // pred_fallthru
    _
  // Predicated region
  $region18: #{transformer_forward.7} parent=0 // pred_check
    _
  $region19: #{transformer_forward.7} parent=0 // pred_check_branch
    %38 = sbr.rel (0) target = $region21
  $region20: #{transformer_forward.7} parent=0 // pred_region
    _
  $region21: #{transformer_forward.7} parent=0 // pred_fallthru
    _
  // Predicated region
  $region22: #{transformer_forward.7} parent=0 // pred_check
    _
  $region23: #{transformer_forward.7} parent=0 // pred_check_branch
    %40 = sbr.rel (0) target = $region25
  $region24: #{transformer_forward.7} parent=0 // pred_region
    _
  $region25: #{transformer_forward.7} parent=0 // pred_fallthru
    _
  // Predicated region
  $region26: #{transformer_forward.7} parent=0 // pred_check
    _
  $region27: #{transformer_forward.7} parent=0 // pred_check_branch
    %42 = sbr.rel (0) target = $region29
  $region28: #{transformer_forward.7} parent=0 // pred_region
    _
  $region29: #{transformer_forward.7} parent=0 // pred_fallthru
    _
  // Predicated region
  $region30: #{transformer_forward.7} parent=0 // pred_check
    _
  $region31: #{transformer_forward.7} parent=0 // pred_check_branch
    %44 = sbr.rel (0) target = $region33
  $region32: #{transformer_forward.7} parent=0 // pred_region
    _
  $region33: #{transformer_forward.7} parent=0 // pred_fallthru
    _
  // Predicated region
  $region34: #{transformer_forward.7} parent=0 // pred_check
    _
  $region35: #{transformer_forward.7} parent=0 // pred_check_branch
    %46 = sbr.rel (0) target = $region37
  $region36: #{transformer_forward.7} parent=0 // pred_region
    _
  $region37: #{transformer_forward.7} parent=0 // pred_fallthru
    _
  // Predicated region
  $region38: #{transformer_forward.7} parent=0 // pred_check
    _
  $region39: #{transformer_forward.7} parent=0 // pred_check_branch
    %48 = sbr.rel (0) target = $region41
  $region40: #{transformer_forward.7} parent=0 // pred_region
    _
  $region41: #{transformer_forward.7} parent=0 // pred_fallthru
    _
  // Predicated region
  $region42: #{transformer_forward.7} parent=0 // pred_check
    _
  $region43: #{transformer_forward.7} parent=0 // pred_check_branch
    %50 = sbr.rel (0) target = $region45
  $region44: #{transformer_forward.7} parent=0 // pred_region
    _
  $region45: #{transformer_forward.7} parent=0 // pred_fallthru
    _
  // Predicated region
  $region46: #{transformer_forward.7} parent=0 // pred_check
    _
  $region47: #{transformer_forward.7} parent=0 // pred_check_branch
    %52 = sbr.rel (0) target = $region49
  $region48: #{transformer_forward.7} parent=0 // pred_region
    _
  $region49: #{transformer_forward.7} parent=0 // pred_fallthru
    _
  // Predicated region
  $region50: #{transformer_forward.7} parent=0 // pred_check
    _
  $region51: #{transformer_forward.7} parent=0 // pred_check_branch
    %54 = sbr.rel (0) target = $region53
  $region52: #{transformer_forward.7} parent=0 // pred_region
    _
  $region53: #{transformer_forward.7} parent=0 // pred_fallthru
    _
  // Predicated region
  $region54: #{transformer_forward.7} parent=0 // pred_check
    _
  $region55: #{transformer_forward.7} parent=0 // pred_check_branch
    %56 = sbr.rel (0) target = $region57
  $region56: #{transformer_forward.7} parent=0 // pred_region
    _
  $region57: #{transformer_forward.7} parent=0 // pred_fallthru
    _
  // Predicated region
  $region58: #{transformer_forward.7} parent=0 // pred_check
    _
  $region59: #{transformer_forward.7} parent=0 // pred_check_branch
    %58 = sbr.rel (0) target = $region61
  $region60: #{transformer_forward.7} parent=0 // pred_region
    _
  $region61: #{transformer_forward.7} parent=0 // pred_fallthru
    _
  // Predicated region
  $region62: #{transformer_forward.7} parent=0 // pred_check
    _
  $region63: #{transformer_forward.7} parent=0 // pred_check_branch
    %60 = sbr.rel (0) target = $region65
  $region64: #{transformer_forward.7} parent=0 // pred_region
    _
  $region65: #{transformer_forward.7} parent=0 // pred_fallthru
    _
  // Predicated region
  $region66: #{transformer_forward.7} parent=0 // pred_check
    _
  $region67: #{transformer_forward.7} parent=0 // pred_check_branch
    %62 = sbr.rel (0) target = $region69
  $region68: #{transformer_forward.7} parent=0 // pred_region
    _
  $region69: #{transformer_forward.7} parent=0 // pred_fallthru
    _
  // Predicated region
  $region70: #{transformer_forward.7} parent=0 // pred_check
    _
  $region71: #{transformer_forward.7} parent=0 // pred_check_branch
    %64 = sbr.rel (0) target = $region73
  $region72: #{transformer_forward.7} parent=0 // pred_region
    _
  $region73: #{transformer_forward.7} parent=0 // pred_fallthru
    _
  // Predicated region
  $region74: #{transformer_forward.7} parent=0 // pred_check
    _
  $region75: #{transformer_forward.7} parent=0 // pred_check_branch
    %66 = sbr.rel (0) target = $region77
  $region76: #{transformer_forward.7} parent=0 // pred_region
    _
  $region77: #{transformer_forward.7} parent=0 // pred_fallthru
    _
  // Predicated region
  $region78: #{transformer_forward.7} parent=0 // pred_check
    _
  $region79: #{transformer_forward.7} parent=0 // pred_check_branch
    %68 = sbr.rel (0) target = $region81
  $region80: #{transformer_forward.7} parent=0 // pred_region
    _
  $region81: #{transformer_forward.7} parent=0 // pred_fallthru
    _
  // Predicated region
  $region82: #{transformer_forward.7} parent=0 // pred_check
    _
  $region83: #{transformer_forward.7} parent=0 // pred_check_branch
    %70 = sbr.rel (0) target = $region85
  $region84: #{transformer_forward.7} parent=0 // pred_region
    _
  $region85: #{transformer_forward.7} parent=0 // pred_fallthru
    _
  // Predicated region
  $region86: #{transformer_forward.7} parent=0 // pred_check
    _
  $region87: #{transformer_forward.7} parent=0 // pred_check_branch
    %72 = sbr.rel (0) target = $region89
  $region88: #{transformer_forward.7} parent=0 // pred_region
    _
  $region89: #{transformer_forward.7} parent=0 // pred_fallthru
    _
  // Predicated region
  $region90: #{transformer_forward.7} parent=0 // pred_check
    _
  $region91: #{transformer_forward.7} parent=0 // pred_check_branch
    %74 = sbr.rel (0) target = $region93
  $region92: #{transformer_forward.7} parent=0 // pred_region
    _
  $region93: #{transformer_forward.7} parent=0 // pred_fallthru
    _
  // Predicated region
  $region94: #{transformer_forward.7} parent=0 // pred_check
    _
  $region95: #{transformer_forward.7} parent=0 // pred_check_branch
    %76 = sbr.rel (0) target = $region97
  $region96: #{transformer_forward.7} parent=0 // pred_region
    _
  $region97: #{transformer_forward.7} parent=0 // pred_fallthru
    _
  %v77 = vld [vmem:[%s0] sm:$0xff]
  %v78 = vld [vmem:[%s0 + $0x8] sm:$0xff]
  %v79 = vld [vmem:[%s1] sm:$0xff]
  %v80 = vld [vmem:[%s1 + $0x8] sm:$0xff]
  %v81 = vld [vmem:[%s4] sm:$0xff]
  %v82 = vld [vmem:[%s4 + $0x8] sm:$0xff]
  %v83 = vld [vmem:[%s4 + $0x10] sm:$0xff]
  %v84 = vld [vmem:[%s4 + $0x18] sm:$0xff]
  %v85 = vld [vmem:[%s5] sm:$0x1]
  %v87 = vlaneseq
  %v88 = vshrl.u32 %v87, 7
  %v89 = vsub.s32 0, %v88
  %v90 = vrot.slane %v85, %v89
  %vm92 = vcmask 261120
  %v94 = vsel %vm92, %v77, 0
  %v97 = vsel %vm92, %v78, 0
  %99 = vmatprep.subr.mxu0 0.0
  %100 = vmatpush1.msra.mxu0 %v81
  %101 = vmatprep.subr.mxu0 0.0
  %102 = vmatpush1.msra.mxu0 %v82
  %103 = vmatprep.subr.mxu0 0.0
  %104 = vmatpush1.msra.mxu0 %v83
  %105 = vmatprep.subr.mxu0 0.0
  %106 = vmatpush1.msra.mxu0 %v84
  %107 = vmatprep.subr.mxu0 0.0
  %108 = vmatpush1.msra.mxu0 0.0
  %109 = vmatprep.subr.mxu0 0.0
  %110 = vmatpush1.msra.mxu0 0.0
  %111 = vmatprep.subr.mxu0 0.0
  %112 = vmatpush1.msra.mxu0 0.0
  %113 = vmatprep.subr.mxu0 0.0
  %114 = vmatpush1.msra.mxu0 0.0
  %115 = vmatprep.subr.mxu0 0.0
  %116 = vmatpush1.msra.mxu0 0.0
  %117 = vmatprep.subr.mxu0 0.0
  %118 = vmatpush1.msra.mxu0 0.0
  %119 = vmatprep.subr.mxu0 0.0
  %120 = vmatpush1.msra.mxu0 0.0
  %121 = vmatprep.subr.mxu0 0.0
  %122 = vmatpush1.msra.mxu0 0.0
  %123 = vmatprep.subr.mxu0 0.0
  %124 = vmatpush1.msra.mxu0 0.0
  %125 = vmatprep.subr.mxu0 0.0
  %126 = vmatpush1.msra.mxu0 0.0
  %127 = vmatprep.subr.mxu0 0.0
  %128 = vmatpush1.msra.mxu0 0.0
  %129 = vmatprep.subr.mxu0 0.0
  %130 = vmatpush1.msra.mxu0 0.0
  %131 = vmatprep.subr.mxu0 0.0
  %132 = vmatpush1.msra.mxu0 0.0
  %133 = vmatprep.subr.mxu0 0.0
  %134 = vmatpush1.msra.mxu0 0.0
  %135 = vmatprep.subr.mxu0 0.0
  %136 = vmatpush1.msra.mxu0 0.0
  %137 = vmatprep.subr.mxu0 0.0
  %138 = vmatpush1.msra.mxu0 0.0
  %139 = vmatprep.subr.mxu0 0.0
  %140 = vmatpush1.msra.mxu0 0.0
  %141 = vmatprep.subr.mxu0 0.0
  %142 = vmatpush1.msra.mxu0 0.0
  %143 = vmatprep.subr.mxu0 0.0
  %144 = vmatpush1.msra.mxu0 0.0
  %145 = vmatprep.subr.mxu0 0.0
  %146 = vmatpush1.msra.mxu0 0.0
  %147 = vmatprep.subr.mxu0 0.0
  %148 = vmatpush1.msra.mxu0 0.0
  %149 = vmatprep.subr.mxu0 0.0
  %150 = vmatpush1.msra.mxu0 0.0
  %151 = vmatprep.subr.mxu0 0.0
  %152 = vmatpush1.msra.mxu0 0.0
  %153 = vmatprep.subr.mxu0 0.0
  %154 = vmatpush1.msra.mxu0 0.0
  %155 = vmatprep.subr.mxu0 0.0
  %156 = vmatpush1.msra.mxu0 0.0
  %157 = vmatprep.subr.mxu0 0.0
  %158 = vmatpush1.msra.mxu0 0.0
  %159 = vmatprep.subr.mxu0 0.0
  %160 = vmatpush1.msra.mxu0 0.0
  %161 = vmatprep.subr.mxu0 0.0
  %162 = vmatpush1.msra.mxu0 0.0
  %163 = vmatprep.mubr.f32.mxu0 0.0
  %164 = vmatmul.mubr.f32.gmra.mrb[0].mxu0 %v94
  %v165 = vpop.f32.mrb[0].mxu0
  %v166 = vadd.f32 %v90, %v165
  %v167 = vpop.f32.mrb[0].mxu0
  %168 = vmatprep.mubr.f32.mxu0 0.0
  %169 = vmatmul.mubr.f32.gmra.mrb[0].mxu0 %v97
  %v170 = vpop.f32.mrb[0].mxu0
  %v171 = vadd.f32 %v90, %v170
  %v172 = vpop.f32.mrb[0].mxu0
  %173 = vdwg.mxu0
  %v174 = vld [vmem:[%s2] sm:$0xff]
  %v175 = vld [vmem:[%s2 + $0x8] sm:$0xff]
  %177 = vrot.lane.b32.xlu0 %v166, 96
  %v178 = vpop.permute.xlu0 %177
  %vm179 = vcmask 64512
  %v180 = vsel %vm179, %v166, 0
  %v182 = vsel %vm179, %v178, 0
  %184 = vmatprep.subr.mxu0 0.0
  %185 = vmatpush1.xpose.msra.mxu0 %v182
  %186 = vmatprep.subr.mxu0 0.0
  %187 = vmatpush1.xpose.msra.mxu0 0.0
  %188 = vmatprep.subr.mxu0 0.0
  %189 = vmatpush1.xpose.msra.mxu0 0.0
  %190 = vmatprep.subr.mxu0 0.0
  %191 = vmatpush1.xpose.msra.mxu0 0.0
  %192 = vmatprep.subr.mxu0 0.0
  %193 = vmatpush1.xpose.msra.mxu0 0.0
  %194 = vmatprep.subr.mxu0 0.0
  %195 = vmatpush1.xpose.msra.mxu0 0.0
  %196 = vmatprep.subr.mxu0 0.0
  %197 = vmatpush1.xpose.msra.mxu0 0.0
  %198 = vmatprep.subr.mxu0 0.0
  %199 = vmatpush1.xpose.msra.mxu0 0.0
  %200 = vmatprep.subr.mxu0 0.0
  %201 = vmatpush1.xpose.msra.mxu0 0.0
  %202 = vmatprep.subr.mxu0 0.0
  %203 = vmatpush1.xpose.msra.mxu0 0.0
  %204 = vmatprep.subr.mxu0 0.0
  %205 = vmatpush1.xpose.msra.mxu0 0.0
  %206 = vmatprep.subr.mxu0 0.0
  %207 = vmatpush1.xpose.msra.mxu0 0.0
  %208 = vmatprep.subr.mxu0 0.0
  %209 = vmatpush1.xpose.msra.mxu0 0.0
  %210 = vmatprep.subr.mxu0 0.0
  %211 = vmatpush1.xpose.msra.mxu0 0.0
  %212 = vmatprep.subr.mxu0 0.0
  %213 = vmatpush1.xpose.msra.mxu0 0.0
  %214 = vmatprep.subr.mxu0 0.0
  %215 = vmatpush1.xpose.msra.mxu0 0.0
  %216 = vmatprep.subr.mxu0 0.0
  %217 = vmatpush1.xpose.msra.mxu0 0.0
  %218 = vmatprep.subr.mxu0 0.0
  %219 = vmatpush1.xpose.msra.mxu0 0.0
  %220 = vmatprep.subr.mxu0 0.0
  %221 = vmatpush1.xpose.msra.mxu0 0.0
  %222 = vmatprep.subr.mxu0 0.0
  %223 = vmatpush1.xpose.msra.mxu0 0.0
  %224 = vmatprep.subr.mxu0 0.0
  %225 = vmatpush1.xpose.msra.mxu0 0.0
  %226 = vmatprep.subr.mxu0 0.0
  %227 = vmatpush1.xpose.msra.mxu0 0.0
  %228 = vmatprep.subr.mxu0 0.0
  %229 = vmatpush1.xpose.msra.mxu0 0.0
  %230 = vmatprep.subr.mxu0 0.0
  %231 = vmatpush1.xpose.msra.mxu0 0.0
  %232 = vmatprep.subr.mxu0 0.0
  %233 = vmatpush1.xpose.msra.mxu0 0.0
  %234 = vmatprep.subr.mxu0 0.0
  %235 = vmatpush1.xpose.msra.mxu0 0.0
  %236 = vmatprep.subr.mxu0 0.0
  %237 = vmatpush1.xpose.msra.mxu0 0.0
  %238 = vmatprep.subr.mxu0 0.0
  %239 = vmatpush1.xpose.msra.mxu0 0.0
  %240 = vmatprep.subr.mxu0 0.0
  %241 = vmatpush1.xpose.msra.mxu0 0.0
  %242 = vmatprep.subr.mxu0 0.0
  %243 = vmatpush1.xpose.msra.mxu0 0.0
  %244 = vmatprep.subr.mxu0 0.0
  %245 = vmatpush1.xpose.msra.mxu0 0.0
  %246 = vmatprep.subr.mxu0 0.0
  %247 = vmatpush1.xpose.msra.mxu0 0.0
  %248 = vmatprep.mubr.f32.mxu0 0.0
  %249 = vmatmul.mubr.f32.gmra.mrb[0].mxu0 %v180
  %v250 = vpop.f32.mrb[0].mxu0
  %v251 = vadd.f32 0.0, %v250
  %v252 = vpop.f32.mrb[0].mxu0
  %253 = vdwg.mxu0
  %v254 = vmul.f32 %v251, 0.35355338
  %v255 = vadd.f32 %v254, %v174
  %v256 = vsel %vm179, %v255, -inf
  %257 = vmax.xlane.f32.xlu0 %v256
  %v258 = vpop.xlane.xlu0 %257
  %v259 = vsub.f32 %v255, %v258
  %v260 = vmul.f32 %v259, 1.442695
  %v261 = vpow.pop %v260
  %v262 = vsel %vm179, %v261, 0.0
  %263 = vadd.xlane.f32.xlu0 %v262
  %v264 = vpop.xlane.xlu0 %263
  %v265 = vrcp.pop %v264
  %v266 = vmul.f32 %v261, %v265
  %267 = vrot.lane.b32.xlu0 %v166, 64
  %v268 = vpop.permute.xlu0 %267
  %v271 = vsel %vm179, %v266, 0
  %273 = vmatprep.subr.mxu0 0.0
  %274 = vmatpush1.msra.mxu0 %v268
  %275 = vmatprep.subr.mxu0 0.0
  %276 = vmatpush1.msra.mxu0 0.0
  %277 = vmatprep.subr.mxu0 0.0
  %278 = vmatpush1.msra.mxu0 0.0
  %279 = vmatprep.subr.mxu0 0.0
  %280 = vmatpush1.msra.mxu0 0.0
  %281 = vmatprep.subr.mxu0 0.0
  %282 = vmatpush1.msra.mxu0 0.0
  %283 = vmatprep.subr.mxu0 0.0
  %284 = vmatpush1.msra.mxu0 0.0
  %285 = vmatprep.subr.mxu0 0.0
  %286 = vmatpush1.msra.mxu0 0.0
  %287 = vmatprep.subr.mxu0 0.0
  %288 = vmatpush1.msra.mxu0 0.0
  %289 = vmatprep.subr.mxu0 0.0
  %290 = vmatpush1.msra.mxu0 0.0
  %291 = vmatprep.subr.mxu0 0.0
  %292 = vmatpush1.msra.mxu0 0.0
  %293 = vmatprep.subr.mxu0 0.0
  %294 = vmatpush1.msra.mxu0 0.0
  %295 = vmatprep.subr.mxu0 0.0
  %296 = vmatpush1.msra.mxu0 0.0
  %297 = vmatprep.subr.mxu0 0.0
  %298 = vmatpush1.msra.mxu0 0.0
  %299 = vmatprep.subr.mxu0 0.0
  %300 = vmatpush1.msra.mxu0 0.0
  %301 = vmatprep.subr.mxu0 0.0
  %302 = vmatpush1.msra.mxu0 0.0
  %303 = vmatprep.subr.mxu0 0.0
  %304 = vmatpush1.msra.mxu0 0.0
  %305 = vmatprep.subr.mxu0 0.0
  %306 = vmatpush1.msra.mxu0 0.0
  %307 = vmatprep.subr.mxu0 0.0
  %308 = vmatpush1.msra.mxu0 0.0
  %309 = vmatprep.subr.mxu0 0.0
  %310 = vmatpush1.msra.mxu0 0.0
  %311 = vmatprep.subr.mxu0 0.0
  %312 = vmatpush1.msra.mxu0 0.0
  %313 = vmatprep.subr.mxu0 0.0
  %314 = vmatpush1.msra.mxu0 0.0
  %315 = vmatprep.subr.mxu0 0.0
  %316 = vmatpush1.msra.mxu0 0.0
  %317 = vmatprep.subr.mxu0 0.0
  %318 = vmatpush1.msra.mxu0 0.0
  %319 = vmatprep.subr.mxu0 0.0
  %320 = vmatpush1.msra.mxu0 0.0
  %321 = vmatprep.subr.mxu0 0.0
  %322 = vmatpush1.msra.mxu0 0.0
  %323 = vmatprep.subr.mxu0 0.0
  %324 = vmatpush1.msra.mxu0 0.0
  %325 = vmatprep.subr.mxu0 0.0
  %326 = vmatpush1.msra.mxu0 0.0
  %327 = vmatprep.subr.mxu0 0.0
  %328 = vmatpush1.msra.mxu0 0.0
  %329 = vmatprep.subr.mxu0 0.0
  %330 = vmatpush1.msra.mxu0 0.0
  %331 = vmatprep.subr.mxu0 0.0
  %332 = vmatpush1.msra.mxu0 0.0
  %333 = vmatprep.subr.mxu0 0.0
  %334 = vmatpush1.msra.mxu0 0.0
  %335 = vmatprep.subr.mxu0 0.0
  %336 = vmatpush1.msra.mxu0 0.0
  %337 = vmatprep.mubr.f32.mxu0 0.0
  %338 = vmatmul.mubr.f32.gmra.mrb[0].mxu0 %v271
  %v339 = vpop.f32.mrb[0].mxu0
  %v340 = vadd.f32 0.0, %v339
  %v341 = vpop.f32.mrb[0].mxu0
  %342 = vdwg.mxu0
  %343 = vrot.lane.b32.xlu0 %v166, 120
  %v344 = vpop.permute.xlu0 %343
  %345 = vrot.lane.b32.xlu0 %v166, 88
  %v346 = vpop.permute.xlu0 %345
  %v347 = vsel %vm179, %v344, 0
  %v349 = vsel %vm179, %v346, 0
  %351 = vmatprep.subr.mxu0 0.0
  %352 = vmatpush1.xpose.msra.mxu0 %v349
  %353 = vmatprep.subr.mxu0 0.0
  %354 = vmatpush1.xpose.msra.mxu0 0.0
  %355 = vmatprep.subr.mxu0 0.0
  %356 = vmatpush1.xpose.msra.mxu0 0.0
  %357 = vmatprep.subr.mxu0 0.0
  %358 = vmatpush1.xpose.msra.mxu0 0.0
  %359 = vmatprep.subr.mxu0 0.0
  %360 = vmatpush1.xpose.msra.mxu0 0.0
  %361 = vmatprep.subr.mxu0 0.0
  %362 = vmatpush1.xpose.msra.mxu0 0.0
  %363 = vmatprep.subr.mxu0 0.0
  %364 = vmatpush1.xpose.msra.mxu0 0.0
  %365 = vmatprep.subr.mxu0 0.0
  %366 = vmatpush1.xpose.msra.mxu0 0.0
  %367 = vmatprep.subr.mxu0 0.0
  %368 = vmatpush1.xpose.msra.mxu0 0.0
  %369 = vmatprep.subr.mxu0 0.0
  %370 = vmatpush1.xpose.msra.mxu0 0.0
  %371 = vmatprep.subr.mxu0 0.0
  %372 = vmatpush1.xpose.msra.mxu0 0.0
  %373 = vmatprep.subr.mxu0 0.0
  %374 = vmatpush1.xpose.msra.mxu0 0.0
  %375 = vmatprep.subr.mxu0 0.0
  %376 = vmatpush1.xpose.msra.mxu0 0.0
  %377 = vmatprep.subr.mxu0 0.0
  %378 = vmatpush1.xpose.msra.mxu0 0.0
  %379 = vmatprep.subr.mxu0 0.0
  %380 = vmatpush1.xpose.msra.mxu0 0.0
  %381 = vmatprep.subr.mxu0 0.0
  %382 = vmatpush1.xpose.msra.mxu0 0.0
  %383 = vmatprep.subr.mxu0 0.0
  %384 = vmatpush1.xpose.msra.mxu0 0.0
  %385 = vmatprep.subr.mxu0 0.0
  %386 = vmatpush1.xpose.msra.mxu0 0.0
  %387 = vmatprep.subr.mxu0 0.0
  %388 = vmatpush1.xpose.msra.mxu0 0.0
  %389 = vmatprep.subr.mxu0 0.0
  %390 = vmatpush1.xpose.msra.mxu0 0.0
  %391 = vmatprep.subr.mxu0 0.0
  %392 = vmatpush1.xpose.msra.mxu0 0.0
  %393 = vmatprep.subr.mxu0 0.0
  %394 = vmatpush1.xpose.msra.mxu0 0.0
  %395 = vmatprep.subr.mxu0 0.0
  %396 = vmatpush1.xpose.msra.mxu0 0.0
  %397 = vmatprep.subr.mxu0 0.0
  %398 = vmatpush1.xpose.msra.mxu0 0.0
  %399 = vmatprep.subr.mxu0 0.0
  %400 = vmatpush1.xpose.msra.mxu0 0.0
  %401 = vmatprep.subr.mxu0 0.0
  %402 = vmatpush1.xpose.msra.mxu0 0.0
  %403 = vmatprep.subr.mxu0 0.0
  %404 = vmatpush1.xpose.msra.mxu0 0.0
  %405 = vmatprep.subr.mxu0 0.0
  %406 = vmatpush1.xpose.msra.mxu0 0.0
  %407 = vmatprep.subr.mxu0 0.0
  %408 = vmatpush1.xpose.msra.mxu0 0.0
  %409 = vmatprep.subr.mxu0 0.0
  %410 = vmatpush1.xpose.msra.mxu0 0.0
  %411 = vmatprep.subr.mxu0 0.0
  %412 = vmatpush1.xpose.msra.mxu0 0.0
  %413 = vmatprep.subr.mxu0 0.0
  %414 = vmatpush1.xpose.msra.mxu0 0.0
  %415 = vmatprep.mubr.f32.mxu0 0.0
  %416 = vmatmul.mubr.f32.gmra.mrb[0].mxu0 %v347
  %v417 = vpop.f32.mrb[0].mxu0
  %v418 = vadd.f32 0.0, %v417
  %v419 = vpop.f32.mrb[0].mxu0
  %420 = vdwg.mxu0
  %v421 = vmul.f32 %v418, 0.35355338
  %v422 = vadd.f32 %v421, %v174
  %v423 = vsel %vm179, %v422, -inf
  %424 = vmax.xlane.f32.xlu0 %v423
  %v425 = vpop.xlane.xlu0 %424
  %v426 = vsub.f32 %v422, %v425
  %v427 = vmul.f32 %v426, 1.442695
  %v428 = vpow.pop %v427
  %v429 = vsel %vm179, %v428, 0.0
  %430 = vadd.xlane.f32.xlu0 %v429
  %v431 = vpop.xlane.xlu0 %430
  %v432 = vrcp.pop %v431
  %v433 = vmul.f32 %v428, %v432
  %434 = vrot.lane.b32.xlu0 %v166, 56
  %v435 = vpop.permute.xlu0 %434
  %v438 = vsel %vm179, %v433, 0
  %440 = vmatprep.subr.mxu0 0.0
  %441 = vmatpush1.msra.mxu0 %v435
  %442 = vmatprep.subr.mxu0 0.0
  %443 = vmatpush1.msra.mxu0 0.0
  %444 = vmatprep.subr.mxu0 0.0
  %445 = vmatpush1.msra.mxu0 0.0
  %446 = vmatprep.subr.mxu0 0.0
  %447 = vmatpush1.msra.mxu0 0.0
  %448 = vmatprep.subr.mxu0 0.0
  %449 = vmatpush1.msra.mxu0 0.0
  %450 = vmatprep.subr.mxu0 0.0
  %451 = vmatpush1.msra.mxu0 0.0
  %452 = vmatprep.subr.mxu0 0.0
  %453 = vmatpush1.msra.mxu0 0.0
  %454 = vmatprep.subr.mxu0 0.0
  %455 = vmatpush1.msra.mxu0 0.0
  %456 = vmatprep.subr.mxu0 0.0
  %457 = vmatpush1.msra.mxu0 0.0
  %458 = vmatprep.subr.mxu0 0.0
  %459 = vmatpush1.msra.mxu0 0.0
  %460 = vmatprep.subr.mxu0 0.0
  %461 = vmatpush1.msra.mxu0 0.0
  %462 = vmatprep.subr.mxu0 0.0
  %463 = vmatpush1.msra.mxu0 0.0
  %464 = vmatprep.subr.mxu0 0.0
  %465 = vmatpush1.msra.mxu0 0.0
  %466 = vmatprep.subr.mxu0 0.0
  %467 = vmatpush1.msra.mxu0 0.0
  %468 = vmatprep.subr.mxu0 0.0
  %469 = vmatpush1.msra.mxu0 0.0
  %470 = vmatprep.subr.mxu0 0.0
  %471 = vmatpush1.msra.mxu0 0.0
  %472 = vmatprep.subr.mxu0 0.0
  %473 = vmatpush1.msra.mxu0 0.0
  %474 = vmatprep.subr.mxu0 0.0
  %475 = vmatpush1.msra.mxu0 0.0
  %476 = vmatprep.subr.mxu0 0.0
  %477 = vmatpush1.msra.mxu0 0.0
  %478 = vmatprep.subr.mxu0 0.0
  %479 = vmatpush1.msra.mxu0 0.0
  %480 = vmatprep.subr.mxu0 0.0
  %481 = vmatpush1.msra.mxu0 0.0
  %482 = vmatprep.subr.mxu0 0.0
  %483 = vmatpush1.msra.mxu0 0.0
  %484 = vmatprep.subr.mxu0 0.0
  %485 = vmatpush1.msra.mxu0 0.0
  %486 = vmatprep.subr.mxu0 0.0
  %487 = vmatpush1.msra.mxu0 0.0
  %488 = vmatprep.subr.mxu0 0.0
  %489 = vmatpush1.msra.mxu0 0.0
  %490 = vmatprep.subr.mxu0 0.0
  %491 = vmatpush1.msra.mxu0 0.0
  %492 = vmatprep.subr.mxu0 0.0
  %493 = vmatpush1.msra.mxu0 0.0
  %494 = vmatprep.subr.mxu0 0.0
  %495 = vmatpush1.msra.mxu0 0.0
  %496 = vmatprep.subr.mxu0 0.0
  %497 = vmatpush1.msra.mxu0 0.0
  %498 = vmatprep.subr.mxu0 0.0
  %499 = vmatpush1.msra.mxu0 0.0
  %500 = vmatprep.subr.mxu0 0.0
  %501 = vmatpush1.msra.mxu0 0.0
  %502 = vmatprep.subr.mxu0 0.0
  %503 = vmatpush1.msra.mxu0 0.0
  %504 = vmatprep.mubr.f32.mxu0 0.0
  %505 = vmatmul.mubr.f32.gmra.mrb[0].mxu0 %v438
  %v506 = vpop.f32.mrb[0].mxu0
  %v507 = vadd.f32 0.0, %v506
  %v508 = vpop.f32.mrb[0].mxu0
  %509 = vdwg.mxu0
  %510 = vrot.lane.b32.xlu0 %v166, 112
  %v511 = vpop.permute.xlu0 %510
  %512 = vrot.lane.b32.xlu0 %v166, 80
  %v513 = vpop.permute.xlu0 %512
  %v514 = vsel %vm179, %v511, 0
  %v516 = vsel %vm179, %v513, 0
  %518 = vmatprep.subr.mxu0 0.0
  %519 = vmatpush1.xpose.msra.mxu0 %v516
  %520 = vmatprep.subr.mxu0 0.0
  %521 = vmatpush1.xpose.msra.mxu0 0.0
  %522 = vmatprep.subr.mxu0 0.0
  %523 = vmatpush1.xpose.msra.mxu0 0.0
  %524 = vmatprep.subr.mxu0 0.0
  %525 = vmatpush1.xpose.msra.mxu0 0.0
  %526 = vmatprep.subr.mxu0 0.0
  %527 = vmatpush1.xpose.msra.mxu0 0.0
  %528 = vmatprep.subr.mxu0 0.0
  %529 = vmatpush1.xpose.msra.mxu0 0.0
  %530 = vmatprep.subr.mxu0 0.0
  %531 = vmatpush1.xpose.msra.mxu0 0.0
  %532 = vmatprep.subr.mxu0 0.0
  %533 = vmatpush1.xpose.msra.mxu0 0.0
  %534 = vmatprep.subr.mxu0 0.0
  %535 = vmatpush1.xpose.msra.mxu0 0.0
  %536 = vmatprep.subr.mxu0 0.0
  %537 = vmatpush1.xpose.msra.mxu0 0.0
  %538 = vmatprep.subr.mxu0 0.0
  %539 = vmatpush1.xpose.msra.mxu0 0.0
  %540 = vmatprep.subr.mxu0 0.0
  %541 = vmatpush1.xpose.msra.mxu0 0.0
  %542 = vmatprep.subr.mxu0 0.0
  %543 = vmatpush1.xpose.msra.mxu0 0.0
  %544 = vmatprep.subr.mxu0 0.0
  %545 = vmatpush1.xpose.msra.mxu0 0.0
  %546 = vmatprep.subr.mxu0 0.0
  %547 = vmatpush1.xpose.msra.mxu0 0.0
  %548 = vmatprep.subr.mxu0 0.0
  %549 = vmatpush1.xpose.msra.mxu0 0.0
  %550 = vmatprep.subr.mxu0 0.0
  %551 = vmatpush1.xpose.msra.mxu0 0.0
  %552 = vmatprep.subr.mxu0 0.0
  %553 = vmatpush1.xpose.msra.mxu0 0.0
  %554 = vmatprep.subr.mxu0 0.0
  %555 = vmatpush1.xpose.msra.mxu0 0.0
  %556 = vmatprep.subr.mxu0 0.0
  %557 = vmatpush1.xpose.msra.mxu0 0.0
  %558 = vmatprep.subr.mxu0 0.0
  %559 = vmatpush1.xpose.msra.mxu0 0.0
  %560 = vmatprep.subr.mxu0 0.0
  %561 = vmatpush1.xpose.msra.mxu0 0.0
  %562 = vmatprep.subr.mxu0 0.0
  %563 = vmatpush1.xpose.msra.mxu0 0.0
  %564 = vmatprep.subr.mxu0 0.0
  %565 = vmatpush1.xpose.msra.mxu0 0.0
  %566 = vmatprep.subr.mxu0 0.0
  %567 = vmatpush1.xpose.msra.mxu0 0.0
  %568 = vmatprep.subr.mxu0 0.0
  %569 = vmatpush1.xpose.msra.mxu0 0.0
  %570 = vmatprep.subr.mxu0 0.0
  %571 = vmatpush1.xpose.msra.mxu0 0.0
  %572 = vmatprep.subr.mxu0 0.0
  %573 = vmatpush1.xpose.msra.mxu0 0.0
  %574 = vmatprep.subr.mxu0 0.0
  %575 = vmatpush1.xpose.msra.mxu0 0.0
  %576 = vmatprep.subr.mxu0 0.0
  %577 = vmatpush1.xpose.msra.mxu0 0.0
  %578 = vmatprep.subr.mxu0 0.0
  %579 = vmatpush1.xpose.msra.mxu0 0.0
  %580 = vmatprep.subr.mxu0 0.0
  %581 = vmatpush1.xpose.msra.mxu0 0.0
  %582 = vmatprep.mubr.f32.mxu0 0.0
  %583 = vmatmul.mubr.f32.gmra.mrb[0].mxu0 %v514
  %v584 = vpop.f32.mrb[0].mxu0
  %v585 = vadd.f32 0.0, %v584
  %v586 = vpop.f32.mrb[0].mxu0
  %587 = vdwg.mxu0
  %v588 = vmul.f32 %v585, 0.35355338
  %v589 = vadd.f32 %v588, %v174
  %v590 = vsel %vm179, %v589, -inf
  %591 = vmax.xlane.f32.xlu0 %v590
  %v592 = vpop.xlane.xlu0 %591
  %v593 = vsub.f32 %v589, %v592
  %v594 = vmul.f32 %v593, 1.442695
  %v595 = vpow.pop %v594
  %v596 = vsel %vm179, %v595, 0.0
  %597 = vadd.xlane.f32.xlu0 %v596
  %v598 = vpop.xlane.xlu0 %597
  %v599 = vrcp.pop %v598
  %v600 = vmul.f32 %v595, %v599
  %601 = vrot.lane.b32.xlu0 %v166, 48
  %v602 = vpop.permute.xlu0 %601
  %v605 = vsel %vm179, %v600, 0
  %607 = vmatprep.subr.mxu0 0.0
  %608 = vmatpush1.msra.mxu0 %v602
  %609 = vmatprep.subr.mxu0 0.0
  %610 = vmatpush1.msra.mxu0 0.0
  %611 = vmatprep.subr.mxu0 0.0
  %612 = vmatpush1.msra.mxu0 0.0
  %613 = vmatprep.subr.mxu0 0.0
  %614 = vmatpush1.msra.mxu0 0.0
  %615 = vmatprep.subr.mxu0 0.0
  %616 = vmatpush1.msra.mxu0 0.0
  %617 = vmatprep.subr.mxu0 0.0
  %618 = vmatpush1.msra.mxu0 0.0
  %619 = vmatprep.subr.mxu0 0.0
  %620 = vmatpush1.msra.mxu0 0.0
  %621 = vmatprep.subr.mxu0 0.0
  %622 = vmatpush1.msra.mxu0 0.0
  %623 = vmatprep.subr.mxu0 0.0
  %624 = vmatpush1.msra.mxu0 0.0
  %625 = vmatprep.subr.mxu0 0.0
  %626 = vmatpush1.msra.mxu0 0.0
  %627 = vmatprep.subr.mxu0 0.0
  %628 = vmatpush1.msra.mxu0 0.0
  %629 = vmatprep.subr.mxu0 0.0
  %630 = vmatpush1.msra.mxu0 0.0
  %631 = vmatprep.subr.mxu0 0.0
  %632 = vmatpush1.msra.mxu0 0.0
  %633 = vmatprep.subr.mxu0 0.0
  %634 = vmatpush1.msra.mxu0 0.0
  %635 = vmatprep.subr.mxu0 0.0
  %636 = vmatpush1.msra.mxu0 0.0
  %637 = vmatprep.subr.mxu0 0.0
  %638 = vmatpush1.msra.mxu0 0.0
  %639 = vmatprep.subr.mxu0 0.0
  %640 = vmatpush1.msra.mxu0 0.0
  %641 = vmatprep.subr.mxu0 0.0
  %642 = vmatpush1.msra.mxu0 0.0
  %643 = vmatprep.subr.mxu0 0.0
  %644 = vmatpush1.msra.mxu0 0.0
  %645 = vmatprep.subr.mxu0 0.0
  %646 = vmatpush1.msra.mxu0 0.0
  %647 = vmatprep.subr.mxu0 0.0
  %648 = vmatpush1.msra.mxu0 0.0
  %649 = vmatprep.subr.mxu0 0.0
  %650 = vmatpush1.msra.mxu0 0.0
  %651 = vmatprep.subr.mxu0 0.0
  %652 = vmatpush1.msra.mxu0 0.0
  %653 = vmatprep.subr.mxu0 0.0
  %654 = vmatpush1.msra.mxu0 0.0
  %655 = vmatprep.subr.mxu0 0.0
  %656 = vmatpush1.msra.mxu0 0.0
  %657 = vmatprep.subr.mxu0 0.0
  %658 = vmatpush1.msra.mxu0 0.0
  %659 = vmatprep.subr.mxu0 0.0
  %660 = vmatpush1.msra.mxu0 0.0
  %661 = vmatprep.subr.mxu0 0.0
  %662 = vmatpush1.msra.mxu0 0.0
  %663 = vmatprep.subr.mxu0 0.0
  %664 = vmatpush1.msra.mxu0 0.0
  %665 = vmatprep.subr.mxu0 0.0
  %666 = vmatpush1.msra.mxu0 0.0
  %667 = vmatprep.subr.mxu0 0.0
  %668 = vmatpush1.msra.mxu0 0.0
  %669 = vmatprep.subr.mxu0 0.0
  %670 = vmatpush1.msra.mxu0 0.0
  %671 = vmatprep.mubr.f32.mxu0 0.0
  %672 = vmatmul.mubr.f32.gmra.mrb[0].mxu0 %v605
  %v673 = vpop.f32.mrb[0].mxu0
  %v674 = vadd.f32 0.0, %v673
  %v675 = vpop.f32.mrb[0].mxu0
  %676 = vdwg.mxu0
  %677 = vrot.lane.b32.xlu0 %v166, 104
  %v678 = vpop.permute.xlu0 %677
  %679 = vrot.lane.b32.xlu0 %v166, 72
  %v680 = vpop.permute.xlu0 %679
  %v681 = vsel %vm179, %v678, 0
  %v683 = vsel %vm179, %v680, 0
  %685 = vmatprep.subr.mxu0 0.0
  %686 = vmatpush1.xpose.msra.mxu0 %v683
  %687 = vmatprep.subr.mxu0 0.0
  %688 = vmatpush1.xpose.msra.mxu0 0.0
  %689 = vmatprep.subr.mxu0 0.0
  %690 = vmatpush1.xpose.msra.mxu0 0.0
  %691 = vmatprep.subr.mxu0 0.0
  %692 = vmatpush1.xpose.msra.mxu0 0.0
  %693 = vmatprep.subr.mxu0 0.0
  %694 = vmatpush1.xpose.msra.mxu0 0.0
  %695 = vmatprep.subr.mxu0 0.0
  %696 = vmatpush1.xpose.msra.mxu0 0.0
  %697 = vmatprep.subr.mxu0 0.0
  %698 = vmatpush1.xpose.msra.mxu0 0.0
  %699 = vmatprep.subr.mxu0 0.0
  %700 = vmatpush1.xpose.msra.mxu0 0.0
  %701 = vmatprep.subr.mxu0 0.0
  %702 = vmatpush1.xpose.msra.mxu0 0.0
  %703 = vmatprep.subr.mxu0 0.0
  %704 = vmatpush1.xpose.msra.mxu0 0.0
  %705 = vmatprep.subr.mxu0 0.0
  %706 = vmatpush1.xpose.msra.mxu0 0.0
  %707 = vmatprep.subr.mxu0 0.0
  %708 = vmatpush1.xpose.msra.mxu0 0.0
  %709 = vmatprep.subr.mxu0 0.0
  %710 = vmatpush1.xpose.msra.mxu0 0.0
  %711 = vmatprep.subr.mxu0 0.0
  %712 = vmatpush1.xpose.msra.mxu0 0.0
  %713 = vmatprep.subr.mxu0 0.0
  %714 = vmatpush1.xpose.msra.mxu0 0.0
  %715 = vmatprep.subr.mxu0 0.0
  %716 = vmatpush1.xpose.msra.mxu0 0.0
  %717 = vmatprep.subr.mxu0 0.0
  %718 = vmatpush1.xpose.msra.mxu0 0.0
  %719 = vmatprep.subr.mxu0 0.0
  %720 = vmatpush1.xpose.msra.mxu0 0.0
  %721 = vmatprep.subr.mxu0 0.0
  %722 = vmatpush1.xpose.msra.mxu0 0.0
  %723 = vmatprep.subr.mxu0 0.0
  %724 = vmatpush1.xpose.msra.mxu0 0.0
  %725 = vmatprep.subr.mxu0 0.0
  %726 = vmatpush1.xpose.msra.mxu0 0.0
  %727 = vmatprep.subr.mxu0 0.0
  %728 = vmatpush1.xpose.msra.mxu0 0.0
  %729 = vmatprep.subr.mxu0 0.0
  %730 = vmatpush1.xpose.msra.mxu0 0.0
  %731 = vmatprep.subr.mxu0 0.0
  %732 = vmatpush1.xpose.msra.mxu0 0.0
  %733 = vmatprep.subr.mxu0 0.0
  %734 = vmatpush1.xpose.msra.mxu0 0.0
  %735 = vmatprep.subr.mxu0 0.0
  %736 = vmatpush1.xpose.msra.mxu0 0.0
  %737 = vmatprep.subr.mxu0 0.0
  %738 = vmatpush1.xpose.msra.mxu0 0.0
  %739 = vmatprep.subr.mxu0 0.0
  %740 = vmatpush1.xpose.msra.mxu0 0.0
  %741 = vmatprep.subr.mxu0 0.0
  %742 = vmatpush1.xpose.msra.mxu0 0.0
  %743 = vmatprep.subr.mxu0 0.0
  %744 = vmatpush1.xpose.msra.mxu0 0.0
  %745 = vmatprep.subr.mxu0 0.0
  %746 = vmatpush1.xpose.msra.mxu0 0.0
  %747 = vmatprep.subr.mxu0 0.0
  %748 = vmatpush1.xpose.msra.mxu0 0.0
  %749 = vmatprep.mubr.f32.mxu0 0.0
  %750 = vmatmul.mubr.f32.gmra.mrb[0].mxu0 %v681
  %v751 = vpop.f32.mrb[0].mxu0
  %v752 = vadd.f32 0.0, %v751
  %v753 = vpop.f32.mrb[0].mxu0
  %754 = vdwg.mxu0
  %v755 = vmul.f32 %v752, 0.35355338
  %v756 = vadd.f32 %v755, %v174
  %v757 = vsel %vm179, %v756, -inf
  %758 = vmax.xlane.f32.xlu0 %v757
  %v759 = vpop.xlane.xlu0 %758
  %v760 = vsub.f32 %v756, %v759
  %v761 = vmul.f32 %v760, 1.442695
  %v762 = vpow.pop %v761
  %v763 = vsel %vm179, %v762, 0.0
  %764 = vadd.xlane.f32.xlu0 %v763
  %v765 = vpop.xlane.xlu0 %764
  %v766 = vrcp.pop %v765
  %v767 = vmul.f32 %v762, %v766
  %768 = vrot.lane.b32.xlu0 %v166, 40
  %v769 = vpop.permute.xlu0 %768
  %v772 = vsel %vm179, %v767, 0
  %774 = vmatprep.subr.mxu0 0.0
  %775 = vmatpush1.msra.mxu0 %v769
  %776 = vmatprep.subr.mxu0 0.0
  %777 = vmatpush1.msra.mxu0 0.0
  %778 = vmatprep.subr.mxu0 0.0
  %779 = vmatpush1.msra.mxu0 0.0
  %780 = vmatprep.subr.mxu0 0.0
  %781 = vmatpush1.msra.mxu0 0.0
  %782 = vmatprep.subr.mxu0 0.0
  %783 = vmatpush1.msra.mxu0 0.0
  %784 = vmatprep.subr.mxu0 0.0
  %785 = vmatpush1.msra.mxu0 0.0
  %786 = vmatprep.subr.mxu0 0.0
  %787 = vmatpush1.msra.mxu0 0.0
  %788 = vmatprep.subr.mxu0 0.0
  %789 = vmatpush1.msra.mxu0 0.0
  %790 = vmatprep.subr.mxu0 0.0
  %791 = vmatpush1.msra.mxu0 0.0
  %792 = vmatprep.subr.mxu0 0.0
  %793 = vmatpush1.msra.mxu0 0.0
  %794 = vmatprep.subr.mxu0 0.0
  %795 = vmatpush1.msra.mxu0 0.0
  %796 = vmatprep.subr.mxu0 0.0
  %797 = vmatpush1.msra.mxu0 0.0
  %798 = vmatprep.subr.mxu0 0.0
  %799 = vmatpush1.msra.mxu0 0.0
  %800 = vmatprep.subr.mxu0 0.0
  %801 = vmatpush1.msra.mxu0 0.0
  %802 = vmatprep.subr.mxu0 0.0
  %803 = vmatpush1.msra.mxu0 0.0
  %804 = vmatprep.subr.mxu0 0.0
  %805 = vmatpush1.msra.mxu0 0.0
  %806 = vmatprep.subr.mxu0 0.0
  %807 = vmatpush1.msra.mxu0 0.0
  %808 = vmatprep.subr.mxu0 0.0
  %809 = vmatpush1.msra.mxu0 0.0
  %810 = vmatprep.subr.mxu0 0.0
  %811 = vmatpush1.msra.mxu0 0.0
  %812 = vmatprep.subr.mxu0 0.0
  %813 = vmatpush1.msra.mxu0 0.0
  %814 = vmatprep.subr.mxu0 0.0
  %815 = vmatpush1.msra.mxu0 0.0
  %816 = vmatprep.subr.mxu0 0.0
  %817 = vmatpush1.msra.mxu0 0.0
  %818 = vmatprep.subr.mxu0 0.0
  %819 = vmatpush1.msra.mxu0 0.0
  %820 = vmatprep.subr.mxu0 0.0
  %821 = vmatpush1.msra.mxu0 0.0
  %822 = vmatprep.subr.mxu0 0.0
  %823 = vmatpush1.msra.mxu0 0.0
  %824 = vmatprep.subr.mxu0 0.0
  %825 = vmatpush1.msra.mxu0 0.0
  %826 = vmatprep.subr.mxu0 0.0
  %827 = vmatpush1.msra.mxu0 0.0
  %828 = vmatprep.subr.mxu0 0.0
  %829 = vmatpush1.msra.mxu0 0.0
  %830 = vmatprep.subr.mxu0 0.0
  %831 = vmatpush1.msra.mxu0 0.0
  %832 = vmatprep.subr.mxu0 0.0
  %833 = vmatpush1.msra.mxu0 0.0
  %834 = vmatprep.subr.mxu0 0.0
  %835 = vmatpush1.msra.mxu0 0.0
  %836 = vmatprep.subr.mxu0 0.0
  %837 = vmatpush1.msra.mxu0 0.0
  %838 = vmatprep.mubr.f32.mxu0 0.0
  %839 = vmatmul.mubr.f32.gmra.mrb[0].mxu0 %v772
  %v840 = vpop.f32.mrb[0].mxu0
  %v841 = vadd.f32 0.0, %v840
  %v842 = vpop.f32.mrb[0].mxu0
  %843 = vdwg.mxu0
  %845 = vrot.lane.b32.xlu0 %v507, 8
  %v846 = vpop.permute.xlu0 %845
  %849 = vrot.lane.b32.xlu0 %v674, 16
  %v850 = vpop.permute.xlu0 %849
  %853 = vrot.lane.b32.xlu0 %v841, 24
  %v854 = vpop.permute.xlu0 %853
  %v856 = vsel %vm179, %v340, %v846
  %vm857 = vcmask 130048
  %v858 = vsel %vm857, %v856, %v850
  %vm859 = vcmask 195584
  %v860 = vsel %vm859, %v858, %v854
  %862 = vrot.lane.b32.xlu0 %v171, 96
  %v863 = vpop.permute.xlu0 %862
  %v864 = vsel %vm179, %v171, 0
  %v866 = vsel %vm179, %v863, 0
  %868 = vmatprep.subr.mxu0 0.0
  %869 = vmatpush1.xpose.msra.mxu0 %v866
  %870 = vmatprep.subr.mxu0 0.0
  %871 = vmatpush1.xpose.msra.mxu0 0.0
  %872 = vmatprep.subr.mxu0 0.0
  %873 = vmatpush1.xpose.msra.mxu0 0.0
  %874 = vmatprep.subr.mxu0 0.0
  %875 = vmatpush1.xpose.msra.mxu0 0.0
  %876 = vmatprep.subr.mxu0 0.0
  %877 = vmatpush1.xpose.msra.mxu0 0.0
  %878 = vmatprep.subr.mxu0 0.0
  %879 = vmatpush1.xpose.msra.mxu0 0.0
  %880 = vmatprep.subr.mxu0 0.0
  %881 = vmatpush1.xpose.msra.mxu0 0.0
  %882 = vmatprep.subr.mxu0 0.0
  %883 = vmatpush1.xpose.msra.mxu0 0.0
  %884 = vmatprep.subr.mxu0 0.0
  %885 = vmatpush1.xpose.msra.mxu0 0.0
  %886 = vmatprep.subr.mxu0 0.0
  %887 = vmatpush1.xpose.msra.mxu0 0.0
  %888 = vmatprep.subr.mxu0 0.0
  %889 = vmatpush1.xpose.msra.mxu0 0.0
  %890 = vmatprep.subr.mxu0 0.0
  %891 = vmatpush1.xpose.msra.mxu0 0.0
  %892 = vmatprep.subr.mxu0 0.0
  %893 = vmatpush1.xpose.msra.mxu0 0.0
  %894 = vmatprep.subr.mxu0 0.0
  %895 = vmatpush1.xpose.msra.mxu0 0.0
  %896 = vmatprep.subr.mxu0 0.0
  %897 = vmatpush1.xpose.msra.mxu0 0.0
  %898 = vmatprep.subr.mxu0 0.0
  %899 = vmatpush1.xpose.msra.mxu0 0.0
  %900 = vmatprep.subr.mxu0 0.0
  %901 = vmatpush1.xpose.msra.mxu0 0.0
  %902 = vmatprep.subr.mxu0 0.0
  %903 = vmatpush1.xpose.msra.mxu0 0.0
  %904 = vmatprep.subr.mxu0 0.0
  %905 = vmatpush1.xpose.msra.mxu0 0.0
  %906 = vmatprep.subr.mxu0 0.0
  %907 = vmatpush1.xpose.msra.mxu0 0.0
  %908 = vmatprep.subr.mxu0 0.0
  %909 = vmatpush1.xpose.msra.mxu0 0.0
  %910 = vmatprep.subr.mxu0 0.0
  %911 = vmatpush1.xpose.msra.mxu0 0.0
  %912 = vmatprep.subr.mxu0 0.0
  %913 = vmatpush1.xpose.msra.mxu0 0.0
  %914 = vmatprep.subr.mxu0 0.0
  %915 = vmatpush1.xpose.msra.mxu0 0.0
  %916 = vmatprep.subr.mxu0 0.0
  %917 = vmatpush1.xpose.msra.mxu0 0.0
  %918 = vmatprep.subr.mxu0 0.0
  %919 = vmatpush1.xpose.msra.mxu0 0.0
  %920 = vmatprep.subr.mxu0 0.0
  %921 = vmatpush1.xpose.msra.mxu0 0.0
  %922 = vmatprep.subr.mxu0 0.0
  %923 = vmatpush1.xpose.msra.mxu0 0.0
  %924 = vmatprep.subr.mxu0 0.0
  %925 = vmatpush1.xpose.msra.mxu0 0.0
  %926 = vmatprep.subr.mxu0 0.0
  %927 = vmatpush1.xpose.msra.mxu0 0.0
  %928 = vmatprep.subr.mxu0 0.0
  %929 = vmatpush1.xpose.msra.mxu0 0.0
  %930 = vmatprep.subr.mxu0 0.0
  %931 = vmatpush1.xpose.msra.mxu0 0.0
  %932 = vmatprep.mubr.f32.mxu0 0.0
  %933 = vmatmul.mubr.f32.gmra.mrb[0].mxu0 %v864
  %v934 = vpop.f32.mrb[0].mxu0
  %v935 = vadd.f32 0.0, %v934
  %v936 = vpop.f32.mrb[0].mxu0
  %937 = vdwg.mxu0
  %v938 = vmul.f32 %v935, 0.35355338
  %v939 = vadd.f32 %v938, %v175
  %v940 = vsel %vm179, %v939, -inf
  %941 = vmax.xlane.f32.xlu0 %v940
  %v942 = vpop.xlane.xlu0 %941
  %v943 = vsub.f32 %v939, %v942
  %v944 = vmul.f32 %v943, 1.442695
  %v945 = vpow.pop %v944
  %v946 = vsel %vm179, %v945, 0.0
  %947 = vadd.xlane.f32.xlu0 %v946
  %v948 = vpop.xlane.xlu0 %947
  %v949 = vrcp.pop %v948
  %v950 = vmul.f32 %v945, %v949
  %951 = vrot.lane.b32.xlu0 %v171, 64
  %v952 = vpop.permute.xlu0 %951
  %v955 = vsel %vm179, %v950, 0
  %957 = vmatprep.subr.mxu0 0.0
  %958 = vmatpush1.msra.mxu0 %v952
  %959 = vmatprep.subr.mxu0 0.0
  %960 = vmatpush1.msra.mxu0 0.0
  %961 = vmatprep.subr.mxu0 0.0
  %962 = vmatpush1.msra.mxu0 0.0
  %963 = vmatprep.subr.mxu0 0.0
  %964 = vmatpush1.msra.mxu0 0.0
  %965 = vmatprep.subr.mxu0 0.0
  %966 = vmatpush1.msra.mxu0 0.0
  %967 = vmatprep.subr.mxu0 0.0
  %968 = vmatpush1.msra.mxu0 0.0
  %969 = vmatprep.subr.mxu0 0.0
  %970 = vmatpush1.msra.mxu0 0.0
  %971 = vmatprep.subr.mxu0 0.0
  %972 = vmatpush1.msra.mxu0 0.0
  %973 = vmatprep.subr.mxu0 0.0
  %974 = vmatpush1.msra.mxu0 0.0
  %975 = vmatprep.subr.mxu0 0.0
  %976 = vmatpush1.msra.mxu0 0.0
  %977 = vmatprep.subr.mxu0 0.0
  %978 = vmatpush1.msra.mxu0 0.0
  %979 = vmatprep.subr.mxu0 0.0
  %980 = vmatpush1.msra.mxu0 0.0
  %981 = vmatprep.subr.mxu0 0.0
  %982 = vmatpush1.msra.mxu0 0.0
  %983 = vmatprep.subr.mxu0 0.0
  %984 = vmatpush1.msra.mxu0 0.0
  %985 = vmatprep.subr.mxu0 0.0
  %986 = vmatpush1.msra.mxu0 0.0
  %987 = vmatprep.subr.mxu0 0.0
  %988 = vmatpush1.msra.mxu0 0.0
  %989 = vmatprep.subr.mxu0 0.0
  %990 = vmatpush1.msra.mxu0 0.0
  %991 = vmatprep.subr.mxu0 0.0
  %992 = vmatpush1.msra.mxu0 0.0
  %993 = vmatprep.subr.mxu0 0.0
  %994 = vmatpush1.msra.mxu0 0.0
  %995 = vmatprep.subr.mxu0 0.0
  %996 = vmatpush1.msra.mxu0 0.0
  %997 = vmatprep.subr.mxu0 0.0
  %998 = vmatpush1.msra.mxu0 0.0
  %999 = vmatprep.subr.mxu0 0.0
  %1000 = vmatpush1.msra.mxu0 0.0
  %1001 = vmatprep.subr.mxu0 0.0
  %1002 = vmatpush1.msra.mxu0 0.0
  %1003 = vmatprep.subr.mxu0 0.0
  %1004 = vmatpush1.msra.mxu0 0.0
  %1005 = vmatprep.subr.mxu0 0.0
  %1006 = vmatpush1.msra.mxu0 0.0
  %1007 = vmatprep.subr.mxu0 0.0
  %1008 = vmatpush1.msra.mxu0 0.0
  %1009 = vmatprep.subr.mxu0 0.0
  %1010 = vmatpush1.msra.mxu0 0.0
  %1011 = vmatprep.subr.mxu0 0.0
  %1012 = vmatpush1.msra.mxu0 0.0
  %1013 = vmatprep.subr.mxu0 0.0
  %1014 = vmatpush1.msra.mxu0 0.0
  %1015 = vmatprep.subr.mxu0 0.0
  %1016 = vmatpush1.msra.mxu0 0.0
  %1017 = vmatprep.subr.mxu0 0.0
  %1018 = vmatpush1.msra.mxu0 0.0
  %1019 = vmatprep.subr.mxu0 0.0
  %1020 = vmatpush1.msra.mxu0 0.0
  %1021 = vmatprep.mubr.f32.mxu0 0.0
  %1022 = vmatmul.mubr.f32.gmra.mrb[0].mxu0 %v955
  %v1023 = vpop.f32.mrb[0].mxu0
  %v1024 = vadd.f32 0.0, %v1023
  %v1025 = vpop.f32.mrb[0].mxu0
  %1026 = vdwg.mxu0
  %1027 = vrot.lane.b32.xlu0 %v171, 120
  %v1028 = vpop.permute.xlu0 %1027
  %1029 = vrot.lane.b32.xlu0 %v171, 88
  %v1030 = vpop.permute.xlu0 %1029
  %v1031 = vsel %vm179, %v1028, 0
  %v1033 = vsel %vm179, %v1030, 0
  %1035 = vmatprep.subr.mxu0 0.0
  %1036 = vmatpush1.xpose.msra.mxu0 %v1033
  %1037 = vmatprep.subr.mxu0 0.0
  %1038 = vmatpush1.xpose.msra.mxu0 0.0
  %1039 = vmatprep.subr.mxu0 0.0
  %1040 = vmatpush1.xpose.msra.mxu0 0.0
  %1041 = vmatprep.subr.mxu0 0.0
  %1042 = vmatpush1.xpose.msra.mxu0 0.0
  %1043 = vmatprep.subr.mxu0 0.0
  %1044 = vmatpush1.xpose.msra.mxu0 0.0
  %1045 = vmatprep.subr.mxu0 0.0
  %1046 = vmatpush1.xpose.msra.mxu0 0.0
  %1047 = vmatprep.subr.mxu0 0.0
  %1048 = vmatpush1.xpose.msra.mxu0 0.0
  %1049 = vmatprep.subr.mxu0 0.0
  %1050 = vmatpush1.xpose.msra.mxu0 0.0
  %1051 = vmatprep.subr.mxu0 0.0
  %1052 = vmatpush1.xpose.msra.mxu0 0.0
  %1053 = vmatprep.subr.mxu0 0.0
  %1054 = vmatpush1.xpose.msra.mxu0 0.0
  %1055 = vmatprep.subr.mxu0 0.0
  %1056 = vmatpush1.xpose.msra.mxu0 0.0
  %1057 = vmatprep.subr.mxu0 0.0
  %1058 = vmatpush1.xpose.msra.mxu0 0.0
  %1059 = vmatprep.subr.mxu0 0.0
  %1060 = vmatpush1.xpose.msra.mxu0 0.0
  %1061 = vmatprep.subr.mxu0 0.0
  %1062 = vmatpush1.xpose.msra.mxu0 0.0
  %1063 = vmatprep.subr.mxu0 0.0
  %1064 = vmatpush1.xpose.msra.mxu0 0.0
  %1065 = vmatprep.subr.mxu0 0.0
  %1066 = vmatpush1.xpose.msra.mxu0 0.0
  %1067 = vmatprep.subr.mxu0 0.0
  %1068 = vmatpush1.xpose.msra.mxu0 0.0
  %1069 = vmatprep.subr.mxu0 0.0
  %1070 = vmatpush1.xpose.msra.mxu0 0.0
  %1071 = vmatprep.subr.mxu0 0.0
  %1072 = vmatpush1.xpose.msra.mxu0 0.0
  %1073 = vmatprep.subr.mxu0 0.0
  %1074 = vmatpush1.xpose.msra.mxu0 0.0
  %1075 = vmatprep.subr.mxu0 0.0
  %1076 = vmatpush1.xpose.msra.mxu0 0.0
  %1077 = vmatprep.subr.mxu0 0.0
  %1078 = vmatpush1.xpose.msra.mxu0 0.0
  %1079 = vmatprep.subr.mxu0 0.0
  %1080 = vmatpush1.xpose.msra.mxu0 0.0
  %1081 = vmatprep.subr.mxu0 0.0
  %1082 = vmatpush1.xpose.msra.mxu0 0.0
  %1083 = vmatprep.subr.mxu0 0.0
  %1084 = vmatpush1.xpose.msra.mxu0 0.0
  %1085 = vmatprep.subr.mxu0 0.0
  %1086 = vmatpush1.xpose.msra.mxu0 0.0
  %1087 = vmatprep.subr.mxu0 0.0
  %1088 = vmatpush1.xpose.msra.mxu0 0.0
  %1089 = vmatprep.subr.mxu0 0.0
  %1090 = vmatpush1.xpose.msra.mxu0 0.0
  %1091 = vmatprep.subr.mxu0 0.0
  %1092 = vmatpush1.xpose.msra.mxu0 0.0
  %1093 = vmatprep.subr.mxu0 0.0
  %1094 = vmatpush1.xpose.msra.mxu0 0.0
  %1095 = vmatprep.subr.mxu0 0.0
  %1096 = vmatpush1.xpose.msra.mxu0 0.0
  %1097 = vmatprep.subr.mxu0 0.0
  %1098 = vmatpush1.xpose.msra.mxu0 0.0
  %1099 = vmatprep.mubr.f32.mxu0 0.0
  %1100 = vmatmul.mubr.f32.gmra.mrb[0].mxu0 %v1031
  %v1101 = vpop.f32.mrb[0].mxu0
  %v1102 = vadd.f32 0.0, %v1101
  %v1103 = vpop.f32.mrb[0].mxu0
  %1104 = vdwg.mxu0
  %v1105 = vmul.f32 %v1102, 0.35355338
  %v1106 = vadd.f32 %v1105, %v175
  %v1107 = vsel %vm179, %v1106, -inf
  %1108 = vmax.xlane.f32.xlu0 %v1107
  %v1109 = vpop.xlane.xlu0 %1108
  %v1110 = vsub.f32 %v1106, %v1109
  %v1111 = vmul.f32 %v1110, 1.442695
  %v1112 = vpow.pop %v1111
  %v1113 = vsel %vm179, %v1112, 0.0
  %1114 = vadd.xlane.f32.xlu0 %v1113
  %v1115 = vpop.xlane.xlu0 %1114
  %v1116 = vrcp.pop %v1115
  %v1117 = vmul.f32 %v1112, %v1116
  %1118 = vrot.lane.b32.xlu0 %v171, 56
  %v1119 = vpop.permute.xlu0 %1118
  %v1122 = vsel %vm179, %v1117, 0
  %1124 = vmatprep.subr.mxu0 0.0
  %1125 = vmatpush1.msra.mxu0 %v1119
  %1126 = vmatprep.subr.mxu0 0.0
  %1127 = vmatpush1.msra.mxu0 0.0
  %1128 = vmatprep.subr.mxu0 0.0
  %1129 = vmatpush1.msra.mxu0 0.0
  %1130 = vmatprep.subr.mxu0 0.0
  %1131 = vmatpush1.msra.mxu0 0.0
  %1132 = vmatprep.subr.mxu0 0.0
  %1133 = vmatpush1.msra.mxu0 0.0
  %1134 = vmatprep.subr.mxu0 0.0
  %1135 = vmatpush1.msra.mxu0 0.0
  %1136 = vmatprep.subr.mxu0 0.0
  %1137 = vmatpush1.msra.mxu0 0.0
  %1138 = vmatprep.subr.mxu0 0.0
  %1139 = vmatpush1.msra.mxu0 0.0
  %1140 = vmatprep.subr.mxu0 0.0
  %1141 = vmatpush1.msra.mxu0 0.0
  %1142 = vmatprep.subr.mxu0 0.0
  %1143 = vmatpush1.msra.mxu0 0.0
  %1144 = vmatprep.subr.mxu0 0.0
  %1145 = vmatpush1.msra.mxu0 0.0
  %1146 = vmatprep.subr.mxu0 0.0
  %1147 = vmatpush1.msra.mxu0 0.0
  %1148 = vmatprep.subr.mxu0 0.0
  %1149 = vmatpush1.msra.mxu0 0.0
  %1150 = vmatprep.subr.mxu0 0.0
  %1151 = vmatpush1.msra.mxu0 0.0
  %1152 = vmatprep.subr.mxu0 0.0
  %1153 = vmatpush1.msra.mxu0 0.0
  %1154 = vmatprep.subr.mxu0 0.0
  %1155 = vmatpush1.msra.mxu0 0.0
  %1156 = vmatprep.subr.mxu0 0.0
  %1157 = vmatpush1.msra.mxu0 0.0
  %1158 = vmatprep.subr.mxu0 0.0
  %1159 = vmatpush1.msra.mxu0 0.0
  %1160 = vmatprep.subr.mxu0 0.0
  %1161 = vmatpush1.msra.mxu0 0.0
  %1162 = vmatprep.subr.mxu0 0.0
  %1163 = vmatpush1.msra.mxu0 0.0
  %1164 = vmatprep.subr.mxu0 0.0
  %1165 = vmatpush1.msra.mxu0 0.0
  %1166 = vmatprep.subr.mxu0 0.0
  %1167 = vmatpush1.msra.mxu0 0.0
  %1168 = vmatprep.subr.mxu0 0.0
  %1169 = vmatpush1.msra.mxu0 0.0
  %1170 = vmatprep.subr.mxu0 0.0
  %1171 = vmatpush1.msra.mxu0 0.0
  %1172 = vmatprep.subr.mxu0 0.0
  %1173 = vmatpush1.msra.mxu0 0.0
  %1174 = vmatprep.subr.mxu0 0.0
  %1175 = vmatpush1.msra.mxu0 0.0
  %1176 = vmatprep.subr.mxu0 0.0
  %1177 = vmatpush1.msra.mxu0 0.0
  %1178 = vmatprep.subr.mxu0 0.0
  %1179 = vmatpush1.msra.mxu0 0.0
  %1180 = vmatprep.subr.mxu0 0.0
  %1181 = vmatpush1.msra.mxu0 0.0
  %1182 = vmatprep.subr.mxu0 0.0
  %1183 = vmatpush1.msra.mxu0 0.0
  %1184 = vmatprep.subr.mxu0 0.0
  %1185 = vmatpush1.msra.mxu0 0.0
  %1186 = vmatprep.subr.mxu0 0.0
  %1187 = vmatpush1.msra.mxu0 0.0
  %1188 = vmatprep.mubr.f32.mxu0 0.0
  %1189 = vmatmul.mubr.f32.gmra.mrb[0].mxu0 %v1122
  %v1190 = vpop.f32.mrb[0].mxu0
  %v1191 = vadd.f32 0.0, %v1190
  %v1192 = vpop.f32.mrb[0].mxu0
  %1193 = vdwg.mxu0
  %1194 = vrot.lane.b32.xlu0 %v171, 112
  %v1195 = vpop.permute.xlu0 %1194
  %1196 = vrot.lane.b32.xlu0 %v171, 80
  %v1197 = vpop.permute.xlu0 %1196
  %v1198 = vsel %vm179, %v1195, 0
  %v1200 = vsel %vm179, %v1197, 0
  %1202 = vmatprep.subr.mxu0 0.0
  %1203 = vmatpush1.xpose.msra.mxu0 %v1200
  %1204 = vmatprep.subr.mxu0 0.0
  %1205 = vmatpush1.xpose.msra.mxu0 0.0
  %1206 = vmatprep.subr.mxu0 0.0
  %1207 = vmatpush1.xpose.msra.mxu0 0.0
  %1208 = vmatprep.subr.mxu0 0.0
  %1209 = vmatpush1.xpose.msra.mxu0 0.0
  %1210 = vmatprep.subr.mxu0 0.0
  %1211 = vmatpush1.xpose.msra.mxu0 0.0
  %1212 = vmatprep.subr.mxu0 0.0
  %1213 = vmatpush1.xpose.msra.mxu0 0.0
  %1214 = vmatprep.subr.mxu0 0.0
  %1215 = vmatpush1.xpose.msra.mxu0 0.0
  %1216 = vmatprep.subr.mxu0 0.0
  %1217 = vmatpush1.xpose.msra.mxu0 0.0
  %1218 = vmatprep.subr.mxu0 0.0
  %1219 = vmatpush1.xpose.msra.mxu0 0.0
  %1220 = vmatprep.subr.mxu0 0.0
  %1221 = vmatpush1.xpose.msra.mxu0 0.0
  %1222 = vmatprep.subr.mxu0 0.0
  %1223 = vmatpush1.xpose.msra.mxu0 0.0
  %1224 = vmatprep.subr.mxu0 0.0
  %1225 = vmatpush1.xpose.msra.mxu0 0.0
  %1226 = vmatprep.subr.mxu0 0.0
  %1227 = vmatpush1.xpose.msra.mxu0 0.0
  %1228 = vmatprep.subr.mxu0 0.0
  %1229 = vmatpush1.xpose.msra.mxu0 0.0
  %1230 = vmatprep.subr.mxu0 0.0
  %1231 = vmatpush1.xpose.msra.mxu0 0.0
  %1232 = vmatprep.subr.mxu0 0.0
  %1233 = vmatpush1.xpose.msra.mxu0 0.0
  %1234 = vmatprep.subr.mxu0 0.0
  %1235 = vmatpush1.xpose.msra.mxu0 0.0
  %1236 = vmatprep.subr.mxu0 0.0
  %1237 = vmatpush1.xpose.msra.mxu0 0.0
  %1238 = vmatprep.subr.mxu0 0.0
  %1239 = vmatpush1.xpose.msra.mxu0 0.0
  %1240 = vmatprep.subr.mxu0 0.0
  %1241 = vmatpush1.xpose.msra.mxu0 0.0
  %1242 = vmatprep.subr.mxu0 0.0
  %1243 = vmatpush1.xpose.msra.mxu0 0.0
  %1244 = vmatprep.subr.mxu0 0.0
  %1245 = vmatpush1.xpose.msra.mxu0 0.0
  %1246 = vmatprep.subr.mxu0 0.0
  %1247 = vmatpush1.xpose.msra.mxu0 0.0
  %1248 = vmatprep.subr.mxu0 0.0
  %1249 = vmatpush1.xpose.msra.mxu0 0.0
  %1250 = vmatprep.subr.mxu0 0.0
  %1251 = vmatpush1.xpose.msra.mxu0 0.0
  %1252 = vmatprep.subr.mxu0 0.0
  %1253 = vmatpush1.xpose.msra.mxu0 0.0
  %1254 = vmatprep.subr.mxu0 0.0
  %1255 = vmatpush1.xpose.msra.mxu0 0.0
  %1256 = vmatprep.subr.mxu0 0.0
  %1257 = vmatpush1.xpose.msra.mxu0 0.0
  %1258 = vmatprep.subr.mxu0 0.0
  %1259 = vmatpush1.xpose.msra.mxu0 0.0
  %1260 = vmatprep.subr.mxu0 0.0
  %1261 = vmatpush1.xpose.msra.mxu0 0.0
  %1262 = vmatprep.subr.mxu0 0.0
  %1263 = vmatpush1.xpose.msra.mxu0 0.0
  %1264 = vmatprep.subr.mxu0 0.0
  %1265 = vmatpush1.xpose.msra.mxu0 0.0
  %1266 = vmatprep.mubr.f32.mxu0 0.0
  %1267 = vmatmul.mubr.f32.gmra.mrb[0].mxu0 %v1198
  %v1268 = vpop.f32.mrb[0].mxu0
  %v1269 = vadd.f32 0.0, %v1268
  %v1270 = vpop.f32.mrb[0].mxu0
  %1271 = vdwg.mxu0
  %v1272 = vmul.f32 %v1269, 0.35355338
  %v1273 = vadd.f32 %v1272, %v175
  %v1274 = vsel %vm179, %v1273, -inf
  %1275 = vmax.xlane.f32.xlu0 %v1274
  %v1276 = vpop.xlane.xlu0 %1275
  %v1277 = vsub.f32 %v1273, %v1276
  %v1278 = vmul.f32 %v1277, 1.442695
  %v1279 = vpow.pop %v1278
  %v1280 = vsel %vm179, %v1279, 0.0
  %1281 = vadd.xlane.f32.xlu0 %v1280
  %v1282 = vpop.xlane.xlu0 %1281
  %v1283 = vrcp.pop %v1282
  %v1284 = vmul.f32 %v1279, %v1283
  %1285 = vrot.lane.b32.xlu0 %v171, 48
  %v1286 = vpop.permute.xlu0 %1285
  %v1289 = vsel %vm179, %v1284, 0
  %1291 = vmatprep.subr.mxu0 0.0
  %1292 = vmatpush1.msra.mxu0 %v1286
  %1293 = vmatprep.subr.mxu0 0.0
  %1294 = vmatpush1.msra.mxu0 0.0
  %1295 = vmatprep.subr.mxu0 0.0
  %1296 = vmatpush1.msra.mxu0 0.0
  %1297 = vmatprep.subr.mxu0 0.0
  %1298 = vmatpush1.msra.mxu0 0.0
  %1299 = vmatprep.subr.mxu0 0.0
  %1300 = vmatpush1.msra.mxu0 0.0
  %1301 = vmatprep.subr.mxu0 0.0
  %1302 = vmatpush1.msra.mxu0 0.0
  %1303 = vmatprep.subr.mxu0 0.0
  %1304 = vmatpush1.msra.mxu0 0.0
  %1305 = vmatprep.subr.mxu0 0.0
  %1306 = vmatpush1.msra.mxu0 0.0
  %1307 = vmatprep.subr.mxu0 0.0
  %1308 = vmatpush1.msra.mxu0 0.0
  %1309 = vmatprep.subr.mxu0 0.0
  %1310 = vmatpush1.msra.mxu0 0.0
  %1311 = vmatprep.subr.mxu0 0.0
  %1312 = vmatpush1.msra.mxu0 0.0
  %1313 = vmatprep.subr.mxu0 0.0
  %1314 = vmatpush1.msra.mxu0 0.0
  %1315 = vmatprep.subr.mxu0 0.0
  %1316 = vmatpush1.msra.mxu0 0.0
  %1317 = vmatprep.subr.mxu0 0.0
  %1318 = vmatpush1.msra.mxu0 0.0
  %1319 = vmatprep.subr.mxu0 0.0
  %1320 = vmatpush1.msra.mxu0 0.0
  %1321 = vmatprep.subr.mxu0 0.0
  %1322 = vmatpush1.msra.mxu0 0.0
  %1323 = vmatprep.subr.mxu0 0.0
  %1324 = vmatpush1.msra.mxu0 0.0
  %1325 = vmatprep.subr.mxu0 0.0
  %1326 = vmatpush1.msra.mxu0 0.0
  %1327 = vmatprep.subr.mxu0 0.0
  %1328 = vmatpush1.msra.mxu0 0.0
  %1329 = vmatprep.subr.mxu0 0.0
  %1330 = vmatpush1.msra.mxu0 0.0
  %1331 = vmatprep.subr.mxu0 0.0
  %1332 = vmatpush1.msra.mxu0 0.0
  %1333 = vmatprep.subr.mxu0 0.0
  %1334 = vmatpush1.msra.mxu0 0.0
  %1335 = vmatprep.subr.mxu0 0.0
  %1336 = vmatpush1.msra.mxu0 0.0
  %1337 = vmatprep.subr.mxu0 0.0
  %1338 = vmatpush1.msra.mxu0 0.0
  %1339 = vmatprep.subr.mxu0 0.0
  %1340 = vmatpush1.msra.mxu0 0.0
  %1341 = vmatprep.subr.mxu0 0.0
  %1342 = vmatpush1.msra.mxu0 0.0
  %1343 = vmatprep.subr.mxu0 0.0
  %1344 = vmatpush1.msra.mxu0 0.0
  %1345 = vmatprep.subr.mxu0 0.0
  %1346 = vmatpush1.msra.mxu0 0.0
  %1347 = vmatprep.subr.mxu0 0.0
  %1348 = vmatpush1.msra.mxu0 0.0
  %1349 = vmatprep.subr.mxu0 0.0
  %1350 = vmatpush1.msra.mxu0 0.0
  %1351 = vmatprep.subr.mxu0 0.0
  %1352 = vmatpush1.msra.mxu0 0.0
  %1353 = vmatprep.subr.mxu0 0.0
  %1354 = vmatpush1.msra.mxu0 0.0
  %1355 = vmatprep.mubr.f32.mxu0 0.0
  %1356 = vmatmul.mubr.f32.gmra.mrb[0].mxu0 %v1289
  %v1357 = vpop.f32.mrb[0].mxu0
  %v1358 = vadd.f32 0.0, %v1357
  %v1359 = vpop.f32.mrb[0].mxu0
  %1360 = vdwg.mxu0
  %1361 = vrot.lane.b32.xlu0 %v171, 104
  %v1362 = vpop.permute.xlu0 %1361
  %1363 = vrot.lane.b32.xlu0 %v171, 72
  %v1364 = vpop.permute.xlu0 %1363
  %v1365 = vsel %vm179, %v1362, 0
  %v1367 = vsel %vm179, %v1364, 0
  %1369 = vmatprep.subr.mxu0 0.0
  %1370 = vmatpush1.xpose.msra.mxu0 %v1367
  %1371 = vmatprep.subr.mxu0 0.0
  %1372 = vmatpush1.xpose.msra.mxu0 0.0
  %1373 = vmatprep.subr.mxu0 0.0
  %1374 = vmatpush1.xpose.msra.mxu0 0.0
  %1375 = vmatprep.subr.mxu0 0.0
  %1376 = vmatpush1.xpose.msra.mxu0 0.0
  %1377 = vmatprep.subr.mxu0 0.0
  %1378 = vmatpush1.xpose.msra.mxu0 0.0
  %1379 = vmatprep.subr.mxu0 0.0
  %1380 = vmatpush1.xpose.msra.mxu0 0.0
  %1381 = vmatprep.subr.mxu0 0.0
  %1382 = vmatpush1.xpose.msra.mxu0 0.0
  %1383 = vmatprep.subr.mxu0 0.0
  %1384 = vmatpush1.xpose.msra.mxu0 0.0
  %1385 = vmatprep.subr.mxu0 0.0
  %1386 = vmatpush1.xpose.msra.mxu0 0.0
  %1387 = vmatprep.subr.mxu0 0.0
  %1388 = vmatpush1.xpose.msra.mxu0 0.0
  %1389 = vmatprep.subr.mxu0 0.0
  %1390 = vmatpush1.xpose.msra.mxu0 0.0
  %1391 = vmatprep.subr.mxu0 0.0
  %1392 = vmatpush1.xpose.msra.mxu0 0.0
  %1393 = vmatprep.subr.mxu0 0.0
  %1394 = vmatpush1.xpose.msra.mxu0 0.0
  %1395 = vmatprep.subr.mxu0 0.0
  %1396 = vmatpush1.xpose.msra.mxu0 0.0
  %1397 = vmatprep.subr.mxu0 0.0
  %1398 = vmatpush1.xpose.msra.mxu0 0.0
  %1399 = vmatprep.subr.mxu0 0.0
  %1400 = vmatpush1.xpose.msra.mxu0 0.0
  %1401 = vmatprep.subr.mxu0 0.0
  %1402 = vmatpush1.xpose.msra.mxu0 0.0
  %1403 = vmatprep.subr.mxu0 0.0
  %1404 = vmatpush1.xpose.msra.mxu0 0.0
  %1405 = vmatprep.subr.mxu0 0.0
  %1406 = vmatpush1.xpose.msra.mxu0 0.0
  %1407 = vmatprep.subr.mxu0 0.0
  %1408 = vmatpush1.xpose.msra.mxu0 0.0
  %1409 = vmatprep.subr.mxu0 0.0
  %1410 = vmatpush1.xpose.msra.mxu0 0.0
  %1411 = vmatprep.subr.mxu0 0.0
  %1412 = vmatpush1.xpose.msra.mxu0 0.0
  %1413 = vmatprep.subr.mxu0 0.0
  %1414 = vmatpush1.xpose.msra.mxu0 0.0
  %1415 = vmatprep.subr.mxu0 0.0
  %1416 = vmatpush1.xpose.msra.mxu0 0.0
  %1417 = vmatprep.subr.mxu0 0.0
  %1418 = vmatpush1.xpose.msra.mxu0 0.0
  %1419 = vmatprep.subr.mxu0 0.0
  %1420 = vmatpush1.xpose.msra.mxu0 0.0
  %1421 = vmatprep.subr.mxu0 0.0
  %1422 = vmatpush1.xpose.msra.mxu0 0.0
  %1423 = vmatprep.subr.mxu0 0.0
  %1424 = vmatpush1.xpose.msra.mxu0 0.0
  %1425 = vmatprep.subr.mxu0 0.0
  %1426 = vmatpush1.xpose.msra.mxu0 0.0
  %1427 = vmatprep.subr.mxu0 0.0
  %1428 = vmatpush1.xpose.msra.mxu0 0.0
  %1429 = vmatprep.subr.mxu0 0.0
  %1430 = vmatpush1.xpose.msra.mxu0 0.0
  %1431 = vmatprep.subr.mxu0 0.0
  %1432 = vmatpush1.xpose.msra.mxu0 0.0
  %1433 = vmatprep.mubr.f32.mxu0 0.0
  %1434 = vmatmul.mubr.f32.gmra.mrb[0].mxu0 %v1365
  %v1435 = vpop.f32.mrb[0].mxu0
  %v1436 = vadd.f32 0.0, %v1435
  %v1437 = vpop.f32.mrb[0].mxu0
  %1438 = vdwg.mxu0
  %v1439 = vmul.f32 %v1436, 0.35355338
  %v1440 = vadd.f32 %v1439, %v175
  %v1441 = vsel %vm179, %v1440, -inf
  %1442 = vmax.xlane.f32.xlu0 %v1441
  %v1443 = vpop.xlane.xlu0 %1442
  %v1444 = vsub.f32 %v1440, %v1443
  %v1445 = vmul.f32 %v1444, 1.442695
  %v1446 = vpow.pop %v1445
  %v1447 = vsel %vm179, %v1446, 0.0
  %1448 = vadd.xlane.f32.xlu0 %v1447
  %v1449 = vpop.xlane.xlu0 %1448
  %v1450 = vrcp.pop %v1449
  %v1451 = vmul.f32 %v1446, %v1450
  %1452 = vrot.lane.b32.xlu0 %v171, 40
  %v1453 = vpop.permute.xlu0 %1452
  %v1456 = vsel %vm179, %v1451, 0
  %1458 = vmatprep.subr.mxu0 0.0
  %1459 = vmatpush1.msra.mxu0 %v1453
  %1460 = vmatprep.subr.mxu0 0.0
  %1461 = vmatpush1.msra.mxu0 0.0
  %1462 = vmatprep.subr.mxu0 0.0
  %1463 = vmatpush1.msra.mxu0 0.0
  %1464 = vmatprep.subr.mxu0 0.0
  %1465 = vmatpush1.msra.mxu0 0.0
  %1466 = vmatprep.subr.mxu0 0.0
  %1467 = vmatpush1.msra.mxu0 0.0
  %1468 = vmatprep.subr.mxu0 0.0
  %1469 = vmatpush1.msra.mxu0 0.0
  %1470 = vmatprep.subr.mxu0 0.0
  %1471 = vmatpush1.msra.mxu0 0.0
  %1472 = vmatprep.subr.mxu0 0.0
  %1473 = vmatpush1.msra.mxu0 0.0
  %1474 = vmatprep.subr.mxu0 0.0
  %1475 = vmatpush1.msra.mxu0 0.0
  %1476 = vmatprep.subr.mxu0 0.0
  %1477 = vmatpush1.msra.mxu0 0.0
  %1478 = vmatprep.subr.mxu0 0.0
  %1479 = vmatpush1.msra.mxu0 0.0
  %1480 = vmatprep.subr.mxu0 0.0
  %1481 = vmatpush1.msra.mxu0 0.0
  %1482 = vmatprep.subr.mxu0 0.0
  %1483 = vmatpush1.msra.mxu0 0.0
  %1484 = vmatprep.subr.mxu0 0.0
  %1485 = vmatpush1.msra.mxu0 0.0
  %1486 = vmatprep.subr.mxu0 0.0
  %1487 = vmatpush1.msra.mxu0 0.0
  %1488 = vmatprep.subr.mxu0 0.0
  %1489 = vmatpush1.msra.mxu0 0.0
  %1490 = vmatprep.subr.mxu0 0.0
  %1491 = vmatpush1.msra.mxu0 0.0
  %1492 = vmatprep.subr.mxu0 0.0
  %1493 = vmatpush1.msra.mxu0 0.0
  %1494 = vmatprep.subr.mxu0 0.0
  %1495 = vmatpush1.msra.mxu0 0.0
  %1496 = vmatprep.subr.mxu0 0.0
  %1497 = vmatpush1.msra.mxu0 0.0
  %1498 = vmatprep.subr.mxu0 0.0
  %1499 = vmatpush1.msra.mxu0 0.0
  %1500 = vmatprep.subr.mxu0 0.0
  %1501 = vmatpush1.msra.mxu0 0.0
  %1502 = vmatprep.subr.mxu0 0.0
  %1503 = vmatpush1.msra.mxu0 0.0
  %1504 = vmatprep.subr.mxu0 0.0
  %1505 = vmatpush1.msra.mxu0 0.0
  %1506 = vmatprep.subr.mxu0 0.0
  %1507 = vmatpush1.msra.mxu0 0.0
  %1508 = vmatprep.subr.mxu0 0.0
  %1509 = vmatpush1.msra.mxu0 0.0
  %1510 = vmatprep.subr.mxu0 0.0
  %1511 = vmatpush1.msra.mxu0 0.0
  %1512 = vmatprep.subr.mxu0 0.0
  %1513 = vmatpush1.msra.mxu0 0.0
  %1514 = vmatprep.subr.mxu0 0.0
  %1515 = vmatpush1.msra.mxu0 0.0
  %1516 = vmatprep.subr.mxu0 0.0
  %1517 = vmatpush1.msra.mxu0 0.0
  %1518 = vmatprep.subr.mxu0 0.0
  %1519 = vmatpush1.msra.mxu0 0.0
  %1520 = vmatprep.subr.mxu0 0.0
  %1521 = vmatpush1.msra.mxu0 0.0
  %1522 = vmatprep.mubr.f32.mxu0 0.0
  %1523 = vmatmul.mubr.f32.gmra.mrb[0].mxu0 %v1456
  %v1524 = vpop.f32.mrb[0].mxu0
  %v1525 = vadd.f32 0.0, %v1524
  %v1526 = vpop.f32.mrb[0].mxu0
  %1527 = vdwg.mxu0
  %1529 = vrot.lane.b32.xlu0 %v1191, 8
  %v1530 = vpop.permute.xlu0 %1529
  %1533 = vrot.lane.b32.xlu0 %v1358, 16
  %v1534 = vpop.permute.xlu0 %1533
  %1537 = vrot.lane.b32.xlu0 %v1525, 24
  %v1538 = vpop.permute.xlu0 %1537
  %v1540 = vsel %vm179, %v1024, %v1530
  %v1541 = vsel %vm857, %v1540, %v1534
  %v1542 = vsel %vm859, %v1541, %v1538
  %v1543 = vld [vmem:[%s6] sm:$0xff]
  %v1544 = vld [vmem:[%s6 + $0x8] sm:$0xff]
  %v1545 = vld [vmem:[%s6 + $0x10] sm:$0xff]
  %v1546 = vld [vmem:[%s6 + $0x18] sm:$0xff]
  %v1547 = vld [vmem:[%s7] sm:$0x1]
  %v1549 = vlaneseq
  %v1550 = vshrl.u32 %v1549, 7
  %v1551 = vsub.s32 0, %v1550
  %v1552 = vrot.slane %v1547, %v1551
  %v1555 = vsel %vm92, %v860, 0
  %v1558 = vsel %vm92, %v1542, 0
  %1560 = vmatprep.subr.mxu0 0.0
  %1561 = vmatpush1.msra.mxu0 %v1543
  %1562 = vmatprep.subr.mxu0 0.0
  %1563 = vmatpush1.msra.mxu0 %v1544
  %1564 = vmatprep.subr.mxu0 0.0
  %1565 = vmatpush1.msra.mxu0 %v1545
  %1566 = vmatprep.subr.mxu0 0.0
  %1567 = vmatpush1.msra.mxu0 %v1546
  %1568 = vmatprep.subr.mxu0 0.0
  %1569 = vmatpush1.msra.mxu0 0.0
  %1570 = vmatprep.subr.mxu0 0.0
  %1571 = vmatpush1.msra.mxu0 0.0
  %1572 = vmatprep.subr.mxu0 0.0
  %1573 = vmatpush1.msra.mxu0 0.0
  %1574 = vmatprep.subr.mxu0 0.0
  %1575 = vmatpush1.msra.mxu0 0.0
  %1576 = vmatprep.subr.mxu0 0.0
  %1577 = vmatpush1.msra.mxu0 0.0
  %1578 = vmatprep.subr.mxu0 0.0
  %1579 = vmatpush1.msra.mxu0 0.0
  %1580 = vmatprep.subr.mxu0 0.0
  %1581 = vmatpush1.msra.mxu0 0.0
  %1582 = vmatprep.subr.mxu0 0.0
  %1583 = vmatpush1.msra.mxu0 0.0
  %1584 = vmatprep.subr.mxu0 0.0
  %1585 = vmatpush1.msra.mxu0 0.0
  %1586 = vmatprep.subr.mxu0 0.0
  %1587 = vmatpush1.msra.mxu0 0.0
  %1588 = vmatprep.subr.mxu0 0.0
  %1589 = vmatpush1.msra.mxu0 0.0
  %1590 = vmatprep.subr.mxu0 0.0
  %1591 = vmatpush1.msra.mxu0 0.0
  %1592 = vmatprep.subr.mxu0 0.0
  %1593 = vmatpush1.msra.mxu0 0.0
  %1594 = vmatprep.subr.mxu0 0.0
  %1595 = vmatpush1.msra.mxu0 0.0
  %1596 = vmatprep.subr.mxu0 0.0
  %1597 = vmatpush1.msra.mxu0 0.0
  %1598 = vmatprep.subr.mxu0 0.0
  %1599 = vmatpush1.msra.mxu0 0.0
  %1600 = vmatprep.subr.mxu0 0.0
  %1601 = vmatpush1.msra.mxu0 0.0
  %1602 = vmatprep.subr.mxu0 0.0
  %1603 = vmatpush1.msra.mxu0 0.0
  %1604 = vmatprep.subr.mxu0 0.0
  %1605 = vmatpush1.msra.mxu0 0.0
  %1606 = vmatprep.subr.mxu0 0.0
  %1607 = vmatpush1.msra.mxu0 0.0
  %1608 = vmatprep.subr.mxu0 0.0
  %1609 = vmatpush1.msra.mxu0 0.0
  %1610 = vmatprep.subr.mxu0 0.0
  %1611 = vmatpush1.msra.mxu0 0.0
  %1612 = vmatprep.subr.mxu0 0.0
  %1613 = vmatpush1.msra.mxu0 0.0
  %1614 = vmatprep.subr.mxu0 0.0
  %1615 = vmatpush1.msra.mxu0 0.0
  %1616 = vmatprep.subr.mxu0 0.0
  %1617 = vmatpush1.msra.mxu0 0.0
  %1618 = vmatprep.subr.mxu0 0.0
  %1619 = vmatpush1.msra.mxu0 0.0
  %1620 = vmatprep.subr.mxu0 0.0
  %1621 = vmatpush1.msra.mxu0 0.0
  %1622 = vmatprep.subr.mxu0 0.0
  %1623 = vmatpush1.msra.mxu0 0.0
  %1624 = vmatprep.mubr.f32.mxu0 0.0
  %1625 = vmatmul.mubr.f32.gmra.mrb[0].mxu0 %v1555
  %v1626 = vpop.f32.mrb[0].mxu0
  %v1627 = vadd.f32 %v1552, %v1626
  %v1628 = vpop.f32.mrb[0].mxu0
  %1629 = vmatprep.mubr.f32.mxu0 0.0
  %1630 = vmatmul.mubr.f32.gmra.mrb[0].mxu0 %v1558
  %v1631 = vpop.f32.mrb[0].mxu0
  %v1632 = vadd.f32 %v1552, %v1631
  %v1633 = vpop.f32.mrb[0].mxu0
  %1634 = vdwg.mxu0
  %v1635 = vadd.f32 %v77, %v1627
  %v1636 = vadd.f32 %v78, %v1632
  %v1637 = vld [vmem:[%s8] sm:$0x1]
  %v1638 = vld [vmem:[%s9] sm:$0x1]
  %v1639 = vsel %vm92, %v1635, 0.0
  %1640 = vadd.xlane.f32.xlu0 %v1639
  %v1641 = vpop.xlane.xlu0 %1640
  %v1642 = vsel %vm92, %v1636, 0.0
  %1643 = vadd.xlane.f32.xlu0 %v1642
  %v1644 = vpop.xlane.xlu0 %1643
  %v1645 = vrcp.pop 32.0
  %v1646 = vmul.f32 %v1641, %v1645
  %v1647 = vmul.f32 %v1644, %v1645
  %v1648 = vsub.f32 %v1635, %v1646
  %v1649 = vsub.f32 %v1636, %v1647
  %v1650 = vmul.f32 %v1648, %v1648
  %v1651 = vmul.f32 %v1649, %v1649
  %v1652 = vsel %vm92, %v1650, 0.0
  %1653 = vadd.xlane.f32.xlu0 %v1652
  %v1654 = vpop.xlane.xlu0 %1653
  %v1655 = vsel %vm92, %v1651, 0.0
  %1656 = vadd.xlane.f32.xlu0 %v1655
  %v1657 = vpop.xlane.xlu0 %1656
  %v1658 = vmul.f32 %v1654, %v1645
  %v1659 = vmul.f32 %v1657, %v1645
  %v1660 = vadd.f32 %v1658, 1e-05
  %v1661 = vadd.f32 %v1659, 1e-05
  %v1662 = vrsqrt.pop %v1660
  %v1663 = vrsqrt.pop %v1661
  %v1664 = vmul.f32 %v1648, %v1662
  %v1665 = vmul.f32 %v1649, %v1663
  %v1667 = vlaneseq
  %v1668 = vshrl.u32 %v1667, 7
  %v1669 = vsub.s32 0, %v1668
  %v1670 = vrot.slane %v1637, %v1669
  %v1672 = vmul.f32 %v1664, %v1670
  %v1673 = vmul.f32 %v1665, %v1670
  %v1675 = vlaneseq
  %v1676 = vshrl.u32 %v1675, 7
  %v1677 = vsub.s32 0, %v1676
  %v1678 = vrot.slane %v1638, %v1677
  %v1680 = vadd.f32 %v1672, %v1678
  %v1681 = vadd.f32 %v1673, %v1678
  %v1682 = vld [vmem:[%s10] sm:$0xff]
  %v1683 = vld [vmem:[%s10 + $0x8] sm:$0xff]
  %v1684 = vld [vmem:[%s10 + $0x10] sm:$0xff]
  %v1685 = vld [vmem:[%s10 + $0x18] sm:$0xff]
  %v1686 = vld [vmem:[%s11] sm:$0x1]
  %v1688 = vlaneseq
  %v1689 = vshrl.u32 %v1688, 7
  %v1690 = vsub.s32 0, %v1689
  %v1691 = vrot.slane %v1686, %v1690
  %v1694 = vsel %vm92, %v1680, 0
  %v1697 = vsel %vm92, %v1681, 0
  %1699 = vmatprep.subr.mxu0 0.0
  %1700 = vmatpush1.msra.mxu0 %v1682
  %1701 = vmatprep.subr.mxu0 0.0
  %1702 = vmatpush1.msra.mxu0 %v1683
  %1703 = vmatprep.subr.mxu0 0.0
  %1704 = vmatpush1.msra.mxu0 %v1684
  %1705 = vmatprep.subr.mxu0 0.0
  %1706 = vmatpush1.msra.mxu0 %v1685
  %1707 = vmatprep.subr.mxu0 0.0
  %1708 = vmatpush1.msra.mxu0 0.0
  %1709 = vmatprep.subr.mxu0 0.0
  %1710 = vmatpush1.msra.mxu0 0.0
  %1711 = vmatprep.subr.mxu0 0.0
  %1712 = vmatpush1.msra.mxu0 0.0
  %1713 = vmatprep.subr.mxu0 0.0
  %1714 = vmatpush1.msra.mxu0 0.0
  %1715 = vmatprep.subr.mxu0 0.0
  %1716 = vmatpush1.msra.mxu0 0.0
  %1717 = vmatprep.subr.mxu0 0.0
  %1718 = vmatpush1.msra.mxu0 0.0
  %1719 = vmatprep.subr.mxu0 0.0
  %1720 = vmatpush1.msra.mxu0 0.0
  %1721 = vmatprep.subr.mxu0 0.0
  %1722 = vmatpush1.msra.mxu0 0.0
  %1723 = vmatprep.subr.mxu0 0.0
  %1724 = vmatpush1.msra.mxu0 0.0
  %1725 = vmatprep.subr.mxu0 0.0
  %1726 = vmatpush1.msra.mxu0 0.0
  %1727 = vmatprep.subr.mxu0 0.0
  %1728 = vmatpush1.msra.mxu0 0.0
  %1729 = vmatprep.subr.mxu0 0.0
  %1730 = vmatpush1.msra.mxu0 0.0
  %1731 = vmatprep.subr.mxu0 0.0
  %1732 = vmatpush1.msra.mxu0 0.0
  %1733 = vmatprep.subr.mxu0 0.0
  %1734 = vmatpush1.msra.mxu0 0.0
  %1735 = vmatprep.subr.mxu0 0.0
  %1736 = vmatpush1.msra.mxu0 0.0
  %1737 = vmatprep.subr.mxu0 0.0
  %1738 = vmatpush1.msra.mxu0 0.0
  %1739 = vmatprep.subr.mxu0 0.0
  %1740 = vmatpush1.msra.mxu0 0.0
  %1741 = vmatprep.subr.mxu0 0.0
  %1742 = vmatpush1.msra.mxu0 0.0
  %1743 = vmatprep.subr.mxu0 0.0
  %1744 = vmatpush1.msra.mxu0 0.0
  %1745 = vmatprep.subr.mxu0 0.0
  %1746 = vmatpush1.msra.mxu0 0.0
  %1747 = vmatprep.subr.mxu0 0.0
  %1748 = vmatpush1.msra.mxu0 0.0
  %1749 = vmatprep.subr.mxu0 0.0
  %1750 = vmatpush1.msra.mxu0 0.0
  %1751 = vmatprep.subr.mxu0 0.0
  %1752 = vmatpush1.msra.mxu0 0.0
  %1753 = vmatprep.subr.mxu0 0.0
  %1754 = vmatpush1.msra.mxu0 0.0
  %1755 = vmatprep.subr.mxu0 0.0
  %1756 = vmatpush1.msra.mxu0 0.0
  %1757 = vmatprep.subr.mxu0 0.0
  %1758 = vmatpush1.msra.mxu0 0.0
  %1759 = vmatprep.subr.mxu0 0.0
  %1760 = vmatpush1.msra.mxu0 0.0
  %1761 = vmatprep.subr.mxu0 0.0
  %1762 = vmatpush1.msra.mxu0 0.0
  %1763 = vmatprep.mubr.f32.mxu0 0.0
  %1764 = vmatmul.mubr.f32.gmra.mrb[0].mxu0 %v1694
  %v1765 = vpop.f32.mrb[0].mxu0
  %v1766 = vadd.f32 %v1691, %v1765
  %v1767 = vpop.f32.mrb[0].mxu0
  %1768 = vmatprep.mubr.f32.mxu0 0.0
  %1769 = vmatmul.mubr.f32.gmra.mrb[0].mxu0 %v1697
  %v1770 = vpop.f32.mrb[0].mxu0
  %v1771 = vadd.f32 %v1691, %v1770
  %v1772 = vpop.f32.mrb[0].mxu0
  %1773 = vdwg.mxu0
  %v1774 = vld [vmem:[%s12] sm:$0xff]
  %v1775 = vld [vmem:[%s12 + $0x8] sm:$0xff]
  %v1776 = vld [vmem:[%s12 + $0x10] sm:$0xff]
  %v1777 = vld [vmem:[%s12 + $0x18] sm:$0xff]
  %v1778 = vld [vmem:[%s13] sm:$0x1]
  %v1780 = vlaneseq
  %v1781 = vshrl.u32 %v1780, 7
  %v1782 = vsub.s32 0, %v1781
  %v1783 = vrot.slane %v1778, %v1782
  %v1786 = vsel %vm92, %v79, 0
  %v1789 = vsel %vm92, %v80, 0
  %1791 = vmatprep.subr.mxu0 0.0
  %1792 = vmatpush1.msra.mxu0 %v1774
  %1793 = vmatprep.subr.mxu0 0.0
  %1794 = vmatpush1.msra.mxu0 %v1775
  %1795 = vmatprep.subr.mxu0 0.0
  %1796 = vmatpush1.msra.mxu0 %v1776
  %1797 = vmatprep.subr.mxu0 0.0
  %1798 = vmatpush1.msra.mxu0 %v1777
  %1799 = vmatprep.subr.mxu0 0.0
  %1800 = vmatpush1.msra.mxu0 0.0
  %1801 = vmatprep.subr.mxu0 0.0
  %1802 = vmatpush1.msra.mxu0 0.0
  %1803 = vmatprep.subr.mxu0 0.0
  %1804 = vmatpush1.msra.mxu0 0.0
  %1805 = vmatprep.subr.mxu0 0.0
  %1806 = vmatpush1.msra.mxu0 0.0
  %1807 = vmatprep.subr.mxu0 0.0
  %1808 = vmatpush1.msra.mxu0 0.0
  %1809 = vmatprep.subr.mxu0 0.0
  %1810 = vmatpush1.msra.mxu0 0.0
  %1811 = vmatprep.subr.mxu0 0.0
  %1812 = vmatpush1.msra.mxu0 0.0
  %1813 = vmatprep.subr.mxu0 0.0
  %1814 = vmatpush1.msra.mxu0 0.0
  %1815 = vmatprep.subr.mxu0 0.0
  %1816 = vmatpush1.msra.mxu0 0.0
  %1817 = vmatprep.subr.mxu0 0.0
  %1818 = vmatpush1.msra.mxu0 0.0
  %1819 = vmatprep.subr.mxu0 0.0
  %1820 = vmatpush1.msra.mxu0 0.0
  %1821 = vmatprep.subr.mxu0 0.0
  %1822 = vmatpush1.msra.mxu0 0.0
  %1823 = vmatprep.subr.mxu0 0.0
  %1824 = vmatpush1.msra.mxu0 0.0
  %1825 = vmatprep.subr.mxu0 0.0
  %1826 = vmatpush1.msra.mxu0 0.0
  %1827 = vmatprep.subr.mxu0 0.0
  %1828 = vmatpush1.msra.mxu0 0.0
  %1829 = vmatprep.subr.mxu0 0.0
  %1830 = vmatpush1.msra.mxu0 0.0
  %1831 = vmatprep.subr.mxu0 0.0
  %1832 = vmatpush1.msra.mxu0 0.0
  %1833 = vmatprep.subr.mxu0 0.0
  %1834 = vmatpush1.msra.mxu0 0.0
  %1835 = vmatprep.subr.mxu0 0.0
  %1836 = vmatpush1.msra.mxu0 0.0
  %1837 = vmatprep.subr.mxu0 0.0
  %1838 = vmatpush1.msra.mxu0 0.0
  %1839 = vmatprep.subr.mxu0 0.0
  %1840 = vmatpush1.msra.mxu0 0.0
  %1841 = vmatprep.subr.mxu0 0.0
  %1842 = vmatpush1.msra.mxu0 0.0
  %1843 = vmatprep.subr.mxu0 0.0
  %1844 = vmatpush1.msra.mxu0 0.0
  %1845 = vmatprep.subr.mxu0 0.0
  %1846 = vmatpush1.msra.mxu0 0.0
  %1847 = vmatprep.subr.mxu0 0.0
  %1848 = vmatpush1.msra.mxu0 0.0
  %1849 = vmatprep.subr.mxu0 0.0
  %1850 = vmatpush1.msra.mxu0 0.0
  %1851 = vmatprep.subr.mxu0 0.0
  %1852 = vmatpush1.msra.mxu0 0.0
  %1853 = vmatprep.subr.mxu0 0.0
  %1854 = vmatpush1.msra.mxu0 0.0
  %1855 = vmatprep.mubr.f32.mxu0 0.0
  %1856 = vmatmul.mubr.f32.gmra.mrb[0].mxu0 %v1786
  %v1857 = vpop.f32.mrb[0].mxu0
  %v1858 = vadd.f32 %v1783, %v1857
  %v1859 = vpop.f32.mrb[0].mxu0
  %1860 = vmatprep.mubr.f32.mxu0 0.0
  %1861 = vmatmul.mubr.f32.gmra.mrb[0].mxu0 %v1789
  %v1862 = vpop.f32.mrb[0].mxu0
  %v1863 = vadd.f32 %v1783, %v1862
  %v1864 = vpop.f32.mrb[0].mxu0
  %1865 = vdwg.mxu0
  %v1866 = vld [vmem:[%s3] sm:$0xff]
  %v1867 = vld [vmem:[%s3 + $0x8] sm:$0xff]
  %v1869 = vsel %vm179, %v1766, 0
  %v1872 = vsel %vm179, %v1858, 0
  %1874 = vmatprep.subr.mxu0 0.0
  %1875 = vmatpush1.xpose.msra.mxu0 %v1872
  %1876 = vmatprep.subr.mxu0 0.0
  %1877 = vmatpush1.xpose.msra.mxu0 0.0
  %1878 = vmatprep.subr.mxu0 0.0
  %1879 = vmatpush1.xpose.msra.mxu0 0.0
  %1880 = vmatprep.subr.mxu0 0.0
  %1881 = vmatpush1.xpose.msra.mxu0 0.0
  %1882 = vmatprep.subr.mxu0 0.0
  %1883 = vmatpush1.xpose.msra.mxu0 0.0
  %1884 = vmatprep.subr.mxu0 0.0
  %1885 = vmatpush1.xpose.msra.mxu0 0.0
  %1886 = vmatprep.subr.mxu0 0.0
  %1887 = vmatpush1.xpose.msra.mxu0 0.0
  %1888 = vmatprep.subr.mxu0 0.0
  %1889 = vmatpush1.xpose.msra.mxu0 0.0
  %1890 = vmatprep.subr.mxu0 0.0
  %1891 = vmatpush1.xpose.msra.mxu0 0.0
  %1892 = vmatprep.subr.mxu0 0.0
  %1893 = vmatpush1.xpose.msra.mxu0 0.0
  %1894 = vmatprep.subr.mxu0 0.0
  %1895 = vmatpush1.xpose.msra.mxu0 0.0
  %1896 = vmatprep.subr.mxu0 0.0
  %1897 = vmatpush1.xpose.msra.mxu0 0.0
  %1898 = vmatprep.subr.mxu0 0.0
  %1899 = vmatpush1.xpose.msra.mxu0 0.0
  %1900 = vmatprep.subr.mxu0 0.0
  %1901 = vmatpush1.xpose.msra.mxu0 0.0
  %1902 = vmatprep.subr.mxu0 0.0
  %1903 = vmatpush1.xpose.msra.mxu0 0.0
  %1904 = vmatprep.subr.mxu0 0.0
  %1905 = vmatpush1.xpose.msra.mxu0 0.0
  %1906 = vmatprep.subr.mxu0 0.0
  %1907 = vmatpush1.xpose.msra.mxu0 0.0
  %1908 = vmatprep.subr.mxu0 0.0
  %1909 = vmatpush1.xpose.msra.mxu0 0.0
  %1910 = vmatprep.subr.mxu0 0.0
  %1911 = vmatpush1.xpose.msra.mxu0 0.0
  %1912 = vmatprep.subr.mxu0 0.0
  %1913 = vmatpush1.xpose.msra.mxu0 0.0
  %1914 = vmatprep.subr.mxu0 0.0
  %1915 = vmatpush1.xpose.msra.mxu0 0.0
  %1916 = vmatprep.subr.mxu0 0.0
  %1917 = vmatpush1.xpose.msra.mxu0 0.0
  %1918 = vmatprep.subr.mxu0 0.0
  %1919 = vmatpush1.xpose.msra.mxu0 0.0
  %1920 = vmatprep.subr.mxu0 0.0
  %1921 = vmatpush1.xpose.msra.mxu0 0.0
  %1922 = vmatprep.subr.mxu0 0.0
  %1923 = vmatpush1.xpose.msra.mxu0 0.0
  %1924 = vmatprep.subr.mxu0 0.0
  %1925 = vmatpush1.xpose.msra.mxu0 0.0
  %1926 = vmatprep.subr.mxu0 0.0
  %1927 = vmatpush1.xpose.msra.mxu0 0.0
  %1928 = vmatprep.subr.mxu0 0.0
  %1929 = vmatpush1.xpose.msra.mxu0 0.0
  %1930 = vmatprep.subr.mxu0 0.0
  %1931 = vmatpush1.xpose.msra.mxu0 0.0
  %1932 = vmatprep.subr.mxu0 0.0
  %1933 = vmatpush1.xpose.msra.mxu0 0.0
  %1934 = vmatprep.subr.mxu0 0.0
  %1935 = vmatpush1.xpose.msra.mxu0 0.0
  %1936 = vmatprep.subr.mxu0 0.0
  %1937 = vmatpush1.xpose.msra.mxu0 0.0
  %1938 = vmatprep.mubr.f32.mxu0 0.0
  %1939 = vmatmul.mubr.f32.gmra.mrb[0].mxu0 %v1869
  %v1940 = vpop.f32.mrb[0].mxu0
  %v1941 = vadd.f32 0.0, %v1940
  %v1942 = vpop.f32.mrb[0].mxu0
  %1943 = vdwg.mxu0
  %v1944 = vmul.f32 %v1941, 0.35355338
  %v1945 = vadd.f32 %v1944, %v1866
  %v1946 = vsel %vm179, %v1945, -inf
  %1947 = vmax.xlane.f32.xlu0 %v1946
  %v1948 = vpop.xlane.xlu0 %1947
  %v1949 = vsub.f32 %v1945, %v1948
  %v1950 = vmul.f32 %v1949, 1.442695
  %v1951 = vpow.pop %v1950
  %v1952 = vsel %vm179, %v1951, 0.0
  %1953 = vadd.xlane.f32.xlu0 %v1952
  %v1954 = vpop.xlane.xlu0 %1953
  %v1955 = vrcp.pop %v1954
  %v1956 = vmul.f32 %v1951, %v1955
  %1957 = vrot.lane.b32.xlu0 %v1858, 96
  %v1958 = vpop.permute.xlu0 %1957
  %v1961 = vsel %vm179, %v1956, 0
  %1963 = vmatprep.subr.mxu0 0.0
  %1964 = vmatpush1.msra.mxu0 %v1958
  %1965 = vmatprep.subr.mxu0 0.0
  %1966 = vmatpush1.msra.mxu0 0.0
  %1967 = vmatprep.subr.mxu0 0.0
  %1968 = vmatpush1.msra.mxu0 0.0
  %1969 = vmatprep.subr.mxu0 0.0
  %1970 = vmatpush1.msra.mxu0 0.0
  %1971 = vmatprep.subr.mxu0 0.0
  %1972 = vmatpush1.msra.mxu0 0.0
  %1973 = vmatprep.subr.mxu0 0.0
  %1974 = vmatpush1.msra.mxu0 0.0
  %1975 = vmatprep.subr.mxu0 0.0
  %1976 = vmatpush1.msra.mxu0 0.0
  %1977 = vmatprep.subr.mxu0 0.0
  %1978 = vmatpush1.msra.mxu0 0.0
  %1979 = vmatprep.subr.mxu0 0.0
  %1980 = vmatpush1.msra.mxu0 0.0
  %1981 = vmatprep.subr.mxu0 0.0
  %1982 = vmatpush1.msra.mxu0 0.0
  %1983 = vmatprep.subr.mxu0 0.0
  %1984 = vmatpush1.msra.mxu0 0.0
  %1985 = vmatprep.subr.mxu0 0.0
  %1986 = vmatpush1.msra.mxu0 0.0
  %1987 = vmatprep.subr.mxu0 0.0
  %1988 = vmatpush1.msra.mxu0 0.0
  %1989 = vmatprep.subr.mxu0 0.0
  %1990 = vmatpush1.msra.mxu0 0.0
  %1991 = vmatprep.subr.mxu0 0.0
  %1992 = vmatpush1.msra.mxu0 0.0
  %1993 = vmatprep.subr.mxu0 0.0
  %1994 = vmatpush1.msra.mxu0 0.0
  %1995 = vmatprep.subr.mxu0 0.0
  %1996 = vmatpush1.msra.mxu0 0.0
  %1997 = vmatprep.subr.mxu0 0.0
  %1998 = vmatpush1.msra.mxu0 0.0
  %1999 = vmatprep.subr.mxu0 0.0
  %2000 = vmatpush1.msra.mxu0 0.0
  %2001 = vmatprep.subr.mxu0 0.0
  %2002 = vmatpush1.msra.mxu0 0.0
  %2003 = vmatprep.subr.mxu0 0.0
  %2004 = vmatpush1.msra.mxu0 0.0
  %2005 = vmatprep.subr.mxu0 0.0
  %2006 = vmatpush1.msra.mxu0 0.0
  %2007 = vmatprep.subr.mxu0 0.0
  %2008 = vmatpush1.msra.mxu0 0.0
  %2009 = vmatprep.subr.mxu0 0.0
  %2010 = vmatpush1.msra.mxu0 0.0
  %2011 = vmatprep.subr.mxu0 0.0
  %2012 = vmatpush1.msra.mxu0 0.0
  %2013 = vmatprep.subr.mxu0 0.0
  %2014 = vmatpush1.msra.mxu0 0.0
  %2015 = vmatprep.subr.mxu0 0.0
  %2016 = vmatpush1.msra.mxu0 0.0
  %2017 = vmatprep.subr.mxu0 0.0
  %2018 = vmatpush1.msra.mxu0 0.0
  %2019 = vmatprep.subr.mxu0 0.0
  %2020 = vmatpush1.msra.mxu0 0.0
  %2021 = vmatprep.subr.mxu0 0.0
  %2022 = vmatpush1.msra.mxu0 0.0
  %2023 = vmatprep.subr.mxu0 0.0
  %2024 = vmatpush1.msra.mxu0 0.0
  %2025 = vmatprep.subr.mxu0 0.0
  %2026 = vmatpush1.msra.mxu0 0.0
  %2027 = vmatprep.mubr.f32.mxu0 0.0
  %2028 = vmatmul.mubr.f32.gmra.mrb[0].mxu0 %v1961
  %v2029 = vpop.f32.mrb[0].mxu0
  %v2030 = vadd.f32 0.0, %v2029
  %v2031 = vpop.f32.mrb[0].mxu0
  %2032 = vdwg.mxu0
  %2033 = vrot.lane.b32.xlu0 %v1766, 120
  %v2034 = vpop.permute.xlu0 %2033
  %2035 = vrot.lane.b32.xlu0 %v1858, 120
  %v2036 = vpop.permute.xlu0 %2035
  %v2037 = vsel %vm179, %v2034, 0
  %v2039 = vsel %vm179, %v2036, 0
  %2041 = vmatprep.subr.mxu0 0.0
  %2042 = vmatpush1.xpose.msra.mxu0 %v2039
  %2043 = vmatprep.subr.mxu0 0.0
  %2044 = vmatpush1.xpose.msra.mxu0 0.0
  %2045 = vmatprep.subr.mxu0 0.0
  %2046 = vmatpush1.xpose.msra.mxu0 0.0
  %2047 = vmatprep.subr.mxu0 0.0
  %2048 = vmatpush1.xpose.msra.mxu0 0.0
  %2049 = vmatprep.subr.mxu0 0.0
  %2050 = vmatpush1.xpose.msra.mxu0 0.0
  %2051 = vmatprep.subr.mxu0 0.0
  %2052 = vmatpush1.xpose.msra.mxu0 0.0
  %2053 = vmatprep.subr.mxu0 0.0
  %2054 = vmatpush1.xpose.msra.mxu0 0.0
  %2055 = vmatprep.subr.mxu0 0.0
  %2056 = vmatpush1.xpose.msra.mxu0 0.0
  %2057 = vmatprep.subr.mxu0 0.0
  %2058 = vmatpush1.xpose.msra.mxu0 0.0
  %2059 = vmatprep.subr.mxu0 0.0
  %2060 = vmatpush1.xpose.msra.mxu0 0.0
  %2061 = vmatprep.subr.mxu0 0.0
  %2062 = vmatpush1.xpose.msra.mxu0 0.0
  %2063 = vmatprep.subr.mxu0 0.0
  %2064 = vmatpush1.xpose.msra.mxu0 0.0
  %2065 = vmatprep.subr.mxu0 0.0
  %2066 = vmatpush1.xpose.msra.mxu0 0.0
  %2067 = vmatprep.subr.mxu0 0.0
  %2068 = vmatpush1.xpose.msra.mxu0 0.0
  %2069 = vmatprep.subr.mxu0 0.0
  %2070 = vmatpush1.xpose.msra.mxu0 0.0
  %2071 = vmatprep.subr.mxu0 0.0
  %2072 = vmatpush1.xpose.msra.mxu0 0.0
  %2073 = vmatprep.subr.mxu0 0.0
  %2074 = vmatpush1.xpose.msra.mxu0 0.0
  %2075 = vmatprep.subr.mxu0 0.0
  %2076 = vmatpush1.xpose.msra.mxu0 0.0
  %2077 = vmatprep.subr.mxu0 0.0
  %2078 = vmatpush1.xpose.msra.mxu0 0.0
  %2079 = vmatprep.subr.mxu0 0.0
  %2080 = vmatpush1.xpose.msra.mxu0 0.0
  %2081 = vmatprep.subr.mxu0 0.0
  %2082 = vmatpush1.xpose.msra.mxu0 0.0
  %2083 = vmatprep.subr.mxu0 0.0
  %2084 = vmatpush1.xpose.msra.mxu0 0.0
  %2085 = vmatprep.subr.mxu0 0.0
  %2086 = vmatpush1.xpose.msra.mxu0 0.0
  %2087 = vmatprep.subr.mxu0 0.0
  %2088 = vmatpush1.xpose.msra.mxu0 0.0
  %2089 = vmatprep.subr.mxu0 0.0
  %2090 = vmatpush1.xpose.msra.mxu0 0.0
  %2091 = vmatprep.subr.mxu0 0.0
  %2092 = vmatpush1.xpose.msra.mxu0 0.0
  %2093 = vmatprep.subr.mxu0 0.0
  %2094 = vmatpush1.xpose.msra.mxu0 0.0
  %2095 = vmatprep.subr.mxu0 0.0
  %2096 = vmatpush1.xpose.msra.mxu0 0.0
  %2097 = vmatprep.subr.mxu0 0.0
  %2098 = vmatpush1.xpose.msra.mxu0 0.0
  %2099 = vmatprep.subr.mxu0 0.0
  %2100 = vmatpush1.xpose.msra.mxu0 0.0
  %2101 = vmatprep.subr.mxu0 0.0
  %2102 = vmatpush1.xpose.msra.mxu0 0.0
  %2103 = vmatprep.subr.mxu0 0.0
  %2104 = vmatpush1.xpose.msra.mxu0 0.0
  %2105 = vmatprep.mubr.f32.mxu0 0.0
  %2106 = vmatmul.mubr.f32.gmra.mrb[0].mxu0 %v2037
  %v2107 = vpop.f32.mrb[0].mxu0
  %v2108 = vadd.f32 0.0, %v2107
  %v2109 = vpop.f32.mrb[0].mxu0
  %2110 = vdwg.mxu0
  %v2111 = vmul.f32 %v2108, 0.35355338
  %v2112 = vadd.f32 %v2111, %v1866
  %v2113 = vsel %vm179, %v2112, -inf
  %2114 = vmax.xlane.f32.xlu0 %v2113
  %v2115 = vpop.xlane.xlu0 %2114
  %v2116 = vsub.f32 %v2112, %v2115
  %v2117 = vmul.f32 %v2116, 1.442695
  %v2118 = vpow.pop %v2117
  %v2119 = vsel %vm179, %v2118, 0.0
  %2120 = vadd.xlane.f32.xlu0 %v2119
  %v2121 = vpop.xlane.xlu0 %2120
  %v2122 = vrcp.pop %v2121
  %v2123 = vmul.f32 %v2118, %v2122
  %2124 = vrot.lane.b32.xlu0 %v1858, 88
  %v2125 = vpop.permute.xlu0 %2124
  %v2128 = vsel %vm179, %v2123, 0
  %2130 = vmatprep.subr.mxu0 0.0
  %2131 = vmatpush1.msra.mxu0 %v2125
  %2132 = vmatprep.subr.mxu0 0.0
  %2133 = vmatpush1.msra.mxu0 0.0
  %2134 = vmatprep.subr.mxu0 0.0
  %2135 = vmatpush1.msra.mxu0 0.0
  %2136 = vmatprep.subr.mxu0 0.0
  %2137 = vmatpush1.msra.mxu0 0.0
  %2138 = vmatprep.subr.mxu0 0.0
  %2139 = vmatpush1.msra.mxu0 0.0
  %2140 = vmatprep.subr.mxu0 0.0
  %2141 = vmatpush1.msra.mxu0 0.0
  %2142 = vmatprep.subr.mxu0 0.0
  %2143 = vmatpush1.msra.mxu0 0.0
  %2144 = vmatprep.subr.mxu0 0.0
  %2145 = vmatpush1.msra.mxu0 0.0
  %2146 = vmatprep.subr.mxu0 0.0
  %2147 = vmatpush1.msra.mxu0 0.0
  %2148 = vmatprep.subr.mxu0 0.0
  %2149 = vmatpush1.msra.mxu0 0.0
  %2150 = vmatprep.subr.mxu0 0.0
  %2151 = vmatpush1.msra.mxu0 0.0
  %2152 = vmatprep.subr.mxu0 0.0
  %2153 = vmatpush1.msra.mxu0 0.0
  %2154 = vmatprep.subr.mxu0 0.0
  %2155 = vmatpush1.msra.mxu0 0.0
  %2156 = vmatprep.subr.mxu0 0.0
  %2157 = vmatpush1.msra.mxu0 0.0
  %2158 = vmatprep.subr.mxu0 0.0
  %2159 = vmatpush1.msra.mxu0 0.0
  %2160 = vmatprep.subr.mxu0 0.0
  %2161 = vmatpush1.msra.mxu0 0.0
  %2162 = vmatprep.subr.mxu0 0.0
  %2163 = vmatpush1.msra.mxu0 0.0
  %2164 = vmatprep.subr.mxu0 0.0
  %2165 = vmatpush1.msra.mxu0 0.0
  %2166 = vmatprep.subr.mxu0 0.0
  %2167 = vmatpush1.msra.mxu0 0.0
  %2168 = vmatprep.subr.mxu0 0.0
  %2169 = vmatpush1.msra.mxu0 0.0
  %2170 = vmatprep.subr.mxu0 0.0
  %2171 = vmatpush1.msra.mxu0 0.0
  %2172 = vmatprep.subr.mxu0 0.0
  %2173 = vmatpush1.msra.mxu0 0.0
  %2174 = vmatprep.subr.mxu0 0.0
  %2175 = vmatpush1.msra.mxu0 0.0
  %2176 = vmatprep.subr.mxu0 0.0
  %2177 = vmatpush1.msra.mxu0 0.0
  %2178 = vmatprep.subr.mxu0 0.0
  %2179 = vmatpush1.msra.mxu0 0.0
  %2180 = vmatprep.subr.mxu0 0.0
  %2181 = vmatpush1.msra.mxu0 0.0
  %2182 = vmatprep.subr.mxu0 0.0
  %2183 = vmatpush1.msra.mxu0 0.0
  %2184 = vmatprep.subr.mxu0 0.0
  %2185 = vmatpush1.msra.mxu0 0.0
  %2186 = vmatprep.subr.mxu0 0.0
  %2187 = vmatpush1.msra.mxu0 0.0
  %2188 = vmatprep.subr.mxu0 0.0
  %2189 = vmatpush1.msra.mxu0 0.0
  %2190 = vmatprep.subr.mxu0 0.0
  %2191 = vmatpush1.msra.mxu0 0.0
  %2192 = vmatprep.subr.mxu0 0.0
  %2193 = vmatpush1.msra.mxu0 0.0
  %2194 = vmatprep.mubr.f32.mxu0 0.0
  %2195 = vmatmul.mubr.f32.gmra.mrb[0].mxu0 %v2128
  %v2196 = vpop.f32.mrb[0].mxu0
  %v2197 = vadd.f32 0.0, %v2196
  %v2198 = vpop.f32.mrb[0].mxu0
  %2199 = vdwg.mxu0
  %2200 = vrot.lane.b32.xlu0 %v1766, 112
  %v2201 = vpop.permute.xlu0 %2200
  %2202 = vrot.lane.b32.xlu0 %v1858, 112
  %v2203 = vpop.permute.xlu0 %2202
  %v2204 = vsel %vm179, %v2201, 0
  %v2206 = vsel %vm179, %v2203, 0
  %2208 = vmatprep.subr.mxu0 0.0
  %2209 = vmatpush1.xpose.msra.mxu0 %v2206
  %2210 = vmatprep.subr.mxu0 0.0
  %2211 = vmatpush1.xpose.msra.mxu0 0.0
  %2212 = vmatprep.subr.mxu0 0.0
  %2213 = vmatpush1.xpose.msra.mxu0 0.0
  %2214 = vmatprep.subr.mxu0 0.0
  %2215 = vmatpush1.xpose.msra.mxu0 0.0
  %2216 = vmatprep.subr.mxu0 0.0
  %2217 = vmatpush1.xpose.msra.mxu0 0.0
  %2218 = vmatprep.subr.mxu0 0.0
  %2219 = vmatpush1.xpose.msra.mxu0 0.0
  %2220 = vmatprep.subr.mxu0 0.0
  %2221 = vmatpush1.xpose.msra.mxu0 0.0
  %2222 = vmatprep.subr.mxu0 0.0
  %2223 = vmatpush1.xpose.msra.mxu0 0.0
  %2224 = vmatprep.subr.mxu0 0.0
  %2225 = vmatpush1.xpose.msra.mxu0 0.0
  %2226 = vmatprep.subr.mxu0 0.0
  %2227 = vmatpush1.xpose.msra.mxu0 0.0
  %2228 = vmatprep.subr.mxu0 0.0
  %2229 = vmatpush1.xpose.msra.mxu0 0.0
  %2230 = vmatprep.subr.mxu0 0.0
  %2231 = vmatpush1.xpose.msra.mxu0 0.0
  %2232 = vmatprep.subr.mxu0 0.0
  %2233 = vmatpush1.xpose.msra.mxu0 0.0
  %2234 = vmatprep.subr.mxu0 0.0
  %2235 = vmatpush1.xpose.msra.mxu0 0.0
  %2236 = vmatprep.subr.mxu0 0.0
  %2237 = vmatpush1.xpose.msra.mxu0 0.0
  %2238 = vmatprep.subr.mxu0 0.0
  %2239 = vmatpush1.xpose.msra.mxu0 0.0
  %2240 = vmatprep.subr.mxu0 0.0
  %2241 = vmatpush1.xpose.msra.mxu0 0.0
  %2242 = vmatprep.subr.mxu0 0.0
  %2243 = vmatpush1.xpose.msra.mxu0 0.0
  %2244 = vmatprep.subr.mxu0 0.0
  %2245 = vmatpush1.xpose.msra.mxu0 0.0
  %2246 = vmatprep.subr.mxu0 0.0
  %2247 = vmatpush1.xpose.msra.mxu0 0.0
  %2248 = vmatprep.subr.mxu0 0.0
  %2249 = vmatpush1.xpose.msra.mxu0 0.0
  %2250 = vmatprep.subr.mxu0 0.0
  %2251 = vmatpush1.xpose.msra.mxu0 0.0
  %2252 = vmatprep.subr.mxu0 0.0
  %2253 = vmatpush1.xpose.msra.mxu0 0.0
  %2254 = vmatprep.subr.mxu0 0.0
  %2255 = vmatpush1.xpose.msra.mxu0 0.0
  %2256 = vmatprep.subr.mxu0 0.0
  %2257 = vmatpush1.xpose.msra.mxu0 0.0
  %2258 = vmatprep.subr.mxu0 0.0
  %2259 = vmatpush1.xpose.msra.mxu0 0.0
  %2260 = vmatprep.subr.mxu0 0.0
  %2261 = vmatpush1.xpose.msra.mxu0 0.0
  %2262 = vmatprep.subr.mxu0 0.0
  %2263 = vmatpush1.xpose.msra.mxu0 0.0
  %2264 = vmatprep.subr.mxu0 0.0
  %2265 = vmatpush1.xpose.msra.mxu0 0.0
  %2266 = vmatprep.subr.mxu0 0.0
  %2267 = vmatpush1.xpose.msra.mxu0 0.0
  %2268 = vmatprep.subr.mxu0 0.0
  %2269 = vmatpush1.xpose.msra.mxu0 0.0
  %2270 = vmatprep.subr.mxu0 0.0
  %2271 = vmatpush1.xpose.msra.mxu0 0.0
  %2272 = vmatprep.mubr.f32.mxu0 0.0
  %2273 = vmatmul.mubr.f32.gmra.mrb[0].mxu0 %v2204
  %v2274 = vpop.f32.mrb[0].mxu0
  %v2275 = vadd.f32 0.0, %v2274
  %v2276 = vpop.f32.mrb[0].mxu0
  %2277 = vdwg.mxu0
  %v2278 = vmul.f32 %v2275, 0.35355338
  %v2279 = vadd.f32 %v2278, %v1866
  %v2280 = vsel %vm179, %v2279, -inf
  %2281 = vmax.xlane.f32.xlu0 %v2280
  %v2282 = vpop.xlane.xlu0 %2281
  %v2283 = vsub.f32 %v2279, %v2282
  %v2284 = vmul.f32 %v2283, 1.442695
  %v2285 = vpow.pop %v2284
  %v2286 = vsel %vm179, %v2285, 0.0
  %2287 = vadd.xlane.f32.xlu0 %v2286
  %v2288 = vpop.xlane.xlu0 %2287
  %v2289 = vrcp.pop %v2288
  %v2290 = vmul.f32 %v2285, %v2289
  %2291 = vrot.lane.b32.xlu0 %v1858, 80
  %v2292 = vpop.permute.xlu0 %2291
  %v2295 = vsel %vm179, %v2290, 0
  %2297 = vmatprep.subr.mxu0 0.0
  %2298 = vmatpush1.msra.mxu0 %v2292
  %2299 = vmatprep.subr.mxu0 0.0
  %2300 = vmatpush1.msra.mxu0 0.0
  %2301 = vmatprep.subr.mxu0 0.0
  %2302 = vmatpush1.msra.mxu0 0.0
  %2303 = vmatprep.subr.mxu0 0.0
  %2304 = vmatpush1.msra.mxu0 0.0
  %2305 = vmatprep.subr.mxu0 0.0
  %2306 = vmatpush1.msra.mxu0 0.0
  %2307 = vmatprep.subr.mxu0 0.0
  %2308 = vmatpush1.msra.mxu0 0.0
  %2309 = vmatprep.subr.mxu0 0.0
  %2310 = vmatpush1.msra.mxu0 0.0
  %2311 = vmatprep.subr.mxu0 0.0
  %2312 = vmatpush1.msra.mxu0 0.0
  %2313 = vmatprep.subr.mxu0 0.0
  %2314 = vmatpush1.msra.mxu0 0.0
  %2315 = vmatprep.subr.mxu0 0.0
  %2316 = vmatpush1.msra.mxu0 0.0
  %2317 = vmatprep.subr.mxu0 0.0
  %2318 = vmatpush1.msra.mxu0 0.0
  %2319 = vmatprep.subr.mxu0 0.0
  %2320 = vmatpush1.msra.mxu0 0.0
  %2321 = vmatprep.subr.mxu0 0.0
  %2322 = vmatpush1.msra.mxu0 0.0
  %2323 = vmatprep.subr.mxu0 0.0
  %2324 = vmatpush1.msra.mxu0 0.0
  %2325 = vmatprep.subr.mxu0 0.0
  %2326 = vmatpush1.msra.mxu0 0.0
  %2327 = vmatprep.subr.mxu0 0.0
  %2328 = vmatpush1.msra.mxu0 0.0
  %2329 = vmatprep.subr.mxu0 0.0
  %2330 = vmatpush1.msra.mxu0 0.0
  %2331 = vmatprep.subr.mxu0 0.0
  %2332 = vmatpush1.msra.mxu0 0.0
  %2333 = vmatprep.subr.mxu0 0.0
  %2334 = vmatpush1.msra.mxu0 0.0
  %2335 = vmatprep.subr.mxu0 0.0
  %2336 = vmatpush1.msra.mxu0 0.0
  %2337 = vmatprep.subr.mxu0 0.0
  %2338 = vmatpush1.msra.mxu0 0.0
  %2339 = vmatprep.subr.mxu0 0.0
  %2340 = vmatpush1.msra.mxu0 0.0
  %2341 = vmatprep.subr.mxu0 0.0
  %2342 = vmatpush1.msra.mxu0 0.0
  %2343 = vmatprep.subr.mxu0 0.0
  %2344 = vmatpush1.msra.mxu0 0.0
  %2345 = vmatprep.subr.mxu0 0.0
  %2346 = vmatpush1.msra.mxu0 0.0
  %2347 = vmatprep.subr.mxu0 0.0
  %2348 = vmatpush1.msra.mxu0 0.0
  %2349 = vmatprep.subr.mxu0 0.0
  %2350 = vmatpush1.msra.mxu0 0.0
  %2351 = vmatprep.subr.mxu0 0.0
  %2352 = vmatpush1.msra.mxu0 0.0
  %2353 = vmatprep.subr.mxu0 0.0
  %2354 = vmatpush1.msra.mxu0 0.0
  %2355 = vmatprep.subr.mxu0 0.0
  %2356 = vmatpush1.msra.mxu0 0.0
  %2357 = vmatprep.subr.mxu0 0.0
  %2358 = vmatpush1.msra.mxu0 0.0
  %2359 = vmatprep.subr.mxu0 0.0
  %2360 = vmatpush1.msra.mxu0 0.0
  %2361 = vmatprep.mubr.f32.mxu0 0.0
  %2362 = vmatmul.mubr.f32.gmra.mrb[0].mxu0 %v2295
  %v2363 = vpop.f32.mrb[0].mxu0
  %v2364 = vadd.f32 0.0, %v2363
  %v2365 = vpop.f32.mrb[0].mxu0
  %2366 = vdwg.mxu0
  %2367 = vrot.lane.b32.xlu0 %v1766, 104
  %v2368 = vpop.permute.xlu0 %2367
  %2369 = vrot.lane.b32.xlu0 %v1858, 104
  %v2370 = vpop.permute.xlu0 %2369
  %v2371 = vsel %vm179, %v2368, 0
  %v2373 = vsel %vm179, %v2370, 0
  %2375 = vmatprep.subr.mxu0 0.0
  %2376 = vmatpush1.xpose.msra.mxu0 %v2373
  %2377 = vmatprep.subr.mxu0 0.0
  %2378 = vmatpush1.xpose.msra.mxu0 0.0
  %2379 = vmatprep.subr.mxu0 0.0
  %2380 = vmatpush1.xpose.msra.mxu0 0.0
  %2381 = vmatprep.subr.mxu0 0.0
  %2382 = vmatpush1.xpose.msra.mxu0 0.0
  %2383 = vmatprep.subr.mxu0 0.0
  %2384 = vmatpush1.xpose.msra.mxu0 0.0
  %2385 = vmatprep.subr.mxu0 0.0
  %2386 = vmatpush1.xpose.msra.mxu0 0.0
  %2387 = vmatprep.subr.mxu0 0.0
  %2388 = vmatpush1.xpose.msra.mxu0 0.0
  %2389 = vmatprep.subr.mxu0 0.0
  %2390 = vmatpush1.xpose.msra.mxu0 0.0
  %2391 = vmatprep.subr.mxu0 0.0
  %2392 = vmatpush1.xpose.msra.mxu0 0.0
  %2393 = vmatprep.subr.mxu0 0.0
  %2394 = vmatpush1.xpose.msra.mxu0 0.0
  %2395 = vmatprep.subr.mxu0 0.0
  %2396 = vmatpush1.xpose.msra.mxu0 0.0
  %2397 = vmatprep.subr.mxu0 0.0
  %2398 = vmatpush1.xpose.msra.mxu0 0.0
  %2399 = vmatprep.subr.mxu0 0.0
  %2400 = vmatpush1.xpose.msra.mxu0 0.0
  %2401 = vmatprep.subr.mxu0 0.0
  %2402 = vmatpush1.xpose.msra.mxu0 0.0
  %2403 = vmatprep.subr.mxu0 0.0
  %2404 = vmatpush1.xpose.msra.mxu0 0.0
  %2405 = vmatprep.subr.mxu0 0.0
  %2406 = vmatpush1.xpose.msra.mxu0 0.0
  %2407 = vmatprep.subr.mxu0 0.0
  %2408 = vmatpush1.xpose.msra.mxu0 0.0
  %2409 = vmatprep.subr.mxu0 0.0
  %2410 = vmatpush1.xpose.msra.mxu0 0.0
  %2411 = vmatprep.subr.mxu0 0.0
  %2412 = vmatpush1.xpose.msra.mxu0 0.0
  %2413 = vmatprep.subr.mxu0 0.0
  %2414 = vmatpush1.xpose.msra.mxu0 0.0
  %2415 = vmatprep.subr.mxu0 0.0
  %2416 = vmatpush1.xpose.msra.mxu0 0.0
  %2417 = vmatprep.subr.mxu0 0.0
  %2418 = vmatpush1.xpose.msra.mxu0 0.0
  %2419 = vmatprep.subr.mxu0 0.0
  %2420 = vmatpush1.xpose.msra.mxu0 0.0
  %2421 = vmatprep.subr.mxu0 0.0
  %2422 = vmatpush1.xpose.msra.mxu0 0.0
  %2423 = vmatprep.subr.mxu0 0.0
  %2424 = vmatpush1.xpose.msra.mxu0 0.0
  %2425 = vmatprep.subr.mxu0 0.0
  %2426 = vmatpush1.xpose.msra.mxu0 0.0
  %2427 = vmatprep.subr.mxu0 0.0
  %2428 = vmatpush1.xpose.msra.mxu0 0.0
  %2429 = vmatprep.subr.mxu0 0.0
  %2430 = vmatpush1.xpose.msra.mxu0 0.0
  %2431 = vmatprep.subr.mxu0 0.0
  %2432 = vmatpush1.xpose.msra.mxu0 0.0
  %2433 = vmatprep.subr.mxu0 0.0
  %2434 = vmatpush1.xpose.msra.mxu0 0.0
  %2435 = vmatprep.subr.mxu0 0.0
  %2436 = vmatpush1.xpose.msra.mxu0 0.0
  %2437 = vmatprep.subr.mxu0 0.0
  %2438 = vmatpush1.xpose.msra.mxu0 0.0
  %2439 = vmatprep.mubr.f32.mxu0 0.0
  %2440 = vmatmul.mubr.f32.gmra.mrb[0].mxu0 %v2371
  %v2441 = vpop.f32.mrb[0].mxu0
  %v2442 = vadd.f32 0.0, %v2441
  %v2443 = vpop.f32.mrb[0].mxu0
  %2444 = vdwg.mxu0
  %v2445 = vmul.f32 %v2442, 0.35355338
  %v2446 = vadd.f32 %v2445, %v1866
  %v2447 = vsel %vm179, %v2446, -inf
  %2448 = vmax.xlane.f32.xlu0 %v2447
  %v2449 = vpop.xlane.xlu0 %2448
  %v2450 = vsub.f32 %v2446, %v2449
  %v2451 = vmul.f32 %v2450, 1.442695
  %v2452 = vpow.pop %v2451
  %v2453 = vsel %vm179, %v2452, 0.0
  %2454 = vadd.xlane.f32.xlu0 %v2453
  %v2455 = vpop.xlane.xlu0 %2454
  %v2456 = vrcp.pop %v2455
  %v2457 = vmul.f32 %v2452, %v2456
  %2458 = vrot.lane.b32.xlu0 %v1858, 72
  %v2459 = vpop.permute.xlu0 %2458
  %v2462 = vsel %vm179, %v2457, 0
  %2464 = vmatprep.subr.mxu0 0.0
  %2465 = vmatpush1.msra.mxu0 %v2459
  %2466 = vmatprep.subr.mxu0 0.0
  %2467 = vmatpush1.msra.mxu0 0.0
  %2468 = vmatprep.subr.mxu0 0.0
  %2469 = vmatpush1.msra.mxu0 0.0
  %2470 = vmatprep.subr.mxu0 0.0
  %2471 = vmatpush1.msra.mxu0 0.0
  %2472 = vmatprep.subr.mxu0 0.0
  %2473 = vmatpush1.msra.mxu0 0.0
  %2474 = vmatprep.subr.mxu0 0.0
  %2475 = vmatpush1.msra.mxu0 0.0
  %2476 = vmatprep.subr.mxu0 0.0
  %2477 = vmatpush1.msra.mxu0 0.0
  %2478 = vmatprep.subr.mxu0 0.0
  %2479 = vmatpush1.msra.mxu0 0.0
  %2480 = vmatprep.subr.mxu0 0.0
  %2481 = vmatpush1.msra.mxu0 0.0
  %2482 = vmatprep.subr.mxu0 0.0
  %2483 = vmatpush1.msra.mxu0 0.0
  %2484 = vmatprep.subr.mxu0 0.0
  %2485 = vmatpush1.msra.mxu0 0.0
  %2486 = vmatprep.subr.mxu0 0.0
  %2487 = vmatpush1.msra.mxu0 0.0
  %2488 = vmatprep.subr.mxu0 0.0
  %2489 = vmatpush1.msra.mxu0 0.0
  %2490 = vmatprep.subr.mxu0 0.0
  %2491 = vmatpush1.msra.mxu0 0.0
  %2492 = vmatprep.subr.mxu0 0.0
  %2493 = vmatpush1.msra.mxu0 0.0
  %2494 = vmatprep.subr.mxu0 0.0
  %2495 = vmatpush1.msra.mxu0 0.0
  %2496 = vmatprep.subr.mxu0 0.0
  %2497 = vmatpush1.msra.mxu0 0.0
  %2498 = vmatprep.subr.mxu0 0.0
  %2499 = vmatpush1.msra.mxu0 0.0
  %2500 = vmatprep.subr.mxu0 0.0
  %2501 = vmatpush1.msra.mxu0 0.0
  %2502 = vmatprep.subr.mxu0 0.0
  %2503 = vmatpush1.msra.mxu0 0.0
  %2504 = vmatprep.subr.mxu0 0.0
  %2505 = vmatpush1.msra.mxu0 0.0
  %2506 = vmatprep.subr.mxu0 0.0
  %2507 = vmatpush1.msra.mxu0 0.0
  %2508 = vmatprep.subr.mxu0 0.0
  %2509 = vmatpush1.msra.mxu0 0.0
  %2510 = vmatprep.subr.mxu0 0.0
  %2511 = vmatpush1.msra.mxu0 0.0
  %2512 = vmatprep.subr.mxu0 0.0
  %2513 = vmatpush1.msra.mxu0 0.0
  %2514 = vmatprep.subr.mxu0 0.0
  %2515 = vmatpush1.msra.mxu0 0.0
  %2516 = vmatprep.subr.mxu0 0.0
  %2517 = vmatpush1.msra.mxu0 0.0
  %2518 = vmatprep.subr.mxu0 0.0
  %2519 = vmatpush1.msra.mxu0 0.0
  %2520 = vmatprep.subr.mxu0 0.0
  %2521 = vmatpush1.msra.mxu0 0.0
  %2522 = vmatprep.subr.mxu0 0.0
  %2523 = vmatpush1.msra.mxu0 0.0
  %2524 = vmatprep.subr.mxu0 0.0
  %2525 = vmatpush1.msra.mxu0 0.0
  %2526 = vmatprep.subr.mxu0 0.0
  %2527 = vmatpush1.msra.mxu0 0.0
  %2528 = vmatprep.mubr.f32.mxu0 0.0
  %2529 = vmatmul.mubr.f32.gmra.mrb[0].mxu0 %v2462
  %v2530 = vpop.f32.mrb[0].mxu0
  %v2531 = vadd.f32 0.0, %v2530
  %v2532 = vpop.f32.mrb[0].mxu0
  %2533 = vdwg.mxu0
  %2535 = vrot.lane.b32.xlu0 %v2197, 8
  %v2536 = vpop.permute.xlu0 %2535
  %2539 = vrot.lane.b32.xlu0 %v2364, 16
  %v2540 = vpop.permute.xlu0 %2539
  %2543 = vrot.lane.b32.xlu0 %v2531, 24
  %v2544 = vpop.permute.xlu0 %2543
  %v2546 = vsel %vm179, %v2030, %v2536
  %v2547 = vsel %vm857, %v2546, %v2540
  %v2548 = vsel %vm859, %v2547, %v2544
  %v2550 = vsel %vm179, %v1771, 0
  %v2553 = vsel %vm179, %v1863, 0
  %2555 = vmatprep.subr.mxu0 0.0
  %2556 = vmatpush1.xpose.msra.mxu0 %v2553
  %2557 = vmatprep.subr.mxu0 0.0
  %2558 = vmatpush1.xpose.msra.mxu0 0.0
  %2559 = vmatprep.subr.mxu0 0.0
  %2560 = vmatpush1.xpose.msra.mxu0 0.0
  %2561 = vmatprep.subr.mxu0 0.0
  %2562 = vmatpush1.xpose.msra.mxu0 0.0
  %2563 = vmatprep.subr.mxu0 0.0
  %2564 = vmatpush1.xpose.msra.mxu0 0.0
  %2565 = vmatprep.subr.mxu0 0.0
  %2566 = vmatpush1.xpose.msra.mxu0 0.0
  %2567 = vmatprep.subr.mxu0 0.0
  %2568 = vmatpush1.xpose.msra.mxu0 0.0
  %2569 = vmatprep.subr.mxu0 0.0
  %2570 = vmatpush1.xpose.msra.mxu0 0.0
  %2571 = vmatprep.subr.mxu0 0.0
  %2572 = vmatpush1.xpose.msra.mxu0 0.0
  %2573 = vmatprep.subr.mxu0 0.0
  %2574 = vmatpush1.xpose.msra.mxu0 0.0
  %2575 = vmatprep.subr.mxu0 0.0
  %2576 = vmatpush1.xpose.msra.mxu0 0.0
  %2577 = vmatprep.subr.mxu0 0.0
  %2578 = vmatpush1.xpose.msra.mxu0 0.0
  %2579 = vmatprep.subr.mxu0 0.0
  %2580 = vmatpush1.xpose.msra.mxu0 0.0
  %2581 = vmatprep.subr.mxu0 0.0
  %2582 = vmatpush1.xpose.msra.mxu0 0.0
  %2583 = vmatprep.subr.mxu0 0.0
  %2584 = vmatpush1.xpose.msra.mxu0 0.0
  %2585 = vmatprep.subr.mxu0 0.0
  %2586 = vmatpush1.xpose.msra.mxu0 0.0
  %2587 = vmatprep.subr.mxu0 0.0
  %2588 = vmatpush1.xpose.msra.mxu0 0.0
  %2589 = vmatprep.subr.mxu0 0.0
  %2590 = vmatpush1.xpose.msra.mxu0 0.0
  %2591 = vmatprep.subr.mxu0 0.0
  %2592 = vmatpush1.xpose.msra.mxu0 0.0
  %2593 = vmatprep.subr.mxu0 0.0
  %2594 = vmatpush1.xpose.msra.mxu0 0.0
  %2595 = vmatprep.subr.mxu0 0.0
  %2596 = vmatpush1.xpose.msra.mxu0 0.0
  %2597 = vmatprep.subr.mxu0 0.0
  %2598 = vmatpush1.xpose.msra.mxu0 0.0
  %2599 = vmatprep.subr.mxu0 0.0
  %2600 = vmatpush1.xpose.msra.mxu0 0.0
  %2601 = vmatprep.subr.mxu0 0.0
  %2602 = vmatpush1.xpose.msra.mxu0 0.0
  %2603 = vmatprep.subr.mxu0 0.0
  %2604 = vmatpush1.xpose.msra.mxu0 0.0
  %2605 = vmatprep.subr.mxu0 0.0
  %2606 = vmatpush1.xpose.msra.mxu0 0.0
  %2607 = vmatprep.subr.mxu0 0.0
  %2608 = vmatpush1.xpose.msra.mxu0 0.0
  %2609 = vmatprep.subr.mxu0 0.0
  %2610 = vmatpush1.xpose.msra.mxu0 0.0
  %2611 = vmatprep.subr.mxu0 0.0
  %2612 = vmatpush1.xpose.msra.mxu0 0.0
  %2613 = vmatprep.subr.mxu0 0.0
  %2614 = vmatpush1.xpose.msra.mxu0 0.0
  %2615 = vmatprep.subr.mxu0 0.0
  %2616 = vmatpush1.xpose.msra.mxu0 0.0
  %2617 = vmatprep.subr.mxu0 0.0
  %2618 = vmatpush1.xpose.msra.mxu0 0.0
  %2619 = vmatprep.mubr.f32.mxu0 0.0
  %2620 = vmatmul.mubr.f32.gmra.mrb[0].mxu0 %v2550
  %v2621 = vpop.f32.mrb[0].mxu0
  %v2622 = vadd.f32 0.0, %v2621
  %v2623 = vpop.f32.mrb[0].mxu0
  %2624 = vdwg.mxu0
  %v2625 = vmul.f32 %v2622, 0.35355338
  %v2626 = vadd.f32 %v2625, %v1867
  %v2627 = vsel %vm179, %v2626, -inf
  %2628 = vmax.xlane.f32.xlu0 %v2627
  %v2629 = vpop.xlane.xlu0 %2628
  %v2630 = vsub.f32 %v2626, %v2629
  %v2631 = vmul.f32 %v2630, 1.442695
  %v2632 = vpow.pop %v2631
  %v2633 = vsel %vm179, %v2632, 0.0
  %2634 = vadd.xlane.f32.xlu0 %v2633
  %v2635 = vpop.xlane.xlu0 %2634
  %v2636 = vrcp.pop %v2635
  %v2637 = vmul.f32 %v2632, %v2636
  %2638 = vrot.lane.b32.xlu0 %v1863, 96
  %v2639 = vpop.permute.xlu0 %2638
  %v2642 = vsel %vm179, %v2637, 0
  %2644 = vmatprep.subr.mxu0 0.0
  %2645 = vmatpush1.msra.mxu0 %v2639
  %2646 = vmatprep.subr.mxu0 0.0
  %2647 = vmatpush1.msra.mxu0 0.0
  %2648 = vmatprep.subr.mxu0 0.0
  %2649 = vmatpush1.msra.mxu0 0.0
  %2650 = vmatprep.subr.mxu0 0.0
  %2651 = vmatpush1.msra.mxu0 0.0
  %2652 = vmatprep.subr.mxu0 0.0
  %2653 = vmatpush1.msra.mxu0 0.0
  %2654 = vmatprep.subr.mxu0 0.0
  %2655 = vmatpush1.msra.mxu0 0.0
  %2656 = vmatprep.subr.mxu0 0.0
  %2657 = vmatpush1.msra.mxu0 0.0
  %2658 = vmatprep.subr.mxu0 0.0
  %2659 = vmatpush1.msra.mxu0 0.0
  %2660 = vmatprep.subr.mxu0 0.0
  %2661 = vmatpush1.msra.mxu0 0.0
  %2662 = vmatprep.subr.mxu0 0.0
  %2663 = vmatpush1.msra.mxu0 0.0
  %2664 = vmatprep.subr.mxu0 0.0
  %2665 = vmatpush1.msra.mxu0 0.0
  %2666 = vmatprep.subr.mxu0 0.0
  %2667 = vmatpush1.msra.mxu0 0.0
  %2668 = vmatprep.subr.mxu0 0.0
  %2669 = vmatpush1.msra.mxu0 0.0
  %2670 = vmatprep.subr.mxu0 0.0
  %2671 = vmatpush1.msra.mxu0 0.0
  %2672 = vmatprep.subr.mxu0 0.0
  %2673 = vmatpush1.msra.mxu0 0.0
  %2674 = vmatprep.subr.mxu0 0.0
  %2675 = vmatpush1.msra.mxu0 0.0
  %2676 = vmatprep.subr.mxu0 0.0
  %2677 = vmatpush1.msra.mxu0 0.0
  %2678 = vmatprep.subr.mxu0 0.0
  %2679 = vmatpush1.msra.mxu0 0.0
  %2680 = vmatprep.subr.mxu0 0.0
  %2681 = vmatpush1.msra.mxu0 0.0
  %2682 = vmatprep.subr.mxu0 0.0
  %2683 = vmatpush1.msra.mxu0 0.0
  %2684 = vmatprep.subr.mxu0 0.0
  %2685 = vmatpush1.msra.mxu0 0.0
  %2686 = vmatprep.subr.mxu0 0.0
  %2687 = vmatpush1.msra.mxu0 0.0
  %2688 = vmatprep.subr.mxu0 0.0
  %2689 = vmatpush1.msra.mxu0 0.0
  %2690 = vmatprep.subr.mxu0 0.0
  %2691 = vmatpush1.msra.mxu0 0.0
  %2692 = vmatprep.subr.mxu0 0.0
  %2693 = vmatpush1.msra.mxu0 0.0
  %2694 = vmatprep.subr.mxu0 0.0
  %2695 = vmatpush1.msra.mxu0 0.0
  %2696 = vmatprep.subr.mxu0 0.0
  %2697 = vmatpush1.msra.mxu0 0.0
  %2698 = vmatprep.subr.mxu0 0.0
  %2699 = vmatpush1.msra.mxu0 0.0
  %2700 = vmatprep.subr.mxu0 0.0
  %2701 = vmatpush1.msra.mxu0 0.0
  %2702 = vmatprep.subr.mxu0 0.0
  %2703 = vmatpush1.msra.mxu0 0.0
  %2704 = vmatprep.subr.mxu0 0.0
  %2705 = vmatpush1.msra.mxu0 0.0
  %2706 = vmatprep.subr.mxu0 0.0
  %2707 = vmatpush1.msra.mxu0 0.0
  %2708 = vmatprep.mubr.f32.mxu0 0.0
  %2709 = vmatmul.mubr.f32.gmra.mrb[0].mxu0 %v2642
  %v2710 = vpop.f32.mrb[0].mxu0
  %v2711 = vadd.f32 0.0, %v2710
  %v2712 = vpop.f32.mrb[0].mxu0
  %2713 = vdwg.mxu0
  %2714 = vrot.lane.b32.xlu0 %v1771, 120
  %v2715 = vpop.permute.xlu0 %2714
  %2716 = vrot.lane.b32.xlu0 %v1863, 120
  %v2717 = vpop.permute.xlu0 %2716
  %v2718 = vsel %vm179, %v2715, 0
  %v2720 = vsel %vm179, %v2717, 0
  %2722 = vmatprep.subr.mxu0 0.0
  %2723 = vmatpush1.xpose.msra.mxu0 %v2720
  %2724 = vmatprep.subr.mxu0 0.0
  %2725 = vmatpush1.xpose.msra.mxu0 0.0
  %2726 = vmatprep.subr.mxu0 0.0
  %2727 = vmatpush1.xpose.msra.mxu0 0.0
  %2728 = vmatprep.subr.mxu0 0.0
  %2729 = vmatpush1.xpose.msra.mxu0 0.0
  %2730 = vmatprep.subr.mxu0 0.0
  %2731 = vmatpush1.xpose.msra.mxu0 0.0
  %2732 = vmatprep.subr.mxu0 0.0
  %2733 = vmatpush1.xpose.msra.mxu0 0.0
  %2734 = vmatprep.subr.mxu0 0.0
  %2735 = vmatpush1.xpose.msra.mxu0 0.0
  %2736 = vmatprep.subr.mxu0 0.0
  %2737 = vmatpush1.xpose.msra.mxu0 0.0
  %2738 = vmatprep.subr.mxu0 0.0
  %2739 = vmatpush1.xpose.msra.mxu0 0.0
  %2740 = vmatprep.subr.mxu0 0.0
  %2741 = vmatpush1.xpose.msra.mxu0 0.0
  %2742 = vmatprep.subr.mxu0 0.0
  %2743 = vmatpush1.xpose.msra.mxu0 0.0
  %2744 = vmatprep.subr.mxu0 0.0
  %2745 = vmatpush1.xpose.msra.mxu0 0.0
  %2746 = vmatprep.subr.mxu0 0.0
  %2747 = vmatpush1.xpose.msra.mxu0 0.0
  %2748 = vmatprep.subr.mxu0 0.0
  %2749 = vmatpush1.xpose.msra.mxu0 0.0
  %2750 = vmatprep.subr.mxu0 0.0
  %2751 = vmatpush1.xpose.msra.mxu0 0.0
  %2752 = vmatprep.subr.mxu0 0.0
  %2753 = vmatpush1.xpose.msra.mxu0 0.0
  %2754 = vmatprep.subr.mxu0 0.0
  %2755 = vmatpush1.xpose.msra.mxu0 0.0
  %2756 = vmatprep.subr.mxu0 0.0
  %2757 = vmatpush1.xpose.msra.mxu0 0.0
  %2758 = vmatprep.subr.mxu0 0.0
  %2759 = vmatpush1.xpose.msra.mxu0 0.0
  %2760 = vmatprep.subr.mxu0 0.0
  %2761 = vmatpush1.xpose.msra.mxu0 0.0
  %2762 = vmatprep.subr.mxu0 0.0
  %2763 = vmatpush1.xpose.msra.mxu0 0.0
  %2764 = vmatprep.subr.mxu0 0.0
  %2765 = vmatpush1.xpose.msra.mxu0 0.0
  %2766 = vmatprep.subr.mxu0 0.0
  %2767 = vmatpush1.xpose.msra.mxu0 0.0
  %2768 = vmatprep.subr.mxu0 0.0
  %2769 = vmatpush1.xpose.msra.mxu0 0.0
  %2770 = vmatprep.subr.mxu0 0.0
  %2771 = vmatpush1.xpose.msra.mxu0 0.0
  %2772 = vmatprep.subr.mxu0 0.0
  %2773 = vmatpush1.xpose.msra.mxu0 0.0
  %2774 = vmatprep.subr.mxu0 0.0
  %2775 = vmatpush1.xpose.msra.mxu0 0.0
  %2776 = vmatprep.subr.mxu0 0.0
  %2777 = vmatpush1.xpose.msra.mxu0 0.0
  %2778 = vmatprep.subr.mxu0 0.0
  %2779 = vmatpush1.xpose.msra.mxu0 0.0
  %2780 = vmatprep.subr.mxu0 0.0
  %2781 = vmatpush1.xpose.msra.mxu0 0.0
  %2782 = vmatprep.subr.mxu0 0.0
  %2783 = vmatpush1.xpose.msra.mxu0 0.0
  %2784 = vmatprep.subr.mxu0 0.0
  %2785 = vmatpush1.xpose.msra.mxu0 0.0
  %2786 = vmatprep.mubr.f32.mxu0 0.0
  %2787 = vmatmul.mubr.f32.gmra.mrb[0].mxu0 %v2718
  %v2788 = vpop.f32.mrb[0].mxu0
  %v2789 = vadd.f32 0.0, %v2788
  %v2790 = vpop.f32.mrb[0].mxu0
  %2791 = vdwg.mxu0
  %v2792 = vmul.f32 %v2789, 0.35355338
  %v2793 = vadd.f32 %v2792, %v1867
  %v2794 = vsel %vm179, %v2793, -inf
  %2795 = vmax.xlane.f32.xlu0 %v2794
  %v2796 = vpop.xlane.xlu0 %2795
  %v2797 = vsub.f32 %v2793, %v2796
  %v2798 = vmul.f32 %v2797, 1.442695
  %v2799 = vpow.pop %v2798
  %v2800 = vsel %vm179, %v2799, 0.0
  %2801 = vadd.xlane.f32.xlu0 %v2800
  %v2802 = vpop.xlane.xlu0 %2801
  %v2803 = vrcp.pop %v2802
  %v2804 = vmul.f32 %v2799, %v2803
  %2805 = vrot.lane.b32.xlu0 %v1863, 88
  %v2806 = vpop.permute.xlu0 %2805
  %v2809 = vsel %vm179, %v2804, 0
  %2811 = vmatprep.subr.mxu0 0.0
  %2812 = vmatpush1.msra.mxu0 %v2806
  %2813 = vmatprep.subr.mxu0 0.0
  %2814 = vmatpush1.msra.mxu0 0.0
  %2815 = vmatprep.subr.mxu0 0.0
  %2816 = vmatpush1.msra.mxu0 0.0
  %2817 = vmatprep.subr.mxu0 0.0
  %2818 = vmatpush1.msra.mxu0 0.0
  %2819 = vmatprep.subr.mxu0 0.0
  %2820 = vmatpush1.msra.mxu0 0.0
  %2821 = vmatprep.subr.mxu0 0.0
  %2822 = vmatpush1.msra.mxu0 0.0
  %2823 = vmatprep.subr.mxu0 0.0
  %2824 = vmatpush1.msra.mxu0 0.0
  %2825 = vmatprep.subr.mxu0 0.0
  %2826 = vmatpush1.msra.mxu0 0.0
  %2827 = vmatprep.subr.mxu0 0.0
  %2828 = vmatpush1.msra.mxu0 0.0
  %2829 = vmatprep.subr.mxu0 0.0
  %2830 = vmatpush1.msra.mxu0 0.0
  %2831 = vmatprep.subr.mxu0 0.0
  %2832 = vmatpush1.msra.mxu0 0.0
  %2833 = vmatprep.subr.mxu0 0.0
  %2834 = vmatpush1.msra.mxu0 0.0
  %2835 = vmatprep.subr.mxu0 0.0
  %2836 = vmatpush1.msra.mxu0 0.0
  %2837 = vmatprep.subr.mxu0 0.0
  %2838 = vmatpush1.msra.mxu0 0.0
  %2839 = vmatprep.subr.mxu0 0.0
  %2840 = vmatpush1.msra.mxu0 0.0
  %2841 = vmatprep.subr.mxu0 0.0
  %2842 = vmatpush1.msra.mxu0 0.0
  %2843 = vmatprep.subr.mxu0 0.0
  %2844 = vmatpush1.msra.mxu0 0.0
  %2845 = vmatprep.subr.mxu0 0.0
  %2846 = vmatpush1.msra.mxu0 0.0
  %2847 = vmatprep.subr.mxu0 0.0
  %2848 = vmatpush1.msra.mxu0 0.0
  %2849 = vmatprep.subr.mxu0 0.0
  %2850 = vmatpush1.msra.mxu0 0.0
  %2851 = vmatprep.subr.mxu0 0.0
  %2852 = vmatpush1.msra.mxu0 0.0
  %2853 = vmatprep.subr.mxu0 0.0
  %2854 = vmatpush1.msra.mxu0 0.0
  %2855 = vmatprep.subr.mxu0 0.0
  %2856 = vmatpush1.msra.mxu0 0.0
  %2857 = vmatprep.subr.mxu0 0.0
  %2858 = vmatpush1.msra.mxu0 0.0
  %2859 = vmatprep.subr.mxu0 0.0
  %2860 = vmatpush1.msra.mxu0 0.0
  %2861 = vmatprep.subr.mxu0 0.0
  %2862 = vmatpush1.msra.mxu0 0.0
  %2863 = vmatprep.subr.mxu0 0.0
  %2864 = vmatpush1.msra.mxu0 0.0
  %2865 = vmatprep.subr.mxu0 0.0
  %2866 = vmatpush1.msra.mxu0 0.0
  %2867 = vmatprep.subr.mxu0 0.0
  %2868 = vmatpush1.msra.mxu0 0.0
  %2869 = vmatprep.subr.mxu0 0.0
  %2870 = vmatpush1.msra.mxu0 0.0
  %2871 = vmatprep.subr.mxu0 0.0
  %2872 = vmatpush1.msra.mxu0 0.0
  %2873 = vmatprep.subr.mxu0 0.0
  %2874 = vmatpush1.msra.mxu0 0.0
  %2875 = vmatprep.mubr.f32.mxu0 0.0
  %2876 = vmatmul.mubr.f32.gmra.mrb[0].mxu0 %v2809
  %v2877 = vpop.f32.mrb[0].mxu0
  %v2878 = vadd.f32 0.0, %v2877
  %v2879 = vpop.f32.mrb[0].mxu0
  %2880 = vdwg.mxu0
  %2881 = vrot.lane.b32.xlu0 %v1771, 112
  %v2882 = vpop.permute.xlu0 %2881
  %2883 = vrot.lane.b32.xlu0 %v1863, 112
  %v2884 = vpop.permute.xlu0 %2883
  %v2885 = vsel %vm179, %v2882, 0
  %v2887 = vsel %vm179, %v2884, 0
  %2889 = vmatprep.subr.mxu0 0.0
  %2890 = vmatpush1.xpose.msra.mxu0 %v2887
  %2891 = vmatprep.subr.mxu0 0.0
  %2892 = vmatpush1.xpose.msra.mxu0 0.0
  %2893 = vmatprep.subr.mxu0 0.0
  %2894 = vmatpush1.xpose.msra.mxu0 0.0
  %2895 = vmatprep.subr.mxu0 0.0
  %2896 = vmatpush1.xpose.msra.mxu0 0.0
  %2897 = vmatprep.subr.mxu0 0.0
  %2898 = vmatpush1.xpose.msra.mxu0 0.0
  %2899 = vmatprep.subr.mxu0 0.0
  %2900 = vmatpush1.xpose.msra.mxu0 0.0
  %2901 = vmatprep.subr.mxu0 0.0
  %2902 = vmatpush1.xpose.msra.mxu0 0.0
  %2903 = vmatprep.subr.mxu0 0.0
  %2904 = vmatpush1.xpose.msra.mxu0 0.0
  %2905 = vmatprep.subr.mxu0 0.0
  %2906 = vmatpush1.xpose.msra.mxu0 0.0
  %2907 = vmatprep.subr.mxu0 0.0
  %2908 = vmatpush1.xpose.msra.mxu0 0.0
  %2909 = vmatprep.subr.mxu0 0.0
  %2910 = vmatpush1.xpose.msra.mxu0 0.0
  %2911 = vmatprep.subr.mxu0 0.0
  %2912 = vmatpush1.xpose.msra.mxu0 0.0
  %2913 = vmatprep.subr.mxu0 0.0
  %2914 = vmatpush1.xpose.msra.mxu0 0.0
  %2915 = vmatprep.subr.mxu0 0.0
  %2916 = vmatpush1.xpose.msra.mxu0 0.0
  %2917 = vmatprep.subr.mxu0 0.0
  %2918 = vmatpush1.xpose.msra.mxu0 0.0
  %2919 = vmatprep.subr.mxu0 0.0
  %2920 = vmatpush1.xpose.msra.mxu0 0.0
  %2921 = vmatprep.subr.mxu0 0.0
  %2922 = vmatpush1.xpose.msra.mxu0 0.0
  %2923 = vmatprep.subr.mxu0 0.0
  %2924 = vmatpush1.xpose.msra.mxu0 0.0
  %2925 = vmatprep.subr.mxu0 0.0
  %2926 = vmatpush1.xpose.msra.mxu0 0.0
  %2927 = vmatprep.subr.mxu0 0.0
  %2928 = vmatpush1.xpose.msra.mxu0 0.0
  %2929 = vmatprep.subr.mxu0 0.0
  %2930 = vmatpush1.xpose.msra.mxu0 0.0
  %2931 = vmatprep.subr.mxu0 0.0
  %2932 = vmatpush1.xpose.msra.mxu0 0.0
  %2933 = vmatprep.subr.mxu0 0.0
  %2934 = vmatpush1.xpose.msra.mxu0 0.0
  %2935 = vmatprep.subr.mxu0 0.0
  %2936 = vmatpush1.xpose.msra.mxu0 0.0
  %2937 = vmatprep.subr.mxu0 0.0
  %2938 = vmatpush1.xpose.msra.mxu0 0.0
  %2939 = vmatprep.subr.mxu0 0.0
  %2940 = vmatpush1.xpose.msra.mxu0 0.0
  %2941 = vmatprep.subr.mxu0 0.0
  %2942 = vmatpush1.xpose.msra.mxu0 0.0
  %2943 = vmatprep.subr.mxu0 0.0
  %2944 = vmatpush1.xpose.msra.mxu0 0.0
  %2945 = vmatprep.subr.mxu0 0.0
  %2946 = vmatpush1.xpose.msra.mxu0 0.0
  %2947 = vmatprep.subr.mxu0 0.0
  %2948 = vmatpush1.xpose.msra.mxu0 0.0
  %2949 = vmatprep.subr.mxu0 0.0
  %2950 = vmatpush1.xpose.msra.mxu0 0.0
  %2951 = vmatprep.subr.mxu0 0.0
  %2952 = vmatpush1.xpose.msra.mxu0 0.0
  %2953 = vmatprep.mubr.f32.mxu0 0.0
  %2954 = vmatmul.mubr.f32.gmra.mrb[0].mxu0 %v2885
  %v2955 = vpop.f32.mrb[0].mxu0
  %v2956 = vadd.f32 0.0, %v2955
  %v2957 = vpop.f32.mrb[0].mxu0
  %2958 = vdwg.mxu0
  %v2959 = vmul.f32 %v2956, 0.35355338
  %v2960 = vadd.f32 %v2959, %v1867
  %v2961 = vsel %vm179, %v2960, -inf
  %2962 = vmax.xlane.f32.xlu0 %v2961
  %v2963 = vpop.xlane.xlu0 %2962
  %v2964 = vsub.f32 %v2960, %v2963
  %v2965 = vmul.f32 %v2964, 1.442695
  %v2966 = vpow.pop %v2965
  %v2967 = vsel %vm179, %v2966, 0.0
  %2968 = vadd.xlane.f32.xlu0 %v2967
  %v2969 = vpop.xlane.xlu0 %2968
  %v2970 = vrcp.pop %v2969
  %v2971 = vmul.f32 %v2966, %v2970
  %2972 = vrot.lane.b32.xlu0 %v1863, 80
  %v2973 = vpop.permute.xlu0 %2972
  %v2976 = vsel %vm179, %v2971, 0
  %2978 = vmatprep.subr.mxu0 0.0
  %2979 = vmatpush1.msra.mxu0 %v2973
  %2980 = vmatprep.subr.mxu0 0.0
  %2981 = vmatpush1.msra.mxu0 0.0
  %2982 = vmatprep.subr.mxu0 0.0
  %2983 = vmatpush1.msra.mxu0 0.0
  %2984 = vmatprep.subr.mxu0 0.0
  %2985 = vmatpush1.msra.mxu0 0.0
  %2986 = vmatprep.subr.mxu0 0.0
  %2987 = vmatpush1.msra.mxu0 0.0
  %2988 = vmatprep.subr.mxu0 0.0
  %2989 = vmatpush1.msra.mxu0 0.0
  %2990 = vmatprep.subr.mxu0 0.0
  %2991 = vmatpush1.msra.mxu0 0.0
  %2992 = vmatprep.subr.mxu0 0.0
  %2993 = vmatpush1.msra.mxu0 0.0
  %2994 = vmatprep.subr.mxu0 0.0
  %2995 = vmatpush1.msra.mxu0 0.0
  %2996 = vmatprep.subr.mxu0 0.0
  %2997 = vmatpush1.msra.mxu0 0.0
  %2998 = vmatprep.subr.mxu0 0.0
  %2999 = vmatpush1.msra.mxu0 0.0
  %3000 = vmatprep.subr.mxu0 0.0
  %3001 = vmatpush1.msra.mxu0 0.0
  %3002 = vmatprep.subr.mxu0 0.0
  %3003 = vmatpush1.msra.mxu0 0.0
  %3004 = vmatprep.subr.mxu0 0.0
  %3005 = vmatpush1.msra.mxu0 0.0
  %3006 = vmatprep.subr.mxu0 0.0
  %3007 = vmatpush1.msra.mxu0 0.0
  %3008 = vmatprep.subr.mxu0 0.0
  %3009 = vmatpush1.msra.mxu0 0.0
  %3010 = vmatprep.subr.mxu0 0.0
  %3011 = vmatpush1.msra.mxu0 0.0
  %3012 = vmatprep.subr.mxu0 0.0
  %3013 = vmatpush1.msra.mxu0 0.0
  %3014 = vmatprep.subr.mxu0 0.0
  %3015 = vmatpush1.msra.mxu0 0.0
  %3016 = vmatprep.subr.mxu0 0.0
  %3017 = vmatpush1.msra.mxu0 0.0
  %3018 = vmatprep.subr.mxu0 0.0
  %3019 = vmatpush1.msra.mxu0 0.0
  %3020 = vmatprep.subr.mxu0 0.0
  %3021 = vmatpush1.msra.mxu0 0.0
  %3022 = vmatprep.subr.mxu0 0.0
  %3023 = vmatpush1.msra.mxu0 0.0
  %3024 = vmatprep.subr.mxu0 0.0
  %3025 = vmatpush1.msra.mxu0 0.0
  %3026 = vmatprep.subr.mxu0 0.0
  %3027 = vmatpush1.msra.mxu0 0.0
  %3028 = vmatprep.subr.mxu0 0.0
  %3029 = vmatpush1.msra.mxu0 0.0
  %3030 = vmatprep.subr.mxu0 0.0
  %3031 = vmatpush1.msra.mxu0 0.0
  %3032 = vmatprep.subr.mxu0 0.0
  %3033 = vmatpush1.msra.mxu0 0.0
  %3034 = vmatprep.subr.mxu0 0.0
  %3035 = vmatpush1.msra.mxu0 0.0
  %3036 = vmatprep.subr.mxu0 0.0
  %3037 = vmatpush1.msra.mxu0 0.0
  %3038 = vmatprep.subr.mxu0 0.0
  %3039 = vmatpush1.msra.mxu0 0.0
  %3040 = vmatprep.subr.mxu0 0.0
  %3041 = vmatpush1.msra.mxu0 0.0
  %3042 = vmatprep.mubr.f32.mxu0 0.0
  %3043 = vmatmul.mubr.f32.gmra.mrb[0].mxu0 %v2976
  %v3044 = vpop.f32.mrb[0].mxu0
  %v3045 = vadd.f32 0.0, %v3044
  %v3046 = vpop.f32.mrb[0].mxu0
  %3047 = vdwg.mxu0
  %3048 = vrot.lane.b32.xlu0 %v1771, 104
  %v3049 = vpop.permute.xlu0 %3048
  %3050 = vrot.lane.b32.xlu0 %v1863, 104
  %v3051 = vpop.permute.xlu0 %3050
  %v3052 = vsel %vm179, %v3049, 0
  %v3054 = vsel %vm179, %v3051, 0
  %3056 = vmatprep.subr.mxu0 0.0
  %3057 = vmatpush1.xpose.msra.mxu0 %v3054
  %3058 = vmatprep.subr.mxu0 0.0
  %3059 = vmatpush1.xpose.msra.mxu0 0.0
  %3060 = vmatprep.subr.mxu0 0.0
  %3061 = vmatpush1.xpose.msra.mxu0 0.0
  %3062 = vmatprep.subr.mxu0 0.0
  %3063 = vmatpush1.xpose.msra.mxu0 0.0
  %3064 = vmatprep.subr.mxu0 0.0
  %3065 = vmatpush1.xpose.msra.mxu0 0.0
  %3066 = vmatprep.subr.mxu0 0.0
  %3067 = vmatpush1.xpose.msra.mxu0 0.0
  %3068 = vmatprep.subr.mxu0 0.0
  %3069 = vmatpush1.xpose.msra.mxu0 0.0
  %3070 = vmatprep.subr.mxu0 0.0
  %3071 = vmatpush1.xpose.msra.mxu0 0.0
  %3072 = vmatprep.subr.mxu0 0.0
  %3073 = vmatpush1.xpose.msra.mxu0 0.0
  %3074 = vmatprep.subr.mxu0 0.0
  %3075 = vmatpush1.xpose.msra.mxu0 0.0
  %3076 = vmatprep.subr.mxu0 0.0
  %3077 = vmatpush1.xpose.msra.mxu0 0.0
  %3078 = vmatprep.subr.mxu0 0.0
  %3079 = vmatpush1.xpose.msra.mxu0 0.0
  %3080 = vmatprep.subr.mxu0 0.0
  %3081 = vmatpush1.xpose.msra.mxu0 0.0
  %3082 = vmatprep.subr.mxu0 0.0
  %3083 = vmatpush1.xpose.msra.mxu0 0.0
  %3084 = vmatprep.subr.mxu0 0.0
  %3085 = vmatpush1.xpose.msra.mxu0 0.0
  %3086 = vmatprep.subr.mxu0 0.0
  %3087 = vmatpush1.xpose.msra.mxu0 0.0
  %3088 = vmatprep.subr.mxu0 0.0
  %3089 = vmatpush1.xpose.msra.mxu0 0.0
  %3090 = vmatprep.subr.mxu0 0.0
  %3091 = vmatpush1.xpose.msra.mxu0 0.0
  %3092 = vmatprep.subr.mxu0 0.0
  %3093 = vmatpush1.xpose.msra.mxu0 0.0
  %3094 = vmatprep.subr.mxu0 0.0
  %3095 = vmatpush1.xpose.msra.mxu0 0.0
  %3096 = vmatprep.subr.mxu0 0.0
  %3097 = vmatpush1.xpose.msra.mxu0 0.0
  %3098 = vmatprep.subr.mxu0 0.0
  %3099 = vmatpush1.xpose.msra.mxu0 0.0
  %3100 = vmatprep.subr.mxu0 0.0
  %3101 = vmatpush1.xpose.msra.mxu0 0.0
  %3102 = vmatprep.subr.mxu0 0.0
  %3103 = vmatpush1.xpose.msra.mxu0 0.0
  %3104 = vmatprep.subr.mxu0 0.0
  %3105 = vmatpush1.xpose.msra.mxu0 0.0
  %3106 = vmatprep.subr.mxu0 0.0
  %3107 = vmatpush1.xpose.msra.mxu0 0.0
  %3108 = vmatprep.subr.mxu0 0.0
  %3109 = vmatpush1.xpose.msra.mxu0 0.0
  %3110 = vmatprep.subr.mxu0 0.0
  %3111 = vmatpush1.xpose.msra.mxu0 0.0
  %3112 = vmatprep.subr.mxu0 0.0
  %3113 = vmatpush1.xpose.msra.mxu0 0.0
  %3114 = vmatprep.subr.mxu0 0.0
  %3115 = vmatpush1.xpose.msra.mxu0 0.0
  %3116 = vmatprep.subr.mxu0 0.0
  %3117 = vmatpush1.xpose.msra.mxu0 0.0
  %3118 = vmatprep.subr.mxu0 0.0
  %3119 = vmatpush1.xpose.msra.mxu0 0.0
  %3120 = vmatprep.mubr.f32.mxu0 0.0
  %3121 = vmatmul.mubr.f32.gmra.mrb[0].mxu0 %v3052
  %v3122 = vpop.f32.mrb[0].mxu0
  %v3123 = vadd.f32 0.0, %v3122
  %v3124 = vpop.f32.mrb[0].mxu0
  %3125 = vdwg.mxu0
  %v3126 = vmul.f32 %v3123, 0.35355338
  %v3127 = vadd.f32 %v3126, %v1867
  %v3128 = vsel %vm179, %v3127, -inf
  %3129 = vmax.xlane.f32.xlu0 %v3128
  %v3130 = vpop.xlane.xlu0 %3129
  %v3131 = vsub.f32 %v3127, %v3130
  %v3132 = vmul.f32 %v3131, 1.442695
  %v3133 = vpow.pop %v3132
  %v3134 = vsel %vm179, %v3133, 0.0
  %3135 = vadd.xlane.f32.xlu0 %v3134
  %v3136 = vpop.xlane.xlu0 %3135
  %v3137 = vrcp.pop %v3136
  %v3138 = vmul.f32 %v3133, %v3137
  %3139 = vrot.lane.b32.xlu0 %v1863, 72
  %v3140 = vpop.permute.xlu0 %3139
  %v3143 = vsel %vm179, %v3138, 0
  %3145 = vmatprep.subr.mxu0 0.0
  %3146 = vmatpush1.msra.mxu0 %v3140
  %3147 = vmatprep.subr.mxu0 0.0
  %3148 = vmatpush1.msra.mxu0 0.0
  %3149 = vmatprep.subr.mxu0 0.0
  %3150 = vmatpush1.msra.mxu0 0.0
  %3151 = vmatprep.subr.mxu0 0.0
  %3152 = vmatpush1.msra.mxu0 0.0
  %3153 = vmatprep.subr.mxu0 0.0
  %3154 = vmatpush1.msra.mxu0 0.0
  %3155 = vmatprep.subr.mxu0 0.0
  %3156 = vmatpush1.msra.mxu0 0.0
  %3157 = vmatprep.subr.mxu0 0.0
  %3158 = vmatpush1.msra.mxu0 0.0
  %3159 = vmatprep.subr.mxu0 0.0
  %3160 = vmatpush1.msra.mxu0 0.0
  %3161 = vmatprep.subr.mxu0 0.0
  %3162 = vmatpush1.msra.mxu0 0.0
  %3163 = vmatprep.subr.mxu0 0.0
  %3164 = vmatpush1.msra.mxu0 0.0
  %3165 = vmatprep.subr.mxu0 0.0
  %3166 = vmatpush1.msra.mxu0 0.0
  %3167 = vmatprep.subr.mxu0 0.0
  %3168 = vmatpush1.msra.mxu0 0.0
  %3169 = vmatprep.subr.mxu0 0.0
  %3170 = vmatpush1.msra.mxu0 0.0
  %3171 = vmatprep.subr.mxu0 0.0
  %3172 = vmatpush1.msra.mxu0 0.0
  %3173 = vmatprep.subr.mxu0 0.0
  %3174 = vmatpush1.msra.mxu0 0.0
  %3175 = vmatprep.subr.mxu0 0.0
  %3176 = vmatpush1.msra.mxu0 0.0
  %3177 = vmatprep.subr.mxu0 0.0
  %3178 = vmatpush1.msra.mxu0 0.0
  %3179 = vmatprep.subr.mxu0 0.0
  %3180 = vmatpush1.msra.mxu0 0.0
  %3181 = vmatprep.subr.mxu0 0.0
  %3182 = vmatpush1.msra.mxu0 0.0
  %3183 = vmatprep.subr.mxu0 0.0
  %3184 = vmatpush1.msra.mxu0 0.0
  %3185 = vmatprep.subr.mxu0 0.0
  %3186 = vmatpush1.msra.mxu0 0.0
  %3187 = vmatprep.subr.mxu0 0.0
  %3188 = vmatpush1.msra.mxu0 0.0
  %3189 = vmatprep.subr.mxu0 0.0
  %3190 = vmatpush1.msra.mxu0 0.0
  %3191 = vmatprep.subr.mxu0 0.0
  %3192 = vmatpush1.msra.mxu0 0.0
  %3193 = vmatprep.subr.mxu0 0.0
  %3194 = vmatpush1.msra.mxu0 0.0
  %3195 = vmatprep.subr.mxu0 0.0
  %3196 = vmatpush1.msra.mxu0 0.0
  %3197 = vmatprep.subr.mxu0 0.0
  %3198 = vmatpush1.msra.mxu0 0.0
  %3199 = vmatprep.subr.mxu0 0.0
  %3200 = vmatpush1.msra.mxu0 0.0
  %3201 = vmatprep.subr.mxu0 0.0
  %3202 = vmatpush1.msra.mxu0 0.0
  %3203 = vmatprep.subr.mxu0 0.0
  %3204 = vmatpush1.msra.mxu0 0.0
  %3205 = vmatprep.subr.mxu0 0.0
  %3206 = vmatpush1.msra.mxu0 0.0
  %3207 = vmatprep.subr.mxu0 0.0
  %3208 = vmatpush1.msra.mxu0 0.0
  %3209 = vmatprep.mubr.f32.mxu0 0.0
  %3210 = vmatmul.mubr.f32.gmra.mrb[0].mxu0 %v3143
  %v3211 = vpop.f32.mrb[0].mxu0
  %v3212 = vadd.f32 0.0, %v3211
  %v3213 = vpop.f32.mrb[0].mxu0
  %3214 = vdwg.mxu0
  %3216 = vrot.lane.b32.xlu0 %v2878, 8
  %v3217 = vpop.permute.xlu0 %3216
  %3220 = vrot.lane.b32.xlu0 %v3045, 16
  %v3221 = vpop.permute.xlu0 %3220
  %3224 = vrot.lane.b32.xlu0 %v3212, 24
  %v3225 = vpop.permute.xlu0 %3224
  %v3227 = vsel %vm179, %v2711, %v3217
  %v3228 = vsel %vm857, %v3227, %v3221
  %v3229 = vsel %vm859, %v3228, %v3225
  %v3230 = vld [vmem:[%s14] sm:$0xff]
  %v3231 = vld [vmem:[%s14 + $0x8] sm:$0xff]
  %v3232 = vld [vmem:[%s14 + $0x10] sm:$0xff]
  %v3233 = vld [vmem:[%s14 + $0x18] sm:$0xff]
  %v3234 = vld [vmem:[%s15] sm:$0x1]
  %v3236 = vlaneseq
  %v3237 = vshrl.u32 %v3236, 7
  %v3238 = vsub.s32 0, %v3237
  %v3239 = vrot.slane %v3234, %v3238
  %v3242 = vsel %vm92, %v2548, 0
  %v3245 = vsel %vm92, %v3229, 0
  %3247 = vmatprep.subr.mxu0 0.0
  %3248 = vmatpush1.msra.mxu0 %v3230
  %3249 = vmatprep.subr.mxu0 0.0
  %3250 = vmatpush1.msra.mxu0 %v3231
  %3251 = vmatprep.subr.mxu0 0.0
  %3252 = vmatpush1.msra.mxu0 %v3232
  %3253 = vmatprep.subr.mxu0 0.0
  %3254 = vmatpush1.msra.mxu0 %v3233
  %3255 = vmatprep.subr.mxu0 0.0
  %3256 = vmatpush1.msra.mxu0 0.0
  %3257 = vmatprep.subr.mxu0 0.0
  %3258 = vmatpush1.msra.mxu0 0.0
  %3259 = vmatprep.subr.mxu0 0.0
  %3260 = vmatpush1.msra.mxu0 0.0
  %3261 = vmatprep.subr.mxu0 0.0
  %3262 = vmatpush1.msra.mxu0 0.0
  %3263 = vmatprep.subr.mxu0 0.0
  %3264 = vmatpush1.msra.mxu0 0.0
  %3265 = vmatprep.subr.mxu0 0.0
  %3266 = vmatpush1.msra.mxu0 0.0
  %3267 = vmatprep.subr.mxu0 0.0
  %3268 = vmatpush1.msra.mxu0 0.0
  %3269 = vmatprep.subr.mxu0 0.0
  %3270 = vmatpush1.msra.mxu0 0.0
  %3271 = vmatprep.subr.mxu0 0.0
  %3272 = vmatpush1.msra.mxu0 0.0
  %3273 = vmatprep.subr.mxu0 0.0
  %3274 = vmatpush1.msra.mxu0 0.0
  %3275 = vmatprep.subr.mxu0 0.0
  %3276 = vmatpush1.msra.mxu0 0.0
  %3277 = vmatprep.subr.mxu0 0.0
  %3278 = vmatpush1.msra.mxu0 0.0
  %3279 = vmatprep.subr.mxu0 0.0
  %3280 = vmatpush1.msra.mxu0 0.0
  %3281 = vmatprep.subr.mxu0 0.0
  %3282 = vmatpush1.msra.mxu0 0.0
  %3283 = vmatprep.subr.mxu0 0.0
  %3284 = vmatpush1.msra.mxu0 0.0
  %3285 = vmatprep.subr.mxu0 0.0
  %3286 = vmatpush1.msra.mxu0 0.0
  %3287 = vmatprep.subr.mxu0 0.0
  %3288 = vmatpush1.msra.mxu0 0.0
  %3289 = vmatprep.subr.mxu0 0.0
  %3290 = vmatpush1.msra.mxu0 0.0
  %3291 = vmatprep.subr.mxu0 0.0
  %3292 = vmatpush1.msra.mxu0 0.0
  %3293 = vmatprep.subr.mxu0 0.0
  %3294 = vmatpush1.msra.mxu0 0.0
  %3295 = vmatprep.subr.mxu0 0.0
  %3296 = vmatpush1.msra.mxu0 0.0
  %3297 = vmatprep.subr.mxu0 0.0
  %3298 = vmatpush1.msra.mxu0 0.0
  %3299 = vmatprep.subr.mxu0 0.0
  %3300 = vmatpush1.msra.mxu0 0.0
  %3301 = vmatprep.subr.mxu0 0.0
  %3302 = vmatpush1.msra.mxu0 0.0
  %3303 = vmatprep.subr.mxu0 0.0
  %3304 = vmatpush1.msra.mxu0 0.0
  %3305 = vmatprep.subr.mxu0 0.0
  %3306 = vmatpush1.msra.mxu0 0.0
  %3307 = vmatprep.subr.mxu0 0.0
  %3308 = vmatpush1.msra.mxu0 0.0
  %3309 = vmatprep.subr.mxu0 0.0
  %3310 = vmatpush1.msra.mxu0 0.0
  %3311 = vmatprep.mubr.f32.mxu0 0.0
  %3312 = vmatmul.mubr.f32.gmra.mrb[0].mxu0 %v3242
  %v3313 = vpop.f32.mrb[0].mxu0
  %v3314 = vadd.f32 %v3239, %v3313
  %v3315 = vpop.f32.mrb[0].mxu0
  %3316 = vmatprep.mubr.f32.mxu0 0.0
  %3317 = vmatmul.mubr.f32.gmra.mrb[0].mxu0 %v3245
  %v3318 = vpop.f32.mrb[0].mxu0
  %v3319 = vadd.f32 %v3239, %v3318
  %v3320 = vpop.f32.mrb[0].mxu0
  %3321 = vdwg.mxu0
  %v3322 = vadd.f32 %v1680, %v3314
  %v3323 = vadd.f32 %v1681, %v3319
  %v3324 = vld [vmem:[%s16] sm:$0x1]
  %v3325 = vld [vmem:[%s17] sm:$0x1]
  %v3326 = vsel %vm92, %v3322, 0.0
  %3327 = vadd.xlane.f32.xlu0 %v3326
  %v3328 = vpop.xlane.xlu0 %3327
  %v3329 = vsel %vm92, %v3323, 0.0
  %3330 = vadd.xlane.f32.xlu0 %v3329
  %v3331 = vpop.xlane.xlu0 %3330
  %v3332 = vmul.f32 %v3328, %v1645
  %v3333 = vmul.f32 %v3331, %v1645
  %v3334 = vsub.f32 %v3322, %v3332
  %v3335 = vsub.f32 %v3323, %v3333
  %v3336 = vmul.f32 %v3334, %v3334
  %v3337 = vmul.f32 %v3335, %v3335
  %v3338 = vsel %vm92, %v3336, 0.0
  %3339 = vadd.xlane.f32.xlu0 %v3338
  %v3340 = vpop.xlane.xlu0 %3339
  %v3341 = vsel %vm92, %v3337, 0.0
  %3342 = vadd.xlane.f32.xlu0 %v3341
  %v3343 = vpop.xlane.xlu0 %3342
  %v3344 = vmul.f32 %v3340, %v1645
  %v3345 = vmul.f32 %v3343, %v1645
  %v3346 = vadd.f32 %v3344, 1e-05
  %v3347 = vadd.f32 %v3345, 1e-05
  %v3348 = vrsqrt.pop %v3346
  %v3349 = vrsqrt.pop %v3347
  %v3350 = vmul.f32 %v3334, %v3348
  %v3351 = vmul.f32 %v3335, %v3349
  %v3353 = vlaneseq
  %v3354 = vshrl.u32 %v3353, 7
  %v3355 = vsub.s32 0, %v3354
  %v3356 = vrot.slane %v3324, %v3355
  %v3358 = vmul.f32 %v3350, %v3356
  %v3359 = vmul.f32 %v3351, %v3356
  %v3361 = vlaneseq
  %v3362 = vshrl.u32 %v3361, 7
  %v3363 = vsub.s32 0, %v3362
  %v3364 = vrot.slane %v3325, %v3363
  %v3366 = vadd.f32 %v3358, %v3364
  %v3367 = vadd.f32 %v3359, %v3364
  %v3368 = vld [vmem:[%s18] sm:$0xff]
  %v3369 = vld [vmem:[%s18 + $0x8] sm:$0xff]
  %v3370 = vld [vmem:[%s18 + $0x10] sm:$0xff]
  %v3371 = vld [vmem:[%s18 + $0x18] sm:$0xff]
  %v3372 = vld [vmem:[%s19] sm:$0x1]
  %v3374 = vlaneseq
  %v3375 = vshrl.u32 %v3374, 7
  %v3376 = vsub.s32 0, %v3375
  %v3377 = vrot.slane %v3372, %v3376
  %v3380 = vsel %vm92, %v3366, 0
  %v3383 = vsel %vm92, %v3367, 0
  %3385 = vmatprep.subr.mxu0 0.0
  %3386 = vmatpush1.msra.mxu0 %v3368
  %3387 = vmatprep.subr.mxu0 0.0
  %3388 = vmatpush1.msra.mxu0 %v3369
  %3389 = vmatprep.subr.mxu0 0.0
  %3390 = vmatpush1.msra.mxu0 %v3370
  %3391 = vmatprep.subr.mxu0 0.0
  %3392 = vmatpush1.msra.mxu0 %v3371
  %3393 = vmatprep.subr.mxu0 0.0
  %3394 = vmatpush1.msra.mxu0 0.0
  %3395 = vmatprep.subr.mxu0 0.0
  %3396 = vmatpush1.msra.mxu0 0.0
  %3397 = vmatprep.subr.mxu0 0.0
  %3398 = vmatpush1.msra.mxu0 0.0
  %3399 = vmatprep.subr.mxu0 0.0
  %3400 = vmatpush1.msra.mxu0 0.0
  %3401 = vmatprep.subr.mxu0 0.0
  %3402 = vmatpush1.msra.mxu0 0.0
  %3403 = vmatprep.subr.mxu0 0.0
  %3404 = vmatpush1.msra.mxu0 0.0
  %3405 = vmatprep.subr.mxu0 0.0
  %3406 = vmatpush1.msra.mxu0 0.0
  %3407 = vmatprep.subr.mxu0 0.0
  %3408 = vmatpush1.msra.mxu0 0.0
  %3409 = vmatprep.subr.mxu0 0.0
  %3410 = vmatpush1.msra.mxu0 0.0
  %3411 = vmatprep.subr.mxu0 0.0
  %3412 = vmatpush1.msra.mxu0 0.0
  %3413 = vmatprep.subr.mxu0 0.0
  %3414 = vmatpush1.msra.mxu0 0.0
  %3415 = vmatprep.subr.mxu0 0.0
  %3416 = vmatpush1.msra.mxu0 0.0
  %3417 = vmatprep.subr.mxu0 0.0
  %3418 = vmatpush1.msra.mxu0 0.0
  %3419 = vmatprep.subr.mxu0 0.0
  %3420 = vmatpush1.msra.mxu0 0.0
  %3421 = vmatprep.subr.mxu0 0.0
  %3422 = vmatpush1.msra.mxu0 0.0
  %3423 = vmatprep.subr.mxu0 0.0
  %3424 = vmatpush1.msra.mxu0 0.0
  %3425 = vmatprep.subr.mxu0 0.0
  %3426 = vmatpush1.msra.mxu0 0.0
  %3427 = vmatprep.subr.mxu0 0.0
  %3428 = vmatpush1.msra.mxu0 0.0
  %3429 = vmatprep.subr.mxu0 0.0
  %3430 = vmatpush1.msra.mxu0 0.0
  %3431 = vmatprep.subr.mxu0 0.0
  %3432 = vmatpush1.msra.mxu0 0.0
  %3433 = vmatprep.subr.mxu0 0.0
  %3434 = vmatpush1.msra.mxu0 0.0
  %3435 = vmatprep.subr.mxu0 0.0
  %3436 = vmatpush1.msra.mxu0 0.0
  %3437 = vmatprep.subr.mxu0 0.0
  %3438 = vmatpush1.msra.mxu0 0.0
  %3439 = vmatprep.subr.mxu0 0.0
  %3440 = vmatpush1.msra.mxu0 0.0
  %3441 = vmatprep.subr.mxu0 0.0
  %3442 = vmatpush1.msra.mxu0 0.0
  %3443 = vmatprep.subr.mxu0 0.0
  %3444 = vmatpush1.msra.mxu0 0.0
  %3445 = vmatprep.subr.mxu0 0.0
  %3446 = vmatpush1.msra.mxu0 0.0
  %3447 = vmatprep.subr.mxu0 0.0
  %3448 = vmatpush1.msra.mxu0 0.0
  %3449 = vmatprep.mubr.f32.mxu0 0.0
  %3450 = vmatmul.mubr.f32.gmra.mrb[0].mxu0 %v3380
  %v3451 = vpop.f32.mrb[0].mxu0
  %v3452 = vadd.f32 %v3377, %v3451
  %v3453 = vpop.f32.mrb[0].mxu0
  %3454 = vmatprep.mubr.f32.mxu0 0.0
  %3455 = vmatmul.mubr.f32.gmra.mrb[0].mxu0 %v3383
  %v3456 = vpop.f32.mrb[0].mxu0
  %v3457 = vadd.f32 %v3377, %v3456
  %v3458 = vpop.f32.mrb[0].mxu0
  %3459 = vdwg.mxu0
  %v3460 = vmax.f32 %v3452, 0.0
  %v3461 = vmax.f32 %v3457, 0.0
  %v3462 = vld [vmem:[%s20] sm:$0xff]
  %v3463 = vld [vmem:[%s20 + $0x8] sm:$0xff]
  %v3464 = vld [vmem:[%s20 + $0x10] sm:$0xff]
  %v3465 = vld [vmem:[%s20 + $0x18] sm:$0xff]
  %v3466 = vld [vmem:[%s20 + $0x20] sm:$0xff]
  %v3467 = vld [vmem:[%s20 + $0x28] sm:$0xff]
  %v3468 = vld [vmem:[%s20 + $0x30] sm:$0xff]
  %v3469 = vld [vmem:[%s20 + $0x38] sm:$0xff]
  %v3470 = vld [vmem:[%s21] sm:$0x1]
  %v3472 = vlaneseq
  %v3473 = vshrl.u32 %v3472, 7
  %v3474 = vsub.s32 0, %v3473
  %v3475 = vrot.slane %v3470, %v3474
  %vm3477 = vcmask 523264
  %v3479 = vsel %vm3477, %v3460, 0
  %v3482 = vsel %vm3477, %v3461, 0
  %3484 = vmatprep.subr.mxu0 0.0
  %3485 = vmatpush1.msra.mxu0 %v3462
  %3486 = vmatprep.subr.mxu0 0.0
  %3487 = vmatpush1.msra.mxu0 %v3463
  %3488 = vmatprep.subr.mxu0 0.0
  %3489 = vmatpush1.msra.mxu0 %v3464
  %3490 = vmatprep.subr.mxu0 0.0
  %3491 = vmatpush1.msra.mxu0 %v3465
  %3492 = vmatprep.subr.mxu0 0.0
  %3493 = vmatpush1.msra.mxu0 %v3466
  %3494 = vmatprep.subr.mxu0 0.0
  %3495 = vmatpush1.msra.mxu0 %v3467
  %3496 = vmatprep.subr.mxu0 0.0
  %3497 = vmatpush1.msra.mxu0 %v3468
  %3498 = vmatprep.subr.mxu0 0.0
  %3499 = vmatpush1.msra.mxu0 %v3469
  %3500 = vmatprep.subr.mxu0 0.0
  %3501 = vmatpush1.msra.mxu0 0.0
  %3502 = vmatprep.subr.mxu0 0.0
  %3503 = vmatpush1.msra.mxu0 0.0
  %3504 = vmatprep.subr.mxu0 0.0
  %3505 = vmatpush1.msra.mxu0 0.0
  %3506 = vmatprep.subr.mxu0 0.0
  %3507 = vmatpush1.msra.mxu0 0.0
  %3508 = vmatprep.subr.mxu0 0.0
  %3509 = vmatpush1.msra.mxu0 0.0
  %3510 = vmatprep.subr.mxu0 0.0
  %3511 = vmatpush1.msra.mxu0 0.0
  %3512 = vmatprep.subr.mxu0 0.0
  %3513 = vmatpush1.msra.mxu0 0.0
  %3514 = vmatprep.subr.mxu0 0.0
  %3515 = vmatpush1.msra.mxu0 0.0
  %3516 = vmatprep.subr.mxu0 0.0
  %3517 = vmatpush1.msra.mxu0 0.0
  %3518 = vmatprep.subr.mxu0 0.0
  %3519 = vmatpush1.msra.mxu0 0.0
  %3520 = vmatprep.subr.mxu0 0.0
  %3521 = vmatpush1.msra.mxu0 0.0
  %3522 = vmatprep.subr.mxu0 0.0
  %3523 = vmatpush1.msra.mxu0 0.0
  %3524 = vmatprep.subr.mxu0 0.0
  %3525 = vmatpush1.msra.mxu0 0.0
  %3526 = vmatprep.subr.mxu0 0.0
  %3527 = vmatpush1.msra.mxu0 0.0
  %3528 = vmatprep.subr.mxu0 0.0
  %3529 = vmatpush1.msra.mxu0 0.0
  %3530 = vmatprep.subr.mxu0 0.0
  %3531 = vmatpush1.msra.mxu0 0.0
  %3532 = vmatprep.subr.mxu0 0.0
  %3533 = vmatpush1.msra.mxu0 0.0
  %3534 = vmatprep.subr.mxu0 0.0
  %3535 = vmatpush1.msra.mxu0 0.0
  %3536 = vmatprep.subr.mxu0 0.0
  %3537 = vmatpush1.msra.mxu0 0.0
  %3538 = vmatprep.subr.mxu0 0.0
  %3539 = vmatpush1.msra.mxu0 0.0
  %3540 = vmatprep.subr.mxu0 0.0
  %3541 = vmatpush1.msra.mxu0 0.0
  %3542 = vmatprep.subr.mxu0 0.0
  %3543 = vmatpush1.msra.mxu0 0.0
  %3544 = vmatprep.subr.mxu0 0.0
  %3545 = vmatpush1.msra.mxu0 0.0
  %3546 = vmatprep.subr.mxu0 0.0
  %3547 = vmatpush1.msra.mxu0 0.0
  %3548 = vmatprep.mubr.f32.mxu0 0.0
  %3549 = vmatmul.mubr.f32.gmra.mrb[0].mxu0 %v3479
  %v3550 = vpop.f32.mrb[0].mxu0
  %v3551 = vadd.f32 %v3475, %v3550
  %v3552 = vpop.f32.mrb[0].mxu0
  %3553 = vmatprep.mubr.f32.mxu0 0.0
  %3554 = vmatmul.mubr.f32.gmra.mrb[0].mxu0 %v3482
  %v3555 = vpop.f32.mrb[0].mxu0
  %v3556 = vadd.f32 %v3475, %v3555
  %v3557 = vpop.f32.mrb[0].mxu0
  %3558 = vdwg.mxu0
  %v3559 = vadd.f32 %v3366, %v3551
  %v3560 = vadd.f32 %v3367, %v3556
  %v3561 = vld [vmem:[%s22] sm:$0x1]
  %v3562 = vld [vmem:[%s23] sm:$0x1]
  %v3563 = vsel %vm92, %v3559, 0.0
  %3564 = vadd.xlane.f32.xlu0 %v3563
  %v3565 = vpop.xlane.xlu0 %3564
  %v3566 = vsel %vm92, %v3560, 0.0
  %3567 = vadd.xlane.f32.xlu0 %v3566
  %v3568 = vpop.xlane.xlu0 %3567
  %v3569 = vmul.f32 %v3565, %v1645
  %v3570 = vmul.f32 %v3568, %v1645
  %v3571 = vsub.f32 %v3559, %v3569
  %v3572 = vsub.f32 %v3560, %v3570
  %v3573 = vmul.f32 %v3571, %v3571
  %v3574 = vmul.f32 %v3572, %v3572
  %v3575 = vsel %vm92, %v3573, 0.0
  %3576 = vadd.xlane.f32.xlu0 %v3575
  %v3577 = vpop.xlane.xlu0 %3576
  %v3578 = vsel %vm92, %v3574, 0.0
  %3579 = vadd.xlane.f32.xlu0 %v3578
  %v3580 = vpop.xlane.xlu0 %3579
  %v3581 = vmul.f32 %v3577, %v1645
  %v3582 = vmul.f32 %v3580, %v1645
  %v3583 = vadd.f32 %v3581, 1e-05
  %v3584 = vadd.f32 %v3582, 1e-05
  %v3585 = vrsqrt.pop %v3583
  %v3586 = vrsqrt.pop %v3584
  %v3587 = vmul.f32 %v3571, %v3585
  %v3588 = vmul.f32 %v3572, %v3586
  %v3590 = vlaneseq
  %v3591 = vshrl.u32 %v3590, 7
  %v3592 = vsub.s32 0, %v3591
  %v3593 = vrot.slane %v3561, %v3592
  %v3595 = vmul.f32 %v3587, %v3593
  %v3596 = vmul.f32 %v3588, %v3593
  %v3598 = vlaneseq
  %v3599 = vshrl.u32 %v3598, 7
  %v3600 = vsub.s32 0, %v3599
  %v3601 = vrot.slane %v3562, %v3600
  %v3603 = vadd.f32 %v3595, %v3601
  %v3604 = vadd.f32 %v3596, %v3601
  %3605 = vst.msk [vmem:[%s24] sm:$0xff] %vm92, %v3603
  %3606 = vst.msk [vmem:[%s24 + $0x8] sm:$0xff] %vm92, %v3604
  // Predicated region
  $region98: #{transformer_forward.7} parent=0 // pred_check
    _
  $region99: #{transformer_forward.7} parent=0 // pred_check_branch
    %3608 = sbr.rel (0) target = $region101
  $region100: #{transformer_forward.7} parent=0 // pred_region
    _
  $region101: #{transformer_forward.7} parent=0 // pred_fallthru
    _
  // Predicated region
  $region102: #{transformer_forward.7} parent=0 // pred_check
    _
  $region103: #{transformer_forward.7} parent=0 // pred_check_branch
    %3610 = sbr.rel (0) target = $region105
  $region104: #{transformer_forward.7} parent=0 // pred_region
    _
  $region105: #{transformer_forward.7} parent=0 // pred_fallthru
    _

</llo_original>
